<compile_context>
chip_gen: v7x
topology: tpu7x:2x2x1
jax: 0.10.0
libtpu: 0.0.40
codegen_flags: <defaults>
</compile_context>

<pallas_src>
import math

import jax
import jax.numpy as jnp
from jax import lax
from jax.experimental import pallas as pl
from jax.experimental.pallas import tpu as pltpu

EPS = 1e-5
LANE = 128
MXU_DTYPE = jnp.bfloat16          # MXU operand dtype (accumulation is f32)


def _round_up(v, m):
    return ((v + m - 1) // m) * m


def _pad_last(a, target):
    pad = target - a.shape[-1]
    if pad == 0:
        return a
    return jnp.pad(a, [(0, 0)] * (a.ndim - 1) + [(0, pad)])


def _pad_cout(c):
    # N (cout) padding: 256-granular for MXU N-utilization on v6e/v7x,
    # 128 for thin layers (avoids 2x padding waste; also the v5e-friendly tile).
    if c <= LANE:
        return LANE
    return _round_up(c, 256)


# -------------------- fused conv kernel (implicit GEMM) ----------------------
#
# Per sample (cout-tile j == 0):
#   act = relu(x * scale + shift)            (BN folded, f32 affine, bf16 store)
#   xp  = zero-halo padded act               (VMEM scratch)
#   col = im2col(xp, stride)  (M, 9*C) bf16  (VMEM scratch, built once)
# Per (sample, cout tile j):
#   out[:, j*tn:(j+1)*tn] = col @ w[j]  (+ residual)       (single MXU matmul)
#   [shortcut[:, ...]     = col[:, 4C:5C] @ wsc[j]]         (center tap = 1x1/stride)

def _make_conv_kernel(H, W, C, Hout, Wout, stride, tn, with_shortcut, with_residual):
    M = Hout * Wout

    def kernel(*refs):
        it = iter(refs)
        x_ref = next(it)                              # (1, H, W, C)        bf16
        scale_ref = next(it)                          # (1, C)              f32
        shift_ref = next(it)                          # (1, C)              f32
        w_ref = next(it)                              # (n_j, 9*C, tn)      bf16 (resident)
        wsc_ref = next(it) if with_shortcut else None # (n_j, C, tn)        bf16 (resident)
        res_ref = next(it) if with_residual else None # (1, Hout, Wout, tn) bf16
        o_ref = next(it)                              # (1, Hout, Wout, tn)
        sc_ref = next(it) if with_shortcut else None  # (1, Hout, Wout, tn) bf16
        xp_ref = next(it)                             # (H+2, W+2, C)       bf16 scratch
        col_ref = next(it)                            # (M, 9*C)            bf16 scratch

        j = pl.program_id(1)

        # ---- per-sample prologue (amortized over all cout tiles) ----
        @pl.when(j == 0)
        def _():
            # Zero only the 1-pixel halo; the interior is overwritten below.
            zr = jnp.zeros((1, W + 2, C), xp_ref.dtype)
            xp_ref[0:1, :, :] = zr
            xp_ref[H + 1:H + 2, :, :] = zr
            zc = jnp.zeros((H + 2, 1, C), xp_ref.dtype)
            xp_ref[:, 0:1, :] = zc
            xp_ref[:, W + 1:W + 2, :] = zc

            # BN affine (f32) + ReLU, then bf16 for the MXU.
            act = jnp.maximum(
                x_ref[0].astype(jnp.float32) * scale_ref[...] + shift_ref[...], 0.0)
            xp_ref[1:H + 1, 1:W + 1, :] = act.astype(xp_ref.dtype)

            # Build the (M, 9*C) im2col slab once (stride applied here).
            for kh in range(3):
                for kw in range(3):
                    t = kh * 3 + kw
                    if stride == 1:
                        sl = xp_ref[kh:kh + Hout, kw:kw + Wout, :]
                    else:
                        sl = xp_ref[pl.ds(kh, Hout, stride),
                                    pl.ds(kw, Wout, stride), :]
                    col_ref[:, t * C:(t + 1) * C] = sl.reshape(M, C)

        # ---- per cout-tile: one deep-K matmul on the MXU ----
        acc = jnp.dot(col_ref[...], w_ref[j],
                      preferred_element_type=jnp.float32)          # (M, tn) f32
        if with_residual:
            acc = acc + res_ref[0].astype(jnp.float32).reshape(M, tn)
        o_ref[...] = acc.reshape(1, Hout, Wout, tn).astype(o_ref.dtype)

        if with_shortcut:
            # 1x1 conv, stride s, pad 0 == center tap columns of the im2col slab.
            sc = jnp.dot(col_ref[:, 4 * C:5 * C], wsc_ref[j],
                         preferred_element_type=jnp.float32)
            sc_ref[...] = sc.reshape(1, Hout, Wout, tn).astype(sc_ref.dtype)

    return kernel


def _fused_conv3x3(x, scale, shift, w, stride, wsc=None, residual=None,
                   out_dtype=jnp.float32):
    """relu(x*scale+shift) -> conv3x3(stride, pad=1) [+residual] [, conv1x1 shortcut].

    x:        (N, H, W, C)        bf16, C multiple of 128
    w:        (n_j, 9*C, tn)      bf16 (cout-tiled)
    wsc:      (n_j, C, tn)        bf16 or None
    residual: (N, Hout, Wout, n_j*tn) bf16 or None
    """
    N, H, W, C = x.shape
    n_j, K9, tn = w.shape
    assert K9 == 9 * C and C % LANE == 0 and tn % LANE == 0
    Coutp = n_j * tn
    Hout = (H - 1) // stride + 1
    Wout = (W - 1) // stride + 1
    M = Hout * Wout
    with_shortcut = wsc is not None
    with_residual = residual is not None

    kernel = _make_conv_kernel(H, W, C, Hout, Wout, stride, tn,
                               with_shortcut, with_residual)

    in_specs = [
        pl.BlockSpec((1, H, W, C), lambda n, j: (n, 0, 0, 0)),
        pl.BlockSpec((1, C), lambda n, j: (0, 0)),
        pl.BlockSpec((1, C), lambda n, j: (0, 0)),
        # resident weight slab: constant block index -> DMA'd once, kept in VMEM
        pl.BlockSpec((n_j, 9 * C, tn), lambda n, j: (0, 0, 0)),
    ]
    inputs = [x, scale, shift, w]
    if with_shortcut:
        in_specs.append(pl.BlockSpec((n_j, C, tn), lambda n, j: (0, 0, 0)))
        inputs.append(wsc)
    if with_residual:
        in_specs.append(pl.BlockSpec((1, Hout, Wout, tn), lambda n, j: (n, 0, 0, j)))
        inputs.append(residual)

    out_spec = pl.BlockSpec((1, Hout, Wout, tn), lambda n, j: (n, 0, 0, j))
    out_shape = jax.ShapeDtypeStruct((N, Hout, Wout, Coutp), out_dtype)
    if with_shortcut:
        out_shape = (out_shape,
                     jax.ShapeDtypeStruct((N, Hout, Wout, Coutp), jnp.bfloat16))
        out_spec = (out_spec,
                    pl.BlockSpec((1, Hout, Wout, tn), lambda n, j: (n, 0, 0, j)))

    # VMEM footprint estimate (bytes): double-buffered blocks + resident weights
    # + scratch.  Capped at 48 MB so the same tiling fits v7x's 64 MiB VMEM
    # (v5e/v6e have 128 MiB and could go higher).
    osz = 4 if out_dtype == jnp.float32 else 2
    est = (2 * H * W * C * 2                     # x blocks
           + 2 * 9 * C * Coutp * 2               # weight slab (conservative x2)
           + (H + 2) * (W + 2) * C * 2           # xp scratch
           + M * 9 * C * 2                       # im2col scratch
           + 2 * M * tn * osz                    # output blocks
           + 4 * C * 4)                          # scale/shift
    if with_shortcut:
        est += 2 * C * Coutp * 2 + 2 * M * tn * 2
    if with_residual:
        est += 2 * M * tn * 2
    vmem_limit = int(min(max(2 * est, 32 * 1024 * 1024), 48 * 1024 * 1024))

    return pl.pallas_call(
        kernel,
        out_shape=out_shape,
        grid=(N, n_j),
        in_specs=in_specs,
        out_specs=out_spec,
        scratch_shapes=[pltpu.VMEM((H + 2, W + 2, C), MXU_DTYPE),
                        pltpu.VMEM((M, 9 * C), MXU_DTYPE)],
        compiler_params=pltpu.CompilerParams(
            # batch axis megacore-shardable; cout-tile axis reuses the
            # per-sample scratch and must stay sequential ("arbitrary").
            dimension_semantics=("parallel", "arbitrary"),
            vmem_limit_bytes=vmem_limit),
    )(*inputs)


# ---------------------------- BasicBlock forward -----------------------------

def basic_block_forward(x_nchw, params, stride, drop_rate=0.0):
    # TODO(synk): F.dropout (drop_rate > 0, training mode) not implemented; eval path only.
    equal_inout = params["equal_inout"]
    x = jnp.transpose(x_nchw, (0, 2, 3, 1)).astype(jnp.float32)      # NCHW -> NHWC
    N, H, W, Cin = x.shape
    Cout = params["conv1_w"].shape[-1]

    Coutp = _pad_cout(Cout)
    tn = min(256, Coutp)
    n_j = Coutp // tn
    if equal_inout:
        assert stride == 1, "identity shortcut requires stride == 1"
        Cinp = Coutp                       # identity residual must line up
    else:
        Cinp = max(_round_up(Cin, LANE), LANE)
    # NOTE: for Cin/Cout << 128 (e.g. this test's 4/8 channels) most of the
    # padded MXU/DMA work is zeros; real WRN widths (160/320/640) are dense.

    def fold_bn(pfx, cp):
        g, b = params[pfx + "_gamma"], params[pfx + "_beta"]
        m, v = params[pfx + "_mean"], params[pfx + "_var"]
        scale = g * lax.rsqrt(v + EPS)
        shift = b - m * scale
        return (_pad_last(scale.reshape(1, -1), cp),
                _pad_last(shift.reshape(1, -1), cp))

    def fold_w3x3(w, cinp, coutp):
        w = jnp.pad(w, ((0, 0), (0, 0),
                        (0, cinp - w.shape[2]), (0, coutp - w.shape[3])))
        w = w.reshape(9 * cinp, coutp)
        return w.reshape(9 * cinp, n_j, tn).transpose(1, 0, 2).astype(MXU_DTYPE)

    scale1, shift1 = fold_bn("bn1", Cinp)
    scale2, shift2 = fold_bn("bn2", Coutp)
    w1 = fold_w3x3(params["conv1_w"], Cinp, Coutp)
    w2 = fold_w3x3(params["conv2_w"], Coutp, Coutp)
    xp = _pad_last(x, Cinp).astype(MXU_DTYPE)          # bf16 kernel input

    if equal_inout:
        # out1 = conv1(relu(bn1(x)));  residual = x  (identity, bf16)
        out1 = _fused_conv3x3(xp, scale1, shift1, w1, stride,
                              out_dtype=jnp.bfloat16)
        residual = xp
    else:
        # out1 = conv1(relu(bn1(x)));  residual = shortcut(relu(bn1(x)))
        wsc = jnp.pad(params["shortcut_w"],
                      ((0, Cinp - Cin), (0, Coutp - Cout)))
        wsc = wsc.reshape(Cinp, n_j, tn).transpose(1, 0, 2).astype(MXU_DTYPE)
        out1, residual = _fused_conv3x3(xp, scale1, shift1, w1, stride, wsc=wsc,
                                        out_dtype=jnp.bfloat16)

    # out = conv2(relu(bn2(out1))) + residual     (fused epilogue), f32 output
    y = _fused_conv3x3(out1, scale2, shift2, w2, 1, residual=residual,
                       out_dtype=jnp.float32)
    y = y[..., :Cout]
    return jnp.transpose(y, (0, 3, 1, 2))                             # -> NCHW


# ----------------------------- params / reference ----------------------------

def init_params(key, in_features, out_features, stride):
    ks = jax.random.split(key, 12)
    p = {"equal_inout": in_features == out_features}
    p["bn1_gamma"] = 1.0 + 0.1 * jax.random.normal(ks[0], (in_features,), jnp.float32)
    p["bn1_beta"] = 0.1 * jax.random.normal(ks[1], (in_features,), jnp.float32)
    p["bn1_mean"] = 0.1 * jax.random.normal(ks[2], (in_features,), jnp.float32)
    p["bn1_var"] = jax.random.uniform(ks[3], (in_features,), jnp.float32, 0.5, 1.5)
    p["bn2_gamma"] = 1.0 + 0.1 * jax.random.normal(ks[4], (out_features,), jnp.float32)
    p["bn2_beta"] = 0.1 * jax.random.normal(ks[5], (out_features,), jnp.float32)
    p["bn2_mean"] = 0.1 * jax.random.normal(ks[6], (out_features,), jnp.float32)
    p["bn2_var"] = jax.random.uniform(ks[7], (out_features,), jnp.float32, 0.5, 1.5)
    s1 = 1.0 / math.sqrt(9 * in_features)
    s2 = 1.0 / math.sqrt(9 * out_features)
    # conv weights stored HWIO (3, 3, Cin, Cout); values are synthetic.
    p["conv1_w"] = s1 * jax.random.normal(ks[8], (3, 3, in_features, out_features), jnp.float32)
    p["conv2_w"] = s2 * jax.random.normal(ks[9], (3, 3, out_features, out_features), jnp.float32)
    if not p["equal_inout"]:
        p["shortcut_w"] = (1.0 / math.sqrt(in_features)) * jax.random.normal(
            ks[10], (in_features, out_features), jnp.float32)
    return p


def reference_forward(x_nchw, params, stride, emulate_bf16=False):
    """Pure-JAX reference (lax.conv).

    emulate_bf16=True mirrors the kernel's rounding points (bf16 input, bf16
    MXU operands, bf16 inter-kernel tensors) with f32 accumulation.
    """
    cd = jnp.bfloat16 if emulate_bf16 else jnp.float32

    def rnd(t):
        return t.astype(jnp.bfloat16).astype(jnp.float32) if emulate_bf16 else t

    x = rnd(jnp.transpose(x_nchw, (0, 2, 3, 1)).astype(jnp.float32))

    def bnr(t, pfx):
        g, b = params[pfx + "_gamma"], params[pfx + "_beta"]
        m, v = params[pfx + "_mean"], params[pfx + "_var"]
        return jnp.maximum((t - m) * g / jnp.sqrt(v + EPS) + b, 0.0)

    def conv(t, w, s, pad):
        return lax.conv_general_dilated(
            t.astype(cd), w.astype(cd), (s, s),
            ((pad, pad), (pad, pad)),
            dimension_numbers=("NHWC", "HWIO", "NHWC"),
            preferred_element_type=jnp.float32)

    act = bnr(x, "bn1")
    out = conv(act, params["conv1_w"], stride, 1)
    out = rnd(out)                                   # out1 stored bf16 between kernels
    out = bnr(out, "bn2")
    out = conv(out, params["conv2_w"], 1, 1)
    if params["equal_inout"]:
        res = x
    else:
        cin, cout = params["shortcut_w"].shape
        res = rnd(conv(act, params["shortcut_w"].reshape(1, 1, cin, cout), stride, 0))
    return jnp.transpose(res + out, (0, 3, 1, 2))


# ----------------------------------- main ------------------------------------

if __name__ == "__main__":
    key = jax.random.PRNGKey(0)
    kx, kp1, kp2 = jax.random.split(key, 3)

    x = jax.random.normal(kx, (2, 4, 16, 16), jnp.float32)   # NCHW, like PyTorch

    # Case 1: in == out, stride 1  (identity shortcut)
    p1 = init_params(kp1, 4, 4, 1)
    y1 = jax.block_until_ready(jax.jit(lambda t: basic_block_forward(t, p1, 1))(x))
    assert y1.shape == (2, 4, 16, 16)
    r1_bf16 = reference_forward(x, p1, 1, emulate_bf16=True)   # same rounding points
    r1_f32 = reference_forward(x, p1, 1)
    assert jnp.allclose(y1, r1_bf16, atol=2e-3, rtol=2e-3), "case 1 mismatch (structure)"
    assert jnp.allclose(y1, r1_f32, atol=1e-1, rtol=1e-1), "case 1 mismatch (f32 sanity)"

    # Case 2: in != out, stride 2  (1x1-conv shortcut, fused into conv1 kernel)
    p2 = init_params(kp2, 4, 8, 2)
    y2 = jax.block_until_ready(jax.jit(lambda t: basic_block_forward(t, p2, 2))(x))
    assert y2.shape == (2, 8, 8, 8)
    r2_bf16 = reference_forward(x, p2, 2, emulate_bf16=True)
    r2_f32 = reference_forward(x, p2, 2)
    assert jnp.allclose(y2, r2_bf16, atol=2e-3, rtol=2e-3), "case 2 mismatch (structure)"
    assert jnp.allclose(y2, r2_f32, atol=1e-1, rtol=1e-1), "case 2 mismatch (f32 sanity)"

    print("KERNEL_OK")
</pallas_src>

<mosaic_0001>
module attributes {stable_mosaic.version = 11 : i64} {
  func.func @kernel(%arg0: i32, %arg1: i32, %arg2: memref<1x16x16x128xbf16, #tpu.memory_space<vmem>>, %arg3: memref<1x128xf32, #tpu.memory_space<vmem>>, %arg4: memref<1x128xf32, #tpu.memory_space<vmem>>, %arg5: memref<1x1152x128xbf16, #tpu.memory_space<vmem>>, %arg6: memref<1x16x16x128xbf16, #tpu.memory_space<vmem>>, %arg7: memref<18x18x128xbf16, #tpu.memory_space<vmem>>, %arg8: memref<256x1152xbf16, #tpu.memory_space<vmem>>) attributes {dimension_semantics = [#tpu.dimension_semantics<parallel>, #tpu.dimension_semantics<arbitrary>], iteration_bounds = array<i64: 2, 1>, scalar_prefetch = 0 : i64, scratch_operands = 2 : i64, tpu.core_type = #tpu.core_type<tc>, window_params = [{transform_indices = @transform_0, window_bounds = array<i64: 1, 16, 16, 128>}, {pipeline_mode = #tpu.pipeline_mode<synchronous>, transform_indices = @transform_1, window_bounds = array<i64: 1, 128>}, {pipeline_mode = #tpu.pipeline_mode<synchronous>, transform_indices = @transform_2, window_bounds = array<i64: 1, 128>}, {pipeline_mode = #tpu.pipeline_mode<synchronous>, transform_indices = @transform_3, window_bounds = array<i64: 1, 1152, 128>}, {transform_indices = @transform_4, window_bounds = array<i64: 1, 16, 16, 128>}]} {
    %c0_i32 = arith.constant 0 : i32
    %0 = arith.cmpi eq, %arg1, %c0_i32 : i32
    %1 = arith.extui %0 : i1 to i32
    %c0_i32_0 = arith.constant 0 : i32
    %2 = arith.cmpi ne, %1, %c0_i32_0 : i32
    scf.if %2 {
      %cst_8 = arith.constant 0.000000e+00 : bf16
      %11 = vector.broadcast %cst_8 : bf16 to vector<1x18x128xbf16>
      %c0_9 = arith.constant 0 : index
      %c0_10 = arith.constant 0 : index
      %c0_11 = arith.constant 0 : index
      %12 = vector.load %arg7[%c0_9, %c0_10, %c0_11] : memref<18x18x128xbf16, #tpu.memory_space<vmem>>, vector<1x18x128xbf16>
      tpu.vector_store %arg7[%c0_9, %c0_10, %c0_11], %11 {strides = array<i32>} : memref<18x18x128xbf16, #tpu.memory_space<vmem>>, vector<1x18x128xbf16>,
      %c17 = arith.constant 17 : index
      %c0_12 = arith.constant 0 : index
      %c0_13 = arith.constant 0 : index
      %13 = vector.load %arg7[%c17, %c0_12, %c0_13] : memref<18x18x128xbf16, #tpu.memory_space<vmem>>, vector<1x18x128xbf16>
      tpu.vector_store %arg7[%c17, %c0_12, %c0_13], %11 {strides = array<i32>} : memref<18x18x128xbf16, #tpu.memory_space<vmem>>, vector<1x18x128xbf16>,
      %cst_14 = arith.constant 0.000000e+00 : bf16
      %14 = vector.broadcast %cst_14 : bf16 to vector<18x1x128xbf16>
      %c0_15 = arith.constant 0 : index
      %c0_16 = arith.constant 0 : index
      %c0_17 = arith.constant 0 : index
      %15 = vector.load %arg7[%c0_15, %c0_16, %c0_17] : memref<18x18x128xbf16, #tpu.memory_space<vmem>>, vector<18x1x128xbf16>
      tpu.vector_store %arg7[%c0_15, %c0_16, %c0_17], %14 {strides = array<i32>} : memref<18x18x128xbf16, #tpu.memory_space<vmem>>, vector<18x1x128xbf16>,
      %c0_18 = arith.constant 0 : index
      %c17_19 = arith.constant 17 : index
      %c0_20 = arith.constant 0 : index
      %16 = vector.load %arg7[%c0_18, %c17_19, %c0_20] : memref<18x18x128xbf16, #tpu.memory_space<vmem>>, vector<18x1x128xbf16>
      tpu.vector_store %arg7[%c0_18, %c17_19, %c0_20], %14 {strides = array<i32>} : memref<18x18x128xbf16, #tpu.memory_space<vmem>>, vector<18x1x128xbf16>,
      %c0_21 = arith.constant 0 : index
      %c0_22 = arith.constant 0 : index
      %c0_23 = arith.constant 0 : index
      %c0_24 = arith.constant 0 : index
      %17 = vector.load %arg2[%c0_21, %c0_22, %c0_23, %c0_24] : memref<1x16x16x128xbf16, #tpu.memory_space<vmem>>, vector<1x16x16x128xbf16>
      %18 = vector.shape_cast %17 : vector<1x16x16x128xbf16> to vector<16x16x128xbf16>
      %19 = arith.extf %18 : vector<16x16x128xbf16> to vector<16x16x128xf32>
      %c0_25 = arith.constant 0 : index
      %c0_26 = arith.constant 0 : index
      %20 = vector.load %arg3[%c0_25, %c0_26] : memref<1x128xf32, #tpu.memory_space<vmem>>, vector<1x128xf32>
      %21 = vector.shape_cast %20 : vector<1x128xf32> to vector<1x1x128xf32>
      %22 = vector.broadcast %21 : vector<1x1x128xf32> to vector<16x16x128xf32>
      %23 = arith.mulf %19, %22 : vector<16x16x128xf32>
      %c0_27 = arith.constant 0 : index
      %c0_28 = arith.constant 0 : index
      %24 = vector.load %arg4[%c0_27, %c0_28] : memref<1x128xf32, #tpu.memory_space<vmem>>, vector<1x128xf32>
      %25 = vector.shape_cast %24 : vector<1x128xf32> to vector<1x1x128xf32>
      %26 = vector.broadcast %25 : vector<1x1x128xf32> to vector<16x16x128xf32>
      %27 = arith.addf %23, %26 : vector<16x16x128xf32>
      %cst_29 = arith.constant 0.000000e+00 : f32
      %28 = vector.broadcast %cst_29 : f32 to vector<16x16x128xf32>
      %29 = arith.maximumf %27, %28 : vector<16x16x128xf32>
      %30 = arith.truncf %29 : vector<16x16x128xf32> to vector<16x16x128xbf16>
      %c1 = arith.constant 1 : index
      %c1_30 = arith.constant 1 : index
      %c0_31 = arith.constant 0 : index
      %31 = vector.load %arg7[%c1, %c1_30, %c0_31] : memref<18x18x128xbf16, #tpu.memory_space<vmem>>, vector<16x16x128xbf16>
      tpu.vector_store %arg7[%c1, %c1_30, %c0_31], %30 {strides = array<i32>} : memref<18x18x128xbf16, #tpu.memory_space<vmem>>, vector<16x16x128xbf16>,
      %c0_32 = arith.constant 0 : index
      %c0_33 = arith.constant 0 : index
      %c0_34 = arith.constant 0 : index
      %32 = vector.load %arg7[%c0_32, %c0_33, %c0_34] : memref<18x18x128xbf16, #tpu.memory_space<vmem>>, vector<16x16x128xbf16>
      %33 = vector.shape_cast %32 : vector<16x16x128xbf16> to vector<256x128xbf16>
      %c0_35 = arith.constant 0 : index
      %c0_36 = arith.constant 0 : index
      %34 = vector.load %arg8[%c0_35, %c0_36] : memref<256x1152xbf16, #tpu.memory_space<vmem>>, vector<256x128xbf16>
      tpu.vector_store %arg8[%c0_35, %c0_36], %33 {strides = array<i32>} : memref<256x1152xbf16, #tpu.memory_space<vmem>>, vector<256x128xbf16>,
      %c0_37 = arith.constant 0 : index
      %c1_38 = arith.constant 1 : index
      %c0_39 = arith.constant 0 : index
      %35 = vector.load %arg7[%c0_37, %c1_38, %c0_39] : memref<18x18x128xbf16, #tpu.memory_space<vmem>>, vector<16x16x128xbf16>
      %36 = vector.shape_cast %35 : vector<16x16x128xbf16> to vector<256x128xbf16>
      %c0_40 = arith.constant 0 : index
      %c128 = arith.constant 128 : index
      %37 = vector.load %arg8[%c0_40, %c128] : memref<256x1152xbf16, #tpu.memory_space<vmem>>, vector<256x128xbf16>
      tpu.vector_store %arg8[%c0_40, %c128], %36 {strides = array<i32>} : memref<256x1152xbf16, #tpu.memory_space<vmem>>, vector<256x128xbf16>,
      %c0_41 = arith.constant 0 : index
      %c2 = arith.constant 2 : index
      %c0_42 = arith.constant 0 : index
      %38 = vector.load %arg7[%c0_41, %c2, %c0_42] : memref<18x18x128xbf16, #tpu.memory_space<vmem>>, vector<16x16x128xbf16>
      %39 = vector.shape_cast %38 : vector<16x16x128xbf16> to vector<256x128xbf16>
      %c0_43 = arith.constant 0 : index
      %c256 = arith.constant 256 : index
      %40 = vector.load %arg8[%c0_43, %c256] : memref<256x1152xbf16, #tpu.memory_space<vmem>>, vector<256x128xbf16>
      tpu.vector_store %arg8[%c0_43, %c256], %39 {strides = array<i32>} : memref<256x1152xbf16, #tpu.memory_space<vmem>>, vector<256x128xbf16>,
      %c1_44 = arith.constant 1 : index
      %c0_45 = arith.constant 0 : index
      %c0_46 = arith.constant 0 : index
      %41 = vector.load %arg7[%c1_44, %c0_45, %c0_46] : memref<18x18x128xbf16, #tpu.memory_space<vmem>>, vector<16x16x128xbf16>
      %42 = vector.shape_cast %41 : vector<16x16x128xbf16> to vector<256x128xbf16>
      %c0_47 = arith.constant 0 : index
      %c384 = arith.constant 384 : index
      %43 = vector.load %arg8[%c0_47, %c384] : memref<256x1152xbf16, #tpu.memory_space<vmem>>, vector<256x128xbf16>
      tpu.vector_store %arg8[%c0_47, %c384], %42 {strides = array<i32>} : memref<256x1152xbf16, #tpu.memory_space<vmem>>, vector<256x128xbf16>,
      %c1_48 = arith.constant 1 : index
      %c1_49 = arith.constant 1 : index
      %c0_50 = arith.constant 0 : index
      %44 = vector.load %arg7[%c1_48, %c1_49, %c0_50] : memref<18x18x128xbf16, #tpu.memory_space<vmem>>, vector<16x16x128xbf16>
      %45 = vector.shape_cast %44 : vector<16x16x128xbf16> to vector<256x128xbf16>
      %c0_51 = arith.constant 0 : index
      %c512 = arith.constant 512 : index
      %46 = vector.load %arg8[%c0_51, %c512] : memref<256x1152xbf16, #tpu.memory_space<vmem>>, vector<256x128xbf16>
      tpu.vector_store %arg8[%c0_51, %c512], %45 {strides = array<i32>} : memref<256x1152xbf16, #tpu.memory_space<vmem>>, vector<256x128xbf16>,
      %c1_52 = arith.constant 1 : index
      %c2_53 = arith.constant 2 : index
      %c0_54 = arith.constant 0 : index
      %47 = vector.load %arg7[%c1_52, %c2_53, %c0_54] : memref<18x18x128xbf16, #tpu.memory_space<vmem>>, vector<16x16x128xbf16>
      %48 = vector.shape_cast %47 : vector<16x16x128xbf16> to vector<256x128xbf16>
      %c0_55 = arith.constant 0 : index
      %c640 = arith.constant 640 : index
      %49 = vector.load %arg8[%c0_55, %c640] : memref<256x1152xbf16, #tpu.memory_space<vmem>>, vector<256x128xbf16>
      tpu.vector_store %arg8[%c0_55, %c640], %48 {strides = array<i32>} : memref<256x1152xbf16, #tpu.memory_space<vmem>>, vector<256x128xbf16>,
      %c2_56 = arith.constant 2 : index
      %c0_57 = arith.constant 0 : index
      %c0_58 = arith.constant 0 : index
      %50 = vector.load %arg7[%c2_56, %c0_57, %c0_58] : memref<18x18x128xbf16, #tpu.memory_space<vmem>>, vector<16x16x128xbf16>
      %51 = vector.shape_cast %50 : vector<16x16x128xbf16> to vector<256x128xbf16>
      %c0_59 = arith.constant 0 : index
      %c768 = arith.constant 768 : index
      %52 = vector.load %arg8[%c0_59, %c768] : memref<256x1152xbf16, #tpu.memory_space<vmem>>, vector<256x128xbf16>
      tpu.vector_store %arg8[%c0_59, %c768], %51 {strides = array<i32>} : memref<256x1152xbf16, #tpu.memory_space<vmem>>, vector<256x128xbf16>,
      %c2_60 = arith.constant 2 : index
      %c1_61 = arith.constant 1 : index
      %c0_62 = arith.constant 0 : index
      %53 = vector.load %arg7[%c2_60, %c1_61, %c0_62] : memref<18x18x128xbf16, #tpu.memory_space<vmem>>, vector<16x16x128xbf16>
      %54 = vector.shape_cast %53 : vector<16x16x128xbf16> to vector<256x128xbf16>
      %c0_63 = arith.constant 0 : index
      %c896 = arith.constant 896 : index
      %55 = vector.load %arg8[%c0_63, %c896] : memref<256x1152xbf16, #tpu.memory_space<vmem>>, vector<256x128xbf16>
      tpu.vector_store %arg8[%c0_63, %c896], %54 {strides = array<i32>} : memref<256x1152xbf16, #tpu.memory_space<vmem>>, vector<256x128xbf16>,
      %c2_64 = arith.constant 2 : index
      %c2_65 = arith.constant 2 : index
      %c0_66 = arith.constant 0 : index
      %56 = vector.load %arg7[%c2_64, %c2_65, %c0_66] : memref<18x18x128xbf16, #tpu.memory_space<vmem>>, vector<16x16x128xbf16>
      %57 = vector.shape_cast %56 : vector<16x16x128xbf16> to vector<256x128xbf16>
      %c0_67 = arith.constant 0 : index
      %c1024 = arith.constant 1024 : index
      %58 = vector.load %arg8[%c0_67, %c1024] : memref<256x1152xbf16, #tpu.memory_space<vmem>>, vector<256x128xbf16>
      tpu.vector_store %arg8[%c0_67, %c1024], %57 {strides = array<i32>} : memref<256x1152xbf16, #tpu.memory_space<vmem>>, vector<256x128xbf16>,
    } else {
    }
    %c0 = arith.constant 0 : index
    %c0_1 = arith.constant 0 : index
    %3 = vector.load %arg8[%c0, %c0_1] : memref<256x1152xbf16, #tpu.memory_space<vmem>>, vector<256x1152xbf16>
    %4 = arith.index_cast %arg1 : i32 to index
    %c0_2 = arith.constant 0 : index
    %c0_3 = arith.constant 0 : index
    %5 = vector.load %arg5[%4, %c0_2, %c0_3] : memref<1x1152x128xbf16, #tpu.memory_space<vmem>>, vector<1x1152x128xbf16>
    %6 = vector.shape_cast %5 : vector<1x1152x128xbf16> to vector<1152x128xbf16>
    %cst = arith.constant dense<0.000000e+00> : vector<256x128xf32>
    %7 = tpu.matmul %3, %6, %cst {dimension_numbers = #tpu.dot_dimension_numbers<[1], [0], [0], [1], [0, 0, 1, 1], [], []>} : vector<256x1152xbf16>, vector<1152x128xbf16>, vector<256x128xf32> -> vector<256x128xf32>
    %8 = vector.shape_cast %7 : vector<256x128xf32> to vector<1x16x16x128xf32>
    %9 = arith.truncf %8 : vector<1x16x16x128xf32> to vector<1x16x16x128xbf16>
    %c0_4 = arith.constant 0 : index
    %c0_5 = arith.constant 0 : index
    %c0_6 = arith.constant 0 : index
    %c0_7 = arith.constant 0 : index
    %10 = vector.load %arg6[%c0_4, %c0_5, %c0_6, %c0_7] : memref<1x16x16x128xbf16, #tpu.memory_space<vmem>>, vector<1x16x16x128xbf16>
    tpu.vector_store %arg6[%c0_4, %c0_5, %c0_6, %c0_7], %9 {strides = array<i32>} : memref<1x16x16x128xbf16, #tpu.memory_space<vmem>>, vector<1x16x16x128xbf16>,
    return
  }
  func.func @transform_0(%arg0: i32, %arg1: i32) -> (i32, i32, i32, i32) {
    %c0_i32 = arith.constant 0 : i32
    %c0_i32_0 = arith.constant 0 : i32
    %c0_i32_1 = arith.constant 0 : i32
    %c0_i32_2 = arith.constant 0 : i32
    return %arg0, %c0_i32, %c0_i32_0, %c0_i32_1 : i32, i32, i32, i32
  }
  func.func @transform_1(%arg0: i32, %arg1: i32) -> (i32, i32) {
    %c0_i32 = arith.constant 0 : i32
    %c0_i32_0 = arith.constant 0 : i32
    %c0_i32_1 = arith.constant 0 : i32
    return %c0_i32, %c0_i32_0 : i32, i32
  }
  func.func @transform_2(%arg0: i32, %arg1: i32) -> (i32, i32) {
    %c0_i32 = arith.constant 0 : i32
    %c0_i32_0 = arith.constant 0 : i32
    %c0_i32_1 = arith.constant 0 : i32
    return %c0_i32, %c0_i32_0 : i32, i32
  }
  func.func @transform_3(%arg0: i32, %arg1: i32) -> (i32, i32, i32) {
    %c0_i32 = arith.constant 0 : i32
    %c0_i32_0 = arith.constant 0 : i32
    %c0_i32_1 = arith.constant 0 : i32
    %c0_i32_2 = arith.constant 0 : i32
    return %c0_i32, %c0_i32_0, %c0_i32_1 : i32, i32, i32
  }
  func.func @transform_4(%arg0: i32, %arg1: i32) -> (i32, i32, i32, i32) {
    %c0_i32 = arith.constant 0 : i32
    %c0_i32_0 = arith.constant 0 : i32
    %c0_i32_1 = arith.constant 0 : i32
    return %arg0, %c0_i32, %c0_i32_0, %arg1 : i32, i32, i32, i32
  }
}

module attributes {stable_mosaic.version = 11 : i64} {
  func.func @kernel(%arg0: i32, %arg1: i32, %arg2: memref<1x16x16x128xbf16, #tpu.memory_space<vmem>>, %arg3: memref<1x128xf32, #tpu.memory_space<vmem>>, %arg4: memref<1x128xf32, #tpu.memory_space<vmem>>, %arg5: memref<1x1152x128xbf16, #tpu.memory_space<vmem>>, %arg6: memref<1x16x16x128xbf16, #tpu.memory_space<vmem>>, %arg7: memref<1x16x16x128xf32, #tpu.memory_space<vmem>>, %arg8: memref<18x18x128xbf16, #tpu.memory_space<vmem>>, %arg9: memref<256x1152xbf16, #tpu.memory_space<vmem>>) attributes {dimension_semantics = [#tpu.dimension_semantics<parallel>, #tpu.dimension_semantics<arbitrary>], iteration_bounds = array<i64: 2, 1>, scalar_prefetch = 0 : i64, scratch_operands = 2 : i64, tpu.core_type = #tpu.core_type<tc>, window_params = [{transform_indices = @transform_0, window_bounds = array<i64: 1, 16, 16, 128>}, {pipeline_mode = #tpu.pipeline_mode<synchronous>, transform_indices = @transform_1, window_bounds = array<i64: 1, 128>}, {pipeline_mode = #tpu.pipeline_mode<synchronous>, transform_indices = @transform_2, window_bounds = array<i64: 1, 128>}, {pipeline_mode = #tpu.pipeline_mode<synchronous>, transform_indices = @transform_3, window_bounds = array<i64: 1, 1152, 128>}, {transform_indices = @transform_4, window_bounds = array<i64: 1, 16, 16, 128>}, {transform_indices = @transform_5, window_bounds = array<i64: 1, 16, 16, 128>}]} {
    %c0_i32 = arith.constant 0 : i32
    %0 = arith.cmpi eq, %arg1, %c0_i32 : i32
    %1 = arith.extui %0 : i1 to i32
    %c0_i32_0 = arith.constant 0 : i32
    %2 = arith.cmpi ne, %1, %c0_i32_0 : i32
    scf.if %2 {
      %cst_12 = arith.constant 0.000000e+00 : bf16
      %15 = vector.broadcast %cst_12 : bf16 to vector<1x18x128xbf16>
      %c0_13 = arith.constant 0 : index
      %c0_14 = arith.constant 0 : index
      %c0_15 = arith.constant 0 : index
      %16 = vector.load %arg8[%c0_13, %c0_14, %c0_15] : memref<18x18x128xbf16, #tpu.memory_space<vmem>>, vector<1x18x128xbf16>
      tpu.vector_store %arg8[%c0_13, %c0_14, %c0_15], %15 {strides = array<i32>} : memref<18x18x128xbf16, #tpu.memory_space<vmem>>, vector<1x18x128xbf16>,
      %c17 = arith.constant 17 : index
      %c0_16 = arith.constant 0 : index
      %c0_17 = arith.constant 0 : index
      %17 = vector.load %arg8[%c17, %c0_16, %c0_17] : memref<18x18x128xbf16, #tpu.memory_space<vmem>>, vector<1x18x128xbf16>
      tpu.vector_store %arg8[%c17, %c0_16, %c0_17], %15 {strides = array<i32>} : memref<18x18x128xbf16, #tpu.memory_space<vmem>>, vector<1x18x128xbf16>,
      %cst_18 = arith.constant 0.000000e+00 : bf16
      %18 = vector.broadcast %cst_18 : bf16 to vector<18x1x128xbf16>
      %c0_19 = arith.constant 0 : index
      %c0_20 = arith.constant 0 : index
      %c0_21 = arith.constant 0 : index
      %19 = vector.load %arg8[%c0_19, %c0_20, %c0_21] : memref<18x18x128xbf16, #tpu.memory_space<vmem>>, vector<18x1x128xbf16>
      tpu.vector_store %arg8[%c0_19, %c0_20, %c0_21], %18 {strides = array<i32>} : memref<18x18x128xbf16, #tpu.memory_space<vmem>>, vector<18x1x128xbf16>,
      %c0_22 = arith.constant 0 : index
      %c17_23 = arith.constant 17 : index
      %c0_24 = arith.constant 0 : index
      %20 = vector.load %arg8[%c0_22, %c17_23, %c0_24] : memref<18x18x128xbf16, #tpu.memory_space<vmem>>, vector<18x1x128xbf16>
      tpu.vector_store %arg8[%c0_22, %c17_23, %c0_24], %18 {strides = array<i32>} : memref<18x18x128xbf16, #tpu.memory_space<vmem>>, vector<18x1x128xbf16>,
      %c0_25 = arith.constant 0 : index
      %c0_26 = arith.constant 0 : index
      %c0_27 = arith.constant 0 : index
      %c0_28 = arith.constant 0 : index
      %21 = vector.load %arg2[%c0_25, %c0_26, %c0_27, %c0_28] : memref<1x16x16x128xbf16, #tpu.memory_space<vmem>>, vector<1x16x16x128xbf16>
      %22 = vector.shape_cast %21 : vector<1x16x16x128xbf16> to vector<16x16x128xbf16>
      %23 = arith.extf %22 : vector<16x16x128xbf16> to vector<16x16x128xf32>
      %c0_29 = arith.constant 0 : index
      %c0_30 = arith.constant 0 : index
      %24 = vector.load %arg3[%c0_29, %c0_30] : memref<1x128xf32, #tpu.memory_space<vmem>>, vector<1x128xf32>
      %25 = vector.shape_cast %24 : vector<1x128xf32> to vector<1x1x128xf32>
      %26 = vector.broadcast %25 : vector<1x1x128xf32> to vector<16x16x128xf32>
      %27 = arith.mulf %23, %26 : vector<16x16x128xf32>
      %c0_31 = arith.constant 0 : index
      %c0_32 = arith.constant 0 : index
      %28 = vector.load %arg4[%c0_31, %c0_32] : memref<1x128xf32, #tpu.memory_space<vmem>>, vector<1x128xf32>
      %29 = vector.shape_cast %28 : vector<1x128xf32> to vector<1x1x128xf32>
      %30 = vector.broadcast %29 : vector<1x1x128xf32> to vector<16x16x128xf32>
      %31 = arith.addf %27, %30 : vector<16x16x128xf32>
      %cst_33 = arith.constant 0.000000e+00 : f32
      %32 = vector.broadcast %cst_33 : f32 to vector<16x16x128xf32>
      %33 = arith.maximumf %31, %32 : vector<16x16x128xf32>
      %34 = arith.truncf %33 : vector<16x16x128xf32> to vector<16x16x128xbf16>
      %c1 = arith.constant 1 : index
      %c1_34 = arith.constant 1 : index
      %c0_35 = arith.constant 0 : index
      %35 = vector.load %arg8[%c1, %c1_34, %c0_35] : memref<18x18x128xbf16, #tpu.memory_space<vmem>>, vector<16x16x128xbf16>
      tpu.vector_store %arg8[%c1, %c1_34, %c0_35], %34 {strides = array<i32>} : memref<18x18x128xbf16, #tpu.memory_space<vmem>>, vector<16x16x128xbf16>,
      %c0_36 = arith.constant 0 : index
      %c0_37 = arith.constant 0 : index
      %c0_38 = arith.constant 0 : index
      %36 = vector.load %arg8[%c0_36, %c0_37, %c0_38] : memref<18x18x128xbf16, #tpu.memory_space<vmem>>, vector<16x16x128xbf16>
      %37 = vector.shape_cast %36 : vector<16x16x128xbf16> to vector<256x128xbf16>
      %c0_39 = arith.constant 0 : index
      %c0_40 = arith.constant 0 : index
      %38 = vector.load %arg9[%c0_39, %c0_40] : memref<256x1152xbf16, #tpu.memory_space<vmem>>, vector<256x128xbf16>
      tpu.vector_store %arg9[%c0_39, %c0_40], %37 {strides = array<i32>} : memref<256x1152xbf16, #tpu.memory_space<vmem>>, vector<256x128xbf16>,
      %c0_41 = arith.constant 0 : index
      %c1_42 = arith.constant 1 : index
      %c0_43 = arith.constant 0 : index
      %39 = vector.load %arg8[%c0_41, %c1_42, %c0_43] : memref<18x18x128xbf16, #tpu.memory_space<vmem>>, vector<16x16x128xbf16>
      %40 = vector.shape_cast %39 : vector<16x16x128xbf16> to vector<256x128xbf16>
      %c0_44 = arith.constant 0 : index
      %c128 = arith.constant 128 : index
      %41 = vector.load %arg9[%c0_44, %c128] : memref<256x1152xbf16, #tpu.memory_space<vmem>>, vector<256x128xbf16>
      tpu.vector_store %arg9[%c0_44, %c128], %40 {strides = array<i32>} : memref<256x1152xbf16, #tpu.memory_space<vmem>>, vector<256x128xbf16>,
      %c0_45 = arith.constant 0 : index
      %c2 = arith.constant 2 : index
      %c0_46 = arith.constant 0 : index
      %42 = vector.load %arg8[%c0_45, %c2, %c0_46] : memref<18x18x128xbf16, #tpu.memory_space<vmem>>, vector<16x16x128xbf16>
      %43 = vector.shape_cast %42 : vector<16x16x128xbf16> to vector<256x128xbf16>
      %c0_47 = arith.constant 0 : index
      %c256 = arith.constant 256 : index
      %44 = vector.load %arg9[%c0_47, %c256] : memref<256x1152xbf16, #tpu.memory_space<vmem>>, vector<256x128xbf16>
      tpu.vector_store %arg9[%c0_47, %c256], %43 {strides = array<i32>} : memref<256x1152xbf16, #tpu.memory_space<vmem>>, vector<256x128xbf16>,
      %c1_48 = arith.constant 1 : index
      %c0_49 = arith.constant 0 : index
      %c0_50 = arith.constant 0 : index
      %45 = vector.load %arg8[%c1_48, %c0_49, %c0_50] : memref<18x18x128xbf16, #tpu.memory_space<vmem>>, vector<16x16x128xbf16>
      %46 = vector.shape_cast %45 : vector<16x16x128xbf16> to vector<256x128xbf16>
      %c0_51 = arith.constant 0 : index
      %c384 = arith.constant 384 : index
      %47 = vector.load %arg9[%c0_51, %c384] : memref<256x1152xbf16, #tpu.memory_space<vmem>>, vector<256x128xbf16>
      tpu.vector_store %arg9[%c0_51, %c384], %46 {strides = array<i32>} : memref<256x1152xbf16, #tpu.memory_space<vmem>>, vector<256x128xbf16>,
      %c1_52 = arith.constant 1 : index
      %c1_53 = arith.constant 1 : index
      %c0_54 = arith.constant 0 : index
      %48 = vector.load %arg8[%c1_52, %c1_53, %c0_54] : memref<18x18x128xbf16, #tpu.memory_space<vmem>>, vector<16x16x128xbf16>
      %49 = vector.shape_cast %48 : vector<16x16x128xbf16> to vector<256x128xbf16>
      %c0_55 = arith.constant 0 : index
      %c512 = arith.constant 512 : index
      %50 = vector.load %arg9[%c0_55, %c512] : memref<256x1152xbf16, #tpu.memory_space<vmem>>, vector<256x128xbf16>
      tpu.vector_store %arg9[%c0_55, %c512], %49 {strides = array<i32>} : memref<256x1152xbf16, #tpu.memory_space<vmem>>, vector<256x128xbf16>,
      %c1_56 = arith.constant 1 : index
      %c2_57 = arith.constant 2 : index
      %c0_58 = arith.constant 0 : index
      %51 = vector.load %arg8[%c1_56, %c2_57, %c0_58] : memref<18x18x128xbf16, #tpu.memory_space<vmem>>, vector<16x16x128xbf16>
      %52 = vector.shape_cast %51 : vector<16x16x128xbf16> to vector<256x128xbf16>
      %c0_59 = arith.constant 0 : index
      %c640 = arith.constant 640 : index
      %53 = vector.load %arg9[%c0_59, %c640] : memref<256x1152xbf16, #tpu.memory_space<vmem>>, vector<256x128xbf16>
      tpu.vector_store %arg9[%c0_59, %c640], %52 {strides = array<i32>} : memref<256x1152xbf16, #tpu.memory_space<vmem>>, vector<256x128xbf16>,
      %c2_60 = arith.constant 2 : index
      %c0_61 = arith.constant 0 : index
      %c0_62 = arith.constant 0 : index
      %54 = vector.load %arg8[%c2_60, %c0_61, %c0_62] : memref<18x18x128xbf16, #tpu.memory_space<vmem>>, vector<16x16x128xbf16>
      %55 = vector.shape_cast %54 : vector<16x16x128xbf16> to vector<256x128xbf16>
      %c0_63 = arith.constant 0 : index
      %c768 = arith.constant 768 : index
      %56 = vector.load %arg9[%c0_63, %c768] : memref<256x1152xbf16, #tpu.memory_space<vmem>>, vector<256x128xbf16>
      tpu.vector_store %arg9[%c0_63, %c768], %55 {strides = array<i32>} : memref<256x1152xbf16, #tpu.memory_space<vmem>>, vector<256x128xbf16>,
      %c2_64 = arith.constant 2 : index
      %c1_65 = arith.constant 1 : index
      %c0_66 = arith.constant 0 : index
      %57 = vector.load %arg8[%c2_64, %c1_65, %c0_66] : memref<18x18x128xbf16, #tpu.memory_space<vmem>>, vector<16x16x128xbf16>
      %58 = vector.shape_cast %57 : vector<16x16x128xbf16> to vector<256x128xbf16>
      %c0_67 = arith.constant 0 : index
      %c896 = arith.constant 896 : index
      %59 = vector.load %arg9[%c0_67, %c896] : memref<256x1152xbf16, #tpu.memory_space<vmem>>, vector<256x128xbf16>
      tpu.vector_store %arg9[%c0_67, %c896], %58 {strides = array<i32>} : memref<256x1152xbf16, #tpu.memory_space<vmem>>, vector<256x128xbf16>,
      %c2_68 = arith.constant 2 : index
      %c2_69 = arith.constant 2 : index
      %c0_70 = arith.constant 0 : index
      %60 = vector.load %arg8[%c2_68, %c2_69, %c0_70] : memref<18x18x128xbf16, #tpu.memory_space<vmem>>, vector<16x16x128xbf16>
      %61 = vector.shape_cast %60 : vector<16x16x128xbf16> to vector<256x128xbf16>
      %c0_71 = arith.constant 0 : index
      %c1024 = arith.constant 1024 : index
      %62 = vector.load %arg9[%c0_71, %c1024] : memref<256x1152xbf16, #tpu.memory_space<vmem>>, vector<256x128xbf16>
      tpu.vector_store %arg9[%c0_71, %c1024], %61 {strides = array<i32>} : memref<256x1152xbf16, #tpu.memory_space<vmem>>, vector<256x128xbf16>,
    } else {
    }
    %c0 = arith.constant 0 : index
    %c0_1 = arith.constant 0 : index
    %3 = vector.load %arg9[%c0, %c0_1] : memref<256x1152xbf16, #tpu.memory_space<vmem>>, vector<256x1152xbf16>
    %4 = arith.index_cast %arg1 : i32 to index
    %c0_2 = arith.constant 0 : index
    %c0_3 = arith.constant 0 : index
    %5 = vector.load %arg5[%4, %c0_2, %c0_3] : memref<1x1152x128xbf16, #tpu.memory_space<vmem>>, vector<1x1152x128xbf16>
    %6 = vector.shape_cast %5 : vector<1x1152x128xbf16> to vector<1152x128xbf16>
    %cst = arith.constant dense<0.000000e+00> : vector<256x128xf32>
    %7 = tpu.matmul %3, %6, %cst {dimension_numbers = #tpu.dot_dimension_numbers<[1], [0], [0], [1], [0, 0, 1, 1], [], []>} : vector<256x1152xbf16>, vector<1152x128xbf16>, vector<256x128xf32> -> vector<256x128xf32>
    %c0_4 = arith.constant 0 : index
    %c0_5 = arith.constant 0 : index
    %c0_6 = arith.constant 0 : index
    %c0_7 = arith.constant 0 : index
    %8 = vector.load %arg6[%c0_4, %c0_5, %c0_6, %c0_7] : memref<1x16x16x128xbf16, #tpu.memory_space<vmem>>, vector<1x16x16x128xbf16>
    %9 = vector.shape_cast %8 : vector<1x16x16x128xbf16> to vector<16x16x128xbf16>
    %10 = arith.extf %9 : vector<16x16x128xbf16> to vector<16x16x128xf32>
    %11 = vector.shape_cast %10 : vector<16x16x128xf32> to vector<256x128xf32>
    %12 = arith.addf %7, %11 : vector<256x128xf32>
    %13 = vector.shape_cast %12 : vector<256x128xf32> to vector<1x16x16x128xf32>
    %c0_8 = arith.constant 0 : index
    %c0_9 = arith.constant 0 : index
    %c0_10 = arith.constant 0 : index
    %c0_11 = arith.constant 0 : index
    %14 = vector.load %arg7[%c0_8, %c0_9, %c0_10, %c0_11] : memref<1x16x16x128xf32, #tpu.memory_space<vmem>>, vector<1x16x16x128xf32>
    tpu.vector_store %arg7[%c0_8, %c0_9, %c0_10, %c0_11], %13 {strides = array<i32>} : memref<1x16x16x128xf32, #tpu.memory_space<vmem>>, vector<1x16x16x128xf32>,
    return
  }
  func.func @transform_0(%arg0: i32, %arg1: i32) -> (i32, i32, i32, i32) {
    %c0_i32 = arith.constant 0 : i32
    %c0_i32_0 = arith.constant 0 : i32
    %c0_i32_1 = arith.constant 0 : i32
    %c0_i32_2 = arith.constant 0 : i32
    return %arg0, %c0_i32, %c0_i32_0, %c0_i32_1 : i32, i32, i32, i32
  }
  func.func @transform_1(%arg0: i32, %arg1: i32) -> (i32, i32) {
    %c0_i32 = arith.constant 0 : i32
    %c0_i32_0 = arith.constant 0 : i32
    %c0_i32_1 = arith.constant 0 : i32
    return %c0_i32, %c0_i32_0 : i32, i32
  }
  func.func @transform_2(%arg0: i32, %arg1: i32) -> (i32, i32) {
    %c0_i32 = arith.constant 0 : i32
    %c0_i32_0 = arith.constant 0 : i32
    %c0_i32_1 = arith.constant 0 : i32
    return %c0_i32, %c0_i32_0 : i32, i32
  }
  func.func @transform_3(%arg0: i32, %arg1: i32) -> (i32, i32, i32) {
    %c0_i32 = arith.constant 0 : i32
    %c0_i32_0 = arith.constant 0 : i32
    %c0_i32_1 = arith.constant 0 : i32
    %c0_i32_2 = arith.constant 0 : i32
    return %c0_i32, %c0_i32_0, %c0_i32_1 : i32, i32, i32
  }
  func.func @transform_4(%arg0: i32, %arg1: i32) -> (i32, i32, i32, i32) {
    %c0_i32 = arith.constant 0 : i32
    %c0_i32_0 = arith.constant 0 : i32
    %c0_i32_1 = arith.constant 0 : i32
    return %arg0, %c0_i32, %c0_i32_0, %arg1 : i32, i32, i32, i32
  }
  func.func @transform_5(%arg0: i32, %arg1: i32) -> (i32, i32, i32, i32) {
    %c0_i32 = arith.constant 0 : i32
    %c0_i32_0 = arith.constant 0 : i32
    %c0_i32_1 = arith.constant 0 : i32
    return %arg0, %c0_i32, %c0_i32_0, %arg1 : i32, i32, i32, i32
  }
}

</mosaic_0001>

<llo_original>
// kernel: _lambda_.2
$region0: #{_lambda_.2}
  #allocation0 [shape = 'u32[]', space=smem, size = 0x4, offset = 0x4, fixed_abs, tag = 'smem constant byte address 0x4 - core index']
  #allocation1 [shape = 'u32[144,128]{1,0:T(1,128)}', space=vmem, size = 0x12000, scoped, tag = 'internal scratch']
  #allocation2 [shape = 'bf16[18,18,128]{2,1,0:T(8,128)(2,1)}', space=vmem, size = 0x1b000, scoped, tag = 'scratch operand']
  #allocation3 [shape = 'bf16[256,1152]{1,0:T(16,128)(2,1)}', space=vmem, size = 0x90000, scoped, tag = 'scratch operand']
  %s0 = inlined_call_operand.vmem [shape: bf16[2,16,16,128], index: 0, kind: input, shape index: {}]
  %s1 = inlined_call_operand.vmem [shape: f32[1,128], index: 1, kind: input, shape index: {}]
  %s2 = inlined_call_operand.vmem [shape: f32[1,128], index: 2, kind: input, shape index: {}]
  %s3 = inlined_call_operand.vmem [shape: bf16[1,1152,128], index: 3, kind: input, shape index: {}]
  %s4 = inlined_call_operand.vmem [shape: bf16[2,16,16,128], index: 4, kind: output, shape index: {}]
  %s5 = sld [smem:[#allocation0]]
  $region53: #{_lambda_.2} parent=0
    _
  %s7 = ssub.s32 1, %s5
  %s8 = scalar_select 0, %s7, %s5
  loop: start=0, step=1, limit=4
  $region2: #{_lambda_.2} parent=0 // loop_pre_header
    _
  $region3: #{_lambda_.2} parent=0 // loop_header
    %s10 = sphi 0, %s14
    %p11 = scmp.ge.s32.totalorder %s10, 4
    %s17 = sphi 0, %s29
    %s18 = sphi 0, %s25
    %s19 = sphi 0, %s17
    %s20 = sphi 0, %s18
    %s21 = sphi 0, %s19
    %s22 = sphi 0, %s20
    %s32 = sphi 0, %s34
    %s35 = sphi 0, %s32
    %s36 = sphi 0, %s35
    %s52 = sphi 0, %s36
    %s56 = sphi 0, %s56
    %s58 = sphi 0, %s56
    %s59 = sphi 0, %s58
    %s73 = sphi 0, %s59
    %s77 = sphi 0, %s77
    %s79 = sphi 0, %s77
    %s80 = sphi 0, %s79
    %s94 = sphi 0, %s80
    %s98 = sphi 0, %s98
    %s100 = sphi 0, %s98
    %s101 = sphi 0, %s100
    %s115 = sphi 0, %s101
    %s123 = sphi 0, %s125
    %s126 = sphi 0, %s123
    %s127 = sphi 0, %s126
    %s143 = sphi 0, %s127
  $region4: #{_lambda_.2} parent=0 // loop_header_branch
    %13 = sbr.rel (%p11) target = $region8
  $region5: #{_lambda_.2} parent=0 // loop_body
    %s15 = ssub.s32 %s10, 1
    %s16 = ssub.s32 %s10, 2
    %s23 = sadd.s32 1, %s18
    %p24 = scmp.ge.s32.totalorder %s23, 1
    %s25 = scalar_select %p24, 0, %s23
    %s26 = sadd.s32 1, %s17
    %s27 = scalar_select %p24, %s26, %s17
    %p28 = scmp.ge.s32.totalorder %s27, 2
    %s29 = scalar_select %p28, 0, %s27
    %s30 = ssub.s32 %s17, %s29
    %p31 = scmp.eq.s32.totalorder %s30, 0
    %s33 = sadd.s32 %s32, 1
    %s34 = scalar_select %p31, %s32, %s33
    %p37 = pneg %p31
    %p38 = scmp.eq.s32.totalorder %s10, 1
    %p39 = por %p37, %p38
    %p40 = scmp.ne.s32.totalorder %s32, %s35
    %p41 = scmp.eq.s32.totalorder %s10, 0
    %p42 = por %p40, %p41
    %p43 = scmp.ne.s32.totalorder %s32, %s35
    %p44 = scmp.eq.s32.totalorder %s15, 1
    %p45 = por %p43, %p44
    %p46 = scmp.ne.s32.totalorder %s35, %s36
    %p47 = scmp.eq.s32.totalorder %s15, 0
    %p48 = por %p46, %p47
    %p49 = scmp.ne.s32.totalorder %s35, %s36
    %p50 = scmp.eq.s32.totalorder %s16, 1
    %p51 = por %p49, %p50
    %p53 = scmp.ne.s32.totalorder %s36, %s52
    %p54 = scmp.eq.s32.totalorder %s16, 0
    %p55 = por %p53, %p54
    %s57 = sadd.s32 %s56, 1
    %p60 = scmp.eq.s32.totalorder %s10, 1
    %p61 = scmp.ne.s32.totalorder %s56, %s58
    %p62 = scmp.eq.s32.totalorder %s10, 0
    %p63 = por %p61, %p62
    %p64 = scmp.ne.s32.totalorder %s56, %s58
    %p65 = scmp.eq.s32.totalorder %s15, 1
    %p66 = por %p64, %p65
    %p67 = scmp.ne.s32.totalorder %s58, %s59
    %p68 = scmp.eq.s32.totalorder %s15, 0
    %p69 = por %p67, %p68
    %p70 = scmp.ne.s32.totalorder %s58, %s59
    %p71 = scmp.eq.s32.totalorder %s16, 1
    %p72 = por %p70, %p71
    %p74 = scmp.ne.s32.totalorder %s59, %s73
    %p75 = scmp.eq.s32.totalorder %s16, 0
    %p76 = por %p74, %p75
    %s78 = sadd.s32 %s77, 1
    %p81 = scmp.eq.s32.totalorder %s10, 1
    %p82 = scmp.ne.s32.totalorder %s77, %s79
    %p83 = scmp.eq.s32.totalorder %s10, 0
    %p84 = por %p82, %p83
    %p85 = scmp.ne.s32.totalorder %s77, %s79
    %p86 = scmp.eq.s32.totalorder %s15, 1
    %p87 = por %p85, %p86
    %p88 = scmp.ne.s32.totalorder %s79, %s80
    %p89 = scmp.eq.s32.totalorder %s15, 0
    %p90 = por %p88, %p89
    %p91 = scmp.ne.s32.totalorder %s79, %s80
    %p92 = scmp.eq.s32.totalorder %s16, 1
    %p93 = por %p91, %p92
    %p95 = scmp.ne.s32.totalorder %s80, %s94
    %p96 = scmp.eq.s32.totalorder %s16, 0
    %p97 = por %p95, %p96
    %s99 = sadd.s32 %s98, 1
    %p102 = scmp.eq.s32.totalorder %s10, 1
    %p103 = scmp.ne.s32.totalorder %s98, %s100
    %p104 = scmp.eq.s32.totalorder %s10, 0
    %p105 = por %p103, %p104
    %p106 = scmp.ne.s32.totalorder %s98, %s100
    %p107 = scmp.eq.s32.totalorder %s15, 1
    %p108 = por %p106, %p107
    %p109 = scmp.ne.s32.totalorder %s100, %s101
    %p110 = scmp.eq.s32.totalorder %s15, 0
    %p111 = por %p109, %p110
    %p112 = scmp.ne.s32.totalorder %s100, %s101
    %p113 = scmp.eq.s32.totalorder %s16, 1
    %p114 = por %p112, %p113
    %p116 = scmp.ne.s32.totalorder %s101, %s115
    %p117 = scmp.eq.s32.totalorder %s16, 0
    %p118 = por %p116, %p117
    %s119 = ssub.s32 %s17, %s29
    %s120 = ssub.s32 %s18, %s25
    %s121 = sor.u32 %s119, %s120
    %p122 = scmp.eq.s32.totalorder %s121, 0
    %s124 = sadd.s32 %s123, 1
    %s125 = scalar_select %p122, %s123, %s124
    %p128 = pneg %p122
    %p129 = scmp.eq.s32.totalorder %s10, 1
    %p130 = por %p128, %p129
    %p131 = scmp.ne.s32.totalorder %s123, %s126
    %p132 = scmp.eq.s32.totalorder %s10, 0
    %p133 = por %p131, %p132
    %p134 = scmp.ne.s32.totalorder %s123, %s126
    %p135 = scmp.eq.s32.totalorder %s15, 1
    %p136 = por %p134, %p135
    %p137 = scmp.ne.s32.totalorder %s126, %s127
    %p138 = scmp.eq.s32.totalorder %s15, 0
    %p139 = por %p137, %p138
    %p140 = scmp.ne.s32.totalorder %s126, %s127
    %p141 = scmp.eq.s32.totalorder %s16, 1
    %p142 = por %p140, %p141
    %p144 = scmp.ne.s32.totalorder %s127, %s143
    %p145 = scmp.eq.s32.totalorder %s16, 0
    %p146 = por %p144, %p145
    %p147 = scmp.le.s32.totalorder 1, %s10
    %p148 = scmp.lt.s32.totalorder %s10, 3
    %p149 = pnand %p147, %p148
    %p150 = pneg %p149
    // Predicated region
    $region9: #{_lambda_.2} parent=5 // pred_check
      _
    $region10: #{_lambda_.2} parent=5 // pred_check_branch
      %152 = sbr.rel (%p149) target = $region12
    $region11: #{_lambda_.2} parent=5 // pred_region
      %s153 = ssub.s32 %s10, 1
      // Predicated region
      $region13: #{_lambda_.2} parent=11 // pred_check
        %p154 = pneg %p69
      $region14: #{_lambda_.2} parent=11 // pred_check_branch
        %156 = sbr.rel (%p154) target = $region16
      $region15: #{_lambda_.2} parent=11 // pred_region
        _
      $region16: #{_lambda_.2} parent=11 // pred_fallthru
        _
      // Predicated region
      $region17: #{_lambda_.2} parent=11 // pred_check
        %p157 = pneg %p90
      $region18: #{_lambda_.2} parent=11 // pred_check_branch
        %159 = sbr.rel (%p157) target = $region20
      $region19: #{_lambda_.2} parent=11 // pred_region
        _
      $region20: #{_lambda_.2} parent=11 // pred_fallthru
        _
      // Predicated region
      $region21: #{_lambda_.2} parent=11 // pred_check
        %p160 = pneg %p111
      $region22: #{_lambda_.2} parent=11 // pred_check_branch
        %162 = sbr.rel (%p160) target = $region24
      $region23: #{_lambda_.2} parent=11 // pred_region
        _
      $region24: #{_lambda_.2} parent=11 // pred_fallthru
        _
    $region12: #{_lambda_.2} parent=5 // pred_fallthru
      _
    %p163 = scmp.lt.s32.totalorder %s10, 2
    // Predicated region
    $region25: #{_lambda_.2} parent=5 // pred_check
      %p164 = pneg %p163
    $region26: #{_lambda_.2} parent=5 // pred_check_branch
      %166 = sbr.rel (%p164) target = $region28
    $region27: #{_lambda_.2} parent=5 // pred_region
      // Predicated region
      $region29: #{_lambda_.2} parent=27 // pred_check
        %p167 = pneg %p42
      $region30: #{_lambda_.2} parent=27 // pred_check_branch
        %169 = sbr.rel (%p167) target = $region32
      $region31: #{_lambda_.2} parent=27 // pred_region
        %p170 = scmp.lt.s32.totalorder %s17, 1
        %s171 = scalar_select %p170, %s17, 1
        %s172 = smul.addr %s171, 32
        %s173 = smul.addr %s172, 4
        %s174 = scalar_lea.vmem %s0, %s173
      $region32: #{_lambda_.2} parent=27 // pred_fallthru
        _
    $region28: #{_lambda_.2} parent=5 // pred_fallthru
      _
    %p175 = scmp.le.s32.totalorder 1, %s10
    %p176 = scmp.lt.s32.totalorder %s10, 3
    %p177 = pnand %p175, %p176
    %p178 = pneg %p177
    // Predicated region
    $region33: #{_lambda_.2} parent=5 // pred_check
      _
    $region34: #{_lambda_.2} parent=5 // pred_check_branch
      %180 = sbr.rel (%p177) target = $region36
    $region35: #{_lambda_.2} parent=5 // pred_region
      %s181 = ssub.s32 %s10, 1
      %p182 = scmp.lt.s32.totalorder %s19, 1
      %s183 = scalar_select %p182, %s19, 1
      %s184 = smul.addr %s183, 32
      %s185 = smul.addr %s184, 4
      %s186 = scalar_lea.vmem %s0, %s185
      %p187 = pneg %p48
      %p188 = pneg %p45
      %p189 = pneg %p69
      %p190 = pneg %p66
      %p191 = pneg %p90
      %p192 = pneg %p87
      %p193 = pneg %p111
      %p194 = pneg %p108
      %p195 = pneg %p139
      %p196 = pneg %p136
      %p197 = scmp.lt.s32.totalorder %s19, 1
      %s198 = scalar_select %p197, %s19, 1
      %p199 = scmp.lt.s32.totalorder %s20, 0
      %s200 = scalar_select %p199, %s20, 0
      %s201 = smul.addr %s198, 32
      %s202 = sadd.s32 %s200, %s201
      %s203 = smul.addr %s202, 4
      %s204 = scalar_lea.vmem %s4, %s203
      %p205 = scmp.lt.s32.totalorder %s19, 1
      %s206 = scalar_select %p205, %s19, 1
      %s207 = smul.addr %s206, 32
      %s208 = smul.addr %s207, 4
      %s209 = scalar_lea.vmem %s0, %s208
      %p210 = scmp.lt.s32.totalorder %s19, 1
      %s211 = scalar_select %p210, %s19, 1
      %p212 = scmp.lt.s32.totalorder %s20, 0
      %s213 = scalar_select %p212, %s20, 0
      %s214 = smul.addr %s211, 32
      %s215 = sadd.s32 %s213, %s214
      %s216 = smul.addr %s215, 4
      %s217 = scalar_lea.vmem %s4, %s216
      %p219 = scmp.eq.s32.totalorder %s20, 0
      // Predicated region
      $region37: #{_lambda_.2} parent=35 // pred_check
        %p220 = pneg %p219
      $region38: #{_lambda_.2} parent=35 // pred_check_branch
        %222 = sbr.rel (%p220) target = $region40
      $region39: #{_lambda_.2} parent=35 // pred_region
        %223 = vst [vmem:[#allocation2] sm:$0xf] 0
        %224 = vst [vmem:[#allocation2 + $0x4] sm:$0xf] 0
        %225 = vst [vmem:[#allocation2 + $0x8] sm:$0x1] 0
        %s226 = scalar_lea.vmem [#allocation2], 204
        %227 = vst [vmem:[%s226] sm:$0xf] 0
        %228 = vst [vmem:[%s226 + $0x4] sm:$0xf] 0
        %229 = vst [vmem:[%s226 + $0x8] sm:$0x1] 0
        %vm230 = vcmask 1040384
        %vm231 = vsmask.f32 256
        %vm232 = vmand %vm230, %vm231
        %v233 = vld [vmem:[#allocation2] sm:$0x1]
        %v234 = vsel %vm232, 0, %v233
        %235 = vst [vmem:[#allocation2] sm:$0x1] %v234
        %v236 = vld [vmem:[#allocation2 + $0xc] sm:$0x1]
        %v237 = vsel %vm232, 0, %v236
        %238 = vst [vmem:[#allocation2 + $0xc] sm:$0x1] %v237
        %v239 = vld [vmem:[#allocation2 + $0x18] sm:$0x1]
        %v240 = vsel %vm232, 0, %v239
        %241 = vst [vmem:[#allocation2 + $0x18] sm:$0x1] %v240
        %v242 = vld [vmem:[#allocation2 + $0x24] sm:$0x1]
        %v243 = vsel %vm232, 0, %v242
        %244 = vst [vmem:[#allocation2 + $0x24] sm:$0x1] %v243
        %v245 = vld [vmem:[#allocation2 + $0x30] sm:$0x1]
        %v246 = vsel %vm232, 0, %v245
        %247 = vst [vmem:[#allocation2 + $0x30] sm:$0x1] %v246
        %v248 = vld [vmem:[#allocation2 + $0x3c] sm:$0x1]
        %v249 = vsel %vm232, 0, %v248
        %250 = vst [vmem:[#allocation2 + $0x3c] sm:$0x1] %v249
        %v251 = vld [vmem:[#allocation2 + $0x48] sm:$0x1]
        %v252 = vsel %vm232, 0, %v251
        %253 = vst [vmem:[#allocation2 + $0x48] sm:$0x1] %v252
        %v254 = vld [vmem:[#allocation2 + $0x54] sm:$0x1]
        %v255 = vsel %vm232, 0, %v254
        %256 = vst [vmem:[#allocation2 + $0x54] sm:$0x1] %v255
        %v257 = vld [vmem:[#allocation2 + $0x60] sm:$0x1]
        %v258 = vsel %vm232, 0, %v257
        %259 = vst [vmem:[#allocation2 + $0x60] sm:$0x1] %v258
        %v260 = vld [vmem:[#allocation2 + $0x6c] sm:$0x1]
        %v261 = vsel %vm232, 0, %v260
        %262 = vst [vmem:[#allocation2 + $0x6c] sm:$0x1] %v261
        %v263 = vld [vmem:[#allocation2 + $0x78] sm:$0x1]
        %v264 = vsel %vm232, 0, %v263
        %265 = vst [vmem:[#allocation2 + $0x78] sm:$0x1] %v264
        %v266 = vld [vmem:[#allocation2 + $0x84] sm:$0x1]
        %v267 = vsel %vm232, 0, %v266
        %268 = vst [vmem:[#allocation2 + $0x84] sm:$0x1] %v267
        %v269 = vld [vmem:[#allocation2 + $0x90] sm:$0x1]
        %v270 = vsel %vm232, 0, %v269
        %271 = vst [vmem:[#allocation2 + $0x90] sm:$0x1] %v270
        %v272 = vld [vmem:[#allocation2 + $0x9c] sm:$0x1]
        %v273 = vsel %vm232, 0, %v272
        %274 = vst [vmem:[#allocation2 + $0x9c] sm:$0x1] %v273
        %v275 = vld [vmem:[#allocation2 + $0xa8] sm:$0x1]
        %v276 = vsel %vm232, 0, %v275
        %277 = vst [vmem:[#allocation2 + $0xa8] sm:$0x1] %v276
        %v278 = vld [vmem:[#allocation2 + $0xb4] sm:$0x1]
        %v279 = vsel %vm232, 0, %v278
        %280 = vst [vmem:[#allocation2 + $0xb4] sm:$0x1] %v279
        %v281 = vld [vmem:[#allocation2 + $0xc0] sm:$0x1]
        %v282 = vsel %vm232, 0, %v281
        %283 = vst [vmem:[#allocation2 + $0xc0] sm:$0x1] %v282
        %v284 = vld [vmem:[#allocation2 + $0xcc] sm:$0x1]
        %v285 = vsel %vm232, 0, %v284
        %286 = vst [vmem:[#allocation2 + $0xcc] sm:$0x1] %v285
        %vm287 = vsmask.f32 7938
        %vm288 = vmand %vm230, %vm287
        %v289 = vld [vmem:[#allocation2 + $0x8] sm:$0x1]
        %v290 = vsel %vm288, 0, %v289
        %291 = vst [vmem:[#allocation2 + $0x8] sm:$0x1] %v290
        %v292 = vld [vmem:[#allocation2 + $0x14] sm:$0x1]
        %v293 = vsel %vm288, 0, %v292
        %294 = vst [vmem:[#allocation2 + $0x14] sm:$0x1] %v293
        %v295 = vld [vmem:[#allocation2 + $0x20] sm:$0x1]
        %v296 = vsel %vm288, 0, %v295
        %297 = vst [vmem:[#allocation2 + $0x20] sm:$0x1] %v296
        %v298 = vld [vmem:[#allocation2 + $0x2c] sm:$0x1]
        %v299 = vsel %vm288, 0, %v298
        %300 = vst [vmem:[#allocation2 + $0x2c] sm:$0x1] %v299
        %v301 = vld [vmem:[#allocation2 + $0x38] sm:$0x1]
        %v302 = vsel %vm288, 0, %v301
        %303 = vst [vmem:[#allocation2 + $0x38] sm:$0x1] %v302
        %v304 = vld [vmem:[#allocation2 + $0x44] sm:$0x1]
        %v305 = vsel %vm288, 0, %v304
        %306 = vst [vmem:[#allocation2 + $0x44] sm:$0x1] %v305
        %v307 = vld [vmem:[#allocation2 + $0x50] sm:$0x1]
        %v308 = vsel %vm288, 0, %v307
        %309 = vst [vmem:[#allocation2 + $0x50] sm:$0x1] %v308
        %v310 = vld [vmem:[#allocation2 + $0x5c] sm:$0x1]
        %v311 = vsel %vm288, 0, %v310
        %312 = vst [vmem:[#allocation2 + $0x5c] sm:$0x1] %v311
        %v313 = vld [vmem:[#allocation2 + $0x68] sm:$0x1]
        %v314 = vsel %vm288, 0, %v313
        %315 = vst [vmem:[#allocation2 + $0x68] sm:$0x1] %v314
        %v316 = vld [vmem:[#allocation2 + $0x74] sm:$0x1]
        %v317 = vsel %vm288, 0, %v316
        %318 = vst [vmem:[#allocation2 + $0x74] sm:$0x1] %v317
        %v319 = vld [vmem:[#allocation2 + $0x80] sm:$0x1]
        %v320 = vsel %vm288, 0, %v319
        %321 = vst [vmem:[#allocation2 + $0x80] sm:$0x1] %v320
        %v322 = vld [vmem:[#allocation2 + $0x8c] sm:$0x1]
        %v323 = vsel %vm288, 0, %v322
        %324 = vst [vmem:[#allocation2 + $0x8c] sm:$0x1] %v323
        %v325 = vld [vmem:[#allocation2 + $0x98] sm:$0x1]
        %v326 = vsel %vm288, 0, %v325
        %327 = vst [vmem:[#allocation2 + $0x98] sm:$0x1] %v326
        %v328 = vld [vmem:[#allocation2 + $0xa4] sm:$0x1]
        %v329 = vsel %vm288, 0, %v328
        %330 = vst [vmem:[#allocation2 + $0xa4] sm:$0x1] %v329
        %v331 = vld [vmem:[#allocation2 + $0xb0] sm:$0x1]
        %v332 = vsel %vm288, 0, %v331
        %333 = vst [vmem:[#allocation2 + $0xb0] sm:$0x1] %v332
        %v334 = vld [vmem:[#allocation2 + $0xbc] sm:$0x1]
        %v335 = vsel %vm288, 0, %v334
        %336 = vst [vmem:[#allocation2 + $0xbc] sm:$0x1] %v335
        %v337 = vld [vmem:[#allocation2 + $0xc8] sm:$0x1]
        %v338 = vsel %vm288, 0, %v337
        %339 = vst [vmem:[#allocation2 + $0xc8] sm:$0x1] %v338
        %v340 = vld [vmem:[#allocation2 + $0xd4] sm:$0x1]
        %v341 = vsel %vm288, 0, %v340
        %342 = vst [vmem:[#allocation2 + $0xd4] sm:$0x1] %v341
        %v343 = vld [vmem:[%s209] sm:$0xf]
        %v344 = vld [vmem:[%s209 + $0x4] sm:$0xf]
        %v345 = vld [vmem:[%s209 + $0x8] sm:$0xf]
        %v346 = vld [vmem:[%s209 + $0xc] sm:$0xf]
        %v347 = vld [vmem:[%s209 + $0x10] sm:$0xf]
        %v348 = vld [vmem:[%s209 + $0x14] sm:$0xf]
        %v349 = vld [vmem:[%s209 + $0x18] sm:$0xf]
        %v350 = vld [vmem:[%s209 + $0x1c] sm:$0xf]
        %v351 = vld [vmem:[%s209 + $0x20] sm:$0xf]
        %v352 = vld [vmem:[%s209 + $0x24] sm:$0xf]
        %v353 = vld [vmem:[%s209 + $0x28] sm:$0xf]
        %v354 = vld [vmem:[%s209 + $0x2c] sm:$0xf]
        %v355 = vld [vmem:[%s209 + $0x30] sm:$0xf]
        %v356 = vld [vmem:[%s209 + $0x34] sm:$0xf]
        %v357 = vld [vmem:[%s209 + $0x38] sm:$0xf]
        %v358 = vld [vmem:[%s209 + $0x3c] sm:$0xf]
        %v359 = vld [vmem:[%s209 + $0x40] sm:$0xf]
        %v360 = vld [vmem:[%s209 + $0x44] sm:$0xf]
        %v361 = vld [vmem:[%s209 + $0x48] sm:$0xf]
        %v362 = vld [vmem:[%s209 + $0x4c] sm:$0xf]
        %v363 = vld [vmem:[%s209 + $0x50] sm:$0xf]
        %v364 = vld [vmem:[%s209 + $0x54] sm:$0xf]
        %v365 = vld [vmem:[%s209 + $0x58] sm:$0xf]
        %v366 = vld [vmem:[%s209 + $0x5c] sm:$0xf]
        %v367 = vld [vmem:[%s209 + $0x60] sm:$0xf]
        %v368 = vld [vmem:[%s209 + $0x64] sm:$0xf]
        %v369 = vld [vmem:[%s209 + $0x68] sm:$0xf]
        %v370 = vld [vmem:[%s209 + $0x6c] sm:$0xf]
        %v371 = vld [vmem:[%s209 + $0x70] sm:$0xf]
        %v372 = vld [vmem:[%s209 + $0x74] sm:$0xf]
        %v373 = vld [vmem:[%s209 + $0x78] sm:$0xf]
        %v374 = vld [vmem:[%s209 + $0x7c] sm:$0xf]
        %v375 = vunpack.c.l.bf16 %v343
        %v376 = vunpack.c.l.bf16 %v344
        %v377 = vunpack.c.l.bf16 %v345
        %v378 = vunpack.c.l.bf16 %v346
        %v379 = vunpack.c.l.bf16 %v347
        %v380 = vunpack.c.l.bf16 %v348
        %v381 = vunpack.c.l.bf16 %v349
        %v382 = vunpack.c.l.bf16 %v350
        %v383 = vunpack.c.l.bf16 %v351
        %v384 = vunpack.c.l.bf16 %v352
        %v385 = vunpack.c.l.bf16 %v353
        %v386 = vunpack.c.l.bf16 %v354
        %v387 = vunpack.c.l.bf16 %v355
        %v388 = vunpack.c.l.bf16 %v356
        %v389 = vunpack.c.l.bf16 %v357
        %v390 = vunpack.c.l.bf16 %v358
        %v391 = vunpack.c.l.bf16 %v359
        %v392 = vunpack.c.l.bf16 %v360
        %v393 = vunpack.c.l.bf16 %v361
        %v394 = vunpack.c.l.bf16 %v362
        %v395 = vunpack.c.l.bf16 %v363
        %v396 = vunpack.c.l.bf16 %v364
        %v397 = vunpack.c.l.bf16 %v365
        %v398 = vunpack.c.l.bf16 %v366
        %v399 = vunpack.c.l.bf16 %v367
        %v400 = vunpack.c.l.bf16 %v368
        %v401 = vunpack.c.l.bf16 %v369
        %v402 = vunpack.c.l.bf16 %v370
        %v403 = vunpack.c.l.bf16 %v371
        %v404 = vunpack.c.l.bf16 %v372
        %v405 = vunpack.c.l.bf16 %v373
        %v406 = vunpack.c.l.bf16 %v374
        %v407 = vld [vmem:[%s1] sm:$0x1]
        %v409 = vlaneseq
        %v410 = vshrl.u32 %v409, 7
        %v411 = vsub.s32 0, %v410
        %v412 = vrot.slane %v407, %v411
        %v414 = vmul.f32 %v375, %v412
        %v415 = vmul.f32 %v376, %v412
        %v416 = vmul.f32 %v377, %v412
        %v417 = vmul.f32 %v378, %v412
        %v418 = vmul.f32 %v379, %v412
        %v419 = vmul.f32 %v380, %v412
        %v420 = vmul.f32 %v381, %v412
        %v421 = vmul.f32 %v382, %v412
        %v422 = vmul.f32 %v383, %v412
        %v423 = vmul.f32 %v384, %v412
        %v424 = vmul.f32 %v385, %v412
        %v425 = vmul.f32 %v386, %v412
        %v426 = vmul.f32 %v387, %v412
        %v427 = vmul.f32 %v388, %v412
        %v428 = vmul.f32 %v389, %v412
        %v429 = vmul.f32 %v390, %v412
        %v430 = vmul.f32 %v391, %v412
        %v431 = vmul.f32 %v392, %v412
        %v432 = vmul.f32 %v393, %v412
        %v433 = vmul.f32 %v394, %v412
        %v434 = vmul.f32 %v395, %v412
        %v435 = vmul.f32 %v396, %v412
        %v436 = vmul.f32 %v397, %v412
        %v437 = vmul.f32 %v398, %v412
        %v438 = vmul.f32 %v399, %v412
        %v439 = vmul.f32 %v400, %v412
        %v440 = vmul.f32 %v401, %v412
        %v441 = vmul.f32 %v402, %v412
        %v442 = vmul.f32 %v403, %v412
        %v443 = vmul.f32 %v404, %v412
        %v444 = vmul.f32 %v405, %v412
        %v445 = vmul.f32 %v406, %v412
        %v446 = vld [vmem:[%s2] sm:$0x1]
        %v448 = vlaneseq
        %v449 = vshrl.u32 %v448, 7
        %v450 = vsub.s32 0, %v449
        %v451 = vrot.slane %v446, %v450
        %v453 = vadd.f32 %v414, %v451
        %v454 = vadd.f32 %v415, %v451
        %v455 = vadd.f32 %v416, %v451
        %v456 = vadd.f32 %v417, %v451
        %v457 = vadd.f32 %v418, %v451
        %v458 = vadd.f32 %v419, %v451
        %v459 = vadd.f32 %v420, %v451
        %v460 = vadd.f32 %v421, %v451
        %v461 = vadd.f32 %v422, %v451
        %v462 = vadd.f32 %v423, %v451
        %v463 = vadd.f32 %v424, %v451
        %v464 = vadd.f32 %v425, %v451
        %v465 = vadd.f32 %v426, %v451
        %v466 = vadd.f32 %v427, %v451
        %v467 = vadd.f32 %v428, %v451
        %v468 = vadd.f32 %v429, %v451
        %v469 = vadd.f32 %v430, %v451
        %v470 = vadd.f32 %v431, %v451
        %v471 = vadd.f32 %v432, %v451
        %v472 = vadd.f32 %v433, %v451
        %v473 = vadd.f32 %v434, %v451
        %v474 = vadd.f32 %v435, %v451
        %v475 = vadd.f32 %v436, %v451
        %v476 = vadd.f32 %v437, %v451
        %v477 = vadd.f32 %v438, %v451
        %v478 = vadd.f32 %v439, %v451
        %v479 = vadd.f32 %v440, %v451
        %v480 = vadd.f32 %v441, %v451
        %v481 = vadd.f32 %v442, %v451
        %v482 = vadd.f32 %v443, %v451
        %v483 = vadd.f32 %v444, %v451
        %v484 = vadd.f32 %v445, %v451
        %v485 = vmax.f32 %v453, 0.0
        %v486 = vmax.f32 %v454, 0.0
        %v487 = vmax.f32 %v455, 0.0
        %v488 = vmax.f32 %v456, 0.0
        %v489 = vmax.f32 %v457, 0.0
        %v490 = vmax.f32 %v458, 0.0
        %v491 = vmax.f32 %v459, 0.0
        %v492 = vmax.f32 %v460, 0.0
        %v493 = vmax.f32 %v461, 0.0
        %v494 = vmax.f32 %v462, 0.0
        %v495 = vmax.f32 %v463, 0.0
        %v496 = vmax.f32 %v464, 0.0
        %v497 = vmax.f32 %v465, 0.0
        %v498 = vmax.f32 %v466, 0.0
        %v499 = vmax.f32 %v467, 0.0
        %v500 = vmax.f32 %v468, 0.0
        %v501 = vmax.f32 %v469, 0.0
        %v502 = vmax.f32 %v470, 0.0
        %v503 = vmax.f32 %v471, 0.0
        %v504 = vmax.f32 %v472, 0.0
        %v505 = vmax.f32 %v473, 0.0
        %v506 = vmax.f32 %v474, 0.0
        %v507 = vmax.f32 %v475, 0.0
        %v508 = vmax.f32 %v476, 0.0
        %v509 = vmax.f32 %v477, 0.0
        %v510 = vmax.f32 %v478, 0.0
        %v511 = vmax.f32 %v479, 0.0
        %v512 = vmax.f32 %v480, 0.0
        %v513 = vmax.f32 %v481, 0.0
        %v514 = vmax.f32 %v482, 0.0
        %v515 = vmax.f32 %v483, 0.0
        %v516 = vmax.f32 %v484, 0.0
        %v517 = vpack.c.bf16 %v486, %v485
        %v518 = vpack.c.bf16 %v488, %v487
        %v519 = vpack.c.bf16 %v490, %v489
        %v520 = vpack.c.bf16 %v492, %v491
        %v521 = vpack.c.bf16 %v494, %v493
        %v522 = vpack.c.bf16 %v496, %v495
        %v523 = vpack.c.bf16 %v498, %v497
        %v524 = vpack.c.bf16 %v500, %v499
        %v525 = vpack.c.bf16 %v502, %v501
        %v526 = vpack.c.bf16 %v504, %v503
        %v527 = vpack.c.bf16 %v506, %v505
        %v528 = vpack.c.bf16 %v508, %v507
        %v529 = vpack.c.bf16 %v510, %v509
        %v530 = vpack.c.bf16 %v512, %v511
        %v531 = vpack.c.bf16 %v514, %v513
        %v532 = vpack.c.bf16 %v516, %v515
        %v549 = vunpack.c.l.b16 %v517
        %v550 = vunpack.c.h.b16 %v517
        %v551 = vunpack.c.l.b16 %v518
        %v552 = vunpack.c.h.b16 %v518
        %v553 = vunpack.c.l.b16 %v519
        %v554 = vunpack.c.h.b16 %v519
        %v555 = vunpack.c.l.b16 %v520
        %v556 = vunpack.c.h.b16 %v520
        %v557 = vunpack.c.l.b16 %v521
        %v558 = vunpack.c.h.b16 %v521
        %v559 = vunpack.c.l.b16 %v522
        %v560 = vunpack.c.h.b16 %v522
        %v561 = vunpack.c.l.b16 %v523
        %v562 = vunpack.c.h.b16 %v523
        %v563 = vunpack.c.l.b16 %v524
        %v564 = vunpack.c.h.b16 %v524
        %v565 = vunpack.c.l.b16 %v525
        %v566 = vunpack.c.h.b16 %v525
        %v567 = vunpack.c.l.b16 %v526
        %v568 = vunpack.c.h.b16 %v526
        %v569 = vunpack.c.l.b16 %v527
        %v570 = vunpack.c.h.b16 %v527
        %v571 = vunpack.c.l.b16 %v528
        %v572 = vunpack.c.h.b16 %v528
        %v573 = vunpack.c.l.b16 %v529
        %v574 = vunpack.c.h.b16 %v529
        %v575 = vunpack.c.l.b16 %v530
        %v576 = vunpack.c.h.b16 %v530
        %v577 = vunpack.c.l.b16 %v531
        %v578 = vunpack.c.h.b16 %v531
        %v579 = vunpack.c.l.b16 %v532
        %v580 = vunpack.c.h.b16 %v532
        %v581 = vpack.c.b16 %v549, %v549
        %v582 = vpack.c.b16 %v550, %v550
        %v583 = vpack.c.b16 %v551, %v551
        %v584 = vpack.c.b16 %v552, %v552
        %v585 = vpack.c.b16 %v553, %v553
        %v586 = vpack.c.b16 %v554, %v554
        %v587 = vpack.c.b16 %v555, %v555
        %v588 = vpack.c.b16 %v556, %v556
        %v589 = vpack.c.b16 %v557, %v557
        %v590 = vpack.c.b16 %v558, %v558
        %v591 = vpack.c.b16 %v559, %v559
        %v592 = vpack.c.b16 %v560, %v560
        %v593 = vpack.c.b16 %v561, %v561
        %v594 = vpack.c.b16 %v562, %v562
        %v595 = vpack.c.b16 %v563, %v563
        %v596 = vpack.c.b16 %v564, %v564
        %v597 = vpack.c.b16 %v565, %v565
        %v598 = vpack.c.b16 %v566, %v566
        %v599 = vpack.c.b16 %v567, %v567
        %v600 = vpack.c.b16 %v568, %v568
        %v601 = vpack.c.b16 %v569, %v569
        %v602 = vpack.c.b16 %v570, %v570
        %v603 = vpack.c.b16 %v571, %v571
        %v604 = vpack.c.b16 %v572, %v572
        %v605 = vpack.c.b16 %v573, %v573
        %v606 = vpack.c.b16 %v574, %v574
        %v607 = vpack.c.b16 %v575, %v575
        %v608 = vpack.c.b16 %v576, %v576
        %v609 = vpack.c.b16 %v577, %v577
        %v610 = vpack.c.b16 %v578, %v578
        %v611 = vpack.c.b16 %v579, %v579
        %v612 = vpack.c.b16 %v580, %v580
        %vm613 = vsmask.f32 4368
        %vm614 = vmor %vm231, %vm613
        %v616 = vshrl.u32 %v581, 16
        %v618 = vrot.slane %v616, 7
        %v619 = vshll.u32 %v581, 16
        %v621 = vor.u32 %v618, %v619
        %v622 = vrot.slane %v618, 4
        %v624 = vshrl.u32 %v582, 16
        %v626 = vrot.slane %v624, 7
        %v627 = vshll.u32 %v582, 16
        %v629 = vor.u32 %v626, %v627
        %v630 = vsel %vm614, %v622, %v629
        %v631 = vrot.slane %v626, 4
        %v633 = vshrl.u32 %v583, 16
        %v635 = vrot.slane %v633, 7
        %v636 = vshll.u32 %v583, 16
        %v638 = vor.u32 %v635, %v636
        %v639 = vrot.slane %v635, 4
        %v641 = vshrl.u32 %v584, 16
        %v643 = vrot.slane %v641, 7
        %v644 = vshll.u32 %v584, 16
        %v646 = vor.u32 %v643, %v644
        %v647 = vsel %vm614, %v639, %v646
        %v648 = vrot.slane %v643, 4
        %v650 = vshrl.u32 %v585, 16
        %v652 = vrot.slane %v650, 7
        %v653 = vshll.u32 %v585, 16
        %v655 = vor.u32 %v652, %v653
        %v656 = vrot.slane %v652, 4
        %v658 = vshrl.u32 %v586, 16
        %v660 = vrot.slane %v658, 7
        %v661 = vshll.u32 %v586, 16
        %v663 = vor.u32 %v660, %v661
        %v664 = vsel %vm614, %v656, %v663
        %v665 = vrot.slane %v660, 4
        %v667 = vshrl.u32 %v587, 16
        %v669 = vrot.slane %v667, 7
        %v670 = vshll.u32 %v587, 16
        %v672 = vor.u32 %v669, %v670
        %v673 = vrot.slane %v669, 4
        %v675 = vshrl.u32 %v588, 16
        %v677 = vrot.slane %v675, 7
        %v678 = vshll.u32 %v588, 16
        %v680 = vor.u32 %v677, %v678
        %v681 = vsel %vm614, %v673, %v680
        %v682 = vrot.slane %v677, 4
        %v684 = vshrl.u32 %v589, 16
        %v686 = vrot.slane %v684, 7
        %v687 = vshll.u32 %v589, 16
        %v689 = vor.u32 %v686, %v687
        %v690 = vrot.slane %v686, 4
        %v692 = vshrl.u32 %v590, 16
        %v694 = vrot.slane %v692, 7
        %v695 = vshll.u32 %v590, 16
        %v697 = vor.u32 %v694, %v695
        %v698 = vsel %vm614, %v690, %v697
        %v699 = vrot.slane %v694, 4
        %v701 = vshrl.u32 %v591, 16
        %v703 = vrot.slane %v701, 7
        %v704 = vshll.u32 %v591, 16
        %v706 = vor.u32 %v703, %v704
        %v707 = vrot.slane %v703, 4
        %v709 = vshrl.u32 %v592, 16
        %v711 = vrot.slane %v709, 7
        %v712 = vshll.u32 %v592, 16
        %v714 = vor.u32 %v711, %v712
        %v715 = vsel %vm614, %v707, %v714
        %v716 = vrot.slane %v711, 4
        %v718 = vshrl.u32 %v593, 16
        %v720 = vrot.slane %v718, 7
        %v721 = vshll.u32 %v593, 16
        %v723 = vor.u32 %v720, %v721
        %v724 = vrot.slane %v720, 4
        %v726 = vshrl.u32 %v594, 16
        %v728 = vrot.slane %v726, 7
        %v729 = vshll.u32 %v594, 16
        %v731 = vor.u32 %v728, %v729
        %v732 = vsel %vm614, %v724, %v731
        %v733 = vrot.slane %v728, 4
        %v735 = vshrl.u32 %v595, 16
        %v737 = vrot.slane %v735, 7
        %v738 = vshll.u32 %v595, 16
        %v740 = vor.u32 %v737, %v738
        %v741 = vrot.slane %v737, 4
        %v743 = vshrl.u32 %v596, 16
        %v745 = vrot.slane %v743, 7
        %v746 = vshll.u32 %v596, 16
        %v748 = vor.u32 %v745, %v746
        %v749 = vsel %vm614, %v741, %v748
        %v750 = vrot.slane %v745, 4
        %v752 = vshrl.u32 %v597, 16
        %v754 = vrot.slane %v752, 7
        %v755 = vshll.u32 %v597, 16
        %v757 = vor.u32 %v754, %v755
        %v758 = vrot.slane %v754, 4
        %v760 = vshrl.u32 %v598, 16
        %v762 = vrot.slane %v760, 7
        %v763 = vshll.u32 %v598, 16
        %v765 = vor.u32 %v762, %v763
        %v766 = vsel %vm614, %v758, %v765
        %v767 = vrot.slane %v762, 4
        %v769 = vshrl.u32 %v599, 16
        %v771 = vrot.slane %v769, 7
        %v772 = vshll.u32 %v599, 16
        %v774 = vor.u32 %v771, %v772
        %v775 = vrot.slane %v771, 4
        %v777 = vshrl.u32 %v600, 16
        %v779 = vrot.slane %v777, 7
        %v780 = vshll.u32 %v600, 16
        %v782 = vor.u32 %v779, %v780
        %v783 = vsel %vm614, %v775, %v782
        %v784 = vrot.slane %v779, 4
        %v786 = vshrl.u32 %v601, 16
        %v788 = vrot.slane %v786, 7
        %v789 = vshll.u32 %v601, 16
        %v791 = vor.u32 %v788, %v789
        %v792 = vrot.slane %v788, 4
        %v794 = vshrl.u32 %v602, 16
        %v796 = vrot.slane %v794, 7
        %v797 = vshll.u32 %v602, 16
        %v799 = vor.u32 %v796, %v797
        %v800 = vsel %vm614, %v792, %v799
        %v801 = vrot.slane %v796, 4
        %v803 = vshrl.u32 %v603, 16
        %v805 = vrot.slane %v803, 7
        %v806 = vshll.u32 %v603, 16
        %v808 = vor.u32 %v805, %v806
        %v809 = vrot.slane %v805, 4
        %v811 = vshrl.u32 %v604, 16
        %v813 = vrot.slane %v811, 7
        %v814 = vshll.u32 %v604, 16
        %v816 = vor.u32 %v813, %v814
        %v817 = vsel %vm614, %v809, %v816
        %v818 = vrot.slane %v813, 4
        %v820 = vshrl.u32 %v605, 16
        %v822 = vrot.slane %v820, 7
        %v823 = vshll.u32 %v605, 16
        %v825 = vor.u32 %v822, %v823
        %v826 = vrot.slane %v822, 4
        %v828 = vshrl.u32 %v606, 16
        %v830 = vrot.slane %v828, 7
        %v831 = vshll.u32 %v606, 16
        %v833 = vor.u32 %v830, %v831
        %v834 = vsel %vm614, %v826, %v833
        %v835 = vrot.slane %v830, 4
        %v837 = vshrl.u32 %v607, 16
        %v839 = vrot.slane %v837, 7
        %v840 = vshll.u32 %v607, 16
        %v842 = vor.u32 %v839, %v840
        %v843 = vrot.slane %v839, 4
        %v845 = vshrl.u32 %v608, 16
        %v847 = vrot.slane %v845, 7
        %v848 = vshll.u32 %v608, 16
        %v850 = vor.u32 %v847, %v848
        %v851 = vsel %vm614, %v843, %v850
        %v852 = vrot.slane %v847, 4
        %v854 = vshrl.u32 %v609, 16
        %v856 = vrot.slane %v854, 7
        %v857 = vshll.u32 %v609, 16
        %v859 = vor.u32 %v856, %v857
        %v860 = vrot.slane %v856, 4
        %v862 = vshrl.u32 %v610, 16
        %v864 = vrot.slane %v862, 7
        %v865 = vshll.u32 %v610, 16
        %v867 = vor.u32 %v864, %v865
        %v868 = vsel %vm614, %v860, %v867
        %v869 = vrot.slane %v864, 4
        %v871 = vshrl.u32 %v611, 16
        %v873 = vrot.slane %v871, 7
        %v874 = vshll.u32 %v611, 16
        %v876 = vor.u32 %v873, %v874
        %v877 = vrot.slane %v873, 4
        %v879 = vshrl.u32 %v612, 16
        %v881 = vrot.slane %v879, 7
        %v882 = vshll.u32 %v612, 16
        %v884 = vor.u32 %v881, %v882
        %v885 = vsel %vm614, %v877, %v884
        %v886 = vrot.slane %v881, 4
        %s935 = scalar_lea.vmem [#allocation2], 12
        %vm936 = vcmask 1043456
        %vm937 = vmand %vm936, %vm287
        %v938 = vld [vmem:[%s935] sm:$0xf]
        %v939 = vsel %vm937, %v621, %v938
        %940 = vst [vmem:[%s935] sm:$0xf] %v939
        %941 = vst [vmem:[%s935 + $0x4] sm:$0xf] %v630
        %v942 = vld [vmem:[%s935 + $0x8] sm:$0x1]
        %v943 = vsel %vm232, %v631, %v942
        %944 = vst [vmem:[%s935 + $0x8] sm:$0x1] %v943
        %v945 = vld [vmem:[%s935 + $0xc] sm:$0xf]
        %v946 = vsel %vm937, %v638, %v945
        %947 = vst [vmem:[%s935 + $0xc] sm:$0xf] %v946
        %948 = vst [vmem:[%s935 + $0x10] sm:$0xf] %v647
        %v949 = vld [vmem:[%s935 + $0x14] sm:$0x1]
        %v950 = vsel %vm232, %v648, %v949
        %951 = vst [vmem:[%s935 + $0x14] sm:$0x1] %v950
        %v952 = vld [vmem:[%s935 + $0x18] sm:$0xf]
        %v953 = vsel %vm937, %v655, %v952
        %954 = vst [vmem:[%s935 + $0x18] sm:$0xf] %v953
        %955 = vst [vmem:[%s935 + $0x1c] sm:$0xf] %v664
        %v956 = vld [vmem:[%s935 + $0x20] sm:$0x1]
        %v957 = vsel %vm232, %v665, %v956
        %958 = vst [vmem:[%s935 + $0x20] sm:$0x1] %v957
        %v959 = vld [vmem:[%s935 + $0x24] sm:$0xf]
        %v960 = vsel %vm937, %v672, %v959
        %961 = vst [vmem:[%s935 + $0x24] sm:$0xf] %v960
        %962 = vst [vmem:[%s935 + $0x28] sm:$0xf] %v681
        %v963 = vld [vmem:[%s935 + $0x2c] sm:$0x1]
        %v964 = vsel %vm232, %v682, %v963
        %965 = vst [vmem:[%s935 + $0x2c] sm:$0x1] %v964
        %v966 = vld [vmem:[%s935 + $0x30] sm:$0xf]
        %v967 = vsel %vm937, %v689, %v966
        %968 = vst [vmem:[%s935 + $0x30] sm:$0xf] %v967
        %969 = vst [vmem:[%s935 + $0x34] sm:$0xf] %v698
        %v970 = vld [vmem:[%s935 + $0x38] sm:$0x1]
        %v971 = vsel %vm232, %v699, %v970
        %972 = vst [vmem:[%s935 + $0x38] sm:$0x1] %v971
        %v973 = vld [vmem:[%s935 + $0x3c] sm:$0xf]
        %v974 = vsel %vm937, %v706, %v973
        %975 = vst [vmem:[%s935 + $0x3c] sm:$0xf] %v974
        %976 = vst [vmem:[%s935 + $0x40] sm:$0xf] %v715
        %v977 = vld [vmem:[%s935 + $0x44] sm:$0x1]
        %v978 = vsel %vm232, %v716, %v977
        %979 = vst [vmem:[%s935 + $0x44] sm:$0x1] %v978
        %v980 = vld [vmem:[%s935 + $0x48] sm:$0xf]
        %v981 = vsel %vm937, %v723, %v980
        %982 = vst [vmem:[%s935 + $0x48] sm:$0xf] %v981
        %983 = vst [vmem:[%s935 + $0x4c] sm:$0xf] %v732
        %v984 = vld [vmem:[%s935 + $0x50] sm:$0x1]
        %v985 = vsel %vm232, %v733, %v984
        %986 = vst [vmem:[%s935 + $0x50] sm:$0x1] %v985
        %v987 = vld [vmem:[%s935 + $0x54] sm:$0xf]
        %v988 = vsel %vm937, %v740, %v987
        %989 = vst [vmem:[%s935 + $0x54] sm:$0xf] %v988
        %990 = vst [vmem:[%s935 + $0x58] sm:$0xf] %v749
        %v991 = vld [vmem:[%s935 + $0x5c] sm:$0x1]
        %v992 = vsel %vm232, %v750, %v991
        %993 = vst [vmem:[%s935 + $0x5c] sm:$0x1] %v992
        %v994 = vld [vmem:[%s935 + $0x60] sm:$0xf]
        %v995 = vsel %vm937, %v757, %v994
        %996 = vst [vmem:[%s935 + $0x60] sm:$0xf] %v995
        %997 = vst [vmem:[%s935 + $0x64] sm:$0xf] %v766
        %v998 = vld [vmem:[%s935 + $0x68] sm:$0x1]
        %v999 = vsel %vm232, %v767, %v998
        %1000 = vst [vmem:[%s935 + $0x68] sm:$0x1] %v999
        %v1001 = vld [vmem:[%s935 + $0x6c] sm:$0xf]
        %v1002 = vsel %vm937, %v774, %v1001
        %1003 = vst [vmem:[%s935 + $0x6c] sm:$0xf] %v1002
        %1004 = vst [vmem:[%s935 + $0x70] sm:$0xf] %v783
        %v1005 = vld [vmem:[%s935 + $0x74] sm:$0x1]
        %v1006 = vsel %vm232, %v784, %v1005
        %1007 = vst [vmem:[%s935 + $0x74] sm:$0x1] %v1006
        %v1008 = vld [vmem:[%s935 + $0x78] sm:$0xf]
        %v1009 = vsel %vm937, %v791, %v1008
        %1010 = vst [vmem:[%s935 + $0x78] sm:$0xf] %v1009
        %1011 = vst [vmem:[%s935 + $0x7c] sm:$0xf] %v800
        %v1012 = vld [vmem:[%s935 + $0x80] sm:$0x1]
        %v1013 = vsel %vm232, %v801, %v1012
        %1014 = vst [vmem:[%s935 + $0x80] sm:$0x1] %v1013
        %v1015 = vld [vmem:[%s935 + $0x84] sm:$0xf]
        %v1016 = vsel %vm937, %v808, %v1015
        %1017 = vst [vmem:[%s935 + $0x84] sm:$0xf] %v1016
        %1018 = vst [vmem:[%s935 + $0x88] sm:$0xf] %v817
        %v1019 = vld [vmem:[%s935 + $0x8c] sm:$0x1]
        %v1020 = vsel %vm232, %v818, %v1019
        %1021 = vst [vmem:[%s935 + $0x8c] sm:$0x1] %v1020
        %v1022 = vld [vmem:[%s935 + $0x90] sm:$0xf]
        %v1023 = vsel %vm937, %v825, %v1022
        %1024 = vst [vmem:[%s935 + $0x90] sm:$0xf] %v1023
        %1025 = vst [vmem:[%s935 + $0x94] sm:$0xf] %v834
        %v1026 = vld [vmem:[%s935 + $0x98] sm:$0x1]
        %v1027 = vsel %vm232, %v835, %v1026
        %1028 = vst [vmem:[%s935 + $0x98] sm:$0x1] %v1027
        %v1029 = vld [vmem:[%s935 + $0x9c] sm:$0xf]
        %v1030 = vsel %vm937, %v842, %v1029
        %1031 = vst [vmem:[%s935 + $0x9c] sm:$0xf] %v1030
        %1032 = vst [vmem:[%s935 + $0xa0] sm:$0xf] %v851
        %v1033 = vld [vmem:[%s935 + $0xa4] sm:$0x1]
        %v1034 = vsel %vm232, %v852, %v1033
        %1035 = vst [vmem:[%s935 + $0xa4] sm:$0x1] %v1034
        %v1036 = vld [vmem:[%s935 + $0xa8] sm:$0xf]
        %v1037 = vsel %vm937, %v859, %v1036
        %1038 = vst [vmem:[%s935 + $0xa8] sm:$0xf] %v1037
        %1039 = vst [vmem:[%s935 + $0xac] sm:$0xf] %v868
        %v1040 = vld [vmem:[%s935 + $0xb0] sm:$0x1]
        %v1041 = vsel %vm232, %v869, %v1040
        %1042 = vst [vmem:[%s935 + $0xb0] sm:$0x1] %v1041
        %v1043 = vld [vmem:[%s935 + $0xb4] sm:$0xf]
        %v1044 = vsel %vm937, %v876, %v1043
        %1045 = vst [vmem:[%s935 + $0xb4] sm:$0xf] %v1044
        %1046 = vst [vmem:[%s935 + $0xb8] sm:$0xf] %v885
        %v1047 = vld [vmem:[%s935 + $0xbc] sm:$0x1]
        %v1048 = vsel %vm232, %v886, %v1047
        %1049 = vst [vmem:[%s935 + $0xbc] sm:$0x1] %v1048
        %v1050 = vld [vmem:[#allocation2] sm:$0xf]
        %v1051 = vld [vmem:[#allocation2 + $0x4] sm:$0xf]
        %v1052 = vld [vmem:[#allocation2 + $0xc] sm:$0xf]
        %v1053 = vld [vmem:[#allocation2 + $0x10] sm:$0xf]
        %v1054 = vld [vmem:[#allocation2 + $0x18] sm:$0xf]
        %v1055 = vld [vmem:[#allocation2 + $0x1c] sm:$0xf]
        %v1056 = vld [vmem:[#allocation2 + $0x24] sm:$0xf]
        %v1057 = vld [vmem:[#allocation2 + $0x28] sm:$0xf]
        %v1058 = vld [vmem:[#allocation2 + $0x30] sm:$0xf]
        %v1059 = vld [vmem:[#allocation2 + $0x34] sm:$0xf]
        %v1060 = vld [vmem:[#allocation2 + $0x3c] sm:$0xf]
        %v1061 = vld [vmem:[#allocation2 + $0x40] sm:$0xf]
        %v1062 = vld [vmem:[#allocation2 + $0x48] sm:$0xf]
        %v1063 = vld [vmem:[#allocation2 + $0x4c] sm:$0xf]
        %v1064 = vld [vmem:[#allocation2 + $0x54] sm:$0xf]
        %v1065 = vld [vmem:[#allocation2 + $0x58] sm:$0xf]
        %v1066 = vld [vmem:[#allocation2 + $0x60] sm:$0xf]
        %v1067 = vld [vmem:[#allocation2 + $0x64] sm:$0xf]
        %v1068 = vld [vmem:[#allocation2 + $0x6c] sm:$0xf]
        %v1069 = vld [vmem:[#allocation2 + $0x70] sm:$0xf]
        %v1070 = vld [vmem:[#allocation2 + $0x78] sm:$0xf]
        %v1071 = vld [vmem:[#allocation2 + $0x7c] sm:$0xf]
        %v1072 = vld [vmem:[#allocation2 + $0x84] sm:$0xf]
        %v1073 = vld [vmem:[#allocation2 + $0x88] sm:$0xf]
        %v1074 = vld [vmem:[#allocation2 + $0x90] sm:$0xf]
        %v1075 = vld [vmem:[#allocation2 + $0x94] sm:$0xf]
        %v1076 = vld [vmem:[#allocation2 + $0x9c] sm:$0xf]
        %v1077 = vld [vmem:[#allocation2 + $0xa0] sm:$0xf]
        %v1078 = vld [vmem:[#allocation2 + $0xa8] sm:$0xf]
        %v1079 = vld [vmem:[#allocation2 + $0xac] sm:$0xf]
        %v1080 = vld [vmem:[#allocation2 + $0xb4] sm:$0xf]
        %v1081 = vld [vmem:[#allocation2 + $0xb8] sm:$0xf]
        %v1114 = vunpack.c.l.b16 %v1050
        %v1115 = vunpack.c.l.b16 %v1051
        %v1116 = vunpack.c.l.b16 %v1052
        %v1117 = vunpack.c.l.b16 %v1053
        %v1118 = vunpack.c.l.b16 %v1054
        %v1119 = vunpack.c.l.b16 %v1055
        %v1120 = vunpack.c.l.b16 %v1056
        %v1121 = vunpack.c.l.b16 %v1057
        %v1122 = vunpack.c.l.b16 %v1058
        %v1123 = vunpack.c.l.b16 %v1059
        %v1124 = vunpack.c.l.b16 %v1060
        %v1125 = vunpack.c.l.b16 %v1061
        %v1126 = vunpack.c.l.b16 %v1062
        %v1127 = vunpack.c.l.b16 %v1063
        %v1128 = vunpack.c.l.b16 %v1064
        %v1129 = vunpack.c.l.b16 %v1065
        %v1130 = vunpack.c.l.b16 %v1066
        %v1131 = vunpack.c.l.b16 %v1067
        %v1132 = vunpack.c.l.b16 %v1068
        %v1133 = vunpack.c.l.b16 %v1069
        %v1134 = vunpack.c.l.b16 %v1070
        %v1135 = vunpack.c.l.b16 %v1071
        %v1136 = vunpack.c.l.b16 %v1072
        %v1137 = vunpack.c.l.b16 %v1073
        %v1138 = vunpack.c.l.b16 %v1074
        %v1139 = vunpack.c.l.b16 %v1075
        %v1140 = vunpack.c.l.b16 %v1076
        %v1141 = vunpack.c.l.b16 %v1077
        %v1142 = vunpack.c.l.b16 %v1078
        %v1143 = vunpack.c.l.b16 %v1079
        %v1144 = vunpack.c.l.b16 %v1080
        %v1145 = vunpack.c.l.b16 %v1081
        %v1146 = vpack.c.b16 %v1115, %v1114
        %v1147 = vpack.c.b16 %v1117, %v1116
        %v1148 = vpack.c.b16 %v1119, %v1118
        %v1149 = vpack.c.b16 %v1121, %v1120
        %v1150 = vpack.c.b16 %v1123, %v1122
        %v1151 = vpack.c.b16 %v1125, %v1124
        %v1152 = vpack.c.b16 %v1127, %v1126
        %v1153 = vpack.c.b16 %v1129, %v1128
        %v1154 = vpack.c.b16 %v1131, %v1130
        %v1155 = vpack.c.b16 %v1133, %v1132
        %v1156 = vpack.c.b16 %v1135, %v1134
        %v1157 = vpack.c.b16 %v1137, %v1136
        %v1158 = vpack.c.b16 %v1139, %v1138
        %v1159 = vpack.c.b16 %v1141, %v1140
        %v1160 = vpack.c.b16 %v1143, %v1142
        %v1161 = vpack.c.b16 %v1145, %v1144
        %1178 = vst [vmem:[#allocation3] sm:$0xff] %v1146
        %1179 = vst [vmem:[#allocation3 + $0x48] sm:$0xff] %v1147
        %1180 = vst [vmem:[#allocation3 + $0x90] sm:$0xff] %v1148
        %1181 = vst [vmem:[#allocation3 + $0xd8] sm:$0xff] %v1149
        %1182 = vst [vmem:[#allocation3 + $0x120] sm:$0xff] %v1150
        %1183 = vst [vmem:[#allocation3 + $0x168] sm:$0xff] %v1151
        %1184 = vst [vmem:[#allocation3 + $0x1b0] sm:$0xff] %v1152
        %1185 = vst [vmem:[#allocation3 + $0x1f8] sm:$0xff] %v1153
        %1186 = vst [vmem:[#allocation3 + $0x240] sm:$0xff] %v1154
        %1187 = vst [vmem:[#allocation3 + $0x288] sm:$0xff] %v1155
        %1188 = vst [vmem:[#allocation3 + $0x2d0] sm:$0xff] %v1156
        %1189 = vst [vmem:[#allocation3 + $0x318] sm:$0xff] %v1157
        %1190 = vst [vmem:[#allocation3 + $0x360] sm:$0xff] %v1158
        %1191 = vst [vmem:[#allocation3 + $0x3a8] sm:$0xff] %v1159
        %1192 = vst [vmem:[#allocation3 + $0x3f0] sm:$0xff] %v1160
        %1193 = vst [vmem:[#allocation3 + $0x438] sm:$0xff] %v1161
        %v1194 = vld [vmem:[#allocation2] sm:$0xf]
        %v1195 = vld [vmem:[#allocation2 + $0x4] sm:$0xf]
        %v1196 = vld [vmem:[#allocation2 + $0x8] sm:$0x1]
        %v1197 = vld [vmem:[#allocation2 + $0xc] sm:$0xf]
        %v1198 = vld [vmem:[#allocation2 + $0x10] sm:$0xf]
        %v1199 = vld [vmem:[#allocation2 + $0x14] sm:$0x1]
        %v1200 = vld [vmem:[#allocation2 + $0x18] sm:$0xf]
        %v1201 = vld [vmem:[#allocation2 + $0x1c] sm:$0xf]
        %v1202 = vld [vmem:[#allocation2 + $0x20] sm:$0x1]
        %v1203 = vld [vmem:[#allocation2 + $0x24] sm:$0xf]
        %v1204 = vld [vmem:[#allocation2 + $0x28] sm:$0xf]
        %v1205 = vld [vmem:[#allocation2 + $0x2c] sm:$0x1]
        %v1206 = vld [vmem:[#allocation2 + $0x30] sm:$0xf]
        %v1207 = vld [vmem:[#allocation2 + $0x34] sm:$0xf]
        %v1208 = vld [vmem:[#allocation2 + $0x38] sm:$0x1]
        %v1209 = vld [vmem:[#allocation2 + $0x3c] sm:$0xf]
        %v1210 = vld [vmem:[#allocation2 + $0x40] sm:$0xf]
        %v1211 = vld [vmem:[#allocation2 + $0x44] sm:$0x1]
        %v1212 = vld [vmem:[#allocation2 + $0x48] sm:$0xf]
        %v1213 = vld [vmem:[#allocation2 + $0x4c] sm:$0xf]
        %v1214 = vld [vmem:[#allocation2 + $0x50] sm:$0x1]
        %v1215 = vld [vmem:[#allocation2 + $0x54] sm:$0xf]
        %v1216 = vld [vmem:[#allocation2 + $0x58] sm:$0xf]
        %v1217 = vld [vmem:[#allocation2 + $0x5c] sm:$0x1]
        %v1218 = vld [vmem:[#allocation2 + $0x60] sm:$0xf]
        %v1219 = vld [vmem:[#allocation2 + $0x64] sm:$0xf]
        %v1220 = vld [vmem:[#allocation2 + $0x68] sm:$0x1]
        %v1221 = vld [vmem:[#allocation2 + $0x6c] sm:$0xf]
        %v1222 = vld [vmem:[#allocation2 + $0x70] sm:$0xf]
        %v1223 = vld [vmem:[#allocation2 + $0x74] sm:$0x1]
        %v1224 = vld [vmem:[#allocation2 + $0x78] sm:$0xf]
        %v1225 = vld [vmem:[#allocation2 + $0x7c] sm:$0xf]
        %v1226 = vld [vmem:[#allocation2 + $0x80] sm:$0x1]
        %v1227 = vld [vmem:[#allocation2 + $0x84] sm:$0xf]
        %v1228 = vld [vmem:[#allocation2 + $0x88] sm:$0xf]
        %v1229 = vld [vmem:[#allocation2 + $0x8c] sm:$0x1]
        %v1230 = vld [vmem:[#allocation2 + $0x90] sm:$0xf]
        %v1231 = vld [vmem:[#allocation2 + $0x94] sm:$0xf]
        %v1232 = vld [vmem:[#allocation2 + $0x98] sm:$0x1]
        %v1233 = vld [vmem:[#allocation2 + $0x9c] sm:$0xf]
        %v1234 = vld [vmem:[#allocation2 + $0xa0] sm:$0xf]
        %v1235 = vld [vmem:[#allocation2 + $0xa4] sm:$0x1]
        %v1236 = vld [vmem:[#allocation2 + $0xa8] sm:$0xf]
        %v1237 = vld [vmem:[#allocation2 + $0xac] sm:$0xf]
        %v1238 = vld [vmem:[#allocation2 + $0xb0] sm:$0x1]
        %v1239 = vld [vmem:[#allocation2 + $0xb4] sm:$0xf]
        %v1240 = vld [vmem:[#allocation2 + $0xb8] sm:$0xf]
        %v1241 = vld [vmem:[#allocation2 + $0xbc] sm:$0x1]
        %vm1242 = vsmask.f32 3328
        %vm1243 = vsmask.f32 7440
        %vm1244 = vmor %vm1242, %vm1243
        %v1246 = vshrl.u32 %v1194, 16
        %v1248 = vrot.slane %v1246, 4
        %v1249 = vshll.u32 %v1194, 16
        %v1251 = vrot.slane %v1249, 5
        %v1252 = vor.u32 %v1248, %v1251
        %v1253 = vrot.slane %v1252, 4
        %v1255 = vshll.u32 %v1195, 16
        %v1257 = vrot.slane %v1255, 5
        %v1258 = vsel %vm1244, %v1253, %v1257
        %v1259 = vshrl.u32 %v1195, 16
        %v1261 = vrot.slane %v1259, 4
        %v1262 = vor.u32 %v1261, %v1257
        %v1263 = vrot.slane %v1262, 4
        %v1265 = vshll.u32 %v1196, 16
        %v1267 = vrot.slane %v1265, 5
        %v1268 = vsel %vm1244, %v1263, %v1267
        %v1270 = vshrl.u32 %v1197, 16
        %v1272 = vrot.slane %v1270, 4
        %v1273 = vshll.u32 %v1197, 16
        %v1275 = vrot.slane %v1273, 5
        %v1276 = vor.u32 %v1272, %v1275
        %v1277 = vrot.slane %v1276, 4
        %v1279 = vshll.u32 %v1198, 16
        %v1281 = vrot.slane %v1279, 5
        %v1282 = vsel %vm1244, %v1277, %v1281
        %v1283 = vshrl.u32 %v1198, 16
        %v1285 = vrot.slane %v1283, 4
        %v1286 = vor.u32 %v1285, %v1281
        %v1287 = vrot.slane %v1286, 4
        %v1289 = vshll.u32 %v1199, 16
        %v1291 = vrot.slane %v1289, 5
        %v1292 = vsel %vm1244, %v1287, %v1291
        %v1294 = vshrl.u32 %v1200, 16
        %v1296 = vrot.slane %v1294, 4
        %v1297 = vshll.u32 %v1200, 16
        %v1299 = vrot.slane %v1297, 5
        %v1300 = vor.u32 %v1296, %v1299
        %v1301 = vrot.slane %v1300, 4
        %v1303 = vshll.u32 %v1201, 16
        %v1305 = vrot.slane %v1303, 5
        %v1306 = vsel %vm1244, %v1301, %v1305
        %v1307 = vshrl.u32 %v1201, 16
        %v1309 = vrot.slane %v1307, 4
        %v1310 = vor.u32 %v1309, %v1305
        %v1311 = vrot.slane %v1310, 4
        %v1313 = vshll.u32 %v1202, 16
        %v1315 = vrot.slane %v1313, 5
        %v1316 = vsel %vm1244, %v1311, %v1315
        %v1318 = vshrl.u32 %v1203, 16
        %v1320 = vrot.slane %v1318, 4
        %v1321 = vshll.u32 %v1203, 16
        %v1323 = vrot.slane %v1321, 5
        %v1324 = vor.u32 %v1320, %v1323
        %v1325 = vrot.slane %v1324, 4
        %v1327 = vshll.u32 %v1204, 16
        %v1329 = vrot.slane %v1327, 5
        %v1330 = vsel %vm1244, %v1325, %v1329
        %v1331 = vshrl.u32 %v1204, 16
        %v1333 = vrot.slane %v1331, 4
        %v1334 = vor.u32 %v1333, %v1329
        %v1335 = vrot.slane %v1334, 4
        %v1337 = vshll.u32 %v1205, 16
        %v1339 = vrot.slane %v1337, 5
        %v1340 = vsel %vm1244, %v1335, %v1339
        %v1342 = vshrl.u32 %v1206, 16
        %v1344 = vrot.slane %v1342, 4
        %v1345 = vshll.u32 %v1206, 16
        %v1347 = vrot.slane %v1345, 5
        %v1348 = vor.u32 %v1344, %v1347
        %v1349 = vrot.slane %v1348, 4
        %v1351 = vshll.u32 %v1207, 16
        %v1353 = vrot.slane %v1351, 5
        %v1354 = vsel %vm1244, %v1349, %v1353
        %v1355 = vshrl.u32 %v1207, 16
        %v1357 = vrot.slane %v1355, 4
        %v1358 = vor.u32 %v1357, %v1353
        %v1359 = vrot.slane %v1358, 4
        %v1361 = vshll.u32 %v1208, 16
        %v1363 = vrot.slane %v1361, 5
        %v1364 = vsel %vm1244, %v1359, %v1363
        %v1366 = vshrl.u32 %v1209, 16
        %v1368 = vrot.slane %v1366, 4
        %v1369 = vshll.u32 %v1209, 16
        %v1371 = vrot.slane %v1369, 5
        %v1372 = vor.u32 %v1368, %v1371
        %v1373 = vrot.slane %v1372, 4
        %v1375 = vshll.u32 %v1210, 16
        %v1377 = vrot.slane %v1375, 5
        %v1378 = vsel %vm1244, %v1373, %v1377
        %v1379 = vshrl.u32 %v1210, 16
        %v1381 = vrot.slane %v1379, 4
        %v1382 = vor.u32 %v1381, %v1377
        %v1383 = vrot.slane %v1382, 4
        %v1385 = vshll.u32 %v1211, 16
        %v1387 = vrot.slane %v1385, 5
        %v1388 = vsel %vm1244, %v1383, %v1387
        %v1390 = vshrl.u32 %v1212, 16
        %v1392 = vrot.slane %v1390, 4
        %v1393 = vshll.u32 %v1212, 16
        %v1395 = vrot.slane %v1393, 5
        %v1396 = vor.u32 %v1392, %v1395
        %v1397 = vrot.slane %v1396, 4
        %v1399 = vshll.u32 %v1213, 16
        %v1401 = vrot.slane %v1399, 5
        %v1402 = vsel %vm1244, %v1397, %v1401
        %v1403 = vshrl.u32 %v1213, 16
        %v1405 = vrot.slane %v1403, 4
        %v1406 = vor.u32 %v1405, %v1401
        %v1407 = vrot.slane %v1406, 4
        %v1409 = vshll.u32 %v1214, 16
        %v1411 = vrot.slane %v1409, 5
        %v1412 = vsel %vm1244, %v1407, %v1411
        %v1414 = vshrl.u32 %v1215, 16
        %v1416 = vrot.slane %v1414, 4
        %v1417 = vshll.u32 %v1215, 16
        %v1419 = vrot.slane %v1417, 5
        %v1420 = vor.u32 %v1416, %v1419
        %v1421 = vrot.slane %v1420, 4
        %v1423 = vshll.u32 %v1216, 16
        %v1425 = vrot.slane %v1423, 5
        %v1426 = vsel %vm1244, %v1421, %v1425
        %v1427 = vshrl.u32 %v1216, 16
        %v1429 = vrot.slane %v1427, 4
        %v1430 = vor.u32 %v1429, %v1425
        %v1431 = vrot.slane %v1430, 4
        %v1433 = vshll.u32 %v1217, 16
        %v1435 = vrot.slane %v1433, 5
        %v1436 = vsel %vm1244, %v1431, %v1435
        %v1438 = vshrl.u32 %v1218, 16
        %v1440 = vrot.slane %v1438, 4
        %v1441 = vshll.u32 %v1218, 16
        %v1443 = vrot.slane %v1441, 5
        %v1444 = vor.u32 %v1440, %v1443
        %v1445 = vrot.slane %v1444, 4
        %v1447 = vshll.u32 %v1219, 16
        %v1449 = vrot.slane %v1447, 5
        %v1450 = vsel %vm1244, %v1445, %v1449
        %v1451 = vshrl.u32 %v1219, 16
        %v1453 = vrot.slane %v1451, 4
        %v1454 = vor.u32 %v1453, %v1449
        %v1455 = vrot.slane %v1454, 4
        %v1457 = vshll.u32 %v1220, 16
        %v1459 = vrot.slane %v1457, 5
        %v1460 = vsel %vm1244, %v1455, %v1459
        %v1462 = vshrl.u32 %v1221, 16
        %v1464 = vrot.slane %v1462, 4
        %v1465 = vshll.u32 %v1221, 16
        %v1467 = vrot.slane %v1465, 5
        %v1468 = vor.u32 %v1464, %v1467
        %v1469 = vrot.slane %v1468, 4
        %v1471 = vshll.u32 %v1222, 16
        %v1473 = vrot.slane %v1471, 5
        %v1474 = vsel %vm1244, %v1469, %v1473
        %v1475 = vshrl.u32 %v1222, 16
        %v1477 = vrot.slane %v1475, 4
        %v1478 = vor.u32 %v1477, %v1473
        %v1479 = vrot.slane %v1478, 4
        %v1481 = vshll.u32 %v1223, 16
        %v1483 = vrot.slane %v1481, 5
        %v1484 = vsel %vm1244, %v1479, %v1483
        %v1486 = vshrl.u32 %v1224, 16
        %v1488 = vrot.slane %v1486, 4
        %v1489 = vshll.u32 %v1224, 16
        %v1491 = vrot.slane %v1489, 5
        %v1492 = vor.u32 %v1488, %v1491
        %v1493 = vrot.slane %v1492, 4
        %v1495 = vshll.u32 %v1225, 16
        %v1497 = vrot.slane %v1495, 5
        %v1498 = vsel %vm1244, %v1493, %v1497
        %v1499 = vshrl.u32 %v1225, 16
        %v1501 = vrot.slane %v1499, 4
        %v1502 = vor.u32 %v1501, %v1497
        %v1503 = vrot.slane %v1502, 4
        %v1505 = vshll.u32 %v1226, 16
        %v1507 = vrot.slane %v1505, 5
        %v1508 = vsel %vm1244, %v1503, %v1507
        %v1510 = vshrl.u32 %v1227, 16
        %v1512 = vrot.slane %v1510, 4
        %v1513 = vshll.u32 %v1227, 16
        %v1515 = vrot.slane %v1513, 5
        %v1516 = vor.u32 %v1512, %v1515
        %v1517 = vrot.slane %v1516, 4
        %v1519 = vshll.u32 %v1228, 16
        %v1521 = vrot.slane %v1519, 5
        %v1522 = vsel %vm1244, %v1517, %v1521
        %v1523 = vshrl.u32 %v1228, 16
        %v1525 = vrot.slane %v1523, 4
        %v1526 = vor.u32 %v1525, %v1521
        %v1527 = vrot.slane %v1526, 4
        %v1529 = vshll.u32 %v1229, 16
        %v1531 = vrot.slane %v1529, 5
        %v1532 = vsel %vm1244, %v1527, %v1531
        %v1534 = vshrl.u32 %v1230, 16
        %v1536 = vrot.slane %v1534, 4
        %v1537 = vshll.u32 %v1230, 16
        %v1539 = vrot.slane %v1537, 5
        %v1540 = vor.u32 %v1536, %v1539
        %v1541 = vrot.slane %v1540, 4
        %v1543 = vshll.u32 %v1231, 16
        %v1545 = vrot.slane %v1543, 5
        %v1546 = vsel %vm1244, %v1541, %v1545
        %v1547 = vshrl.u32 %v1231, 16
        %v1549 = vrot.slane %v1547, 4
        %v1550 = vor.u32 %v1549, %v1545
        %v1551 = vrot.slane %v1550, 4
        %v1553 = vshll.u32 %v1232, 16
        %v1555 = vrot.slane %v1553, 5
        %v1556 = vsel %vm1244, %v1551, %v1555
        %v1558 = vshrl.u32 %v1233, 16
        %v1560 = vrot.slane %v1558, 4
        %v1561 = vshll.u32 %v1233, 16
        %v1563 = vrot.slane %v1561, 5
        %v1564 = vor.u32 %v1560, %v1563
        %v1565 = vrot.slane %v1564, 4
        %v1567 = vshll.u32 %v1234, 16
        %v1569 = vrot.slane %v1567, 5
        %v1570 = vsel %vm1244, %v1565, %v1569
        %v1571 = vshrl.u32 %v1234, 16
        %v1573 = vrot.slane %v1571, 4
        %v1574 = vor.u32 %v1573, %v1569
        %v1575 = vrot.slane %v1574, 4
        %v1577 = vshll.u32 %v1235, 16
        %v1579 = vrot.slane %v1577, 5
        %v1580 = vsel %vm1244, %v1575, %v1579
        %v1582 = vshrl.u32 %v1236, 16
        %v1584 = vrot.slane %v1582, 4
        %v1585 = vshll.u32 %v1236, 16
        %v1587 = vrot.slane %v1585, 5
        %v1588 = vor.u32 %v1584, %v1587
        %v1589 = vrot.slane %v1588, 4
        %v1591 = vshll.u32 %v1237, 16
        %v1593 = vrot.slane %v1591, 5
        %v1594 = vsel %vm1244, %v1589, %v1593
        %v1595 = vshrl.u32 %v1237, 16
        %v1597 = vrot.slane %v1595, 4
        %v1598 = vor.u32 %v1597, %v1593
        %v1599 = vrot.slane %v1598, 4
        %v1601 = vshll.u32 %v1238, 16
        %v1603 = vrot.slane %v1601, 5
        %v1604 = vsel %vm1244, %v1599, %v1603
        %v1606 = vshrl.u32 %v1239, 16
        %v1608 = vrot.slane %v1606, 4
        %v1609 = vshll.u32 %v1239, 16
        %v1611 = vrot.slane %v1609, 5
        %v1612 = vor.u32 %v1608, %v1611
        %v1613 = vrot.slane %v1612, 4
        %v1615 = vshll.u32 %v1240, 16
        %v1617 = vrot.slane %v1615, 5
        %v1618 = vsel %vm1244, %v1613, %v1617
        %v1619 = vshrl.u32 %v1240, 16
        %v1621 = vrot.slane %v1619, 4
        %v1622 = vor.u32 %v1621, %v1617
        %v1623 = vrot.slane %v1622, 4
        %v1625 = vshll.u32 %v1241, 16
        %v1627 = vrot.slane %v1625, 5
        %v1628 = vsel %vm1244, %v1623, %v1627
        %v1629 = vunpack.c.l.b16 %v1258
        %v1630 = vunpack.c.l.b16 %v1268
        %v1631 = vunpack.c.l.b16 %v1282
        %v1632 = vunpack.c.l.b16 %v1292
        %v1633 = vunpack.c.l.b16 %v1306
        %v1634 = vunpack.c.l.b16 %v1316
        %v1635 = vunpack.c.l.b16 %v1330
        %v1636 = vunpack.c.l.b16 %v1340
        %v1637 = vunpack.c.l.b16 %v1354
        %v1638 = vunpack.c.l.b16 %v1364
        %v1639 = vunpack.c.l.b16 %v1378
        %v1640 = vunpack.c.l.b16 %v1388
        %v1641 = vunpack.c.l.b16 %v1402
        %v1642 = vunpack.c.l.b16 %v1412
        %v1643 = vunpack.c.l.b16 %v1426
        %v1644 = vunpack.c.l.b16 %v1436
        %v1645 = vunpack.c.l.b16 %v1450
        %v1646 = vunpack.c.l.b16 %v1460
        %v1647 = vunpack.c.l.b16 %v1474
        %v1648 = vunpack.c.l.b16 %v1484
        %v1649 = vunpack.c.l.b16 %v1498
        %v1650 = vunpack.c.l.b16 %v1508
        %v1651 = vunpack.c.l.b16 %v1522
        %v1652 = vunpack.c.l.b16 %v1532
        %v1653 = vunpack.c.l.b16 %v1546
        %v1654 = vunpack.c.l.b16 %v1556
        %v1655 = vunpack.c.l.b16 %v1570
        %v1656 = vunpack.c.l.b16 %v1580
        %v1657 = vunpack.c.l.b16 %v1594
        %v1658 = vunpack.c.l.b16 %v1604
        %v1659 = vunpack.c.l.b16 %v1618
        %v1660 = vunpack.c.l.b16 %v1628
        %v1661 = vpack.c.b16 %v1630, %v1629
        %v1662 = vpack.c.b16 %v1632, %v1631
        %v1663 = vpack.c.b16 %v1634, %v1633
        %v1664 = vpack.c.b16 %v1636, %v1635
        %v1665 = vpack.c.b16 %v1638, %v1637
        %v1666 = vpack.c.b16 %v1640, %v1639
        %v1667 = vpack.c.b16 %v1642, %v1641
        %v1668 = vpack.c.b16 %v1644, %v1643
        %v1669 = vpack.c.b16 %v1646, %v1645
        %v1670 = vpack.c.b16 %v1648, %v1647
        %v1671 = vpack.c.b16 %v1650, %v1649
        %v1672 = vpack.c.b16 %v1652, %v1651
        %v1673 = vpack.c.b16 %v1654, %v1653
        %v1674 = vpack.c.b16 %v1656, %v1655
        %v1675 = vpack.c.b16 %v1658, %v1657
        %v1676 = vpack.c.b16 %v1660, %v1659
        %1693 = vst [vmem:[#allocation3 + $0x8] sm:$0xff] %v1661
        %1694 = vst [vmem:[#allocation3 + $0x50] sm:$0xff] %v1662
        %1695 = vst [vmem:[#allocation3 + $0x98] sm:$0xff] %v1663
        %1696 = vst [vmem:[#allocation3 + $0xe0] sm:$0xff] %v1664
        %1697 = vst [vmem:[#allocation3 + $0x128] sm:$0xff] %v1665
        %1698 = vst [vmem:[#allocation3 + $0x170] sm:$0xff] %v1666
        %1699 = vst [vmem:[#allocation3 + $0x1b8] sm:$0xff] %v1667
        %1700 = vst [vmem:[#allocation3 + $0x200] sm:$0xff] %v1668
        %1701 = vst [vmem:[#allocation3 + $0x248] sm:$0xff] %v1669
        %1702 = vst [vmem:[#allocation3 + $0x290] sm:$0xff] %v1670
        %1703 = vst [vmem:[#allocation3 + $0x2d8] sm:$0xff] %v1671
        %1704 = vst [vmem:[#allocation3 + $0x320] sm:$0xff] %v1672
        %1705 = vst [vmem:[#allocation3 + $0x368] sm:$0xff] %v1673
        %1706 = vst [vmem:[#allocation3 + $0x3b0] sm:$0xff] %v1674
        %1707 = vst [vmem:[#allocation3 + $0x3f8] sm:$0xff] %v1675
        %1708 = vst [vmem:[#allocation3 + $0x440] sm:$0xff] %v1676
        %v1709 = vld [vmem:[#allocation2] sm:$0xe]
        %v1710 = vld [vmem:[#allocation2 + $0x4] sm:$0xf]
        %v1711 = vld [vmem:[#allocation2 + $0x8] sm:$0x1]
        %v1712 = vld [vmem:[#allocation2 + $0xc] sm:$0xe]
        %v1713 = vld [vmem:[#allocation2 + $0x10] sm:$0xf]
        %v1714 = vld [vmem:[#allocation2 + $0x14] sm:$0x1]
        %v1715 = vld [vmem:[#allocation2 + $0x18] sm:$0xe]
        %v1716 = vld [vmem:[#allocation2 + $0x1c] sm:$0xf]
        %v1717 = vld [vmem:[#allocation2 + $0x20] sm:$0x1]
        %v1718 = vld [vmem:[#allocation2 + $0x24] sm:$0xe]
        %v1719 = vld [vmem:[#allocation2 + $0x28] sm:$0xf]
        %v1720 = vld [vmem:[#allocation2 + $0x2c] sm:$0x1]
        %v1721 = vld [vmem:[#allocation2 + $0x30] sm:$0xe]
        %v1722 = vld [vmem:[#allocation2 + $0x34] sm:$0xf]
        %v1723 = vld [vmem:[#allocation2 + $0x38] sm:$0x1]
        %v1724 = vld [vmem:[#allocation2 + $0x3c] sm:$0xe]
        %v1725 = vld [vmem:[#allocation2 + $0x40] sm:$0xf]
        %v1726 = vld [vmem:[#allocation2 + $0x44] sm:$0x1]
        %v1727 = vld [vmem:[#allocation2 + $0x48] sm:$0xe]
        %v1728 = vld [vmem:[#allocation2 + $0x4c] sm:$0xf]
        %v1729 = vld [vmem:[#allocation2 + $0x50] sm:$0x1]
        %v1730 = vld [vmem:[#allocation2 + $0x54] sm:$0xe]
        %v1731 = vld [vmem:[#allocation2 + $0x58] sm:$0xf]
        %v1732 = vld [vmem:[#allocation2 + $0x5c] sm:$0x1]
        %v1733 = vld [vmem:[#allocation2 + $0x60] sm:$0xe]
        %v1734 = vld [vmem:[#allocation2 + $0x64] sm:$0xf]
        %v1735 = vld [vmem:[#allocation2 + $0x68] sm:$0x1]
        %v1736 = vld [vmem:[#allocation2 + $0x6c] sm:$0xe]
        %v1737 = vld [vmem:[#allocation2 + $0x70] sm:$0xf]
        %v1738 = vld [vmem:[#allocation2 + $0x74] sm:$0x1]
        %v1739 = vld [vmem:[#allocation2 + $0x78] sm:$0xe]
        %v1740 = vld [vmem:[#allocation2 + $0x7c] sm:$0xf]
        %v1741 = vld [vmem:[#allocation2 + $0x80] sm:$0x1]
        %v1742 = vld [vmem:[#allocation2 + $0x84] sm:$0xe]
        %v1743 = vld [vmem:[#allocation2 + $0x88] sm:$0xf]
        %v1744 = vld [vmem:[#allocation2 + $0x8c] sm:$0x1]
        %v1745 = vld [vmem:[#allocation2 + $0x90] sm:$0xe]
        %v1746 = vld [vmem:[#allocation2 + $0x94] sm:$0xf]
        %v1747 = vld [vmem:[#allocation2 + $0x98] sm:$0x1]
        %v1748 = vld [vmem:[#allocation2 + $0x9c] sm:$0xe]
        %v1749 = vld [vmem:[#allocation2 + $0xa0] sm:$0xf]
        %v1750 = vld [vmem:[#allocation2 + $0xa4] sm:$0x1]
        %v1751 = vld [vmem:[#allocation2 + $0xa8] sm:$0xe]
        %v1752 = vld [vmem:[#allocation2 + $0xac] sm:$0xf]
        %v1753 = vld [vmem:[#allocation2 + $0xb0] sm:$0x1]
        %v1754 = vld [vmem:[#allocation2 + $0xb4] sm:$0xe]
        %v1755 = vld [vmem:[#allocation2 + $0xb8] sm:$0xf]
        %v1756 = vld [vmem:[#allocation2 + $0xbc] sm:$0x1]
        %vm1805 = vcmask 1042432
        %vm1806 = vcmask 1046532
        %vm1807 = vmor %vm1805, %vm1806
        %v1808 = vrot.slane %v1709, 5
        %v1809 = vrot.slane %v1808, 4
        %v1810 = vrot.slane %v1710, 5
        %v1811 = vsel %vm1807, %v1809, %v1810
        %v1812 = vrot.slane %v1810, 4
        %v1813 = vrot.slane %v1711, 5
        %v1814 = vsel %vm1807, %v1812, %v1813
        %v1815 = vrot.slane %v1712, 5
        %v1816 = vrot.slane %v1815, 4
        %v1817 = vrot.slane %v1713, 5
        %v1818 = vsel %vm1807, %v1816, %v1817
        %v1819 = vrot.slane %v1817, 4
        %v1820 = vrot.slane %v1714, 5
        %v1821 = vsel %vm1807, %v1819, %v1820
        %v1822 = vrot.slane %v1715, 5
        %v1823 = vrot.slane %v1822, 4
        %v1824 = vrot.slane %v1716, 5
        %v1825 = vsel %vm1807, %v1823, %v1824
        %v1826 = vrot.slane %v1824, 4
        %v1827 = vrot.slane %v1717, 5
        %v1828 = vsel %vm1807, %v1826, %v1827
        %v1829 = vrot.slane %v1718, 5
        %v1830 = vrot.slane %v1829, 4
        %v1831 = vrot.slane %v1719, 5
        %v1832 = vsel %vm1807, %v1830, %v1831
        %v1833 = vrot.slane %v1831, 4
        %v1834 = vrot.slane %v1720, 5
        %v1835 = vsel %vm1807, %v1833, %v1834
        %v1836 = vrot.slane %v1721, 5
        %v1837 = vrot.slane %v1836, 4
        %v1838 = vrot.slane %v1722, 5
        %v1839 = vsel %vm1807, %v1837, %v1838
        %v1840 = vrot.slane %v1838, 4
        %v1841 = vrot.slane %v1723, 5
        %v1842 = vsel %vm1807, %v1840, %v1841
        %v1843 = vrot.slane %v1724, 5
        %v1844 = vrot.slane %v1843, 4
        %v1845 = vrot.slane %v1725, 5
        %v1846 = vsel %vm1807, %v1844, %v1845
        %v1847 = vrot.slane %v1845, 4
        %v1848 = vrot.slane %v1726, 5
        %v1849 = vsel %vm1807, %v1847, %v1848
        %v1850 = vrot.slane %v1727, 5
        %v1851 = vrot.slane %v1850, 4
        %v1852 = vrot.slane %v1728, 5
        %v1853 = vsel %vm1807, %v1851, %v1852
        %v1854 = vrot.slane %v1852, 4
        %v1855 = vrot.slane %v1729, 5
        %v1856 = vsel %vm1807, %v1854, %v1855
        %v1857 = vrot.slane %v1730, 5
        %v1858 = vrot.slane %v1857, 4
        %v1859 = vrot.slane %v1731, 5
        %v1860 = vsel %vm1807, %v1858, %v1859
        %v1861 = vrot.slane %v1859, 4
        %v1862 = vrot.slane %v1732, 5
        %v1863 = vsel %vm1807, %v1861, %v1862
        %v1864 = vrot.slane %v1733, 5
        %v1865 = vrot.slane %v1864, 4
        %v1866 = vrot.slane %v1734, 5
        %v1867 = vsel %vm1807, %v1865, %v1866
        %v1868 = vrot.slane %v1866, 4
        %v1869 = vrot.slane %v1735, 5
        %v1870 = vsel %vm1807, %v1868, %v1869
        %v1871 = vrot.slane %v1736, 5
        %v1872 = vrot.slane %v1871, 4
        %v1873 = vrot.slane %v1737, 5
        %v1874 = vsel %vm1807, %v1872, %v1873
        %v1875 = vrot.slane %v1873, 4
        %v1876 = vrot.slane %v1738, 5
        %v1877 = vsel %vm1807, %v1875, %v1876
        %v1878 = vrot.slane %v1739, 5
        %v1879 = vrot.slane %v1878, 4
        %v1880 = vrot.slane %v1740, 5
        %v1881 = vsel %vm1807, %v1879, %v1880
        %v1882 = vrot.slane %v1880, 4
        %v1883 = vrot.slane %v1741, 5
        %v1884 = vsel %vm1807, %v1882, %v1883
        %v1885 = vrot.slane %v1742, 5
        %v1886 = vrot.slane %v1885, 4
        %v1887 = vrot.slane %v1743, 5
        %v1888 = vsel %vm1807, %v1886, %v1887
        %v1889 = vrot.slane %v1887, 4
        %v1890 = vrot.slane %v1744, 5
        %v1891 = vsel %vm1807, %v1889, %v1890
        %v1892 = vrot.slane %v1745, 5
        %v1893 = vrot.slane %v1892, 4
        %v1894 = vrot.slane %v1746, 5
        %v1895 = vsel %vm1807, %v1893, %v1894
        %v1896 = vrot.slane %v1894, 4
        %v1897 = vrot.slane %v1747, 5
        %v1898 = vsel %vm1807, %v1896, %v1897
        %v1899 = vrot.slane %v1748, 5
        %v1900 = vrot.slane %v1899, 4
        %v1901 = vrot.slane %v1749, 5
        %v1902 = vsel %vm1807, %v1900, %v1901
        %v1903 = vrot.slane %v1901, 4
        %v1904 = vrot.slane %v1750, 5
        %v1905 = vsel %vm1807, %v1903, %v1904
        %v1906 = vrot.slane %v1751, 5
        %v1907 = vrot.slane %v1906, 4
        %v1908 = vrot.slane %v1752, 5
        %v1909 = vsel %vm1807, %v1907, %v1908
        %v1910 = vrot.slane %v1908, 4
        %v1911 = vrot.slane %v1753, 5
        %v1912 = vsel %vm1807, %v1910, %v1911
        %v1913 = vrot.slane %v1754, 5
        %v1914 = vrot.slane %v1913, 4
        %v1915 = vrot.slane %v1755, 5
        %v1916 = vsel %vm1807, %v1914, %v1915
        %v1917 = vrot.slane %v1915, 4
        %v1918 = vrot.slane %v1756, 5
        %v1919 = vsel %vm1807, %v1917, %v1918
        %v1920 = vunpack.c.l.b16 %v1811
        %v1921 = vunpack.c.l.b16 %v1814
        %v1922 = vunpack.c.l.b16 %v1818
        %v1923 = vunpack.c.l.b16 %v1821
        %v1924 = vunpack.c.l.b16 %v1825
        %v1925 = vunpack.c.l.b16 %v1828
        %v1926 = vunpack.c.l.b16 %v1832
        %v1927 = vunpack.c.l.b16 %v1835
        %v1928 = vunpack.c.l.b16 %v1839
        %v1929 = vunpack.c.l.b16 %v1842
        %v1930 = vunpack.c.l.b16 %v1846
        %v1931 = vunpack.c.l.b16 %v1849
        %v1932 = vunpack.c.l.b16 %v1853
        %v1933 = vunpack.c.l.b16 %v1856
        %v1934 = vunpack.c.l.b16 %v1860
        %v1935 = vunpack.c.l.b16 %v1863
        %v1936 = vunpack.c.l.b16 %v1867
        %v1937 = vunpack.c.l.b16 %v1870
        %v1938 = vunpack.c.l.b16 %v1874
        %v1939 = vunpack.c.l.b16 %v1877
        %v1940 = vunpack.c.l.b16 %v1881
        %v1941 = vunpack.c.l.b16 %v1884
        %v1942 = vunpack.c.l.b16 %v1888
        %v1943 = vunpack.c.l.b16 %v1891
        %v1944 = vunpack.c.l.b16 %v1895
        %v1945 = vunpack.c.l.b16 %v1898
        %v1946 = vunpack.c.l.b16 %v1902
        %v1947 = vunpack.c.l.b16 %v1905
        %v1948 = vunpack.c.l.b16 %v1909
        %v1949 = vunpack.c.l.b16 %v1912
        %v1950 = vunpack.c.l.b16 %v1916
        %v1951 = vunpack.c.l.b16 %v1919
        %v1952 = vpack.c.b16 %v1921, %v1920
        %v1953 = vpack.c.b16 %v1923, %v1922
        %v1954 = vpack.c.b16 %v1925, %v1924
        %v1955 = vpack.c.b16 %v1927, %v1926
        %v1956 = vpack.c.b16 %v1929, %v1928
        %v1957 = vpack.c.b16 %v1931, %v1930
        %v1958 = vpack.c.b16 %v1933, %v1932
        %v1959 = vpack.c.b16 %v1935, %v1934
        %v1960 = vpack.c.b16 %v1937, %v1936
        %v1961 = vpack.c.b16 %v1939, %v1938
        %v1962 = vpack.c.b16 %v1941, %v1940
        %v1963 = vpack.c.b16 %v1943, %v1942
        %v1964 = vpack.c.b16 %v1945, %v1944
        %v1965 = vpack.c.b16 %v1947, %v1946
        %v1966 = vpack.c.b16 %v1949, %v1948
        %v1967 = vpack.c.b16 %v1951, %v1950
        %1984 = vst [vmem:[#allocation3 + $0x10] sm:$0xff] %v1952
        %1985 = vst [vmem:[#allocation3 + $0x58] sm:$0xff] %v1953
        %1986 = vst [vmem:[#allocation3 + $0xa0] sm:$0xff] %v1954
        %1987 = vst [vmem:[#allocation3 + $0xe8] sm:$0xff] %v1955
        %1988 = vst [vmem:[#allocation3 + $0x130] sm:$0xff] %v1956
        %1989 = vst [vmem:[#allocation3 + $0x178] sm:$0xff] %v1957
        %1990 = vst [vmem:[#allocation3 + $0x1c0] sm:$0xff] %v1958
        %1991 = vst [vmem:[#allocation3 + $0x208] sm:$0xff] %v1959
        %1992 = vst [vmem:[#allocation3 + $0x250] sm:$0xff] %v1960
        %1993 = vst [vmem:[#allocation3 + $0x298] sm:$0xff] %v1961
        %1994 = vst [vmem:[#allocation3 + $0x2e0] sm:$0xff] %v1962
        %1995 = vst [vmem:[#allocation3 + $0x328] sm:$0xff] %v1963
        %1996 = vst [vmem:[#allocation3 + $0x370] sm:$0xff] %v1964
        %1997 = vst [vmem:[#allocation3 + $0x3b8] sm:$0xff] %v1965
        %1998 = vst [vmem:[#allocation3 + $0x400] sm:$0xff] %v1966
        %1999 = vst [vmem:[#allocation3 + $0x448] sm:$0xff] %v1967
        %v2000 = vld [vmem:[%s935] sm:$0xf]
        %v2001 = vld [vmem:[%s935 + $0x4] sm:$0xf]
        %v2002 = vld [vmem:[%s935 + $0xc] sm:$0xf]
        %v2003 = vld [vmem:[%s935 + $0x10] sm:$0xf]
        %v2004 = vld [vmem:[%s935 + $0x18] sm:$0xf]
        %v2005 = vld [vmem:[%s935 + $0x1c] sm:$0xf]
        %v2006 = vld [vmem:[%s935 + $0x24] sm:$0xf]
        %v2007 = vld [vmem:[%s935 + $0x28] sm:$0xf]
        %v2008 = vld [vmem:[%s935 + $0x30] sm:$0xf]
        %v2009 = vld [vmem:[%s935 + $0x34] sm:$0xf]
        %v2010 = vld [vmem:[%s935 + $0x3c] sm:$0xf]
        %v2011 = vld [vmem:[%s935 + $0x40] sm:$0xf]
        %v2012 = vld [vmem:[%s935 + $0x48] sm:$0xf]
        %v2013 = vld [vmem:[%s935 + $0x4c] sm:$0xf]
        %v2014 = vld [vmem:[%s935 + $0x54] sm:$0xf]
        %v2015 = vld [vmem:[%s935 + $0x58] sm:$0xf]
        %v2016 = vld [vmem:[%s935 + $0x60] sm:$0xf]
        %v2017 = vld [vmem:[%s935 + $0x64] sm:$0xf]
        %v2018 = vld [vmem:[%s935 + $0x6c] sm:$0xf]
        %v2019 = vld [vmem:[%s935 + $0x70] sm:$0xf]
        %v2020 = vld [vmem:[%s935 + $0x78] sm:$0xf]
        %v2021 = vld [vmem:[%s935 + $0x7c] sm:$0xf]
        %v2022 = vld [vmem:[%s935 + $0x84] sm:$0xf]
        %v2023 = vld [vmem:[%s935 + $0x88] sm:$0xf]
        %v2024 = vld [vmem:[%s935 + $0x90] sm:$0xf]
        %v2025 = vld [vmem:[%s935 + $0x94] sm:$0xf]
        %v2026 = vld [vmem:[%s935 + $0x9c] sm:$0xf]
        %v2027 = vld [vmem:[%s935 + $0xa0] sm:$0xf]
        %v2028 = vld [vmem:[%s935 + $0xa8] sm:$0xf]
        %v2029 = vld [vmem:[%s935 + $0xac] sm:$0xf]
        %v2030 = vld [vmem:[%s935 + $0xb4] sm:$0xf]
        %v2031 = vld [vmem:[%s935 + $0xb8] sm:$0xf]
        %v2064 = vunpack.c.l.b16 %v2000
        %v2065 = vunpack.c.l.b16 %v2001
        %v2066 = vunpack.c.l.b16 %v2002
        %v2067 = vunpack.c.l.b16 %v2003
        %v2068 = vunpack.c.l.b16 %v2004
        %v2069 = vunpack.c.l.b16 %v2005
        %v2070 = vunpack.c.l.b16 %v2006
        %v2071 = vunpack.c.l.b16 %v2007
        %v2072 = vunpack.c.l.b16 %v2008
        %v2073 = vunpack.c.l.b16 %v2009
        %v2074 = vunpack.c.l.b16 %v2010
        %v2075 = vunpack.c.l.b16 %v2011
        %v2076 = vunpack.c.l.b16 %v2012
        %v2077 = vunpack.c.l.b16 %v2013
        %v2078 = vunpack.c.l.b16 %v2014
        %v2079 = vunpack.c.l.b16 %v2015
        %v2080 = vunpack.c.l.b16 %v2016
        %v2081 = vunpack.c.l.b16 %v2017
        %v2082 = vunpack.c.l.b16 %v2018
        %v2083 = vunpack.c.l.b16 %v2019
        %v2084 = vunpack.c.l.b16 %v2020
        %v2085 = vunpack.c.l.b16 %v2021
        %v2086 = vunpack.c.l.b16 %v2022
        %v2087 = vunpack.c.l.b16 %v2023
        %v2088 = vunpack.c.l.b16 %v2024
        %v2089 = vunpack.c.l.b16 %v2025
        %v2090 = vunpack.c.l.b16 %v2026
        %v2091 = vunpack.c.l.b16 %v2027
        %v2092 = vunpack.c.l.b16 %v2028
        %v2093 = vunpack.c.l.b16 %v2029
        %v2094 = vunpack.c.l.b16 %v2030
        %v2095 = vunpack.c.l.b16 %v2031
        %v2096 = vpack.c.b16 %v2065, %v2064
        %v2097 = vpack.c.b16 %v2067, %v2066
        %v2098 = vpack.c.b16 %v2069, %v2068
        %v2099 = vpack.c.b16 %v2071, %v2070
        %v2100 = vpack.c.b16 %v2073, %v2072
        %v2101 = vpack.c.b16 %v2075, %v2074
        %v2102 = vpack.c.b16 %v2077, %v2076
        %v2103 = vpack.c.b16 %v2079, %v2078
        %v2104 = vpack.c.b16 %v2081, %v2080
        %v2105 = vpack.c.b16 %v2083, %v2082
        %v2106 = vpack.c.b16 %v2085, %v2084
        %v2107 = vpack.c.b16 %v2087, %v2086
        %v2108 = vpack.c.b16 %v2089, %v2088
        %v2109 = vpack.c.b16 %v2091, %v2090
        %v2110 = vpack.c.b16 %v2093, %v2092
        %v2111 = vpack.c.b16 %v2095, %v2094
        %2128 = vst [vmem:[#allocation3 + $0x18] sm:$0xff] %v2096
        %2129 = vst [vmem:[#allocation3 + $0x60] sm:$0xff] %v2097
        %2130 = vst [vmem:[#allocation3 + $0xa8] sm:$0xff] %v2098
        %2131 = vst [vmem:[#allocation3 + $0xf0] sm:$0xff] %v2099
        %2132 = vst [vmem:[#allocation3 + $0x138] sm:$0xff] %v2100
        %2133 = vst [vmem:[#allocation3 + $0x180] sm:$0xff] %v2101
        %2134 = vst [vmem:[#allocation3 + $0x1c8] sm:$0xff] %v2102
        %2135 = vst [vmem:[#allocation3 + $0x210] sm:$0xff] %v2103
        %2136 = vst [vmem:[#allocation3 + $0x258] sm:$0xff] %v2104
        %2137 = vst [vmem:[#allocation3 + $0x2a0] sm:$0xff] %v2105
        %2138 = vst [vmem:[#allocation3 + $0x2e8] sm:$0xff] %v2106
        %2139 = vst [vmem:[#allocation3 + $0x330] sm:$0xff] %v2107
        %2140 = vst [vmem:[#allocation3 + $0x378] sm:$0xff] %v2108
        %2141 = vst [vmem:[#allocation3 + $0x3c0] sm:$0xff] %v2109
        %2142 = vst [vmem:[#allocation3 + $0x408] sm:$0xff] %v2110
        %2143 = vst [vmem:[#allocation3 + $0x450] sm:$0xff] %v2111
        %v2144 = vld [vmem:[%s935] sm:$0xf]
        %v2145 = vld [vmem:[%s935 + $0x4] sm:$0xf]
        %v2146 = vld [vmem:[%s935 + $0x8] sm:$0x1]
        %v2147 = vld [vmem:[%s935 + $0xc] sm:$0xf]
        %v2148 = vld [vmem:[%s935 + $0x10] sm:$0xf]
        %v2149 = vld [vmem:[%s935 + $0x14] sm:$0x1]
        %v2150 = vld [vmem:[%s935 + $0x18] sm:$0xf]
        %v2151 = vld [vmem:[%s935 + $0x1c] sm:$0xf]
        %v2152 = vld [vmem:[%s935 + $0x20] sm:$0x1]
        %v2153 = vld [vmem:[%s935 + $0x24] sm:$0xf]
        %v2154 = vld [vmem:[%s935 + $0x28] sm:$0xf]
        %v2155 = vld [vmem:[%s935 + $0x2c] sm:$0x1]
        %v2156 = vld [vmem:[%s935 + $0x30] sm:$0xf]
        %v2157 = vld [vmem:[%s935 + $0x34] sm:$0xf]
        %v2158 = vld [vmem:[%s935 + $0x38] sm:$0x1]
        %v2159 = vld [vmem:[%s935 + $0x3c] sm:$0xf]
        %v2160 = vld [vmem:[%s935 + $0x40] sm:$0xf]
        %v2161 = vld [vmem:[%s935 + $0x44] sm:$0x1]
        %v2162 = vld [vmem:[%s935 + $0x48] sm:$0xf]
        %v2163 = vld [vmem:[%s935 + $0x4c] sm:$0xf]
        %v2164 = vld [vmem:[%s935 + $0x50] sm:$0x1]
        %v2165 = vld [vmem:[%s935 + $0x54] sm:$0xf]
        %v2166 = vld [vmem:[%s935 + $0x58] sm:$0xf]
        %v2167 = vld [vmem:[%s935 + $0x5c] sm:$0x1]
        %v2168 = vld [vmem:[%s935 + $0x60] sm:$0xf]
        %v2169 = vld [vmem:[%s935 + $0x64] sm:$0xf]
        %v2170 = vld [vmem:[%s935 + $0x68] sm:$0x1]
        %v2171 = vld [vmem:[%s935 + $0x6c] sm:$0xf]
        %v2172 = vld [vmem:[%s935 + $0x70] sm:$0xf]
        %v2173 = vld [vmem:[%s935 + $0x74] sm:$0x1]
        %v2174 = vld [vmem:[%s935 + $0x78] sm:$0xf]
        %v2175 = vld [vmem:[%s935 + $0x7c] sm:$0xf]
        %v2176 = vld [vmem:[%s935 + $0x80] sm:$0x1]
        %v2177 = vld [vmem:[%s935 + $0x84] sm:$0xf]
        %v2178 = vld [vmem:[%s935 + $0x88] sm:$0xf]
        %v2179 = vld [vmem:[%s935 + $0x8c] sm:$0x1]
        %v2180 = vld [vmem:[%s935 + $0x90] sm:$0xf]
        %v2181 = vld [vmem:[%s935 + $0x94] sm:$0xf]
        %v2182 = vld [vmem:[%s935 + $0x98] sm:$0x1]
        %v2183 = vld [vmem:[%s935 + $0x9c] sm:$0xf]
        %v2184 = vld [vmem:[%s935 + $0xa0] sm:$0xf]
        %v2185 = vld [vmem:[%s935 + $0xa4] sm:$0x1]
        %v2186 = vld [vmem:[%s935 + $0xa8] sm:$0xf]
        %v2187 = vld [vmem:[%s935 + $0xac] sm:$0xf]
        %v2188 = vld [vmem:[%s935 + $0xb0] sm:$0x1]
        %v2189 = vld [vmem:[%s935 + $0xb4] sm:$0xf]
        %v2190 = vld [vmem:[%s935 + $0xb8] sm:$0xf]
        %v2191 = vld [vmem:[%s935 + $0xbc] sm:$0x1]
        %v2193 = vshrl.u32 %v2144, 16
        %v2195 = vrot.slane %v2193, 4
        %v2196 = vshll.u32 %v2144, 16
        %v2198 = vrot.slane %v2196, 5
        %v2199 = vor.u32 %v2195, %v2198
        %v2200 = vrot.slane %v2199, 4
        %v2202 = vshll.u32 %v2145, 16
        %v2204 = vrot.slane %v2202, 5
        %v2205 = vsel %vm1244, %v2200, %v2204
        %v2206 = vshrl.u32 %v2145, 16
        %v2208 = vrot.slane %v2206, 4
        %v2209 = vor.u32 %v2208, %v2204
        %v2210 = vrot.slane %v2209, 4
        %v2212 = vshll.u32 %v2146, 16
        %v2214 = vrot.slane %v2212, 5
        %v2215 = vsel %vm1244, %v2210, %v2214
        %v2217 = vshrl.u32 %v2147, 16
        %v2219 = vrot.slane %v2217, 4
        %v2220 = vshll.u32 %v2147, 16
        %v2222 = vrot.slane %v2220, 5
        %v2223 = vor.u32 %v2219, %v2222
        %v2224 = vrot.slane %v2223, 4
        %v2226 = vshll.u32 %v2148, 16
        %v2228 = vrot.slane %v2226, 5
        %v2229 = vsel %vm1244, %v2224, %v2228
        %v2230 = vshrl.u32 %v2148, 16
        %v2232 = vrot.slane %v2230, 4
        %v2233 = vor.u32 %v2232, %v2228
        %v2234 = vrot.slane %v2233, 4
        %v2236 = vshll.u32 %v2149, 16
        %v2238 = vrot.slane %v2236, 5
        %v2239 = vsel %vm1244, %v2234, %v2238
        %v2241 = vshrl.u32 %v2150, 16
        %v2243 = vrot.slane %v2241, 4
        %v2244 = vshll.u32 %v2150, 16
        %v2246 = vrot.slane %v2244, 5
        %v2247 = vor.u32 %v2243, %v2246
        %v2248 = vrot.slane %v2247, 4
        %v2250 = vshll.u32 %v2151, 16
        %v2252 = vrot.slane %v2250, 5
        %v2253 = vsel %vm1244, %v2248, %v2252
        %v2254 = vshrl.u32 %v2151, 16
        %v2256 = vrot.slane %v2254, 4
        %v2257 = vor.u32 %v2256, %v2252
        %v2258 = vrot.slane %v2257, 4
        %v2260 = vshll.u32 %v2152, 16
        %v2262 = vrot.slane %v2260, 5
        %v2263 = vsel %vm1244, %v2258, %v2262
        %v2265 = vshrl.u32 %v2153, 16
        %v2267 = vrot.slane %v2265, 4
        %v2268 = vshll.u32 %v2153, 16
        %v2270 = vrot.slane %v2268, 5
        %v2271 = vor.u32 %v2267, %v2270
        %v2272 = vrot.slane %v2271, 4
        %v2274 = vshll.u32 %v2154, 16
        %v2276 = vrot.slane %v2274, 5
        %v2277 = vsel %vm1244, %v2272, %v2276
        %v2278 = vshrl.u32 %v2154, 16
        %v2280 = vrot.slane %v2278, 4
        %v2281 = vor.u32 %v2280, %v2276
        %v2282 = vrot.slane %v2281, 4
        %v2284 = vshll.u32 %v2155, 16
        %v2286 = vrot.slane %v2284, 5
        %v2287 = vsel %vm1244, %v2282, %v2286
        %v2289 = vshrl.u32 %v2156, 16
        %v2291 = vrot.slane %v2289, 4
        %v2292 = vshll.u32 %v2156, 16
        %v2294 = vrot.slane %v2292, 5
        %v2295 = vor.u32 %v2291, %v2294
        %v2296 = vrot.slane %v2295, 4
        %v2298 = vshll.u32 %v2157, 16
        %v2300 = vrot.slane %v2298, 5
        %v2301 = vsel %vm1244, %v2296, %v2300
        %v2302 = vshrl.u32 %v2157, 16
        %v2304 = vrot.slane %v2302, 4
        %v2305 = vor.u32 %v2304, %v2300
        %v2306 = vrot.slane %v2305, 4
        %v2308 = vshll.u32 %v2158, 16
        %v2310 = vrot.slane %v2308, 5
        %v2311 = vsel %vm1244, %v2306, %v2310
        %v2313 = vshrl.u32 %v2159, 16
        %v2315 = vrot.slane %v2313, 4
        %v2316 = vshll.u32 %v2159, 16
        %v2318 = vrot.slane %v2316, 5
        %v2319 = vor.u32 %v2315, %v2318
        %v2320 = vrot.slane %v2319, 4
        %v2322 = vshll.u32 %v2160, 16
        %v2324 = vrot.slane %v2322, 5
        %v2325 = vsel %vm1244, %v2320, %v2324
        %v2326 = vshrl.u32 %v2160, 16
        %v2328 = vrot.slane %v2326, 4
        %v2329 = vor.u32 %v2328, %v2324
        %v2330 = vrot.slane %v2329, 4
        %v2332 = vshll.u32 %v2161, 16
        %v2334 = vrot.slane %v2332, 5
        %v2335 = vsel %vm1244, %v2330, %v2334
        %v2337 = vshrl.u32 %v2162, 16
        %v2339 = vrot.slane %v2337, 4
        %v2340 = vshll.u32 %v2162, 16
        %v2342 = vrot.slane %v2340, 5
        %v2343 = vor.u32 %v2339, %v2342
        %v2344 = vrot.slane %v2343, 4
        %v2346 = vshll.u32 %v2163, 16
        %v2348 = vrot.slane %v2346, 5
        %v2349 = vsel %vm1244, %v2344, %v2348
        %v2350 = vshrl.u32 %v2163, 16
        %v2352 = vrot.slane %v2350, 4
        %v2353 = vor.u32 %v2352, %v2348
        %v2354 = vrot.slane %v2353, 4
        %v2356 = vshll.u32 %v2164, 16
        %v2358 = vrot.slane %v2356, 5
        %v2359 = vsel %vm1244, %v2354, %v2358
        %v2361 = vshrl.u32 %v2165, 16
        %v2363 = vrot.slane %v2361, 4
        %v2364 = vshll.u32 %v2165, 16
        %v2366 = vrot.slane %v2364, 5
        %v2367 = vor.u32 %v2363, %v2366
        %v2368 = vrot.slane %v2367, 4
        %v2370 = vshll.u32 %v2166, 16
        %v2372 = vrot.slane %v2370, 5
        %v2373 = vsel %vm1244, %v2368, %v2372
        %v2374 = vshrl.u32 %v2166, 16
        %v2376 = vrot.slane %v2374, 4
        %v2377 = vor.u32 %v2376, %v2372
        %v2378 = vrot.slane %v2377, 4
        %v2380 = vshll.u32 %v2167, 16
        %v2382 = vrot.slane %v2380, 5
        %v2383 = vsel %vm1244, %v2378, %v2382
        %v2385 = vshrl.u32 %v2168, 16
        %v2387 = vrot.slane %v2385, 4
        %v2388 = vshll.u32 %v2168, 16
        %v2390 = vrot.slane %v2388, 5
        %v2391 = vor.u32 %v2387, %v2390
        %v2392 = vrot.slane %v2391, 4
        %v2394 = vshll.u32 %v2169, 16
        %v2396 = vrot.slane %v2394, 5
        %v2397 = vsel %vm1244, %v2392, %v2396
        %v2398 = vshrl.u32 %v2169, 16
        %v2400 = vrot.slane %v2398, 4
        %v2401 = vor.u32 %v2400, %v2396
        %v2402 = vrot.slane %v2401, 4
        %v2404 = vshll.u32 %v2170, 16
        %v2406 = vrot.slane %v2404, 5
        %v2407 = vsel %vm1244, %v2402, %v2406
        %v2409 = vshrl.u32 %v2171, 16
        %v2411 = vrot.slane %v2409, 4
        %v2412 = vshll.u32 %v2171, 16
        %v2414 = vrot.slane %v2412, 5
        %v2415 = vor.u32 %v2411, %v2414
        %v2416 = vrot.slane %v2415, 4
        %v2418 = vshll.u32 %v2172, 16
        %v2420 = vrot.slane %v2418, 5
        %v2421 = vsel %vm1244, %v2416, %v2420
        %v2422 = vshrl.u32 %v2172, 16
        %v2424 = vrot.slane %v2422, 4
        %v2425 = vor.u32 %v2424, %v2420
        %v2426 = vrot.slane %v2425, 4
        %v2428 = vshll.u32 %v2173, 16
        %v2430 = vrot.slane %v2428, 5
        %v2431 = vsel %vm1244, %v2426, %v2430
        %v2433 = vshrl.u32 %v2174, 16
        %v2435 = vrot.slane %v2433, 4
        %v2436 = vshll.u32 %v2174, 16
        %v2438 = vrot.slane %v2436, 5
        %v2439 = vor.u32 %v2435, %v2438
        %v2440 = vrot.slane %v2439, 4
        %v2442 = vshll.u32 %v2175, 16
        %v2444 = vrot.slane %v2442, 5
        %v2445 = vsel %vm1244, %v2440, %v2444
        %v2446 = vshrl.u32 %v2175, 16
        %v2448 = vrot.slane %v2446, 4
        %v2449 = vor.u32 %v2448, %v2444
        %v2450 = vrot.slane %v2449, 4
        %v2452 = vshll.u32 %v2176, 16
        %v2454 = vrot.slane %v2452, 5
        %v2455 = vsel %vm1244, %v2450, %v2454
        %v2457 = vshrl.u32 %v2177, 16
        %v2459 = vrot.slane %v2457, 4
        %v2460 = vshll.u32 %v2177, 16
        %v2462 = vrot.slane %v2460, 5
        %v2463 = vor.u32 %v2459, %v2462
        %v2464 = vrot.slane %v2463, 4
        %v2466 = vshll.u32 %v2178, 16
        %v2468 = vrot.slane %v2466, 5
        %v2469 = vsel %vm1244, %v2464, %v2468
        %v2470 = vshrl.u32 %v2178, 16
        %v2472 = vrot.slane %v2470, 4
        %v2473 = vor.u32 %v2472, %v2468
        %v2474 = vrot.slane %v2473, 4
        %v2476 = vshll.u32 %v2179, 16
        %v2478 = vrot.slane %v2476, 5
        %v2479 = vsel %vm1244, %v2474, %v2478
        %v2481 = vshrl.u32 %v2180, 16
        %v2483 = vrot.slane %v2481, 4
        %v2484 = vshll.u32 %v2180, 16
        %v2486 = vrot.slane %v2484, 5
        %v2487 = vor.u32 %v2483, %v2486
        %v2488 = vrot.slane %v2487, 4
        %v2490 = vshll.u32 %v2181, 16
        %v2492 = vrot.slane %v2490, 5
        %v2493 = vsel %vm1244, %v2488, %v2492
        %v2494 = vshrl.u32 %v2181, 16
        %v2496 = vrot.slane %v2494, 4
        %v2497 = vor.u32 %v2496, %v2492
        %v2498 = vrot.slane %v2497, 4
        %v2500 = vshll.u32 %v2182, 16
        %v2502 = vrot.slane %v2500, 5
        %v2503 = vsel %vm1244, %v2498, %v2502
        %v2505 = vshrl.u32 %v2183, 16
        %v2507 = vrot.slane %v2505, 4
        %v2508 = vshll.u32 %v2183, 16
        %v2510 = vrot.slane %v2508, 5
        %v2511 = vor.u32 %v2507, %v2510
        %v2512 = vrot.slane %v2511, 4
        %v2514 = vshll.u32 %v2184, 16
        %v2516 = vrot.slane %v2514, 5
        %v2517 = vsel %vm1244, %v2512, %v2516
        %v2518 = vshrl.u32 %v2184, 16
        %v2520 = vrot.slane %v2518, 4
        %v2521 = vor.u32 %v2520, %v2516
        %v2522 = vrot.slane %v2521, 4
        %v2524 = vshll.u32 %v2185, 16
        %v2526 = vrot.slane %v2524, 5
        %v2527 = vsel %vm1244, %v2522, %v2526
        %v2529 = vshrl.u32 %v2186, 16
        %v2531 = vrot.slane %v2529, 4
        %v2532 = vshll.u32 %v2186, 16
        %v2534 = vrot.slane %v2532, 5
        %v2535 = vor.u32 %v2531, %v2534
        %v2536 = vrot.slane %v2535, 4
        %v2538 = vshll.u32 %v2187, 16
        %v2540 = vrot.slane %v2538, 5
        %v2541 = vsel %vm1244, %v2536, %v2540
        %v2542 = vshrl.u32 %v2187, 16
        %v2544 = vrot.slane %v2542, 4
        %v2545 = vor.u32 %v2544, %v2540
        %v2546 = vrot.slane %v2545, 4
        %v2548 = vshll.u32 %v2188, 16
        %v2550 = vrot.slane %v2548, 5
        %v2551 = vsel %vm1244, %v2546, %v2550
        %v2553 = vshrl.u32 %v2189, 16
        %v2555 = vrot.slane %v2553, 4
        %v2556 = vshll.u32 %v2189, 16
        %v2558 = vrot.slane %v2556, 5
        %v2559 = vor.u32 %v2555, %v2558
        %v2560 = vrot.slane %v2559, 4
        %v2562 = vshll.u32 %v2190, 16
        %v2564 = vrot.slane %v2562, 5
        %v2565 = vsel %vm1244, %v2560, %v2564
        %v2566 = vshrl.u32 %v2190, 16
        %v2568 = vrot.slane %v2566, 4
        %v2569 = vor.u32 %v2568, %v2564
        %v2570 = vrot.slane %v2569, 4
        %v2572 = vshll.u32 %v2191, 16
        %v2574 = vrot.slane %v2572, 5
        %v2575 = vsel %vm1244, %v2570, %v2574
        %v2576 = vunpack.c.l.b16 %v2205
        %v2577 = vunpack.c.l.b16 %v2215
        %v2578 = vunpack.c.l.b16 %v2229
        %v2579 = vunpack.c.l.b16 %v2239
        %v2580 = vunpack.c.l.b16 %v2253
        %v2581 = vunpack.c.l.b16 %v2263
        %v2582 = vunpack.c.l.b16 %v2277
        %v2583 = vunpack.c.l.b16 %v2287
        %v2584 = vunpack.c.l.b16 %v2301
        %v2585 = vunpack.c.l.b16 %v2311
        %v2586 = vunpack.c.l.b16 %v2325
        %v2587 = vunpack.c.l.b16 %v2335
        %v2588 = vunpack.c.l.b16 %v2349
        %v2589 = vunpack.c.l.b16 %v2359
        %v2590 = vunpack.c.l.b16 %v2373
        %v2591 = vunpack.c.l.b16 %v2383
        %v2592 = vunpack.c.l.b16 %v2397
        %v2593 = vunpack.c.l.b16 %v2407
        %v2594 = vunpack.c.l.b16 %v2421
        %v2595 = vunpack.c.l.b16 %v2431
        %v2596 = vunpack.c.l.b16 %v2445
        %v2597 = vunpack.c.l.b16 %v2455
        %v2598 = vunpack.c.l.b16 %v2469
        %v2599 = vunpack.c.l.b16 %v2479
        %v2600 = vunpack.c.l.b16 %v2493
        %v2601 = vunpack.c.l.b16 %v2503
        %v2602 = vunpack.c.l.b16 %v2517
        %v2603 = vunpack.c.l.b16 %v2527
        %v2604 = vunpack.c.l.b16 %v2541
        %v2605 = vunpack.c.l.b16 %v2551
        %v2606 = vunpack.c.l.b16 %v2565
        %v2607 = vunpack.c.l.b16 %v2575
        %v2608 = vpack.c.b16 %v2577, %v2576
        %v2609 = vpack.c.b16 %v2579, %v2578
        %v2610 = vpack.c.b16 %v2581, %v2580
        %v2611 = vpack.c.b16 %v2583, %v2582
        %v2612 = vpack.c.b16 %v2585, %v2584
        %v2613 = vpack.c.b16 %v2587, %v2586
        %v2614 = vpack.c.b16 %v2589, %v2588
        %v2615 = vpack.c.b16 %v2591, %v2590
        %v2616 = vpack.c.b16 %v2593, %v2592
        %v2617 = vpack.c.b16 %v2595, %v2594
        %v2618 = vpack.c.b16 %v2597, %v2596
        %v2619 = vpack.c.b16 %v2599, %v2598
        %v2620 = vpack.c.b16 %v2601, %v2600
        %v2621 = vpack.c.b16 %v2603, %v2602
        %v2622 = vpack.c.b16 %v2605, %v2604
        %v2623 = vpack.c.b16 %v2607, %v2606
        %2640 = vst [vmem:[#allocation3 + $0x20] sm:$0xff] %v2608
        %2641 = vst [vmem:[#allocation3 + $0x68] sm:$0xff] %v2609
        %2642 = vst [vmem:[#allocation3 + $0xb0] sm:$0xff] %v2610
        %2643 = vst [vmem:[#allocation3 + $0xf8] sm:$0xff] %v2611
        %2644 = vst [vmem:[#allocation3 + $0x140] sm:$0xff] %v2612
        %2645 = vst [vmem:[#allocation3 + $0x188] sm:$0xff] %v2613
        %2646 = vst [vmem:[#allocation3 + $0x1d0] sm:$0xff] %v2614
        %2647 = vst [vmem:[#allocation3 + $0x218] sm:$0xff] %v2615
        %2648 = vst [vmem:[#allocation3 + $0x260] sm:$0xff] %v2616
        %2649 = vst [vmem:[#allocation3 + $0x2a8] sm:$0xff] %v2617
        %2650 = vst [vmem:[#allocation3 + $0x2f0] sm:$0xff] %v2618
        %2651 = vst [vmem:[#allocation3 + $0x338] sm:$0xff] %v2619
        %2652 = vst [vmem:[#allocation3 + $0x380] sm:$0xff] %v2620
        %2653 = vst [vmem:[#allocation3 + $0x3c8] sm:$0xff] %v2621
        %2654 = vst [vmem:[#allocation3 + $0x410] sm:$0xff] %v2622
        %2655 = vst [vmem:[#allocation3 + $0x458] sm:$0xff] %v2623
        %v2656 = vld [vmem:[%s935] sm:$0xe]
        %v2657 = vld [vmem:[%s935 + $0x4] sm:$0xf]
        %v2658 = vld [vmem:[%s935 + $0x8] sm:$0x1]
        %v2659 = vld [vmem:[%s935 + $0xc] sm:$0xe]
        %v2660 = vld [vmem:[%s935 + $0x10] sm:$0xf]
        %v2661 = vld [vmem:[%s935 + $0x14] sm:$0x1]
        %v2662 = vld [vmem:[%s935 + $0x18] sm:$0xe]
        %v2663 = vld [vmem:[%s935 + $0x1c] sm:$0xf]
        %v2664 = vld [vmem:[%s935 + $0x20] sm:$0x1]
        %v2665 = vld [vmem:[%s935 + $0x24] sm:$0xe]
        %v2666 = vld [vmem:[%s935 + $0x28] sm:$0xf]
        %v2667 = vld [vmem:[%s935 + $0x2c] sm:$0x1]
        %v2668 = vld [vmem:[%s935 + $0x30] sm:$0xe]
        %v2669 = vld [vmem:[%s935 + $0x34] sm:$0xf]
        %v2670 = vld [vmem:[%s935 + $0x38] sm:$0x1]
        %v2671 = vld [vmem:[%s935 + $0x3c] sm:$0xe]
        %v2672 = vld [vmem:[%s935 + $0x40] sm:$0xf]
        %v2673 = vld [vmem:[%s935 + $0x44] sm:$0x1]
        %v2674 = vld [vmem:[%s935 + $0x48] sm:$0xe]
        %v2675 = vld [vmem:[%s935 + $0x4c] sm:$0xf]
        %v2676 = vld [vmem:[%s935 + $0x50] sm:$0x1]
        %v2677 = vld [vmem:[%s935 + $0x54] sm:$0xe]
        %v2678 = vld [vmem:[%s935 + $0x58] sm:$0xf]
        %v2679 = vld [vmem:[%s935 + $0x5c] sm:$0x1]
        %v2680 = vld [vmem:[%s935 + $0x60] sm:$0xe]
        %v2681 = vld [vmem:[%s935 + $0x64] sm:$0xf]
        %v2682 = vld [vmem:[%s935 + $0x68] sm:$0x1]
        %v2683 = vld [vmem:[%s935 + $0x6c] sm:$0xe]
        %v2684 = vld [vmem:[%s935 + $0x70] sm:$0xf]
        %v2685 = vld [vmem:[%s935 + $0x74] sm:$0x1]
        %v2686 = vld [vmem:[%s935 + $0x78] sm:$0xe]
        %v2687 = vld [vmem:[%s935 + $0x7c] sm:$0xf]
        %v2688 = vld [vmem:[%s935 + $0x80] sm:$0x1]
        %v2689 = vld [vmem:[%s935 + $0x84] sm:$0xe]
        %v2690 = vld [vmem:[%s935 + $0x88] sm:$0xf]
        %v2691 = vld [vmem:[%s935 + $0x8c] sm:$0x1]
        %v2692 = vld [vmem:[%s935 + $0x90] sm:$0xe]
        %v2693 = vld [vmem:[%s935 + $0x94] sm:$0xf]
        %v2694 = vld [vmem:[%s935 + $0x98] sm:$0x1]
        %v2695 = vld [vmem:[%s935 + $0x9c] sm:$0xe]
        %v2696 = vld [vmem:[%s935 + $0xa0] sm:$0xf]
        %v2697 = vld [vmem:[%s935 + $0xa4] sm:$0x1]
        %v2698 = vld [vmem:[%s935 + $0xa8] sm:$0xe]
        %v2699 = vld [vmem:[%s935 + $0xac] sm:$0xf]
        %v2700 = vld [vmem:[%s935 + $0xb0] sm:$0x1]
        %v2701 = vld [vmem:[%s935 + $0xb4] sm:$0xe]
        %v2702 = vld [vmem:[%s935 + $0xb8] sm:$0xf]
        %v2703 = vld [vmem:[%s935 + $0xbc] sm:$0x1]
        %v2752 = vrot.slane %v2656, 5
        %v2753 = vrot.slane %v2752, 4
        %v2754 = vrot.slane %v2657, 5
        %v2755 = vsel %vm1807, %v2753, %v2754
        %v2756 = vrot.slane %v2754, 4
        %v2757 = vrot.slane %v2658, 5
        %v2758 = vsel %vm1807, %v2756, %v2757
        %v2759 = vrot.slane %v2659, 5
        %v2760 = vrot.slane %v2759, 4
        %v2761 = vrot.slane %v2660, 5
        %v2762 = vsel %vm1807, %v2760, %v2761
        %v2763 = vrot.slane %v2761, 4
        %v2764 = vrot.slane %v2661, 5
        %v2765 = vsel %vm1807, %v2763, %v2764
        %v2766 = vrot.slane %v2662, 5
        %v2767 = vrot.slane %v2766, 4
        %v2768 = vrot.slane %v2663, 5
        %v2769 = vsel %vm1807, %v2767, %v2768
        %v2770 = vrot.slane %v2768, 4
        %v2771 = vrot.slane %v2664, 5
        %v2772 = vsel %vm1807, %v2770, %v2771
        %v2773 = vrot.slane %v2665, 5
        %v2774 = vrot.slane %v2773, 4
        %v2775 = vrot.slane %v2666, 5
        %v2776 = vsel %vm1807, %v2774, %v2775
        %v2777 = vrot.slane %v2775, 4
        %v2778 = vrot.slane %v2667, 5
        %v2779 = vsel %vm1807, %v2777, %v2778
        %v2780 = vrot.slane %v2668, 5
        %v2781 = vrot.slane %v2780, 4
        %v2782 = vrot.slane %v2669, 5
        %v2783 = vsel %vm1807, %v2781, %v2782
        %v2784 = vrot.slane %v2782, 4
        %v2785 = vrot.slane %v2670, 5
        %v2786 = vsel %vm1807, %v2784, %v2785
        %v2787 = vrot.slane %v2671, 5
        %v2788 = vrot.slane %v2787, 4
        %v2789 = vrot.slane %v2672, 5
        %v2790 = vsel %vm1807, %v2788, %v2789
        %v2791 = vrot.slane %v2789, 4
        %v2792 = vrot.slane %v2673, 5
        %v2793 = vsel %vm1807, %v2791, %v2792
        %v2794 = vrot.slane %v2674, 5
        %v2795 = vrot.slane %v2794, 4
        %v2796 = vrot.slane %v2675, 5
        %v2797 = vsel %vm1807, %v2795, %v2796
        %v2798 = vrot.slane %v2796, 4
        %v2799 = vrot.slane %v2676, 5
        %v2800 = vsel %vm1807, %v2798, %v2799
        %v2801 = vrot.slane %v2677, 5
        %v2802 = vrot.slane %v2801, 4
        %v2803 = vrot.slane %v2678, 5
        %v2804 = vsel %vm1807, %v2802, %v2803
        %v2805 = vrot.slane %v2803, 4
        %v2806 = vrot.slane %v2679, 5
        %v2807 = vsel %vm1807, %v2805, %v2806
        %v2808 = vrot.slane %v2680, 5
        %v2809 = vrot.slane %v2808, 4
        %v2810 = vrot.slane %v2681, 5
        %v2811 = vsel %vm1807, %v2809, %v2810
        %v2812 = vrot.slane %v2810, 4
        %v2813 = vrot.slane %v2682, 5
        %v2814 = vsel %vm1807, %v2812, %v2813
        %v2815 = vrot.slane %v2683, 5
        %v2816 = vrot.slane %v2815, 4
        %v2817 = vrot.slane %v2684, 5
        %v2818 = vsel %vm1807, %v2816, %v2817
        %v2819 = vrot.slane %v2817, 4
        %v2820 = vrot.slane %v2685, 5
        %v2821 = vsel %vm1807, %v2819, %v2820
        %v2822 = vrot.slane %v2686, 5
        %v2823 = vrot.slane %v2822, 4
        %v2824 = vrot.slane %v2687, 5
        %v2825 = vsel %vm1807, %v2823, %v2824
        %v2826 = vrot.slane %v2824, 4
        %v2827 = vrot.slane %v2688, 5
        %v2828 = vsel %vm1807, %v2826, %v2827
        %v2829 = vrot.slane %v2689, 5
        %v2830 = vrot.slane %v2829, 4
        %v2831 = vrot.slane %v2690, 5
        %v2832 = vsel %vm1807, %v2830, %v2831
        %v2833 = vrot.slane %v2831, 4
        %v2834 = vrot.slane %v2691, 5
        %v2835 = vsel %vm1807, %v2833, %v2834
        %v2836 = vrot.slane %v2692, 5
        %v2837 = vrot.slane %v2836, 4
        %v2838 = vrot.slane %v2693, 5
        %v2839 = vsel %vm1807, %v2837, %v2838
        %v2840 = vrot.slane %v2838, 4
        %v2841 = vrot.slane %v2694, 5
        %v2842 = vsel %vm1807, %v2840, %v2841
        %v2843 = vrot.slane %v2695, 5
        %v2844 = vrot.slane %v2843, 4
        %v2845 = vrot.slane %v2696, 5
        %v2846 = vsel %vm1807, %v2844, %v2845
        %v2847 = vrot.slane %v2845, 4
        %v2848 = vrot.slane %v2697, 5
        %v2849 = vsel %vm1807, %v2847, %v2848
        %v2850 = vrot.slane %v2698, 5
        %v2851 = vrot.slane %v2850, 4
        %v2852 = vrot.slane %v2699, 5
        %v2853 = vsel %vm1807, %v2851, %v2852
        %v2854 = vrot.slane %v2852, 4
        %v2855 = vrot.slane %v2700, 5
        %v2856 = vsel %vm1807, %v2854, %v2855
        %v2857 = vrot.slane %v2701, 5
        %v2858 = vrot.slane %v2857, 4
        %v2859 = vrot.slane %v2702, 5
        %v2860 = vsel %vm1807, %v2858, %v2859
        %v2861 = vrot.slane %v2859, 4
        %v2862 = vrot.slane %v2703, 5
        %v2863 = vsel %vm1807, %v2861, %v2862
        %v2864 = vunpack.c.l.b16 %v2755
        %v2865 = vunpack.c.l.b16 %v2758
        %v2866 = vunpack.c.l.b16 %v2762
        %v2867 = vunpack.c.l.b16 %v2765
        %v2868 = vunpack.c.l.b16 %v2769
        %v2869 = vunpack.c.l.b16 %v2772
        %v2870 = vunpack.c.l.b16 %v2776
        %v2871 = vunpack.c.l.b16 %v2779
        %v2872 = vunpack.c.l.b16 %v2783
        %v2873 = vunpack.c.l.b16 %v2786
        %v2874 = vunpack.c.l.b16 %v2790
        %v2875 = vunpack.c.l.b16 %v2793
        %v2876 = vunpack.c.l.b16 %v2797
        %v2877 = vunpack.c.l.b16 %v2800
        %v2878 = vunpack.c.l.b16 %v2804
        %v2879 = vunpack.c.l.b16 %v2807
        %v2880 = vunpack.c.l.b16 %v2811
        %v2881 = vunpack.c.l.b16 %v2814
        %v2882 = vunpack.c.l.b16 %v2818
        %v2883 = vunpack.c.l.b16 %v2821
        %v2884 = vunpack.c.l.b16 %v2825
        %v2885 = vunpack.c.l.b16 %v2828
        %v2886 = vunpack.c.l.b16 %v2832
        %v2887 = vunpack.c.l.b16 %v2835
        %v2888 = vunpack.c.l.b16 %v2839
        %v2889 = vunpack.c.l.b16 %v2842
        %v2890 = vunpack.c.l.b16 %v2846
        %v2891 = vunpack.c.l.b16 %v2849
        %v2892 = vunpack.c.l.b16 %v2853
        %v2893 = vunpack.c.l.b16 %v2856
        %v2894 = vunpack.c.l.b16 %v2860
        %v2895 = vunpack.c.l.b16 %v2863
        %v2896 = vpack.c.b16 %v2865, %v2864
        %v2897 = vpack.c.b16 %v2867, %v2866
        %v2898 = vpack.c.b16 %v2869, %v2868
        %v2899 = vpack.c.b16 %v2871, %v2870
        %v2900 = vpack.c.b16 %v2873, %v2872
        %v2901 = vpack.c.b16 %v2875, %v2874
        %v2902 = vpack.c.b16 %v2877, %v2876
        %v2903 = vpack.c.b16 %v2879, %v2878
        %v2904 = vpack.c.b16 %v2881, %v2880
        %v2905 = vpack.c.b16 %v2883, %v2882
        %v2906 = vpack.c.b16 %v2885, %v2884
        %v2907 = vpack.c.b16 %v2887, %v2886
        %v2908 = vpack.c.b16 %v2889, %v2888
        %v2909 = vpack.c.b16 %v2891, %v2890
        %v2910 = vpack.c.b16 %v2893, %v2892
        %v2911 = vpack.c.b16 %v2895, %v2894
        %2928 = vst [vmem:[#allocation3 + $0x28] sm:$0xff] %v2896
        %2929 = vst [vmem:[#allocation3 + $0x70] sm:$0xff] %v2897
        %2930 = vst [vmem:[#allocation3 + $0xb8] sm:$0xff] %v2898
        %2931 = vst [vmem:[#allocation3 + $0x100] sm:$0xff] %v2899
        %2932 = vst [vmem:[#allocation3 + $0x148] sm:$0xff] %v2900
        %2933 = vst [vmem:[#allocation3 + $0x190] sm:$0xff] %v2901
        %2934 = vst [vmem:[#allocation3 + $0x1d8] sm:$0xff] %v2902
        %2935 = vst [vmem:[#allocation3 + $0x220] sm:$0xff] %v2903
        %2936 = vst [vmem:[#allocation3 + $0x268] sm:$0xff] %v2904
        %2937 = vst [vmem:[#allocation3 + $0x2b0] sm:$0xff] %v2905
        %2938 = vst [vmem:[#allocation3 + $0x2f8] sm:$0xff] %v2906
        %2939 = vst [vmem:[#allocation3 + $0x340] sm:$0xff] %v2907
        %2940 = vst [vmem:[#allocation3 + $0x388] sm:$0xff] %v2908
        %2941 = vst [vmem:[#allocation3 + $0x3d0] sm:$0xff] %v2909
        %2942 = vst [vmem:[#allocation3 + $0x418] sm:$0xff] %v2910
        %2943 = vst [vmem:[#allocation3 + $0x460] sm:$0xff] %v2911
        %s2944 = scalar_lea.vmem [#allocation2], 24
        %v2945 = vld [vmem:[%s2944] sm:$0xf]
        %v2946 = vld [vmem:[%s2944 + $0x4] sm:$0xf]
        %v2947 = vld [vmem:[%s2944 + $0xc] sm:$0xf]
        %v2948 = vld [vmem:[%s2944 + $0x10] sm:$0xf]
        %v2949 = vld [vmem:[%s2944 + $0x18] sm:$0xf]
        %v2950 = vld [vmem:[%s2944 + $0x1c] sm:$0xf]
        %v2951 = vld [vmem:[%s2944 + $0x24] sm:$0xf]
        %v2952 = vld [vmem:[%s2944 + $0x28] sm:$0xf]
        %v2953 = vld [vmem:[%s2944 + $0x30] sm:$0xf]
        %v2954 = vld [vmem:[%s2944 + $0x34] sm:$0xf]
        %v2955 = vld [vmem:[%s2944 + $0x3c] sm:$0xf]
        %v2956 = vld [vmem:[%s2944 + $0x40] sm:$0xf]
        %v2957 = vld [vmem:[%s2944 + $0x48] sm:$0xf]
        %v2958 = vld [vmem:[%s2944 + $0x4c] sm:$0xf]
        %v2959 = vld [vmem:[%s2944 + $0x54] sm:$0xf]
        %v2960 = vld [vmem:[%s2944 + $0x58] sm:$0xf]
        %v2961 = vld [vmem:[%s2944 + $0x60] sm:$0xf]
        %v2962 = vld [vmem:[%s2944 + $0x64] sm:$0xf]
        %v2963 = vld [vmem:[%s2944 + $0x6c] sm:$0xf]
        %v2964 = vld [vmem:[%s2944 + $0x70] sm:$0xf]
        %v2965 = vld [vmem:[%s2944 + $0x78] sm:$0xf]
        %v2966 = vld [vmem:[%s2944 + $0x7c] sm:$0xf]
        %v2967 = vld [vmem:[%s2944 + $0x84] sm:$0xf]
        %v2968 = vld [vmem:[%s2944 + $0x88] sm:$0xf]
        %v2969 = vld [vmem:[%s2944 + $0x90] sm:$0xf]
        %v2970 = vld [vmem:[%s2944 + $0x94] sm:$0xf]
        %v2971 = vld [vmem:[%s2944 + $0x9c] sm:$0xf]
        %v2972 = vld [vmem:[%s2944 + $0xa0] sm:$0xf]
        %v2973 = vld [vmem:[%s2944 + $0xa8] sm:$0xf]
        %v2974 = vld [vmem:[%s2944 + $0xac] sm:$0xf]
        %v2975 = vld [vmem:[%s2944 + $0xb4] sm:$0xf]
        %v2976 = vld [vmem:[%s2944 + $0xb8] sm:$0xf]
        %v3009 = vunpack.c.l.b16 %v2945
        %v3010 = vunpack.c.l.b16 %v2946
        %v3011 = vunpack.c.l.b16 %v2947
        %v3012 = vunpack.c.l.b16 %v2948
        %v3013 = vunpack.c.l.b16 %v2949
        %v3014 = vunpack.c.l.b16 %v2950
        %v3015 = vunpack.c.l.b16 %v2951
        %v3016 = vunpack.c.l.b16 %v2952
        %v3017 = vunpack.c.l.b16 %v2953
        %v3018 = vunpack.c.l.b16 %v2954
        %v3019 = vunpack.c.l.b16 %v2955
        %v3020 = vunpack.c.l.b16 %v2956
        %v3021 = vunpack.c.l.b16 %v2957
        %v3022 = vunpack.c.l.b16 %v2958
        %v3023 = vunpack.c.l.b16 %v2959
        %v3024 = vunpack.c.l.b16 %v2960
        %v3025 = vunpack.c.l.b16 %v2961
        %v3026 = vunpack.c.l.b16 %v2962
        %v3027 = vunpack.c.l.b16 %v2963
        %v3028 = vunpack.c.l.b16 %v2964
        %v3029 = vunpack.c.l.b16 %v2965
        %v3030 = vunpack.c.l.b16 %v2966
        %v3031 = vunpack.c.l.b16 %v2967
        %v3032 = vunpack.c.l.b16 %v2968
        %v3033 = vunpack.c.l.b16 %v2969
        %v3034 = vunpack.c.l.b16 %v2970
        %v3035 = vunpack.c.l.b16 %v2971
        %v3036 = vunpack.c.l.b16 %v2972
        %v3037 = vunpack.c.l.b16 %v2973
        %v3038 = vunpack.c.l.b16 %v2974
        %v3039 = vunpack.c.l.b16 %v2975
        %v3040 = vunpack.c.l.b16 %v2976
        %v3041 = vpack.c.b16 %v3010, %v3009
        %v3042 = vpack.c.b16 %v3012, %v3011
        %v3043 = vpack.c.b16 %v3014, %v3013
        %v3044 = vpack.c.b16 %v3016, %v3015
        %v3045 = vpack.c.b16 %v3018, %v3017
        %v3046 = vpack.c.b16 %v3020, %v3019
        %v3047 = vpack.c.b16 %v3022, %v3021
        %v3048 = vpack.c.b16 %v3024, %v3023
        %v3049 = vpack.c.b16 %v3026, %v3025
        %v3050 = vpack.c.b16 %v3028, %v3027
        %v3051 = vpack.c.b16 %v3030, %v3029
        %v3052 = vpack.c.b16 %v3032, %v3031
        %v3053 = vpack.c.b16 %v3034, %v3033
        %v3054 = vpack.c.b16 %v3036, %v3035
        %v3055 = vpack.c.b16 %v3038, %v3037
        %v3056 = vpack.c.b16 %v3040, %v3039
        %3073 = vst [vmem:[#allocation3 + $0x30] sm:$0xff] %v3041
        %3074 = vst [vmem:[#allocation3 + $0x78] sm:$0xff] %v3042
        %3075 = vst [vmem:[#allocation3 + $0xc0] sm:$0xff] %v3043
        %3076 = vst [vmem:[#allocation3 + $0x108] sm:$0xff] %v3044
        %3077 = vst [vmem:[#allocation3 + $0x150] sm:$0xff] %v3045
        %3078 = vst [vmem:[#allocation3 + $0x198] sm:$0xff] %v3046
        %3079 = vst [vmem:[#allocation3 + $0x1e0] sm:$0xff] %v3047
        %3080 = vst [vmem:[#allocation3 + $0x228] sm:$0xff] %v3048
        %3081 = vst [vmem:[#allocation3 + $0x270] sm:$0xff] %v3049
        %3082 = vst [vmem:[#allocation3 + $0x2b8] sm:$0xff] %v3050
        %3083 = vst [vmem:[#allocation3 + $0x300] sm:$0xff] %v3051
        %3084 = vst [vmem:[#allocation3 + $0x348] sm:$0xff] %v3052
        %3085 = vst [vmem:[#allocation3 + $0x390] sm:$0xff] %v3053
        %3086 = vst [vmem:[#allocation3 + $0x3d8] sm:$0xff] %v3054
        %3087 = vst [vmem:[#allocation3 + $0x420] sm:$0xff] %v3055
        %3088 = vst [vmem:[#allocation3 + $0x468] sm:$0xff] %v3056
        %v3089 = vld [vmem:[%s2944] sm:$0xf]
        %v3090 = vld [vmem:[%s2944 + $0x4] sm:$0xf]
        %v3091 = vld [vmem:[%s2944 + $0x8] sm:$0x1]
        %v3092 = vld [vmem:[%s2944 + $0xc] sm:$0xf]
        %v3093 = vld [vmem:[%s2944 + $0x10] sm:$0xf]
        %v3094 = vld [vmem:[%s2944 + $0x14] sm:$0x1]
        %v3095 = vld [vmem:[%s2944 + $0x18] sm:$0xf]
        %v3096 = vld [vmem:[%s2944 + $0x1c] sm:$0xf]
        %v3097 = vld [vmem:[%s2944 + $0x20] sm:$0x1]
        %v3098 = vld [vmem:[%s2944 + $0x24] sm:$0xf]
        %v3099 = vld [vmem:[%s2944 + $0x28] sm:$0xf]
        %v3100 = vld [vmem:[%s2944 + $0x2c] sm:$0x1]
        %v3101 = vld [vmem:[%s2944 + $0x30] sm:$0xf]
        %v3102 = vld [vmem:[%s2944 + $0x34] sm:$0xf]
        %v3103 = vld [vmem:[%s2944 + $0x38] sm:$0x1]
        %v3104 = vld [vmem:[%s2944 + $0x3c] sm:$0xf]
        %v3105 = vld [vmem:[%s2944 + $0x40] sm:$0xf]
        %v3106 = vld [vmem:[%s2944 + $0x44] sm:$0x1]
        %v3107 = vld [vmem:[%s2944 + $0x48] sm:$0xf]
        %v3108 = vld [vmem:[%s2944 + $0x4c] sm:$0xf]
        %v3109 = vld [vmem:[%s2944 + $0x50] sm:$0x1]
        %v3110 = vld [vmem:[%s2944 + $0x54] sm:$0xf]
        %v3111 = vld [vmem:[%s2944 + $0x58] sm:$0xf]
        %v3112 = vld [vmem:[%s2944 + $0x5c] sm:$0x1]
        %v3113 = vld [vmem:[%s2944 + $0x60] sm:$0xf]
        %v3114 = vld [vmem:[%s2944 + $0x64] sm:$0xf]
        %v3115 = vld [vmem:[%s2944 + $0x68] sm:$0x1]
        %v3116 = vld [vmem:[%s2944 + $0x6c] sm:$0xf]
        %v3117 = vld [vmem:[%s2944 + $0x70] sm:$0xf]
        %v3118 = vld [vmem:[%s2944 + $0x74] sm:$0x1]
        %v3119 = vld [vmem:[%s2944 + $0x78] sm:$0xf]
        %v3120 = vld [vmem:[%s2944 + $0x7c] sm:$0xf]
        %v3121 = vld [vmem:[%s2944 + $0x80] sm:$0x1]
        %v3122 = vld [vmem:[%s2944 + $0x84] sm:$0xf]
        %v3123 = vld [vmem:[%s2944 + $0x88] sm:$0xf]
        %v3124 = vld [vmem:[%s2944 + $0x8c] sm:$0x1]
        %v3125 = vld [vmem:[%s2944 + $0x90] sm:$0xf]
        %v3126 = vld [vmem:[%s2944 + $0x94] sm:$0xf]
        %v3127 = vld [vmem:[%s2944 + $0x98] sm:$0x1]
        %v3128 = vld [vmem:[%s2944 + $0x9c] sm:$0xf]
        %v3129 = vld [vmem:[%s2944 + $0xa0] sm:$0xf]
        %v3130 = vld [vmem:[%s2944 + $0xa4] sm:$0x1]
        %v3131 = vld [vmem:[%s2944 + $0xa8] sm:$0xf]
        %v3132 = vld [vmem:[%s2944 + $0xac] sm:$0xf]
        %v3133 = vld [vmem:[%s2944 + $0xb0] sm:$0x1]
        %v3134 = vld [vmem:[%s2944 + $0xb4] sm:$0xf]
        %v3135 = vld [vmem:[%s2944 + $0xb8] sm:$0xf]
        %v3136 = vld [vmem:[%s2944 + $0xbc] sm:$0x1]
        %v3138 = vshrl.u32 %v3089, 16
        %v3140 = vrot.slane %v3138, 4
        %v3141 = vshll.u32 %v3089, 16
        %v3143 = vrot.slane %v3141, 5
        %v3144 = vor.u32 %v3140, %v3143
        %v3145 = vrot.slane %v3144, 4
        %v3147 = vshll.u32 %v3090, 16
        %v3149 = vrot.slane %v3147, 5
        %v3150 = vsel %vm1244, %v3145, %v3149
        %v3151 = vshrl.u32 %v3090, 16
        %v3153 = vrot.slane %v3151, 4
        %v3154 = vor.u32 %v3153, %v3149
        %v3155 = vrot.slane %v3154, 4
        %v3157 = vshll.u32 %v3091, 16
        %v3159 = vrot.slane %v3157, 5
        %v3160 = vsel %vm1244, %v3155, %v3159
        %v3162 = vshrl.u32 %v3092, 16
        %v3164 = vrot.slane %v3162, 4
        %v3165 = vshll.u32 %v3092, 16
        %v3167 = vrot.slane %v3165, 5
        %v3168 = vor.u32 %v3164, %v3167
        %v3169 = vrot.slane %v3168, 4
        %v3171 = vshll.u32 %v3093, 16
        %v3173 = vrot.slane %v3171, 5
        %v3174 = vsel %vm1244, %v3169, %v3173
        %v3175 = vshrl.u32 %v3093, 16
        %v3177 = vrot.slane %v3175, 4
        %v3178 = vor.u32 %v3177, %v3173
        %v3179 = vrot.slane %v3178, 4
        %v3181 = vshll.u32 %v3094, 16
        %v3183 = vrot.slane %v3181, 5
        %v3184 = vsel %vm1244, %v3179, %v3183
        %v3186 = vshrl.u32 %v3095, 16
        %v3188 = vrot.slane %v3186, 4
        %v3189 = vshll.u32 %v3095, 16
        %v3191 = vrot.slane %v3189, 5
        %v3192 = vor.u32 %v3188, %v3191
        %v3193 = vrot.slane %v3192, 4
        %v3195 = vshll.u32 %v3096, 16
        %v3197 = vrot.slane %v3195, 5
        %v3198 = vsel %vm1244, %v3193, %v3197
        %v3199 = vshrl.u32 %v3096, 16
        %v3201 = vrot.slane %v3199, 4
        %v3202 = vor.u32 %v3201, %v3197
        %v3203 = vrot.slane %v3202, 4
        %v3205 = vshll.u32 %v3097, 16
        %v3207 = vrot.slane %v3205, 5
        %v3208 = vsel %vm1244, %v3203, %v3207
        %v3210 = vshrl.u32 %v3098, 16
        %v3212 = vrot.slane %v3210, 4
        %v3213 = vshll.u32 %v3098, 16
        %v3215 = vrot.slane %v3213, 5
        %v3216 = vor.u32 %v3212, %v3215
        %v3217 = vrot.slane %v3216, 4
        %v3219 = vshll.u32 %v3099, 16
        %v3221 = vrot.slane %v3219, 5
        %v3222 = vsel %vm1244, %v3217, %v3221
        %v3223 = vshrl.u32 %v3099, 16
        %v3225 = vrot.slane %v3223, 4
        %v3226 = vor.u32 %v3225, %v3221
        %v3227 = vrot.slane %v3226, 4
        %v3229 = vshll.u32 %v3100, 16
        %v3231 = vrot.slane %v3229, 5
        %v3232 = vsel %vm1244, %v3227, %v3231
        %v3234 = vshrl.u32 %v3101, 16
        %v3236 = vrot.slane %v3234, 4
        %v3237 = vshll.u32 %v3101, 16
        %v3239 = vrot.slane %v3237, 5
        %v3240 = vor.u32 %v3236, %v3239
        %v3241 = vrot.slane %v3240, 4
        %v3243 = vshll.u32 %v3102, 16
        %v3245 = vrot.slane %v3243, 5
        %v3246 = vsel %vm1244, %v3241, %v3245
        %v3247 = vshrl.u32 %v3102, 16
        %v3249 = vrot.slane %v3247, 4
        %v3250 = vor.u32 %v3249, %v3245
        %v3251 = vrot.slane %v3250, 4
        %v3253 = vshll.u32 %v3103, 16
        %v3255 = vrot.slane %v3253, 5
        %v3256 = vsel %vm1244, %v3251, %v3255
        %v3258 = vshrl.u32 %v3104, 16
        %v3260 = vrot.slane %v3258, 4
        %v3261 = vshll.u32 %v3104, 16
        %v3263 = vrot.slane %v3261, 5
        %v3264 = vor.u32 %v3260, %v3263
        %v3265 = vrot.slane %v3264, 4
        %v3267 = vshll.u32 %v3105, 16
        %v3269 = vrot.slane %v3267, 5
        %v3270 = vsel %vm1244, %v3265, %v3269
        %v3271 = vshrl.u32 %v3105, 16
        %v3273 = vrot.slane %v3271, 4
        %v3274 = vor.u32 %v3273, %v3269
        %v3275 = vrot.slane %v3274, 4
        %v3277 = vshll.u32 %v3106, 16
        %v3279 = vrot.slane %v3277, 5
        %v3280 = vsel %vm1244, %v3275, %v3279
        %v3282 = vshrl.u32 %v3107, 16
        %v3284 = vrot.slane %v3282, 4
        %v3285 = vshll.u32 %v3107, 16
        %v3287 = vrot.slane %v3285, 5
        %v3288 = vor.u32 %v3284, %v3287
        %v3289 = vrot.slane %v3288, 4
        %v3291 = vshll.u32 %v3108, 16
        %v3293 = vrot.slane %v3291, 5
        %v3294 = vsel %vm1244, %v3289, %v3293
        %v3295 = vshrl.u32 %v3108, 16
        %v3297 = vrot.slane %v3295, 4
        %v3298 = vor.u32 %v3297, %v3293
        %v3299 = vrot.slane %v3298, 4
        %v3301 = vshll.u32 %v3109, 16
        %v3303 = vrot.slane %v3301, 5
        %v3304 = vsel %vm1244, %v3299, %v3303
        %v3306 = vshrl.u32 %v3110, 16
        %v3308 = vrot.slane %v3306, 4
        %v3309 = vshll.u32 %v3110, 16
        %v3311 = vrot.slane %v3309, 5
        %v3312 = vor.u32 %v3308, %v3311
        %v3313 = vrot.slane %v3312, 4
        %v3315 = vshll.u32 %v3111, 16
        %v3317 = vrot.slane %v3315, 5
        %v3318 = vsel %vm1244, %v3313, %v3317
        %v3319 = vshrl.u32 %v3111, 16
        %v3321 = vrot.slane %v3319, 4
        %v3322 = vor.u32 %v3321, %v3317
        %v3323 = vrot.slane %v3322, 4
        %v3325 = vshll.u32 %v3112, 16
        %v3327 = vrot.slane %v3325, 5
        %v3328 = vsel %vm1244, %v3323, %v3327
        %v3330 = vshrl.u32 %v3113, 16
        %v3332 = vrot.slane %v3330, 4
        %v3333 = vshll.u32 %v3113, 16
        %v3335 = vrot.slane %v3333, 5
        %v3336 = vor.u32 %v3332, %v3335
        %v3337 = vrot.slane %v3336, 4
        %v3339 = vshll.u32 %v3114, 16
        %v3341 = vrot.slane %v3339, 5
        %v3342 = vsel %vm1244, %v3337, %v3341
        %v3343 = vshrl.u32 %v3114, 16
        %v3345 = vrot.slane %v3343, 4
        %v3346 = vor.u32 %v3345, %v3341
        %v3347 = vrot.slane %v3346, 4
        %v3349 = vshll.u32 %v3115, 16
        %v3351 = vrot.slane %v3349, 5
        %v3352 = vsel %vm1244, %v3347, %v3351
        %v3354 = vshrl.u32 %v3116, 16
        %v3356 = vrot.slane %v3354, 4
        %v3357 = vshll.u32 %v3116, 16
        %v3359 = vrot.slane %v3357, 5
        %v3360 = vor.u32 %v3356, %v3359
        %v3361 = vrot.slane %v3360, 4
        %v3363 = vshll.u32 %v3117, 16
        %v3365 = vrot.slane %v3363, 5
        %v3366 = vsel %vm1244, %v3361, %v3365
        %v3367 = vshrl.u32 %v3117, 16
        %v3369 = vrot.slane %v3367, 4
        %v3370 = vor.u32 %v3369, %v3365
        %v3371 = vrot.slane %v3370, 4
        %v3373 = vshll.u32 %v3118, 16
        %v3375 = vrot.slane %v3373, 5
        %v3376 = vsel %vm1244, %v3371, %v3375
        %v3378 = vshrl.u32 %v3119, 16
        %v3380 = vrot.slane %v3378, 4
        %v3381 = vshll.u32 %v3119, 16
        %v3383 = vrot.slane %v3381, 5
        %v3384 = vor.u32 %v3380, %v3383
        %v3385 = vrot.slane %v3384, 4
        %v3387 = vshll.u32 %v3120, 16
        %v3389 = vrot.slane %v3387, 5
        %v3390 = vsel %vm1244, %v3385, %v3389
        %v3391 = vshrl.u32 %v3120, 16
        %v3393 = vrot.slane %v3391, 4
        %v3394 = vor.u32 %v3393, %v3389
        %v3395 = vrot.slane %v3394, 4
        %v3397 = vshll.u32 %v3121, 16
        %v3399 = vrot.slane %v3397, 5
        %v3400 = vsel %vm1244, %v3395, %v3399
        %v3402 = vshrl.u32 %v3122, 16
        %v3404 = vrot.slane %v3402, 4
        %v3405 = vshll.u32 %v3122, 16
        %v3407 = vrot.slane %v3405, 5
        %v3408 = vor.u32 %v3404, %v3407
        %v3409 = vrot.slane %v3408, 4
        %v3411 = vshll.u32 %v3123, 16
        %v3413 = vrot.slane %v3411, 5
        %v3414 = vsel %vm1244, %v3409, %v3413
        %v3415 = vshrl.u32 %v3123, 16
        %v3417 = vrot.slane %v3415, 4
        %v3418 = vor.u32 %v3417, %v3413
        %v3419 = vrot.slane %v3418, 4
        %v3421 = vshll.u32 %v3124, 16
        %v3423 = vrot.slane %v3421, 5
        %v3424 = vsel %vm1244, %v3419, %v3423
        %v3426 = vshrl.u32 %v3125, 16
        %v3428 = vrot.slane %v3426, 4
        %v3429 = vshll.u32 %v3125, 16
        %v3431 = vrot.slane %v3429, 5
        %v3432 = vor.u32 %v3428, %v3431
        %v3433 = vrot.slane %v3432, 4
        %v3435 = vshll.u32 %v3126, 16
        %v3437 = vrot.slane %v3435, 5
        %v3438 = vsel %vm1244, %v3433, %v3437
        %v3439 = vshrl.u32 %v3126, 16
        %v3441 = vrot.slane %v3439, 4
        %v3442 = vor.u32 %v3441, %v3437
        %v3443 = vrot.slane %v3442, 4
        %v3445 = vshll.u32 %v3127, 16
        %v3447 = vrot.slane %v3445, 5
        %v3448 = vsel %vm1244, %v3443, %v3447
        %v3450 = vshrl.u32 %v3128, 16
        %v3452 = vrot.slane %v3450, 4
        %v3453 = vshll.u32 %v3128, 16
        %v3455 = vrot.slane %v3453, 5
        %v3456 = vor.u32 %v3452, %v3455
        %v3457 = vrot.slane %v3456, 4
        %v3459 = vshll.u32 %v3129, 16
        %v3461 = vrot.slane %v3459, 5
        %v3462 = vsel %vm1244, %v3457, %v3461
        %v3463 = vshrl.u32 %v3129, 16
        %v3465 = vrot.slane %v3463, 4
        %v3466 = vor.u32 %v3465, %v3461
        %v3467 = vrot.slane %v3466, 4
        %v3469 = vshll.u32 %v3130, 16
        %v3471 = vrot.slane %v3469, 5
        %v3472 = vsel %vm1244, %v3467, %v3471
        %v3474 = vshrl.u32 %v3131, 16
        %v3476 = vrot.slane %v3474, 4
        %v3477 = vshll.u32 %v3131, 16
        %v3479 = vrot.slane %v3477, 5
        %v3480 = vor.u32 %v3476, %v3479
        %v3481 = vrot.slane %v3480, 4
        %v3483 = vshll.u32 %v3132, 16
        %v3485 = vrot.slane %v3483, 5
        %v3486 = vsel %vm1244, %v3481, %v3485
        %v3487 = vshrl.u32 %v3132, 16
        %v3489 = vrot.slane %v3487, 4
        %v3490 = vor.u32 %v3489, %v3485
        %v3491 = vrot.slane %v3490, 4
        %v3493 = vshll.u32 %v3133, 16
        %v3495 = vrot.slane %v3493, 5
        %v3496 = vsel %vm1244, %v3491, %v3495
        %v3498 = vshrl.u32 %v3134, 16
        %v3500 = vrot.slane %v3498, 4
        %v3501 = vshll.u32 %v3134, 16
        %v3503 = vrot.slane %v3501, 5
        %v3504 = vor.u32 %v3500, %v3503
        %v3505 = vrot.slane %v3504, 4
        %v3507 = vshll.u32 %v3135, 16
        %v3509 = vrot.slane %v3507, 5
        %v3510 = vsel %vm1244, %v3505, %v3509
        %v3511 = vshrl.u32 %v3135, 16
        %v3513 = vrot.slane %v3511, 4
        %v3514 = vor.u32 %v3513, %v3509
        %v3515 = vrot.slane %v3514, 4
        %v3517 = vshll.u32 %v3136, 16
        %v3519 = vrot.slane %v3517, 5
        %v3520 = vsel %vm1244, %v3515, %v3519
        %v3521 = vunpack.c.l.b16 %v3150
        %v3522 = vunpack.c.l.b16 %v3160
        %v3523 = vunpack.c.l.b16 %v3174
        %v3524 = vunpack.c.l.b16 %v3184
        %v3525 = vunpack.c.l.b16 %v3198
        %v3526 = vunpack.c.l.b16 %v3208
        %v3527 = vunpack.c.l.b16 %v3222
        %v3528 = vunpack.c.l.b16 %v3232
        %v3529 = vunpack.c.l.b16 %v3246
        %v3530 = vunpack.c.l.b16 %v3256
        %v3531 = vunpack.c.l.b16 %v3270
        %v3532 = vunpack.c.l.b16 %v3280
        %v3533 = vunpack.c.l.b16 %v3294
        %v3534 = vunpack.c.l.b16 %v3304
        %v3535 = vunpack.c.l.b16 %v3318
        %v3536 = vunpack.c.l.b16 %v3328
        %v3537 = vunpack.c.l.b16 %v3342
        %v3538 = vunpack.c.l.b16 %v3352
        %v3539 = vunpack.c.l.b16 %v3366
        %v3540 = vunpack.c.l.b16 %v3376
        %v3541 = vunpack.c.l.b16 %v3390
        %v3542 = vunpack.c.l.b16 %v3400
        %v3543 = vunpack.c.l.b16 %v3414
        %v3544 = vunpack.c.l.b16 %v3424
        %v3545 = vunpack.c.l.b16 %v3438
        %v3546 = vunpack.c.l.b16 %v3448
        %v3547 = vunpack.c.l.b16 %v3462
        %v3548 = vunpack.c.l.b16 %v3472
        %v3549 = vunpack.c.l.b16 %v3486
        %v3550 = vunpack.c.l.b16 %v3496
        %v3551 = vunpack.c.l.b16 %v3510
        %v3552 = vunpack.c.l.b16 %v3520
        %v3553 = vpack.c.b16 %v3522, %v3521
        %v3554 = vpack.c.b16 %v3524, %v3523
        %v3555 = vpack.c.b16 %v3526, %v3525
        %v3556 = vpack.c.b16 %v3528, %v3527
        %v3557 = vpack.c.b16 %v3530, %v3529
        %v3558 = vpack.c.b16 %v3532, %v3531
        %v3559 = vpack.c.b16 %v3534, %v3533
        %v3560 = vpack.c.b16 %v3536, %v3535
        %v3561 = vpack.c.b16 %v3538, %v3537
        %v3562 = vpack.c.b16 %v3540, %v3539
        %v3563 = vpack.c.b16 %v3542, %v3541
        %v3564 = vpack.c.b16 %v3544, %v3543
        %v3565 = vpack.c.b16 %v3546, %v3545
        %v3566 = vpack.c.b16 %v3548, %v3547
        %v3567 = vpack.c.b16 %v3550, %v3549
        %v3568 = vpack.c.b16 %v3552, %v3551
        %3585 = vst [vmem:[#allocation3 + $0x38] sm:$0xff] %v3553
        %3586 = vst [vmem:[#allocation3 + $0x80] sm:$0xff] %v3554
        %3587 = vst [vmem:[#allocation3 + $0xc8] sm:$0xff] %v3555
        %3588 = vst [vmem:[#allocation3 + $0x110] sm:$0xff] %v3556
        %3589 = vst [vmem:[#allocation3 + $0x158] sm:$0xff] %v3557
        %3590 = vst [vmem:[#allocation3 + $0x1a0] sm:$0xff] %v3558
        %3591 = vst [vmem:[#allocation3 + $0x1e8] sm:$0xff] %v3559
        %3592 = vst [vmem:[#allocation3 + $0x230] sm:$0xff] %v3560
        %3593 = vst [vmem:[#allocation3 + $0x278] sm:$0xff] %v3561
        %3594 = vst [vmem:[#allocation3 + $0x2c0] sm:$0xff] %v3562
        %3595 = vst [vmem:[#allocation3 + $0x308] sm:$0xff] %v3563
        %3596 = vst [vmem:[#allocation3 + $0x350] sm:$0xff] %v3564
        %3597 = vst [vmem:[#allocation3 + $0x398] sm:$0xff] %v3565
        %3598 = vst [vmem:[#allocation3 + $0x3e0] sm:$0xff] %v3566
        %3599 = vst [vmem:[#allocation3 + $0x428] sm:$0xff] %v3567
        %3600 = vst [vmem:[#allocation3 + $0x470] sm:$0xff] %v3568
        %v3601 = vld [vmem:[%s2944] sm:$0xe]
        %v3602 = vld [vmem:[%s2944 + $0x4] sm:$0xf]
        %v3603 = vld [vmem:[%s2944 + $0x8] sm:$0x1]
        %v3604 = vld [vmem:[%s2944 + $0xc] sm:$0xe]
        %v3605 = vld [vmem:[%s2944 + $0x10] sm:$0xf]
        %v3606 = vld [vmem:[%s2944 + $0x14] sm:$0x1]
        %v3607 = vld [vmem:[%s2944 + $0x18] sm:$0xe]
        %v3608 = vld [vmem:[%s2944 + $0x1c] sm:$0xf]
        %v3609 = vld [vmem:[%s2944 + $0x20] sm:$0x1]
        %v3610 = vld [vmem:[%s2944 + $0x24] sm:$0xe]
        %v3611 = vld [vmem:[%s2944 + $0x28] sm:$0xf]
        %v3612 = vld [vmem:[%s2944 + $0x2c] sm:$0x1]
        %v3613 = vld [vmem:[%s2944 + $0x30] sm:$0xe]
        %v3614 = vld [vmem:[%s2944 + $0x34] sm:$0xf]
        %v3615 = vld [vmem:[%s2944 + $0x38] sm:$0x1]
        %v3616 = vld [vmem:[%s2944 + $0x3c] sm:$0xe]
        %v3617 = vld [vmem:[%s2944 + $0x40] sm:$0xf]
        %v3618 = vld [vmem:[%s2944 + $0x44] sm:$0x1]
        %v3619 = vld [vmem:[%s2944 + $0x48] sm:$0xe]
        %v3620 = vld [vmem:[%s2944 + $0x4c] sm:$0xf]
        %v3621 = vld [vmem:[%s2944 + $0x50] sm:$0x1]
        %v3622 = vld [vmem:[%s2944 + $0x54] sm:$0xe]
        %v3623 = vld [vmem:[%s2944 + $0x58] sm:$0xf]
        %v3624 = vld [vmem:[%s2944 + $0x5c] sm:$0x1]
        %v3625 = vld [vmem:[%s2944 + $0x60] sm:$0xe]
        %v3626 = vld [vmem:[%s2944 + $0x64] sm:$0xf]
        %v3627 = vld [vmem:[%s2944 + $0x68] sm:$0x1]
        %v3628 = vld [vmem:[%s2944 + $0x6c] sm:$0xe]
        %v3629 = vld [vmem:[%s2944 + $0x70] sm:$0xf]
        %v3630 = vld [vmem:[%s2944 + $0x74] sm:$0x1]
        %v3631 = vld [vmem:[%s2944 + $0x78] sm:$0xe]
        %v3632 = vld [vmem:[%s2944 + $0x7c] sm:$0xf]
        %v3633 = vld [vmem:[%s2944 + $0x80] sm:$0x1]
        %v3634 = vld [vmem:[%s2944 + $0x84] sm:$0xe]
        %v3635 = vld [vmem:[%s2944 + $0x88] sm:$0xf]
        %v3636 = vld [vmem:[%s2944 + $0x8c] sm:$0x1]
        %v3637 = vld [vmem:[%s2944 + $0x90] sm:$0xe]
        %v3638 = vld [vmem:[%s2944 + $0x94] sm:$0xf]
        %v3639 = vld [vmem:[%s2944 + $0x98] sm:$0x1]
        %v3640 = vld [vmem:[%s2944 + $0x9c] sm:$0xe]
        %v3641 = vld [vmem:[%s2944 + $0xa0] sm:$0xf]
        %v3642 = vld [vmem:[%s2944 + $0xa4] sm:$0x1]
        %v3643 = vld [vmem:[%s2944 + $0xa8] sm:$0xe]
        %v3644 = vld [vmem:[%s2944 + $0xac] sm:$0xf]
        %v3645 = vld [vmem:[%s2944 + $0xb0] sm:$0x1]
        %v3646 = vld [vmem:[%s2944 + $0xb4] sm:$0xe]
        %v3647 = vld [vmem:[%s2944 + $0xb8] sm:$0xf]
        %v3648 = vld [vmem:[%s2944 + $0xbc] sm:$0x1]
        %v3697 = vrot.slane %v3601, 5
        %v3698 = vrot.slane %v3697, 4
        %v3699 = vrot.slane %v3602, 5
        %v3700 = vsel %vm1807, %v3698, %v3699
        %v3701 = vrot.slane %v3699, 4
        %v3702 = vrot.slane %v3603, 5
        %v3703 = vsel %vm1807, %v3701, %v3702
        %v3704 = vrot.slane %v3604, 5
        %v3705 = vrot.slane %v3704, 4
        %v3706 = vrot.slane %v3605, 5
        %v3707 = vsel %vm1807, %v3705, %v3706
        %v3708 = vrot.slane %v3706, 4
        %v3709 = vrot.slane %v3606, 5
        %v3710 = vsel %vm1807, %v3708, %v3709
        %v3711 = vrot.slane %v3607, 5
        %v3712 = vrot.slane %v3711, 4
        %v3713 = vrot.slane %v3608, 5
        %v3714 = vsel %vm1807, %v3712, %v3713
        %v3715 = vrot.slane %v3713, 4
        %v3716 = vrot.slane %v3609, 5
        %v3717 = vsel %vm1807, %v3715, %v3716
        %v3718 = vrot.slane %v3610, 5
        %v3719 = vrot.slane %v3718, 4
        %v3720 = vrot.slane %v3611, 5
        %v3721 = vsel %vm1807, %v3719, %v3720
        %v3722 = vrot.slane %v3720, 4
        %v3723 = vrot.slane %v3612, 5
        %v3724 = vsel %vm1807, %v3722, %v3723
        %v3725 = vrot.slane %v3613, 5
        %v3726 = vrot.slane %v3725, 4
        %v3727 = vrot.slane %v3614, 5
        %v3728 = vsel %vm1807, %v3726, %v3727
        %v3729 = vrot.slane %v3727, 4
        %v3730 = vrot.slane %v3615, 5
        %v3731 = vsel %vm1807, %v3729, %v3730
        %v3732 = vrot.slane %v3616, 5
        %v3733 = vrot.slane %v3732, 4
        %v3734 = vrot.slane %v3617, 5
        %v3735 = vsel %vm1807, %v3733, %v3734
        %v3736 = vrot.slane %v3734, 4
        %v3737 = vrot.slane %v3618, 5
        %v3738 = vsel %vm1807, %v3736, %v3737
        %v3739 = vrot.slane %v3619, 5
        %v3740 = vrot.slane %v3739, 4
        %v3741 = vrot.slane %v3620, 5
        %v3742 = vsel %vm1807, %v3740, %v3741
        %v3743 = vrot.slane %v3741, 4
        %v3744 = vrot.slane %v3621, 5
        %v3745 = vsel %vm1807, %v3743, %v3744
        %v3746 = vrot.slane %v3622, 5
        %v3747 = vrot.slane %v3746, 4
        %v3748 = vrot.slane %v3623, 5
        %v3749 = vsel %vm1807, %v3747, %v3748
        %v3750 = vrot.slane %v3748, 4
        %v3751 = vrot.slane %v3624, 5
        %v3752 = vsel %vm1807, %v3750, %v3751
        %v3753 = vrot.slane %v3625, 5
        %v3754 = vrot.slane %v3753, 4
        %v3755 = vrot.slane %v3626, 5
        %v3756 = vsel %vm1807, %v3754, %v3755
        %v3757 = vrot.slane %v3755, 4
        %v3758 = vrot.slane %v3627, 5
        %v3759 = vsel %vm1807, %v3757, %v3758
        %v3760 = vrot.slane %v3628, 5
        %v3761 = vrot.slane %v3760, 4
        %v3762 = vrot.slane %v3629, 5
        %v3763 = vsel %vm1807, %v3761, %v3762
        %v3764 = vrot.slane %v3762, 4
        %v3765 = vrot.slane %v3630, 5
        %v3766 = vsel %vm1807, %v3764, %v3765
        %v3767 = vrot.slane %v3631, 5
        %v3768 = vrot.slane %v3767, 4
        %v3769 = vrot.slane %v3632, 5
        %v3770 = vsel %vm1807, %v3768, %v3769
        %v3771 = vrot.slane %v3769, 4
        %v3772 = vrot.slane %v3633, 5
        %v3773 = vsel %vm1807, %v3771, %v3772
        %v3774 = vrot.slane %v3634, 5
        %v3775 = vrot.slane %v3774, 4
        %v3776 = vrot.slane %v3635, 5
        %v3777 = vsel %vm1807, %v3775, %v3776
        %v3778 = vrot.slane %v3776, 4
        %v3779 = vrot.slane %v3636, 5
        %v3780 = vsel %vm1807, %v3778, %v3779
        %v3781 = vrot.slane %v3637, 5
        %v3782 = vrot.slane %v3781, 4
        %v3783 = vrot.slane %v3638, 5
        %v3784 = vsel %vm1807, %v3782, %v3783
        %v3785 = vrot.slane %v3783, 4
        %v3786 = vrot.slane %v3639, 5
        %v3787 = vsel %vm1807, %v3785, %v3786
        %v3788 = vrot.slane %v3640, 5
        %v3789 = vrot.slane %v3788, 4
        %v3790 = vrot.slane %v3641, 5
        %v3791 = vsel %vm1807, %v3789, %v3790
        %v3792 = vrot.slane %v3790, 4
        %v3793 = vrot.slane %v3642, 5
        %v3794 = vsel %vm1807, %v3792, %v3793
        %v3795 = vrot.slane %v3643, 5
        %v3796 = vrot.slane %v3795, 4
        %v3797 = vrot.slane %v3644, 5
        %v3798 = vsel %vm1807, %v3796, %v3797
        %v3799 = vrot.slane %v3797, 4
        %v3800 = vrot.slane %v3645, 5
        %v3801 = vsel %vm1807, %v3799, %v3800
        %v3802 = vrot.slane %v3646, 5
        %v3803 = vrot.slane %v3802, 4
        %v3804 = vrot.slane %v3647, 5
        %v3805 = vsel %vm1807, %v3803, %v3804
        %v3806 = vrot.slane %v3804, 4
        %v3807 = vrot.slane %v3648, 5
        %v3808 = vsel %vm1807, %v3806, %v3807
        %v3809 = vunpack.c.l.b16 %v3700
        %v3810 = vunpack.c.l.b16 %v3703
        %v3811 = vunpack.c.l.b16 %v3707
        %v3812 = vunpack.c.l.b16 %v3710
        %v3813 = vunpack.c.l.b16 %v3714
        %v3814 = vunpack.c.l.b16 %v3717
        %v3815 = vunpack.c.l.b16 %v3721
        %v3816 = vunpack.c.l.b16 %v3724
        %v3817 = vunpack.c.l.b16 %v3728
        %v3818 = vunpack.c.l.b16 %v3731
        %v3819 = vunpack.c.l.b16 %v3735
        %v3820 = vunpack.c.l.b16 %v3738
        %v3821 = vunpack.c.l.b16 %v3742
        %v3822 = vunpack.c.l.b16 %v3745
        %v3823 = vunpack.c.l.b16 %v3749
        %v3824 = vunpack.c.l.b16 %v3752
        %v3825 = vunpack.c.l.b16 %v3756
        %v3826 = vunpack.c.l.b16 %v3759
        %v3827 = vunpack.c.l.b16 %v3763
        %v3828 = vunpack.c.l.b16 %v3766
        %v3829 = vunpack.c.l.b16 %v3770
        %v3830 = vunpack.c.l.b16 %v3773
        %v3831 = vunpack.c.l.b16 %v3777
        %v3832 = vunpack.c.l.b16 %v3780
        %v3833 = vunpack.c.l.b16 %v3784
        %v3834 = vunpack.c.l.b16 %v3787
        %v3835 = vunpack.c.l.b16 %v3791
        %v3836 = vunpack.c.l.b16 %v3794
        %v3837 = vunpack.c.l.b16 %v3798
        %v3838 = vunpack.c.l.b16 %v3801
        %v3839 = vunpack.c.l.b16 %v3805
        %v3840 = vunpack.c.l.b16 %v3808
        %v3841 = vpack.c.b16 %v3810, %v3809
        %v3842 = vpack.c.b16 %v3812, %v3811
        %v3843 = vpack.c.b16 %v3814, %v3813
        %v3844 = vpack.c.b16 %v3816, %v3815
        %v3845 = vpack.c.b16 %v3818, %v3817
        %v3846 = vpack.c.b16 %v3820, %v3819
        %v3847 = vpack.c.b16 %v3822, %v3821
        %v3848 = vpack.c.b16 %v3824, %v3823
        %v3849 = vpack.c.b16 %v3826, %v3825
        %v3850 = vpack.c.b16 %v3828, %v3827
        %v3851 = vpack.c.b16 %v3830, %v3829
        %v3852 = vpack.c.b16 %v3832, %v3831
        %v3853 = vpack.c.b16 %v3834, %v3833
        %v3854 = vpack.c.b16 %v3836, %v3835
        %v3855 = vpack.c.b16 %v3838, %v3837
        %v3856 = vpack.c.b16 %v3840, %v3839
        %3873 = vst [vmem:[#allocation3 + $0x40] sm:$0xff] %v3841
        %3874 = vst [vmem:[#allocation3 + $0x88] sm:$0xff] %v3842
        %3875 = vst [vmem:[#allocation3 + $0xd0] sm:$0xff] %v3843
        %3876 = vst [vmem:[#allocation3 + $0x118] sm:$0xff] %v3844
        %3877 = vst [vmem:[#allocation3 + $0x160] sm:$0xff] %v3845
        %3878 = vst [vmem:[#allocation3 + $0x1a8] sm:$0xff] %v3846
        %3879 = vst [vmem:[#allocation3 + $0x1f0] sm:$0xff] %v3847
        %3880 = vst [vmem:[#allocation3 + $0x238] sm:$0xff] %v3848
        %3881 = vst [vmem:[#allocation3 + $0x280] sm:$0xff] %v3849
        %3882 = vst [vmem:[#allocation3 + $0x2c8] sm:$0xff] %v3850
        %3883 = vst [vmem:[#allocation3 + $0x310] sm:$0xff] %v3851
        %3884 = vst [vmem:[#allocation3 + $0x358] sm:$0xff] %v3852
        %3885 = vst [vmem:[#allocation3 + $0x3a0] sm:$0xff] %v3853
        %3886 = vst [vmem:[#allocation3 + $0x3e8] sm:$0xff] %v3854
        %3887 = vst [vmem:[#allocation3 + $0x430] sm:$0xff] %v3855
        %3888 = vst [vmem:[#allocation3 + $0x478] sm:$0xff] %v3856
      $region40: #{_lambda_.2} parent=35 // pred_fallthru
        _
      %v3889 = vld [vmem:[#allocation3] sm:$0xff]
      %v3890 = vld [vmem:[#allocation3 + $0x8] sm:$0xff]
      %v3891 = vld [vmem:[#allocation3 + $0x10] sm:$0xff]
      %v3892 = vld [vmem:[#allocation3 + $0x18] sm:$0xff]
      %v3893 = vld [vmem:[#allocation3 + $0x20] sm:$0xff]
      %v3894 = vld [vmem:[#allocation3 + $0x28] sm:$0xff]
      %v3895 = vld [vmem:[#allocation3 + $0x30] sm:$0xff]
      %v3896 = vld [vmem:[#allocation3 + $0x38] sm:$0xff]
      %v3897 = vld [vmem:[#allocation3 + $0x40] sm:$0xff]
      %v3898 = vld [vmem:[#allocation3 + $0x48] sm:$0xff]
      %v3899 = vld [vmem:[#allocation3 + $0x50] sm:$0xff]
      %v3900 = vld [vmem:[#allocation3 + $0x58] sm:$0xff]
      %v3901 = vld [vmem:[#allocation3 + $0x60] sm:$0xff]
      %v3902 = vld [vmem:[#allocation3 + $0x68] sm:$0xff]
      %v3903 = vld [vmem:[#allocation3 + $0x70] sm:$0xff]
      %v3904 = vld [vmem:[#allocation3 + $0x78] sm:$0xff]
      %v3905 = vld [vmem:[#allocation3 + $0x80] sm:$0xff]
      %v3906 = vld [vmem:[#allocation3 + $0x88] sm:$0xff]
      %v3907 = vld [vmem:[#allocation3 + $0x90] sm:$0xff]
      %v3908 = vld [vmem:[#allocation3 + $0x98] sm:$0xff]
      %v3909 = vld [vmem:[#allocation3 + $0xa0] sm:$0xff]
      %v3910 = vld [vmem:[#allocation3 + $0xa8] sm:$0xff]
      %v3911 = vld [vmem:[#allocation3 + $0xb0] sm:$0xff]
      %v3912 = vld [vmem:[#allocation3 + $0xb8] sm:$0xff]
      %v3913 = vld [vmem:[#allocation3 + $0xc0] sm:$0xff]
      %v3914 = vld [vmem:[#allocation3 + $0xc8] sm:$0xff]
      %v3915 = vld [vmem:[#allocation3 + $0xd0] sm:$0xff]
      %v3916 = vld [vmem:[#allocation3 + $0xd8] sm:$0xff]
      %v3917 = vld [vmem:[#allocation3 + $0xe0] sm:$0xff]
      %v3918 = vld [vmem:[#allocation3 + $0xe8] sm:$0xff]
      %v3919 = vld [vmem:[#allocation3 + $0xf0] sm:$0xff]
      %v3920 = vld [vmem:[#allocation3 + $0xf8] sm:$0xff]
      %v3921 = vld [vmem:[#allocation3 + $0x100] sm:$0xff]
      %v3922 = vld [vmem:[#allocation3 + $0x108] sm:$0xff]
      %v3923 = vld [vmem:[#allocation3 + $0x110] sm:$0xff]
      %v3924 = vld [vmem:[#allocation3 + $0x118] sm:$0xff]
      %v3925 = vld [vmem:[#allocation3 + $0x120] sm:$0xff]
      %v3926 = vld [vmem:[#allocation3 + $0x128] sm:$0xff]
      %v3927 = vld [vmem:[#allocation3 + $0x130] sm:$0xff]
      %v3928 = vld [vmem:[#allocation3 + $0x138] sm:$0xff]
      %v3929 = vld [vmem:[#allocation3 + $0x140] sm:$0xff]
      %v3930 = vld [vmem:[#allocation3 + $0x148] sm:$0xff]
      %v3931 = vld [vmem:[#allocation3 + $0x150] sm:$0xff]
      %v3932 = vld [vmem:[#allocation3 + $0x158] sm:$0xff]
      %v3933 = vld [vmem:[#allocation3 + $0x160] sm:$0xff]
      %v3934 = vld [vmem:[#allocation3 + $0x168] sm:$0xff]
      %v3935 = vld [vmem:[#allocation3 + $0x170] sm:$0xff]
      %v3936 = vld [vmem:[#allocation3 + $0x178] sm:$0xff]
      %v3937 = vld [vmem:[#allocation3 + $0x180] sm:$0xff]
      %v3938 = vld [vmem:[#allocation3 + $0x188] sm:$0xff]
      %v3939 = vld [vmem:[#allocation3 + $0x190] sm:$0xff]
      %v3940 = vld [vmem:[#allocation3 + $0x198] sm:$0xff]
      %v3941 = vld [vmem:[#allocation3 + $0x1a0] sm:$0xff]
      %v3942 = vld [vmem:[#allocation3 + $0x1a8] sm:$0xff]
      %v3943 = vld [vmem:[#allocation3 + $0x1b0] sm:$0xff]
      %v3944 = vld [vmem:[#allocation3 + $0x1b8] sm:$0xff]
      %v3945 = vld [vmem:[#allocation3 + $0x1c0] sm:$0xff]
      %v3946 = vld [vmem:[#allocation3 + $0x1c8] sm:$0xff]
      %v3947 = vld [vmem:[#allocation3 + $0x1d0] sm:$0xff]
      %v3948 = vld [vmem:[#allocation3 + $0x1d8] sm:$0xff]
      %v3949 = vld [vmem:[#allocation3 + $0x1e0] sm:$0xff]
      %v3950 = vld [vmem:[#allocation3 + $0x1e8] sm:$0xff]
      %v3951 = vld [vmem:[#allocation3 + $0x1f0] sm:$0xff]
      %v3952 = vld [vmem:[#allocation3 + $0x1f8] sm:$0xff]
      %v3953 = vld [vmem:[#allocation3 + $0x200] sm:$0xff]
      %v3954 = vld [vmem:[#allocation3 + $0x208] sm:$0xff]
      %v3955 = vld [vmem:[#allocation3 + $0x210] sm:$0xff]
      %v3956 = vld [vmem:[#allocation3 + $0x218] sm:$0xff]
      %v3957 = vld [vmem:[#allocation3 + $0x220] sm:$0xff]
      %v3958 = vld [vmem:[#allocation3 + $0x228] sm:$0xff]
      %v3959 = vld [vmem:[#allocation3 + $0x230] sm:$0xff]
      %v3960 = vld [vmem:[#allocation3 + $0x238] sm:$0xff]
      %v3961 = vld [vmem:[#allocation3 + $0x240] sm:$0xff]
      %v3962 = vld [vmem:[#allocation3 + $0x248] sm:$0xff]
      %v3963 = vld [vmem:[#allocation3 + $0x250] sm:$0xff]
      %v3964 = vld [vmem:[#allocation3 + $0x258] sm:$0xff]
      %v3965 = vld [vmem:[#allocation3 + $0x260] sm:$0xff]
      %v3966 = vld [vmem:[#allocation3 + $0x268] sm:$0xff]
      %v3967 = vld [vmem:[#allocation3 + $0x270] sm:$0xff]
      %v3968 = vld [vmem:[#allocation3 + $0x278] sm:$0xff]
      %v3969 = vld [vmem:[#allocation3 + $0x280] sm:$0xff]
      %v3970 = vld [vmem:[#allocation3 + $0x288] sm:$0xff]
      %v3971 = vld [vmem:[#allocation3 + $0x290] sm:$0xff]
      %v3972 = vld [vmem:[#allocation3 + $0x298] sm:$0xff]
      %v3973 = vld [vmem:[#allocation3 + $0x2a0] sm:$0xff]
      %v3974 = vld [vmem:[#allocation3 + $0x2a8] sm:$0xff]
      %v3975 = vld [vmem:[#allocation3 + $0x2b0] sm:$0xff]
      %v3976 = vld [vmem:[#allocation3 + $0x2b8] sm:$0xff]
      %v3977 = vld [vmem:[#allocation3 + $0x2c0] sm:$0xff]
      %v3978 = vld [vmem:[#allocation3 + $0x2c8] sm:$0xff]
      %v3979 = vld [vmem:[#allocation3 + $0x2d0] sm:$0xff]
      %v3980 = vld [vmem:[#allocation3 + $0x2d8] sm:$0xff]
      %v3981 = vld [vmem:[#allocation3 + $0x2e0] sm:$0xff]
      %v3982 = vld [vmem:[#allocation3 + $0x2e8] sm:$0xff]
      %v3983 = vld [vmem:[#allocation3 + $0x2f0] sm:$0xff]
      %v3984 = vld [vmem:[#allocation3 + $0x2f8] sm:$0xff]
      %v3985 = vld [vmem:[#allocation3 + $0x300] sm:$0xff]
      %v3986 = vld [vmem:[#allocation3 + $0x308] sm:$0xff]
      %v3987 = vld [vmem:[#allocation3 + $0x310] sm:$0xff]
      %v3988 = vld [vmem:[#allocation3 + $0x318] sm:$0xff]
      %v3989 = vld [vmem:[#allocation3 + $0x320] sm:$0xff]
      %v3990 = vld [vmem:[#allocation3 + $0x328] sm:$0xff]
      %v3991 = vld [vmem:[#allocation3 + $0x330] sm:$0xff]
      %v3992 = vld [vmem:[#allocation3 + $0x338] sm:$0xff]
      %v3993 = vld [vmem:[#allocation3 + $0x340] sm:$0xff]
      %v3994 = vld [vmem:[#allocation3 + $0x348] sm:$0xff]
      %v3995 = vld [vmem:[#allocation3 + $0x350] sm:$0xff]
      %v3996 = vld [vmem:[#allocation3 + $0x358] sm:$0xff]
      %v3997 = vld [vmem:[#allocation3 + $0x360] sm:$0xff]
      %v3998 = vld [vmem:[#allocation3 + $0x368] sm:$0xff]
      %v3999 = vld [vmem:[#allocation3 + $0x370] sm:$0xff]
      %v4000 = vld [vmem:[#allocation3 + $0x378] sm:$0xff]
      %v4001 = vld [vmem:[#allocation3 + $0x380] sm:$0xff]
      %v4002 = vld [vmem:[#allocation3 + $0x388] sm:$0xff]
      %v4003 = vld [vmem:[#allocation3 + $0x390] sm:$0xff]
      %v4004 = vld [vmem:[#allocation3 + $0x398] sm:$0xff]
      %v4005 = vld [vmem:[#allocation3 + $0x3a0] sm:$0xff]
      %v4006 = vld [vmem:[#allocation3 + $0x3a8] sm:$0xff]
      %v4007 = vld [vmem:[#allocation3 + $0x3b0] sm:$0xff]
      %v4008 = vld [vmem:[#allocation3 + $0x3b8] sm:$0xff]
      %v4009 = vld [vmem:[#allocation3 + $0x3c0] sm:$0xff]
      %v4010 = vld [vmem:[#allocation3 + $0x3c8] sm:$0xff]
      %v4011 = vld [vmem:[#allocation3 + $0x3d0] sm:$0xff]
      %v4012 = vld [vmem:[#allocation3 + $0x3d8] sm:$0xff]
      %v4013 = vld [vmem:[#allocation3 + $0x3e0] sm:$0xff]
      %v4014 = vld [vmem:[#allocation3 + $0x3e8] sm:$0xff]
      %v4015 = vld [vmem:[#allocation3 + $0x3f0] sm:$0xff]
      %v4016 = vld [vmem:[#allocation3 + $0x3f8] sm:$0xff]
      %v4017 = vld [vmem:[#allocation3 + $0x400] sm:$0xff]
      %v4018 = vld [vmem:[#allocation3 + $0x408] sm:$0xff]
      %v4019 = vld [vmem:[#allocation3 + $0x410] sm:$0xff]
      %v4020 = vld [vmem:[#allocation3 + $0x418] sm:$0xff]
      %v4021 = vld [vmem:[#allocation3 + $0x420] sm:$0xff]
      %v4022 = vld [vmem:[#allocation3 + $0x428] sm:$0xff]
      %v4023 = vld [vmem:[#allocation3 + $0x430] sm:$0xff]
      %v4024 = vld [vmem:[#allocation3 + $0x438] sm:$0xff]
      %v4025 = vld [vmem:[#allocation3 + $0x440] sm:$0xff]
      %v4026 = vld [vmem:[#allocation3 + $0x448] sm:$0xff]
      %v4027 = vld [vmem:[#allocation3 + $0x450] sm:$0xff]
      %v4028 = vld [vmem:[#allocation3 + $0x458] sm:$0xff]
      %v4029 = vld [vmem:[#allocation3 + $0x460] sm:$0xff]
      %v4030 = vld [vmem:[#allocation3 + $0x468] sm:$0xff]
      %v4031 = vld [vmem:[#allocation3 + $0x470] sm:$0xff]
      %v4032 = vld [vmem:[#allocation3 + $0x478] sm:$0xff]
      %s4033 = smul.u32 %s20, 144
      %s4034 = smul.addr %s4033, 4
      %s4035 = scalar_lea.vmem %s3, %s4034
      %v4036 = vld [vmem:[%s4035] sm:$0xf]
      %v4037 = vld [vmem:[%s4035 + $0x4] sm:$0xf]
      %v4038 = vld [vmem:[%s4035 + $0x8] sm:$0xf]
      %v4039 = vld [vmem:[%s4035 + $0xc] sm:$0xf]
      %v4040 = vld [vmem:[%s4035 + $0x10] sm:$0xf]
      %v4041 = vld [vmem:[%s4035 + $0x14] sm:$0xf]
      %v4042 = vld [vmem:[%s4035 + $0x18] sm:$0xf]
      %v4043 = vld [vmem:[%s4035 + $0x1c] sm:$0xf]
      %v4044 = vld [vmem:[%s4035 + $0x20] sm:$0xf]
      %v4045 = vld [vmem:[%s4035 + $0x24] sm:$0xf]
      %v4046 = vld [vmem:[%s4035 + $0x28] sm:$0xf]
      %v4047 = vld [vmem:[%s4035 + $0x2c] sm:$0xf]
      %v4048 = vld [vmem:[%s4035 + $0x30] sm:$0xf]
      %v4049 = vld [vmem:[%s4035 + $0x34] sm:$0xf]
      %v4050 = vld [vmem:[%s4035 + $0x38] sm:$0xf]
      %v4051 = vld [vmem:[%s4035 + $0x3c] sm:$0xf]
      %v4052 = vld [vmem:[%s4035 + $0x40] sm:$0xf]
      %v4053 = vld [vmem:[%s4035 + $0x44] sm:$0xf]
      %v4054 = vld [vmem:[%s4035 + $0x48] sm:$0xf]
      %v4055 = vld [vmem:[%s4035 + $0x4c] sm:$0xf]
      %v4056 = vld [vmem:[%s4035 + $0x50] sm:$0xf]
      %v4057 = vld [vmem:[%s4035 + $0x54] sm:$0xf]
      %v4058 = vld [vmem:[%s4035 + $0x58] sm:$0xf]
      %v4059 = vld [vmem:[%s4035 + $0x5c] sm:$0xf]
      %v4060 = vld [vmem:[%s4035 + $0x60] sm:$0xf]
      %v4061 = vld [vmem:[%s4035 + $0x64] sm:$0xf]
      %v4062 = vld [vmem:[%s4035 + $0x68] sm:$0xf]
      %v4063 = vld [vmem:[%s4035 + $0x6c] sm:$0xf]
      %v4064 = vld [vmem:[%s4035 + $0x70] sm:$0xf]
      %v4065 = vld [vmem:[%s4035 + $0x74] sm:$0xf]
      %v4066 = vld [vmem:[%s4035 + $0x78] sm:$0xf]
      %v4067 = vld [vmem:[%s4035 + $0x7c] sm:$0xf]
      %v4068 = vld [vmem:[%s4035 + $0x80] sm:$0xf]
      %v4069 = vld [vmem:[%s4035 + $0x84] sm:$0xf]
      %v4070 = vld [vmem:[%s4035 + $0x88] sm:$0xf]
      %v4071 = vld [vmem:[%s4035 + $0x8c] sm:$0xf]
      %v4072 = vld [vmem:[%s4035 + $0x90] sm:$0xf]
      %v4073 = vld [vmem:[%s4035 + $0x94] sm:$0xf]
      %v4074 = vld [vmem:[%s4035 + $0x98] sm:$0xf]
      %v4075 = vld [vmem:[%s4035 + $0x9c] sm:$0xf]
      %v4076 = vld [vmem:[%s4035 + $0xa0] sm:$0xf]
      %v4077 = vld [vmem:[%s4035 + $0xa4] sm:$0xf]
      %v4078 = vld [vmem:[%s4035 + $0xa8] sm:$0xf]
      %v4079 = vld [vmem:[%s4035 + $0xac] sm:$0xf]
      %v4080 = vld [vmem:[%s4035 + $0xb0] sm:$0xf]
      %v4081 = vld [vmem:[%s4035 + $0xb4] sm:$0xf]
      %v4082 = vld [vmem:[%s4035 + $0xb8] sm:$0xf]
      %v4083 = vld [vmem:[%s4035 + $0xbc] sm:$0xf]
      %v4084 = vld [vmem:[%s4035 + $0xc0] sm:$0xf]
      %v4085 = vld [vmem:[%s4035 + $0xc4] sm:$0xf]
      %v4086 = vld [vmem:[%s4035 + $0xc8] sm:$0xf]
      %v4087 = vld [vmem:[%s4035 + $0xcc] sm:$0xf]
      %v4088 = vld [vmem:[%s4035 + $0xd0] sm:$0xf]
      %v4089 = vld [vmem:[%s4035 + $0xd4] sm:$0xf]
      %v4090 = vld [vmem:[%s4035 + $0xd8] sm:$0xf]
      %v4091 = vld [vmem:[%s4035 + $0xdc] sm:$0xf]
      %v4092 = vld [vmem:[%s4035 + $0xe0] sm:$0xf]
      %v4093 = vld [vmem:[%s4035 + $0xe4] sm:$0xf]
      %v4094 = vld [vmem:[%s4035 + $0xe8] sm:$0xf]
      %v4095 = vld [vmem:[%s4035 + $0xec] sm:$0xf]
      %v4096 = vld [vmem:[%s4035 + $0xf0] sm:$0xf]
      %v4097 = vld [vmem:[%s4035 + $0xf4] sm:$0xf]
      %v4098 = vld [vmem:[%s4035 + $0xf8] sm:$0xf]
      %v4099 = vld [vmem:[%s4035 + $0xfc] sm:$0xf]
      %v4100 = vld [vmem:[%s4035 + $0x100] sm:$0xf]
      %v4101 = vld [vmem:[%s4035 + $0x104] sm:$0xf]
      %v4102 = vld [vmem:[%s4035 + $0x108] sm:$0xf]
      %v4103 = vld [vmem:[%s4035 + $0x10c] sm:$0xf]
      %v4104 = vld [vmem:[%s4035 + $0x110] sm:$0xf]
      %v4105 = vld [vmem:[%s4035 + $0x114] sm:$0xf]
      %v4106 = vld [vmem:[%s4035 + $0x118] sm:$0xf]
      %v4107 = vld [vmem:[%s4035 + $0x11c] sm:$0xf]
      %v4108 = vld [vmem:[%s4035 + $0x120] sm:$0xf]
      %v4109 = vld [vmem:[%s4035 + $0x124] sm:$0xf]
      %v4110 = vld [vmem:[%s4035 + $0x128] sm:$0xf]
      %v4111 = vld [vmem:[%s4035 + $0x12c] sm:$0xf]
      %v4112 = vld [vmem:[%s4035 + $0x130] sm:$0xf]
      %v4113 = vld [vmem:[%s4035 + $0x134] sm:$0xf]
      %v4114 = vld [vmem:[%s4035 + $0x138] sm:$0xf]
      %v4115 = vld [vmem:[%s4035 + $0x13c] sm:$0xf]
      %v4116 = vld [vmem:[%s4035 + $0x140] sm:$0xf]
      %v4117 = vld [vmem:[%s4035 + $0x144] sm:$0xf]
      %v4118 = vld [vmem:[%s4035 + $0x148] sm:$0xf]
      %v4119 = vld [vmem:[%s4035 + $0x14c] sm:$0xf]
      %v4120 = vld [vmem:[%s4035 + $0x150] sm:$0xf]
      %v4121 = vld [vmem:[%s4035 + $0x154] sm:$0xf]
      %v4122 = vld [vmem:[%s4035 + $0x158] sm:$0xf]
      %v4123 = vld [vmem:[%s4035 + $0x15c] sm:$0xf]
      %v4124 = vld [vmem:[%s4035 + $0x160] sm:$0xf]
      %v4125 = vld [vmem:[%s4035 + $0x164] sm:$0xf]
      %v4126 = vld [vmem:[%s4035 + $0x168] sm:$0xf]
      %v4127 = vld [vmem:[%s4035 + $0x16c] sm:$0xf]
      %v4128 = vld [vmem:[%s4035 + $0x170] sm:$0xf]
      %v4129 = vld [vmem:[%s4035 + $0x174] sm:$0xf]
      %v4130 = vld [vmem:[%s4035 + $0x178] sm:$0xf]
      %v4131 = vld [vmem:[%s4035 + $0x17c] sm:$0xf]
      %v4132 = vld [vmem:[%s4035 + $0x180] sm:$0xf]
      %v4133 = vld [vmem:[%s4035 + $0x184] sm:$0xf]
      %v4134 = vld [vmem:[%s4035 + $0x188] sm:$0xf]
      %v4135 = vld [vmem:[%s4035 + $0x18c] sm:$0xf]
      %v4136 = vld [vmem:[%s4035 + $0x190] sm:$0xf]
      %v4137 = vld [vmem:[%s4035 + $0x194] sm:$0xf]
      %v4138 = vld [vmem:[%s4035 + $0x198] sm:$0xf]
      %v4139 = vld [vmem:[%s4035 + $0x19c] sm:$0xf]
      %v4140 = vld [vmem:[%s4035 + $0x1a0] sm:$0xf]
      %v4141 = vld [vmem:[%s4035 + $0x1a4] sm:$0xf]
      %v4142 = vld [vmem:[%s4035 + $0x1a8] sm:$0xf]
      %v4143 = vld [vmem:[%s4035 + $0x1ac] sm:$0xf]
      %v4144 = vld [vmem:[%s4035 + $0x1b0] sm:$0xf]
      %v4145 = vld [vmem:[%s4035 + $0x1b4] sm:$0xf]
      %v4146 = vld [vmem:[%s4035 + $0x1b8] sm:$0xf]
      %v4147 = vld [vmem:[%s4035 + $0x1bc] sm:$0xf]
      %v4148 = vld [vmem:[%s4035 + $0x1c0] sm:$0xf]
      %v4149 = vld [vmem:[%s4035 + $0x1c4] sm:$0xf]
      %v4150 = vld [vmem:[%s4035 + $0x1c8] sm:$0xf]
      %v4151 = vld [vmem:[%s4035 + $0x1cc] sm:$0xf]
      %v4152 = vld [vmem:[%s4035 + $0x1d0] sm:$0xf]
      %v4153 = vld [vmem:[%s4035 + $0x1d4] sm:$0xf]
      %v4154 = vld [vmem:[%s4035 + $0x1d8] sm:$0xf]
      %v4155 = vld [vmem:[%s4035 + $0x1dc] sm:$0xf]
      %v4156 = vld [vmem:[%s4035 + $0x1e0] sm:$0xf]
      %v4157 = vld [vmem:[%s4035 + $0x1e4] sm:$0xf]
      %v4158 = vld [vmem:[%s4035 + $0x1e8] sm:$0xf]
      %v4159 = vld [vmem:[%s4035 + $0x1ec] sm:$0xf]
      %v4160 = vld [vmem:[%s4035 + $0x1f0] sm:$0xf]
      %v4161 = vld [vmem:[%s4035 + $0x1f4] sm:$0xf]
      %v4162 = vld [vmem:[%s4035 + $0x1f8] sm:$0xf]
      %v4163 = vld [vmem:[%s4035 + $0x1fc] sm:$0xf]
      %v4164 = vld [vmem:[%s4035 + $0x200] sm:$0xf]
      %v4165 = vld [vmem:[%s4035 + $0x204] sm:$0xf]
      %v4166 = vld [vmem:[%s4035 + $0x208] sm:$0xf]
      %v4167 = vld [vmem:[%s4035 + $0x20c] sm:$0xf]
      %v4168 = vld [vmem:[%s4035 + $0x210] sm:$0xf]
      %v4169 = vld [vmem:[%s4035 + $0x214] sm:$0xf]
      %v4170 = vld [vmem:[%s4035 + $0x218] sm:$0xf]
      %v4171 = vld [vmem:[%s4035 + $0x21c] sm:$0xf]
      %v4172 = vld [vmem:[%s4035 + $0x220] sm:$0xf]
      %v4173 = vld [vmem:[%s4035 + $0x224] sm:$0xf]
      %v4174 = vld [vmem:[%s4035 + $0x228] sm:$0xf]
      %v4175 = vld [vmem:[%s4035 + $0x22c] sm:$0xf]
      %v4176 = vld [vmem:[%s4035 + $0x230] sm:$0xf]
      %v4177 = vld [vmem:[%s4035 + $0x234] sm:$0xf]
      %v4178 = vld [vmem:[%s4035 + $0x238] sm:$0xf]
      %v4179 = vld [vmem:[%s4035 + $0x23c] sm:$0xf]
      %v4324 = vunpack.c.l.b16 %v4036
      %v4325 = vunpack.c.l.b16 %v4037
      %v4326 = vunpack.c.l.b16 %v4038
      %v4327 = vunpack.c.l.b16 %v4039
      %v4328 = vunpack.c.l.b16 %v4040
      %v4329 = vunpack.c.l.b16 %v4041
      %v4330 = vunpack.c.l.b16 %v4042
      %v4331 = vunpack.c.l.b16 %v4043
      %v4332 = vunpack.c.l.b16 %v4044
      %v4333 = vunpack.c.l.b16 %v4045
      %v4334 = vunpack.c.l.b16 %v4046
      %v4335 = vunpack.c.l.b16 %v4047
      %v4336 = vunpack.c.l.b16 %v4048
      %v4337 = vunpack.c.l.b16 %v4049
      %v4338 = vunpack.c.l.b16 %v4050
      %v4339 = vunpack.c.l.b16 %v4051
      %v4340 = vunpack.c.l.b16 %v4052
      %v4341 = vunpack.c.l.b16 %v4053
      %v4342 = vunpack.c.l.b16 %v4054
      %v4343 = vunpack.c.l.b16 %v4055
      %v4344 = vunpack.c.l.b16 %v4056
      %v4345 = vunpack.c.l.b16 %v4057
      %v4346 = vunpack.c.l.b16 %v4058
      %v4347 = vunpack.c.l.b16 %v4059
      %v4348 = vunpack.c.l.b16 %v4060
      %v4349 = vunpack.c.l.b16 %v4061
      %v4350 = vunpack.c.l.b16 %v4062
      %v4351 = vunpack.c.l.b16 %v4063
      %v4352 = vunpack.c.l.b16 %v4064
      %v4353 = vunpack.c.l.b16 %v4065
      %v4354 = vunpack.c.l.b16 %v4066
      %v4355 = vunpack.c.l.b16 %v4067
      %v4356 = vunpack.c.l.b16 %v4068
      %v4357 = vunpack.c.l.b16 %v4069
      %v4358 = vunpack.c.l.b16 %v4070
      %v4359 = vunpack.c.l.b16 %v4071
      %v4360 = vunpack.c.l.b16 %v4072
      %v4361 = vunpack.c.l.b16 %v4073
      %v4362 = vunpack.c.l.b16 %v4074
      %v4363 = vunpack.c.l.b16 %v4075
      %v4364 = vunpack.c.l.b16 %v4076
      %v4365 = vunpack.c.l.b16 %v4077
      %v4366 = vunpack.c.l.b16 %v4078
      %v4367 = vunpack.c.l.b16 %v4079
      %v4368 = vunpack.c.l.b16 %v4080
      %v4369 = vunpack.c.l.b16 %v4081
      %v4370 = vunpack.c.l.b16 %v4082
      %v4371 = vunpack.c.l.b16 %v4083
      %v4372 = vunpack.c.l.b16 %v4084
      %v4373 = vunpack.c.l.b16 %v4085
      %v4374 = vunpack.c.l.b16 %v4086
      %v4375 = vunpack.c.l.b16 %v4087
      %v4376 = vunpack.c.l.b16 %v4088
      %v4377 = vunpack.c.l.b16 %v4089
      %v4378 = vunpack.c.l.b16 %v4090
      %v4379 = vunpack.c.l.b16 %v4091
      %v4380 = vunpack.c.l.b16 %v4092
      %v4381 = vunpack.c.l.b16 %v4093
      %v4382 = vunpack.c.l.b16 %v4094
      %v4383 = vunpack.c.l.b16 %v4095
      %v4384 = vunpack.c.l.b16 %v4096
      %v4385 = vunpack.c.l.b16 %v4097
      %v4386 = vunpack.c.l.b16 %v4098
      %v4387 = vunpack.c.l.b16 %v4099
      %v4388 = vunpack.c.l.b16 %v4100
      %v4389 = vunpack.c.l.b16 %v4101
      %v4390 = vunpack.c.l.b16 %v4102
      %v4391 = vunpack.c.l.b16 %v4103
      %v4392 = vunpack.c.l.b16 %v4104
      %v4393 = vunpack.c.l.b16 %v4105
      %v4394 = vunpack.c.l.b16 %v4106
      %v4395 = vunpack.c.l.b16 %v4107
      %v4396 = vunpack.c.l.b16 %v4108
      %v4397 = vunpack.c.l.b16 %v4109
      %v4398 = vunpack.c.l.b16 %v4110
      %v4399 = vunpack.c.l.b16 %v4111
      %v4400 = vunpack.c.l.b16 %v4112
      %v4401 = vunpack.c.l.b16 %v4113
      %v4402 = vunpack.c.l.b16 %v4114
      %v4403 = vunpack.c.l.b16 %v4115
      %v4404 = vunpack.c.l.b16 %v4116
      %v4405 = vunpack.c.l.b16 %v4117
      %v4406 = vunpack.c.l.b16 %v4118
      %v4407 = vunpack.c.l.b16 %v4119
      %v4408 = vunpack.c.l.b16 %v4120
      %v4409 = vunpack.c.l.b16 %v4121
      %v4410 = vunpack.c.l.b16 %v4122
      %v4411 = vunpack.c.l.b16 %v4123
      %v4412 = vunpack.c.l.b16 %v4124
      %v4413 = vunpack.c.l.b16 %v4125
      %v4414 = vunpack.c.l.b16 %v4126
      %v4415 = vunpack.c.l.b16 %v4127
      %v4416 = vunpack.c.l.b16 %v4128
      %v4417 = vunpack.c.l.b16 %v4129
      %v4418 = vunpack.c.l.b16 %v4130
      %v4419 = vunpack.c.l.b16 %v4131
      %v4420 = vunpack.c.l.b16 %v4132
      %v4421 = vunpack.c.l.b16 %v4133
      %v4422 = vunpack.c.l.b16 %v4134
      %v4423 = vunpack.c.l.b16 %v4135
      %v4424 = vunpack.c.l.b16 %v4136
      %v4425 = vunpack.c.l.b16 %v4137
      %v4426 = vunpack.c.l.b16 %v4138
      %v4427 = vunpack.c.l.b16 %v4139
      %v4428 = vunpack.c.l.b16 %v4140
      %v4429 = vunpack.c.l.b16 %v4141
      %v4430 = vunpack.c.l.b16 %v4142
      %v4431 = vunpack.c.l.b16 %v4143
      %v4432 = vunpack.c.l.b16 %v4144
      %v4433 = vunpack.c.l.b16 %v4145
      %v4434 = vunpack.c.l.b16 %v4146
      %v4435 = vunpack.c.l.b16 %v4147
      %v4436 = vunpack.c.l.b16 %v4148
      %v4437 = vunpack.c.l.b16 %v4149
      %v4438 = vunpack.c.l.b16 %v4150
      %v4439 = vunpack.c.l.b16 %v4151
      %v4440 = vunpack.c.l.b16 %v4152
      %v4441 = vunpack.c.l.b16 %v4153
      %v4442 = vunpack.c.l.b16 %v4154
      %v4443 = vunpack.c.l.b16 %v4155
      %v4444 = vunpack.c.l.b16 %v4156
      %v4445 = vunpack.c.l.b16 %v4157
      %v4446 = vunpack.c.l.b16 %v4158
      %v4447 = vunpack.c.l.b16 %v4159
      %v4448 = vunpack.c.l.b16 %v4160
      %v4449 = vunpack.c.l.b16 %v4161
      %v4450 = vunpack.c.l.b16 %v4162
      %v4451 = vunpack.c.l.b16 %v4163
      %v4452 = vunpack.c.l.b16 %v4164
      %v4453 = vunpack.c.l.b16 %v4165
      %v4454 = vunpack.c.l.b16 %v4166
      %v4455 = vunpack.c.l.b16 %v4167
      %v4456 = vunpack.c.l.b16 %v4168
      %v4457 = vunpack.c.l.b16 %v4169
      %v4458 = vunpack.c.l.b16 %v4170
      %v4459 = vunpack.c.l.b16 %v4171
      %v4460 = vunpack.c.l.b16 %v4172
      %v4461 = vunpack.c.l.b16 %v4173
      %v4462 = vunpack.c.l.b16 %v4174
      %v4463 = vunpack.c.l.b16 %v4175
      %v4464 = vunpack.c.l.b16 %v4176
      %v4465 = vunpack.c.l.b16 %v4177
      %v4466 = vunpack.c.l.b16 %v4178
      %v4467 = vunpack.c.l.b16 %v4179
      %v4468 = vpack.c.b16 %v4325, %v4324
      %v4469 = vpack.c.b16 %v4327, %v4326
      %v4470 = vpack.c.b16 %v4329, %v4328
      %v4471 = vpack.c.b16 %v4331, %v4330
      %v4472 = vpack.c.b16 %v4333, %v4332
      %v4473 = vpack.c.b16 %v4335, %v4334
      %v4474 = vpack.c.b16 %v4337, %v4336
      %v4475 = vpack.c.b16 %v4339, %v4338
      %v4476 = vpack.c.b16 %v4341, %v4340
      %v4477 = vpack.c.b16 %v4343, %v4342
      %v4478 = vpack.c.b16 %v4345, %v4344
      %v4479 = vpack.c.b16 %v4347, %v4346
      %v4480 = vpack.c.b16 %v4349, %v4348
      %v4481 = vpack.c.b16 %v4351, %v4350
      %v4482 = vpack.c.b16 %v4353, %v4352
      %v4483 = vpack.c.b16 %v4355, %v4354
      %v4484 = vpack.c.b16 %v4357, %v4356
      %v4485 = vpack.c.b16 %v4359, %v4358
      %v4486 = vpack.c.b16 %v4361, %v4360
      %v4487 = vpack.c.b16 %v4363, %v4362
      %v4488 = vpack.c.b16 %v4365, %v4364
      %v4489 = vpack.c.b16 %v4367, %v4366
      %v4490 = vpack.c.b16 %v4369, %v4368
      %v4491 = vpack.c.b16 %v4371, %v4370
      %v4492 = vpack.c.b16 %v4373, %v4372
      %v4493 = vpack.c.b16 %v4375, %v4374
      %v4494 = vpack.c.b16 %v4377, %v4376
      %v4495 = vpack.c.b16 %v4379, %v4378
      %v4496 = vpack.c.b16 %v4381, %v4380
      %v4497 = vpack.c.b16 %v4383, %v4382
      %v4498 = vpack.c.b16 %v4385, %v4384
      %v4499 = vpack.c.b16 %v4387, %v4386
      %v4500 = vpack.c.b16 %v4389, %v4388
      %v4501 = vpack.c.b16 %v4391, %v4390
      %v4502 = vpack.c.b16 %v4393, %v4392
      %v4503 = vpack.c.b16 %v4395, %v4394
      %v4504 = vpack.c.b16 %v4397, %v4396
      %v4505 = vpack.c.b16 %v4399, %v4398
      %v4506 = vpack.c.b16 %v4401, %v4400
      %v4507 = vpack.c.b16 %v4403, %v4402
      %v4508 = vpack.c.b16 %v4405, %v4404
      %v4509 = vpack.c.b16 %v4407, %v4406
      %v4510 = vpack.c.b16 %v4409, %v4408
      %v4511 = vpack.c.b16 %v4411, %v4410
      %v4512 = vpack.c.b16 %v4413, %v4412
      %v4513 = vpack.c.b16 %v4415, %v4414
      %v4514 = vpack.c.b16 %v4417, %v4416
      %v4515 = vpack.c.b16 %v4419, %v4418
      %v4516 = vpack.c.b16 %v4421, %v4420
      %v4517 = vpack.c.b16 %v4423, %v4422
      %v4518 = vpack.c.b16 %v4425, %v4424
      %v4519 = vpack.c.b16 %v4427, %v4426
      %v4520 = vpack.c.b16 %v4429, %v4428
      %v4521 = vpack.c.b16 %v4431, %v4430
      %v4522 = vpack.c.b16 %v4433, %v4432
      %v4523 = vpack.c.b16 %v4435, %v4434
      %v4524 = vpack.c.b16 %v4437, %v4436
      %v4525 = vpack.c.b16 %v4439, %v4438
      %v4526 = vpack.c.b16 %v4441, %v4440
      %v4527 = vpack.c.b16 %v4443, %v4442
      %v4528 = vpack.c.b16 %v4445, %v4444
      %v4529 = vpack.c.b16 %v4447, %v4446
      %v4530 = vpack.c.b16 %v4449, %v4448
      %v4531 = vpack.c.b16 %v4451, %v4450
      %v4532 = vpack.c.b16 %v4453, %v4452
      %v4533 = vpack.c.b16 %v4455, %v4454
      %v4534 = vpack.c.b16 %v4457, %v4456
      %v4535 = vpack.c.b16 %v4459, %v4458
      %v4536 = vpack.c.b16 %v4461, %v4460
      %v4537 = vpack.c.b16 %v4463, %v4462
      %v4538 = vpack.c.b16 %v4465, %v4464
      %v4539 = vpack.c.b16 %v4467, %v4466
      %4612 = vmatprep.subr.bf16.mxu0 0
      %4613 = vmatpush1.bf16.msra.mxu0 %v4468
      %4614 = vmatprep.subr.bf16.mxu0 0
      %4615 = vmatpush1.bf16.msra.mxu0 %v4469
      %4616 = vmatprep.subr.bf16.mxu0 0
      %4617 = vmatpush1.bf16.msra.mxu0 %v4470
      %4618 = vmatprep.subr.bf16.mxu0 0
      %4619 = vmatpush1.bf16.msra.mxu0 %v4471
      %4620 = vmatprep.subr.bf16.mxu0 0
      %4621 = vmatpush1.bf16.msra.mxu0 %v4472
      %4622 = vmatprep.subr.bf16.mxu0 0
      %4623 = vmatpush1.bf16.msra.mxu0 %v4473
      %4624 = vmatprep.subr.bf16.mxu0 0
      %4625 = vmatpush1.bf16.msra.mxu0 %v4474
      %4626 = vmatprep.subr.bf16.mxu0 0
      %4627 = vmatpush1.bf16.msra.mxu0 %v4475
      %4628 = vmatprep.subr.bf16.mxu0 0
      %4629 = vmatpush1.bf16.msra.mxu0 %v4476
      %4630 = vmatprep.subr.bf16.mxu0 0
      %4631 = vmatpush1.bf16.msra.mxu0 %v4477
      %4632 = vmatprep.subr.bf16.mxu0 0
      %4633 = vmatpush1.bf16.msra.mxu0 %v4478
      %4634 = vmatprep.subr.bf16.mxu0 0
      %4635 = vmatpush1.bf16.msra.mxu0 %v4479
      %4636 = vmatprep.subr.bf16.mxu0 0
      %4637 = vmatpush1.bf16.msra.mxu0 %v4480
      %4638 = vmatprep.subr.bf16.mxu0 0
      %4639 = vmatpush1.bf16.msra.mxu0 %v4481
      %4640 = vmatprep.subr.bf16.mxu0 0
      %4641 = vmatpush1.bf16.msra.mxu0 %v4482
      %4642 = vmatprep.subr.bf16.mxu0 0
      %4643 = vmatpush1.bf16.msra.mxu0 %v4483
      %4644 = vmatprep.mubr.bf16.mxu0 %v3890
      %4645 = vmatmul.mubr.bf16.gmra.mrb[0].mxu0 %v3889
      %v4646 = vpop.f32.mrb[0].mxu0
      %v4647 = vadd.f32 0.0, %v4646
      %v4648 = vpop.f32.mrb[0].mxu0
      %v4649 = vpop.f32.mrb[0].mxu0
      %v4650 = vadd.f32 0.0, %v4649
      %v4651 = vpop.f32.mrb[0].mxu0
      %4652 = vmatprep.mubr.bf16.mxu0 %v3899
      %4653 = vmatmul.mubr.bf16.gmra.mrb[0].mxu0 %v3898
      %v4654 = vpop.f32.mrb[0].mxu0
      %v4655 = vadd.f32 0.0, %v4654
      %v4656 = vpop.f32.mrb[0].mxu0
      %v4657 = vpop.f32.mrb[0].mxu0
      %v4658 = vadd.f32 0.0, %v4657
      %v4659 = vpop.f32.mrb[0].mxu0
      %4660 = vmatprep.mubr.bf16.mxu0 %v3908
      %4661 = vmatmul.mubr.bf16.gmra.mrb[0].mxu0 %v3907
      %v4662 = vpop.f32.mrb[0].mxu0
      %v4663 = vadd.f32 0.0, %v4662
      %v4664 = vpop.f32.mrb[0].mxu0
      %v4665 = vpop.f32.mrb[0].mxu0
      %v4666 = vadd.f32 0.0, %v4665
      %v4667 = vpop.f32.mrb[0].mxu0
      %4668 = vmatprep.mubr.bf16.mxu0 %v3917
      %4669 = vmatmul.mubr.bf16.gmra.mrb[0].mxu0 %v3916
      %v4670 = vpop.f32.mrb[0].mxu0
      %v4671 = vadd.f32 0.0, %v4670
      %v4672 = vpop.f32.mrb[0].mxu0
      %v4673 = vpop.f32.mrb[0].mxu0
      %v4674 = vadd.f32 0.0, %v4673
      %v4675 = vpop.f32.mrb[0].mxu0
      %4676 = vmatprep.mubr.bf16.mxu0 %v3926
      %4677 = vmatmul.mubr.bf16.gmra.mrb[0].mxu0 %v3925
      %v4678 = vpop.f32.mrb[0].mxu0
      %v4679 = vadd.f32 0.0, %v4678
      %v4680 = vpop.f32.mrb[0].mxu0
      %v4681 = vpop.f32.mrb[0].mxu0
      %v4682 = vadd.f32 0.0, %v4681
      %v4683 = vpop.f32.mrb[0].mxu0
      %4684 = vmatprep.mubr.bf16.mxu0 %v3935
      %4685 = vmatmul.mubr.bf16.gmra.mrb[0].mxu0 %v3934
      %v4686 = vpop.f32.mrb[0].mxu0
      %v4687 = vadd.f32 0.0, %v4686
      %v4688 = vpop.f32.mrb[0].mxu0
      %v4689 = vpop.f32.mrb[0].mxu0
      %v4690 = vadd.f32 0.0, %v4689
      %v4691 = vpop.f32.mrb[0].mxu0
      %4692 = vmatprep.mubr.bf16.mxu0 %v3944
      %4693 = vmatmul.mubr.bf16.gmra.mrb[0].mxu0 %v3943
      %v4694 = vpop.f32.mrb[0].mxu0
      %v4695 = vadd.f32 0.0, %v4694
      %v4696 = vpop.f32.mrb[0].mxu0
      %v4697 = vpop.f32.mrb[0].mxu0
      %v4698 = vadd.f32 0.0, %v4697
      %v4699 = vpop.f32.mrb[0].mxu0
      %4700 = vmatprep.mubr.bf16.mxu0 %v3953
      %4701 = vmatmul.mubr.bf16.gmra.mrb[0].mxu0 %v3952
      %v4702 = vpop.f32.mrb[0].mxu0
      %v4703 = vadd.f32 0.0, %v4702
      %v4704 = vpop.f32.mrb[0].mxu0
      %v4705 = vpop.f32.mrb[0].mxu0
      %v4706 = vadd.f32 0.0, %v4705
      %v4707 = vpop.f32.mrb[0].mxu0
      %4708 = vmatprep.mubr.bf16.mxu0 %v3962
      %4709 = vmatmul.mubr.bf16.gmra.mrb[0].mxu0 %v3961
      %v4710 = vpop.f32.mrb[0].mxu0
      %v4711 = vadd.f32 0.0, %v4710
      %v4712 = vpop.f32.mrb[0].mxu0
      %v4713 = vpop.f32.mrb[0].mxu0
      %v4714 = vadd.f32 0.0, %v4713
      %v4715 = vpop.f32.mrb[0].mxu0
      %4716 = vmatprep.mubr.bf16.mxu0 %v3971
      %4717 = vmatmul.mubr.bf16.gmra.mrb[0].mxu0 %v3970
      %v4718 = vpop.f32.mrb[0].mxu0
      %v4719 = vadd.f32 0.0, %v4718
      %v4720 = vpop.f32.mrb[0].mxu0
      %v4721 = vpop.f32.mrb[0].mxu0
      %v4722 = vadd.f32 0.0, %v4721
      %v4723 = vpop.f32.mrb[0].mxu0
      %4724 = vmatprep.mubr.bf16.mxu0 %v3980
      %4725 = vmatmul.mubr.bf16.gmra.mrb[0].mxu0 %v3979
      %v4726 = vpop.f32.mrb[0].mxu0
      %v4727 = vadd.f32 0.0, %v4726
      %v4728 = vpop.f32.mrb[0].mxu0
      %v4729 = vpop.f32.mrb[0].mxu0
      %v4730 = vadd.f32 0.0, %v4729
      %v4731 = vpop.f32.mrb[0].mxu0
      %4732 = vmatprep.mubr.bf16.mxu0 %v3989
      %4733 = vmatmul.mubr.bf16.gmra.mrb[0].mxu0 %v3988
      %v4734 = vpop.f32.mrb[0].mxu0
      %v4735 = vadd.f32 0.0, %v4734
      %v4736 = vpop.f32.mrb[0].mxu0
      %v4737 = vpop.f32.mrb[0].mxu0
      %v4738 = vadd.f32 0.0, %v4737
      %v4739 = vpop.f32.mrb[0].mxu0
      %4740 = vmatprep.mubr.bf16.mxu0 %v3998
      %4741 = vmatmul.mubr.bf16.gmra.mrb[0].mxu0 %v3997
      %v4742 = vpop.f32.mrb[0].mxu0
      %v4743 = vadd.f32 0.0, %v4742
      %v4744 = vpop.f32.mrb[0].mxu0
      %v4745 = vpop.f32.mrb[0].mxu0
      %v4746 = vadd.f32 0.0, %v4745
      %v4747 = vpop.f32.mrb[0].mxu0
      %4748 = vmatprep.mubr.bf16.mxu0 %v4007
      %4749 = vmatmul.mubr.bf16.gmra.mrb[0].mxu0 %v4006
      %v4750 = vpop.f32.mrb[0].mxu0
      %v4751 = vadd.f32 0.0, %v4750
      %v4752 = vpop.f32.mrb[0].mxu0
      %v4753 = vpop.f32.mrb[0].mxu0
      %v4754 = vadd.f32 0.0, %v4753
      %v4755 = vpop.f32.mrb[0].mxu0
      %4756 = vmatprep.mubr.bf16.mxu0 %v4016
      %4757 = vmatmul.mubr.bf16.gmra.mrb[0].mxu0 %v4015
      %v4758 = vpop.f32.mrb[0].mxu0
      %v4759 = vadd.f32 0.0, %v4758
      %v4760 = vpop.f32.mrb[0].mxu0
      %v4761 = vpop.f32.mrb[0].mxu0
      %v4762 = vadd.f32 0.0, %v4761
      %v4763 = vpop.f32.mrb[0].mxu0
      %4764 = vmatprep.mubr.bf16.mxu0 %v4025
      %4765 = vmatmul.mubr.bf16.gmra.mrb[0].mxu0 %v4024
      %v4766 = vpop.f32.mrb[0].mxu0
      %v4767 = vadd.f32 0.0, %v4766
      %v4768 = vpop.f32.mrb[0].mxu0
      %v4769 = vpop.f32.mrb[0].mxu0
      %v4770 = vadd.f32 0.0, %v4769
      %v4771 = vpop.f32.mrb[0].mxu0
      %4772 = vdwg.mxu0
      %4773 = vmatprep.subr.bf16.mxu0 0
      %4774 = vmatpush1.bf16.msra.mxu0 %v4484
      %4775 = vmatprep.subr.bf16.mxu0 0
      %4776 = vmatpush1.bf16.msra.mxu0 %v4485
      %4777 = vmatprep.subr.bf16.mxu0 0
      %4778 = vmatpush1.bf16.msra.mxu0 %v4486
      %4779 = vmatprep.subr.bf16.mxu0 0
      %4780 = vmatpush1.bf16.msra.mxu0 %v4487
      %4781 = vmatprep.subr.bf16.mxu0 0
      %4782 = vmatpush1.bf16.msra.mxu0 %v4488
      %4783 = vmatprep.subr.bf16.mxu0 0
      %4784 = vmatpush1.bf16.msra.mxu0 %v4489
      %4785 = vmatprep.subr.bf16.mxu0 0
      %4786 = vmatpush1.bf16.msra.mxu0 %v4490
      %4787 = vmatprep.subr.bf16.mxu0 0
      %4788 = vmatpush1.bf16.msra.mxu0 %v4491
      %4789 = vmatprep.subr.bf16.mxu0 0
      %4790 = vmatpush1.bf16.msra.mxu0 %v4492
      %4791 = vmatprep.subr.bf16.mxu0 0
      %4792 = vmatpush1.bf16.msra.mxu0 %v4493
      %4793 = vmatprep.subr.bf16.mxu0 0
      %4794 = vmatpush1.bf16.msra.mxu0 %v4494
      %4795 = vmatprep.subr.bf16.mxu0 0
      %4796 = vmatpush1.bf16.msra.mxu0 %v4495
      %4797 = vmatprep.subr.bf16.mxu0 0
      %4798 = vmatpush1.bf16.msra.mxu0 %v4496
      %4799 = vmatprep.subr.bf16.mxu0 0
      %4800 = vmatpush1.bf16.msra.mxu0 %v4497
      %4801 = vmatprep.subr.bf16.mxu0 0
      %4802 = vmatpush1.bf16.msra.mxu0 %v4498
      %4803 = vmatprep.subr.bf16.mxu0 0
      %4804 = vmatpush1.bf16.msra.mxu0 %v4499
      %4805 = vmatprep.mubr.bf16.mxu0 %v3892
      %4806 = vmatmul.mubr.bf16.gmra.mrb[0].mxu0 %v3891
      %v4807 = vpop.f32.mrb[0].mxu0
      %v4808 = vadd.f32 %v4647, %v4807
      %v4809 = vpop.f32.mrb[0].mxu0
      %v4810 = vpop.f32.mrb[0].mxu0
      %v4811 = vadd.f32 %v4650, %v4810
      %v4812 = vpop.f32.mrb[0].mxu0
      %4813 = vmatprep.mubr.bf16.mxu0 %v3901
      %4814 = vmatmul.mubr.bf16.gmra.mrb[0].mxu0 %v3900
      %v4815 = vpop.f32.mrb[0].mxu0
      %v4816 = vadd.f32 %v4655, %v4815
      %v4817 = vpop.f32.mrb[0].mxu0
      %v4818 = vpop.f32.mrb[0].mxu0
      %v4819 = vadd.f32 %v4658, %v4818
      %v4820 = vpop.f32.mrb[0].mxu0
      %4821 = vmatprep.mubr.bf16.mxu0 %v3910
      %4822 = vmatmul.mubr.bf16.gmra.mrb[0].mxu0 %v3909
      %v4823 = vpop.f32.mrb[0].mxu0
      %v4824 = vadd.f32 %v4663, %v4823
      %v4825 = vpop.f32.mrb[0].mxu0
      %v4826 = vpop.f32.mrb[0].mxu0
      %v4827 = vadd.f32 %v4666, %v4826
      %v4828 = vpop.f32.mrb[0].mxu0
      %4829 = vmatprep.mubr.bf16.mxu0 %v3919
      %4830 = vmatmul.mubr.bf16.gmra.mrb[0].mxu0 %v3918
      %v4831 = vpop.f32.mrb[0].mxu0
      %v4832 = vadd.f32 %v4671, %v4831
      %v4833 = vpop.f32.mrb[0].mxu0
      %v4834 = vpop.f32.mrb[0].mxu0
      %v4835 = vadd.f32 %v4674, %v4834
      %v4836 = vpop.f32.mrb[0].mxu0
      %4837 = vmatprep.mubr.bf16.mxu0 %v3928
      %4838 = vmatmul.mubr.bf16.gmra.mrb[0].mxu0 %v3927
      %v4839 = vpop.f32.mrb[0].mxu0
      %v4840 = vadd.f32 %v4679, %v4839
      %v4841 = vpop.f32.mrb[0].mxu0
      %v4842 = vpop.f32.mrb[0].mxu0
      %v4843 = vadd.f32 %v4682, %v4842
      %v4844 = vpop.f32.mrb[0].mxu0
      %4845 = vmatprep.mubr.bf16.mxu0 %v3937
      %4846 = vmatmul.mubr.bf16.gmra.mrb[0].mxu0 %v3936
      %v4847 = vpop.f32.mrb[0].mxu0
      %v4848 = vadd.f32 %v4687, %v4847
      %v4849 = vpop.f32.mrb[0].mxu0
      %v4850 = vpop.f32.mrb[0].mxu0
      %v4851 = vadd.f32 %v4690, %v4850
      %v4852 = vpop.f32.mrb[0].mxu0
      %4853 = vmatprep.mubr.bf16.mxu0 %v3946
      %4854 = vmatmul.mubr.bf16.gmra.mrb[0].mxu0 %v3945
      %v4855 = vpop.f32.mrb[0].mxu0
      %v4856 = vadd.f32 %v4695, %v4855
      %v4857 = vpop.f32.mrb[0].mxu0
      %v4858 = vpop.f32.mrb[0].mxu0
      %v4859 = vadd.f32 %v4698, %v4858
      %v4860 = vpop.f32.mrb[0].mxu0
      %4861 = vmatprep.mubr.bf16.mxu0 %v3955
      %4862 = vmatmul.mubr.bf16.gmra.mrb[0].mxu0 %v3954
      %v4863 = vpop.f32.mrb[0].mxu0
      %v4864 = vadd.f32 %v4703, %v4863
      %v4865 = vpop.f32.mrb[0].mxu0
      %v4866 = vpop.f32.mrb[0].mxu0
      %v4867 = vadd.f32 %v4706, %v4866
      %v4868 = vpop.f32.mrb[0].mxu0
      %4869 = vmatprep.mubr.bf16.mxu0 %v3964
      %4870 = vmatmul.mubr.bf16.gmra.mrb[0].mxu0 %v3963
      %v4871 = vpop.f32.mrb[0].mxu0
      %v4872 = vadd.f32 %v4711, %v4871
      %v4873 = vpop.f32.mrb[0].mxu0
      %v4874 = vpop.f32.mrb[0].mxu0
      %v4875 = vadd.f32 %v4714, %v4874
      %v4876 = vpop.f32.mrb[0].mxu0
      %4877 = vmatprep.mubr.bf16.mxu0 %v3973
      %4878 = vmatmul.mubr.bf16.gmra.mrb[0].mxu0 %v3972
      %v4879 = vpop.f32.mrb[0].mxu0
      %v4880 = vadd.f32 %v4719, %v4879
      %v4881 = vpop.f32.mrb[0].mxu0
      %v4882 = vpop.f32.mrb[0].mxu0
      %v4883 = vadd.f32 %v4722, %v4882
      %v4884 = vpop.f32.mrb[0].mxu0
      %4885 = vmatprep.mubr.bf16.mxu0 %v3982
      %4886 = vmatmul.mubr.bf16.gmra.mrb[0].mxu0 %v3981
      %v4887 = vpop.f32.mrb[0].mxu0
      %v4888 = vadd.f32 %v4727, %v4887
      %v4889 = vpop.f32.mrb[0].mxu0
      %v4890 = vpop.f32.mrb[0].mxu0
      %v4891 = vadd.f32 %v4730, %v4890
      %v4892 = vpop.f32.mrb[0].mxu0
      %4893 = vmatprep.mubr.bf16.mxu0 %v3991
      %4894 = vmatmul.mubr.bf16.gmra.mrb[0].mxu0 %v3990
      %v4895 = vpop.f32.mrb[0].mxu0
      %v4896 = vadd.f32 %v4735, %v4895
      %v4897 = vpop.f32.mrb[0].mxu0
      %v4898 = vpop.f32.mrb[0].mxu0
      %v4899 = vadd.f32 %v4738, %v4898
      %v4900 = vpop.f32.mrb[0].mxu0
      %4901 = vmatprep.mubr.bf16.mxu0 %v4000
      %4902 = vmatmul.mubr.bf16.gmra.mrb[0].mxu0 %v3999
      %v4903 = vpop.f32.mrb[0].mxu0
      %v4904 = vadd.f32 %v4743, %v4903
      %v4905 = vpop.f32.mrb[0].mxu0
      %v4906 = vpop.f32.mrb[0].mxu0
      %v4907 = vadd.f32 %v4746, %v4906
      %v4908 = vpop.f32.mrb[0].mxu0
      %4909 = vmatprep.mubr.bf16.mxu0 %v4009
      %4910 = vmatmul.mubr.bf16.gmra.mrb[0].mxu0 %v4008
      %v4911 = vpop.f32.mrb[0].mxu0
      %v4912 = vadd.f32 %v4751, %v4911
      %v4913 = vpop.f32.mrb[0].mxu0
      %v4914 = vpop.f32.mrb[0].mxu0
      %v4915 = vadd.f32 %v4754, %v4914
      %v4916 = vpop.f32.mrb[0].mxu0
      %4917 = vmatprep.mubr.bf16.mxu0 %v4018
      %4918 = vmatmul.mubr.bf16.gmra.mrb[0].mxu0 %v4017
      %v4919 = vpop.f32.mrb[0].mxu0
      %v4920 = vadd.f32 %v4759, %v4919
      %v4921 = vpop.f32.mrb[0].mxu0
      %v4922 = vpop.f32.mrb[0].mxu0
      %v4923 = vadd.f32 %v4762, %v4922
      %v4924 = vpop.f32.mrb[0].mxu0
      %4925 = vmatprep.mubr.bf16.mxu0 %v4027
      %4926 = vmatmul.mubr.bf16.gmra.mrb[0].mxu0 %v4026
      %v4927 = vpop.f32.mrb[0].mxu0
      %v4928 = vadd.f32 %v4767, %v4927
      %v4929 = vpop.f32.mrb[0].mxu0
      %v4930 = vpop.f32.mrb[0].mxu0
      %v4931 = vadd.f32 %v4770, %v4930
      %v4932 = vpop.f32.mrb[0].mxu0
      %4933 = vdwg.mxu0
      %4934 = vmatprep.subr.bf16.mxu0 0
      %4935 = vmatpush1.bf16.msra.mxu0 %v4500
      %4936 = vmatprep.subr.bf16.mxu0 0
      %4937 = vmatpush1.bf16.msra.mxu0 %v4501
      %4938 = vmatprep.subr.bf16.mxu0 0
      %4939 = vmatpush1.bf16.msra.mxu0 %v4502
      %4940 = vmatprep.subr.bf16.mxu0 0
      %4941 = vmatpush1.bf16.msra.mxu0 %v4503
      %4942 = vmatprep.subr.bf16.mxu0 0
      %4943 = vmatpush1.bf16.msra.mxu0 %v4504
      %4944 = vmatprep.subr.bf16.mxu0 0
      %4945 = vmatpush1.bf16.msra.mxu0 %v4505
      %4946 = vmatprep.subr.bf16.mxu0 0
      %4947 = vmatpush1.bf16.msra.mxu0 %v4506
      %4948 = vmatprep.subr.bf16.mxu0 0
      %4949 = vmatpush1.bf16.msra.mxu0 %v4507
      %4950 = vmatprep.subr.bf16.mxu0 0
      %4951 = vmatpush1.bf16.msra.mxu0 %v4508
      %4952 = vmatprep.subr.bf16.mxu0 0
      %4953 = vmatpush1.bf16.msra.mxu0 %v4509
      %4954 = vmatprep.subr.bf16.mxu0 0
      %4955 = vmatpush1.bf16.msra.mxu0 %v4510
      %4956 = vmatprep.subr.bf16.mxu0 0
      %4957 = vmatpush1.bf16.msra.mxu0 %v4511
      %4958 = vmatprep.subr.bf16.mxu0 0
      %4959 = vmatpush1.bf16.msra.mxu0 %v4512
      %4960 = vmatprep.subr.bf16.mxu0 0
      %4961 = vmatpush1.bf16.msra.mxu0 %v4513
      %4962 = vmatprep.subr.bf16.mxu0 0
      %4963 = vmatpush1.bf16.msra.mxu0 %v4514
      %4964 = vmatprep.subr.bf16.mxu0 0
      %4965 = vmatpush1.bf16.msra.mxu0 %v4515
      %4966 = vmatprep.mubr.bf16.mxu0 %v3894
      %4967 = vmatmul.mubr.bf16.gmra.mrb[0].mxu0 %v3893
      %v4968 = vpop.f32.mrb[0].mxu0
      %v4969 = vadd.f32 %v4808, %v4968
      %v4970 = vpop.f32.mrb[0].mxu0
      %v4971 = vpop.f32.mrb[0].mxu0
      %v4972 = vadd.f32 %v4811, %v4971
      %v4973 = vpop.f32.mrb[0].mxu0
      %4974 = vmatprep.mubr.bf16.mxu0 %v3903
      %4975 = vmatmul.mubr.bf16.gmra.mrb[0].mxu0 %v3902
      %v4976 = vpop.f32.mrb[0].mxu0
      %v4977 = vadd.f32 %v4816, %v4976
      %v4978 = vpop.f32.mrb[0].mxu0
      %v4979 = vpop.f32.mrb[0].mxu0
      %v4980 = vadd.f32 %v4819, %v4979
      %v4981 = vpop.f32.mrb[0].mxu0
      %4982 = vmatprep.mubr.bf16.mxu0 %v3912
      %4983 = vmatmul.mubr.bf16.gmra.mrb[0].mxu0 %v3911
      %v4984 = vpop.f32.mrb[0].mxu0
      %v4985 = vadd.f32 %v4824, %v4984
      %v4986 = vpop.f32.mrb[0].mxu0
      %v4987 = vpop.f32.mrb[0].mxu0
      %v4988 = vadd.f32 %v4827, %v4987
      %v4989 = vpop.f32.mrb[0].mxu0
      %4990 = vmatprep.mubr.bf16.mxu0 %v3921
      %4991 = vmatmul.mubr.bf16.gmra.mrb[0].mxu0 %v3920
      %v4992 = vpop.f32.mrb[0].mxu0
      %v4993 = vadd.f32 %v4832, %v4992
      %v4994 = vpop.f32.mrb[0].mxu0
      %v4995 = vpop.f32.mrb[0].mxu0
      %v4996 = vadd.f32 %v4835, %v4995
      %v4997 = vpop.f32.mrb[0].mxu0
      %4998 = vmatprep.mubr.bf16.mxu0 %v3930
      %4999 = vmatmul.mubr.bf16.gmra.mrb[0].mxu0 %v3929
      %v5000 = vpop.f32.mrb[0].mxu0
      %v5001 = vadd.f32 %v4840, %v5000
      %v5002 = vpop.f32.mrb[0].mxu0
      %v5003 = vpop.f32.mrb[0].mxu0
      %v5004 = vadd.f32 %v4843, %v5003
      %v5005 = vpop.f32.mrb[0].mxu0
      %5006 = vmatprep.mubr.bf16.mxu0 %v3939
      %5007 = vmatmul.mubr.bf16.gmra.mrb[0].mxu0 %v3938
      %v5008 = vpop.f32.mrb[0].mxu0
      %v5009 = vadd.f32 %v4848, %v5008
      %v5010 = vpop.f32.mrb[0].mxu0
      %v5011 = vpop.f32.mrb[0].mxu0
      %v5012 = vadd.f32 %v4851, %v5011
      %v5013 = vpop.f32.mrb[0].mxu0
      %5014 = vmatprep.mubr.bf16.mxu0 %v3948
      %5015 = vmatmul.mubr.bf16.gmra.mrb[0].mxu0 %v3947
      %v5016 = vpop.f32.mrb[0].mxu0
      %v5017 = vadd.f32 %v4856, %v5016
      %v5018 = vpop.f32.mrb[0].mxu0
      %v5019 = vpop.f32.mrb[0].mxu0
      %v5020 = vadd.f32 %v4859, %v5019
      %v5021 = vpop.f32.mrb[0].mxu0
      %5022 = vmatprep.mubr.bf16.mxu0 %v3957
      %5023 = vmatmul.mubr.bf16.gmra.mrb[0].mxu0 %v3956
      %v5024 = vpop.f32.mrb[0].mxu0
      %v5025 = vadd.f32 %v4864, %v5024
      %v5026 = vpop.f32.mrb[0].mxu0
      %v5027 = vpop.f32.mrb[0].mxu0
      %v5028 = vadd.f32 %v4867, %v5027
      %v5029 = vpop.f32.mrb[0].mxu0
      %5030 = vmatprep.mubr.bf16.mxu0 %v3966
      %5031 = vmatmul.mubr.bf16.gmra.mrb[0].mxu0 %v3965
      %v5032 = vpop.f32.mrb[0].mxu0
      %v5033 = vadd.f32 %v4872, %v5032
      %v5034 = vpop.f32.mrb[0].mxu0
      %v5035 = vpop.f32.mrb[0].mxu0
      %v5036 = vadd.f32 %v4875, %v5035
      %v5037 = vpop.f32.mrb[0].mxu0
      %5038 = vmatprep.mubr.bf16.mxu0 %v3975
      %5039 = vmatmul.mubr.bf16.gmra.mrb[0].mxu0 %v3974
      %v5040 = vpop.f32.mrb[0].mxu0
      %v5041 = vadd.f32 %v4880, %v5040
      %v5042 = vpop.f32.mrb[0].mxu0
      %v5043 = vpop.f32.mrb[0].mxu0
      %v5044 = vadd.f32 %v4883, %v5043
      %v5045 = vpop.f32.mrb[0].mxu0
      %5046 = vmatprep.mubr.bf16.mxu0 %v3984
      %5047 = vmatmul.mubr.bf16.gmra.mrb[0].mxu0 %v3983
      %v5048 = vpop.f32.mrb[0].mxu0
      %v5049 = vadd.f32 %v4888, %v5048
      %v5050 = vpop.f32.mrb[0].mxu0
      %v5051 = vpop.f32.mrb[0].mxu0
      %v5052 = vadd.f32 %v4891, %v5051
      %v5053 = vpop.f32.mrb[0].mxu0
      %5054 = vmatprep.mubr.bf16.mxu0 %v3993
      %5055 = vmatmul.mubr.bf16.gmra.mrb[0].mxu0 %v3992
      %v5056 = vpop.f32.mrb[0].mxu0
      %v5057 = vadd.f32 %v4896, %v5056
      %v5058 = vpop.f32.mrb[0].mxu0
      %v5059 = vpop.f32.mrb[0].mxu0
      %v5060 = vadd.f32 %v4899, %v5059
      %v5061 = vpop.f32.mrb[0].mxu0
      %5062 = vmatprep.mubr.bf16.mxu0 %v4002
      %5063 = vmatmul.mubr.bf16.gmra.mrb[0].mxu0 %v4001
      %v5064 = vpop.f32.mrb[0].mxu0
      %v5065 = vadd.f32 %v4904, %v5064
      %v5066 = vpop.f32.mrb[0].mxu0
      %v5067 = vpop.f32.mrb[0].mxu0
      %v5068 = vadd.f32 %v4907, %v5067
      %v5069 = vpop.f32.mrb[0].mxu0
      %5070 = vmatprep.mubr.bf16.mxu0 %v4011
      %5071 = vmatmul.mubr.bf16.gmra.mrb[0].mxu0 %v4010
      %v5072 = vpop.f32.mrb[0].mxu0
      %v5073 = vadd.f32 %v4912, %v5072
      %v5074 = vpop.f32.mrb[0].mxu0
      %v5075 = vpop.f32.mrb[0].mxu0
      %v5076 = vadd.f32 %v4915, %v5075
      %v5077 = vpop.f32.mrb[0].mxu0
      %5078 = vmatprep.mubr.bf16.mxu0 %v4020
      %5079 = vmatmul.mubr.bf16.gmra.mrb[0].mxu0 %v4019
      %v5080 = vpop.f32.mrb[0].mxu0
      %v5081 = vadd.f32 %v4920, %v5080
      %v5082 = vpop.f32.mrb[0].mxu0
      %v5083 = vpop.f32.mrb[0].mxu0
      %v5084 = vadd.f32 %v4923, %v5083
      %v5085 = vpop.f32.mrb[0].mxu0
      %5086 = vmatprep.mubr.bf16.mxu0 %v4029
      %5087 = vmatmul.mubr.bf16.gmra.mrb[0].mxu0 %v4028
      %v5088 = vpop.f32.mrb[0].mxu0
      %v5089 = vadd.f32 %v4928, %v5088
      %v5090 = vpop.f32.mrb[0].mxu0
      %v5091 = vpop.f32.mrb[0].mxu0
      %v5092 = vadd.f32 %v4931, %v5091
      %v5093 = vpop.f32.mrb[0].mxu0
      %5094 = vdwg.mxu0
      %5095 = vmatprep.subr.bf16.mxu0 0
      %5096 = vmatpush1.bf16.msra.mxu0 %v4516
      %5097 = vmatprep.subr.bf16.mxu0 0
      %5098 = vmatpush1.bf16.msra.mxu0 %v4517
      %5099 = vmatprep.subr.bf16.mxu0 0
      %5100 = vmatpush1.bf16.msra.mxu0 %v4518
      %5101 = vmatprep.subr.bf16.mxu0 0
      %5102 = vmatpush1.bf16.msra.mxu0 %v4519
      %5103 = vmatprep.subr.bf16.mxu0 0
      %5104 = vmatpush1.bf16.msra.mxu0 %v4520
      %5105 = vmatprep.subr.bf16.mxu0 0
      %5106 = vmatpush1.bf16.msra.mxu0 %v4521
      %5107 = vmatprep.subr.bf16.mxu0 0
      %5108 = vmatpush1.bf16.msra.mxu0 %v4522
      %5109 = vmatprep.subr.bf16.mxu0 0
      %5110 = vmatpush1.bf16.msra.mxu0 %v4523
      %5111 = vmatprep.subr.bf16.mxu0 0
      %5112 = vmatpush1.bf16.msra.mxu0 %v4524
      %5113 = vmatprep.subr.bf16.mxu0 0
      %5114 = vmatpush1.bf16.msra.mxu0 %v4525
      %5115 = vmatprep.subr.bf16.mxu0 0
      %5116 = vmatpush1.bf16.msra.mxu0 %v4526
      %5117 = vmatprep.subr.bf16.mxu0 0
      %5118 = vmatpush1.bf16.msra.mxu0 %v4527
      %5119 = vmatprep.subr.bf16.mxu0 0
      %5120 = vmatpush1.bf16.msra.mxu0 %v4528
      %5121 = vmatprep.subr.bf16.mxu0 0
      %5122 = vmatpush1.bf16.msra.mxu0 %v4529
      %5123 = vmatprep.subr.bf16.mxu0 0
      %5124 = vmatpush1.bf16.msra.mxu0 %v4530
      %5125 = vmatprep.subr.bf16.mxu0 0
      %5126 = vmatpush1.bf16.msra.mxu0 %v4531
      %5127 = vmatprep.mubr.bf16.mxu0 %v3896
      %5128 = vmatmul.mubr.bf16.gmra.mrb[0].mxu0 %v3895
      %v5129 = vpop.f32.mrb[0].mxu0
      %v5130 = vadd.f32 %v4969, %v5129
      %v5131 = vpop.f32.mrb[0].mxu0
      %v5132 = vpop.f32.mrb[0].mxu0
      %v5133 = vadd.f32 %v4972, %v5132
      %v5134 = vpop.f32.mrb[0].mxu0
      %5135 = vmatprep.mubr.bf16.mxu0 %v3905
      %5136 = vmatmul.mubr.bf16.gmra.mrb[0].mxu0 %v3904
      %v5137 = vpop.f32.mrb[0].mxu0
      %v5138 = vadd.f32 %v4977, %v5137
      %v5139 = vpop.f32.mrb[0].mxu0
      %v5140 = vpop.f32.mrb[0].mxu0
      %v5141 = vadd.f32 %v4980, %v5140
      %v5142 = vpop.f32.mrb[0].mxu0
      %5143 = vmatprep.mubr.bf16.mxu0 %v3914
      %5144 = vmatmul.mubr.bf16.gmra.mrb[0].mxu0 %v3913
      %v5145 = vpop.f32.mrb[0].mxu0
      %v5146 = vadd.f32 %v4985, %v5145
      %v5147 = vpop.f32.mrb[0].mxu0
      %v5148 = vpop.f32.mrb[0].mxu0
      %v5149 = vadd.f32 %v4988, %v5148
      %v5150 = vpop.f32.mrb[0].mxu0
      %5151 = vmatprep.mubr.bf16.mxu0 %v3923
      %5152 = vmatmul.mubr.bf16.gmra.mrb[0].mxu0 %v3922
      %v5153 = vpop.f32.mrb[0].mxu0
      %v5154 = vadd.f32 %v4993, %v5153
      %v5155 = vpop.f32.mrb[0].mxu0
      %v5156 = vpop.f32.mrb[0].mxu0
      %v5157 = vadd.f32 %v4996, %v5156
      %v5158 = vpop.f32.mrb[0].mxu0
      %5159 = vmatprep.mubr.bf16.mxu0 %v3932
      %5160 = vmatmul.mubr.bf16.gmra.mrb[0].mxu0 %v3931
      %v5161 = vpop.f32.mrb[0].mxu0
      %v5162 = vadd.f32 %v5001, %v5161
      %v5163 = vpop.f32.mrb[0].mxu0
      %v5164 = vpop.f32.mrb[0].mxu0
      %v5165 = vadd.f32 %v5004, %v5164
      %v5166 = vpop.f32.mrb[0].mxu0
      %5167 = vmatprep.mubr.bf16.mxu0 %v3941
      %5168 = vmatmul.mubr.bf16.gmra.mrb[0].mxu0 %v3940
      %v5169 = vpop.f32.mrb[0].mxu0
      %v5170 = vadd.f32 %v5009, %v5169
      %v5171 = vpop.f32.mrb[0].mxu0
      %v5172 = vpop.f32.mrb[0].mxu0
      %v5173 = vadd.f32 %v5012, %v5172
      %v5174 = vpop.f32.mrb[0].mxu0
      %5175 = vmatprep.mubr.bf16.mxu0 %v3950
      %5176 = vmatmul.mubr.bf16.gmra.mrb[0].mxu0 %v3949
      %v5177 = vpop.f32.mrb[0].mxu0
      %v5178 = vadd.f32 %v5017, %v5177
      %v5179 = vpop.f32.mrb[0].mxu0
      %v5180 = vpop.f32.mrb[0].mxu0
      %v5181 = vadd.f32 %v5020, %v5180
      %v5182 = vpop.f32.mrb[0].mxu0
      %5183 = vmatprep.mubr.bf16.mxu0 %v3959
      %5184 = vmatmul.mubr.bf16.gmra.mrb[0].mxu0 %v3958
      %v5185 = vpop.f32.mrb[0].mxu0
      %v5186 = vadd.f32 %v5025, %v5185
      %v5187 = vpop.f32.mrb[0].mxu0
      %v5188 = vpop.f32.mrb[0].mxu0
      %v5189 = vadd.f32 %v5028, %v5188
      %v5190 = vpop.f32.mrb[0].mxu0
      %5191 = vmatprep.mubr.bf16.mxu0 %v3968
      %5192 = vmatmul.mubr.bf16.gmra.mrb[0].mxu0 %v3967
      %v5193 = vpop.f32.mrb[0].mxu0
      %v5194 = vadd.f32 %v5033, %v5193
      %v5195 = vpop.f32.mrb[0].mxu0
      %v5196 = vpop.f32.mrb[0].mxu0
      %v5197 = vadd.f32 %v5036, %v5196
      %v5198 = vpop.f32.mrb[0].mxu0
      %5199 = vmatprep.mubr.bf16.mxu0 %v3977
      %5200 = vmatmul.mubr.bf16.gmra.mrb[0].mxu0 %v3976
      %v5201 = vpop.f32.mrb[0].mxu0
      %v5202 = vadd.f32 %v5041, %v5201
      %v5203 = vpop.f32.mrb[0].mxu0
      %v5204 = vpop.f32.mrb[0].mxu0
      %v5205 = vadd.f32 %v5044, %v5204
      %v5206 = vpop.f32.mrb[0].mxu0
      %5207 = vmatprep.mubr.bf16.mxu0 %v3986
      %5208 = vmatmul.mubr.bf16.gmra.mrb[0].mxu0 %v3985
      %v5209 = vpop.f32.mrb[0].mxu0
      %v5210 = vadd.f32 %v5049, %v5209
      %v5211 = vpop.f32.mrb[0].mxu0
      %v5212 = vpop.f32.mrb[0].mxu0
      %v5213 = vadd.f32 %v5052, %v5212
      %v5214 = vpop.f32.mrb[0].mxu0
      %5215 = vmatprep.mubr.bf16.mxu0 %v3995
      %5216 = vmatmul.mubr.bf16.gmra.mrb[0].mxu0 %v3994
      %v5217 = vpop.f32.mrb[0].mxu0
      %v5218 = vadd.f32 %v5057, %v5217
      %v5219 = vpop.f32.mrb[0].mxu0
      %v5220 = vpop.f32.mrb[0].mxu0
      %v5221 = vadd.f32 %v5060, %v5220
      %v5222 = vpop.f32.mrb[0].mxu0
      %5223 = vmatprep.mubr.bf16.mxu0 %v4004
      %5224 = vmatmul.mubr.bf16.gmra.mrb[0].mxu0 %v4003
      %v5225 = vpop.f32.mrb[0].mxu0
      %v5226 = vadd.f32 %v5065, %v5225
      %v5227 = vpop.f32.mrb[0].mxu0
      %v5228 = vpop.f32.mrb[0].mxu0
      %v5229 = vadd.f32 %v5068, %v5228
      %v5230 = vpop.f32.mrb[0].mxu0
      %5231 = vmatprep.mubr.bf16.mxu0 %v4013
      %5232 = vmatmul.mubr.bf16.gmra.mrb[0].mxu0 %v4012
      %v5233 = vpop.f32.mrb[0].mxu0
      %v5234 = vadd.f32 %v5073, %v5233
      %v5235 = vpop.f32.mrb[0].mxu0
      %v5236 = vpop.f32.mrb[0].mxu0
      %v5237 = vadd.f32 %v5076, %v5236
      %v5238 = vpop.f32.mrb[0].mxu0
      %5239 = vmatprep.mubr.bf16.mxu0 %v4022
      %5240 = vmatmul.mubr.bf16.gmra.mrb[0].mxu0 %v4021
      %v5241 = vpop.f32.mrb[0].mxu0
      %v5242 = vadd.f32 %v5081, %v5241
      %v5243 = vpop.f32.mrb[0].mxu0
      %v5244 = vpop.f32.mrb[0].mxu0
      %v5245 = vadd.f32 %v5084, %v5244
      %v5246 = vpop.f32.mrb[0].mxu0
      %5247 = vmatprep.mubr.bf16.mxu0 %v4031
      %5248 = vmatmul.mubr.bf16.gmra.mrb[0].mxu0 %v4030
      %v5249 = vpop.f32.mrb[0].mxu0
      %v5250 = vadd.f32 %v5089, %v5249
      %v5251 = vpop.f32.mrb[0].mxu0
      %v5252 = vpop.f32.mrb[0].mxu0
      %v5253 = vadd.f32 %v5092, %v5252
      %v5254 = vpop.f32.mrb[0].mxu0
      %5255 = vdwg.mxu0
      %5256 = vmatprep.subr.bf16.mxu0 0
      %5257 = vmatpush1.bf16.msra.mxu0 %v4532
      %5258 = vmatprep.subr.bf16.mxu0 0
      %5259 = vmatpush1.bf16.msra.mxu0 %v4533
      %5260 = vmatprep.subr.bf16.mxu0 0
      %5261 = vmatpush1.bf16.msra.mxu0 %v4534
      %5262 = vmatprep.subr.bf16.mxu0 0
      %5263 = vmatpush1.bf16.msra.mxu0 %v4535
      %5264 = vmatprep.subr.bf16.mxu0 0
      %5265 = vmatpush1.bf16.msra.mxu0 %v4536
      %5266 = vmatprep.subr.bf16.mxu0 0
      %5267 = vmatpush1.bf16.msra.mxu0 %v4537
      %5268 = vmatprep.subr.bf16.mxu0 0
      %5269 = vmatpush1.bf16.msra.mxu0 %v4538
      %5270 = vmatprep.subr.bf16.mxu0 0
      %5271 = vmatpush1.bf16.msra.mxu0 %v4539
      %5272 = vmatprep.subr.bf16.mxu0 0
      %5273 = vmatpush1.bf16.msra.mxu0 0
      %5274 = vmatprep.subr.bf16.mxu0 0
      %5275 = vmatpush1.bf16.msra.mxu0 0
      %5276 = vmatprep.subr.bf16.mxu0 0
      %5277 = vmatpush1.bf16.msra.mxu0 0
      %5278 = vmatprep.subr.bf16.mxu0 0
      %5279 = vmatpush1.bf16.msra.mxu0 0
      %5280 = vmatprep.subr.bf16.mxu0 0
      %5281 = vmatpush1.bf16.msra.mxu0 0
      %5282 = vmatprep.subr.bf16.mxu0 0
      %5283 = vmatpush1.bf16.msra.mxu0 0
      %5284 = vmatprep.subr.bf16.mxu0 0
      %5285 = vmatpush1.bf16.msra.mxu0 0
      %5286 = vmatprep.subr.bf16.mxu0 0
      %5287 = vmatpush1.bf16.msra.mxu0 0
      %5288 = vmatprep.mubr.bf16.mxu0 0
      %5289 = vmatmul.mubr.bf16.gmra.mrb[0].mxu0 %v3897
      %v5290 = vpop.f32.mrb[0].mxu0
      %v5291 = vadd.f32 %v5130, %v5290
      %v5292 = vpop.f32.mrb[0].mxu0
      %v5293 = vpop.f32.mrb[0].mxu0
      %v5294 = vadd.f32 %v5133, %v5293
      %v5295 = vpop.f32.mrb[0].mxu0
      %5296 = vmatprep.mubr.bf16.mxu0 0
      %5297 = vmatmul.mubr.bf16.gmra.mrb[0].mxu0 %v3906
      %v5298 = vpop.f32.mrb[0].mxu0
      %v5299 = vadd.f32 %v5138, %v5298
      %v5300 = vpop.f32.mrb[0].mxu0
      %v5301 = vpop.f32.mrb[0].mxu0
      %v5302 = vadd.f32 %v5141, %v5301
      %v5303 = vpop.f32.mrb[0].mxu0
      %5304 = vmatprep.mubr.bf16.mxu0 0
      %5305 = vmatmul.mubr.bf16.gmra.mrb[0].mxu0 %v3915
      %v5306 = vpop.f32.mrb[0].mxu0
      %v5307 = vadd.f32 %v5146, %v5306
      %v5308 = vpop.f32.mrb[0].mxu0
      %v5309 = vpop.f32.mrb[0].mxu0
      %v5310 = vadd.f32 %v5149, %v5309
      %v5311 = vpop.f32.mrb[0].mxu0
      %5312 = vmatprep.mubr.bf16.mxu0 0
      %5313 = vmatmul.mubr.bf16.gmra.mrb[0].mxu0 %v3924
      %v5314 = vpop.f32.mrb[0].mxu0
      %v5315 = vadd.f32 %v5154, %v5314
      %v5316 = vpop.f32.mrb[0].mxu0
      %v5317 = vpop.f32.mrb[0].mxu0
      %v5318 = vadd.f32 %v5157, %v5317
      %v5319 = vpop.f32.mrb[0].mxu0
      %5320 = vmatprep.mubr.bf16.mxu0 0
      %5321 = vmatmul.mubr.bf16.gmra.mrb[0].mxu0 %v3933
      %v5322 = vpop.f32.mrb[0].mxu0
      %v5323 = vadd.f32 %v5162, %v5322
      %v5324 = vpop.f32.mrb[0].mxu0
      %v5325 = vpop.f32.mrb[0].mxu0
      %v5326 = vadd.f32 %v5165, %v5325
      %v5327 = vpop.f32.mrb[0].mxu0
      %5328 = vmatprep.mubr.bf16.mxu0 0
      %5329 = vmatmul.mubr.bf16.gmra.mrb[0].mxu0 %v3942
      %v5330 = vpop.f32.mrb[0].mxu0
      %v5331 = vadd.f32 %v5170, %v5330
      %v5332 = vpop.f32.mrb[0].mxu0
      %v5333 = vpop.f32.mrb[0].mxu0
      %v5334 = vadd.f32 %v5173, %v5333
      %v5335 = vpop.f32.mrb[0].mxu0
      %5336 = vmatprep.mubr.bf16.mxu0 0
      %5337 = vmatmul.mubr.bf16.gmra.mrb[0].mxu0 %v3951
      %v5338 = vpop.f32.mrb[0].mxu0
      %v5339 = vadd.f32 %v5178, %v5338
      %v5340 = vpop.f32.mrb[0].mxu0
      %v5341 = vpop.f32.mrb[0].mxu0
      %v5342 = vadd.f32 %v5181, %v5341
      %v5343 = vpop.f32.mrb[0].mxu0
      %5344 = vmatprep.mubr.bf16.mxu0 0
      %5345 = vmatmul.mubr.bf16.gmra.mrb[0].mxu0 %v3960
      %v5346 = vpop.f32.mrb[0].mxu0
      %v5347 = vadd.f32 %v5186, %v5346
      %v5348 = vpop.f32.mrb[0].mxu0
      %v5349 = vpop.f32.mrb[0].mxu0
      %v5350 = vadd.f32 %v5189, %v5349
      %v5351 = vpop.f32.mrb[0].mxu0
      %5352 = vmatprep.mubr.bf16.mxu0 0
      %5353 = vmatmul.mubr.bf16.gmra.mrb[0].mxu0 %v3969
      %v5354 = vpop.f32.mrb[0].mxu0
      %v5355 = vadd.f32 %v5194, %v5354
      %v5356 = vpop.f32.mrb[0].mxu0
      %v5357 = vpop.f32.mrb[0].mxu0
      %v5358 = vadd.f32 %v5197, %v5357
      %v5359 = vpop.f32.mrb[0].mxu0
      %5360 = vmatprep.mubr.bf16.mxu0 0
      %5361 = vmatmul.mubr.bf16.gmra.mrb[0].mxu0 %v3978
      %v5362 = vpop.f32.mrb[0].mxu0
      %v5363 = vadd.f32 %v5202, %v5362
      %v5364 = vpop.f32.mrb[0].mxu0
      %v5365 = vpop.f32.mrb[0].mxu0
      %v5366 = vadd.f32 %v5205, %v5365
      %v5367 = vpop.f32.mrb[0].mxu0
      %5368 = vmatprep.mubr.bf16.mxu0 0
      %5369 = vmatmul.mubr.bf16.gmra.mrb[0].mxu0 %v3987
      %v5370 = vpop.f32.mrb[0].mxu0
      %v5371 = vadd.f32 %v5210, %v5370
      %v5372 = vpop.f32.mrb[0].mxu0
      %v5373 = vpop.f32.mrb[0].mxu0
      %v5374 = vadd.f32 %v5213, %v5373
      %v5375 = vpop.f32.mrb[0].mxu0
      %5376 = vmatprep.mubr.bf16.mxu0 0
      %5377 = vmatmul.mubr.bf16.gmra.mrb[0].mxu0 %v3996
      %v5378 = vpop.f32.mrb[0].mxu0
      %v5379 = vadd.f32 %v5218, %v5378
      %v5380 = vpop.f32.mrb[0].mxu0
      %v5381 = vpop.f32.mrb[0].mxu0
      %v5382 = vadd.f32 %v5221, %v5381
      %v5383 = vpop.f32.mrb[0].mxu0
      %5384 = vmatprep.mubr.bf16.mxu0 0
      %5385 = vmatmul.mubr.bf16.gmra.mrb[0].mxu0 %v4005
      %v5386 = vpop.f32.mrb[0].mxu0
      %v5387 = vadd.f32 %v5226, %v5386
      %v5388 = vpop.f32.mrb[0].mxu0
      %v5389 = vpop.f32.mrb[0].mxu0
      %v5390 = vadd.f32 %v5229, %v5389
      %v5391 = vpop.f32.mrb[0].mxu0
      %5392 = vmatprep.mubr.bf16.mxu0 0
      %5393 = vmatmul.mubr.bf16.gmra.mrb[0].mxu0 %v4014
      %v5394 = vpop.f32.mrb[0].mxu0
      %v5395 = vadd.f32 %v5234, %v5394
      %v5396 = vpop.f32.mrb[0].mxu0
      %v5397 = vpop.f32.mrb[0].mxu0
      %v5398 = vadd.f32 %v5237, %v5397
      %v5399 = vpop.f32.mrb[0].mxu0
      %5400 = vmatprep.mubr.bf16.mxu0 0
      %5401 = vmatmul.mubr.bf16.gmra.mrb[0].mxu0 %v4023
      %v5402 = vpop.f32.mrb[0].mxu0
      %v5403 = vadd.f32 %v5242, %v5402
      %v5404 = vpop.f32.mrb[0].mxu0
      %v5405 = vpop.f32.mrb[0].mxu0
      %v5406 = vadd.f32 %v5245, %v5405
      %v5407 = vpop.f32.mrb[0].mxu0
      %5408 = vmatprep.mubr.bf16.mxu0 0
      %5409 = vmatmul.mubr.bf16.gmra.mrb[0].mxu0 %v4032
      %v5410 = vpop.f32.mrb[0].mxu0
      %v5411 = vadd.f32 %v5250, %v5410
      %v5412 = vpop.f32.mrb[0].mxu0
      %v5413 = vpop.f32.mrb[0].mxu0
      %v5414 = vadd.f32 %v5253, %v5413
      %v5415 = vpop.f32.mrb[0].mxu0
      %5416 = vdwg.mxu0
      %v5417 = vpack.c.bf16 %v5294, %v5291
      %v5418 = vpack.c.bf16 %v5302, %v5299
      %v5419 = vpack.c.bf16 %v5310, %v5307
      %v5420 = vpack.c.bf16 %v5318, %v5315
      %v5421 = vpack.c.bf16 %v5326, %v5323
      %v5422 = vpack.c.bf16 %v5334, %v5331
      %v5423 = vpack.c.bf16 %v5342, %v5339
      %v5424 = vpack.c.bf16 %v5350, %v5347
      %v5425 = vpack.c.bf16 %v5358, %v5355
      %v5426 = vpack.c.bf16 %v5366, %v5363
      %v5427 = vpack.c.bf16 %v5374, %v5371
      %v5428 = vpack.c.bf16 %v5382, %v5379
      %v5429 = vpack.c.bf16 %v5390, %v5387
      %v5430 = vpack.c.bf16 %v5398, %v5395
      %v5431 = vpack.c.bf16 %v5406, %v5403
      %v5432 = vpack.c.bf16 %v5414, %v5411
      %v5449 = vunpack.c.l.b16 %v5417
      %v5450 = vunpack.c.h.b16 %v5417
      %v5451 = vunpack.c.l.b16 %v5418
      %v5452 = vunpack.c.h.b16 %v5418
      %v5453 = vunpack.c.l.b16 %v5419
      %v5454 = vunpack.c.h.b16 %v5419
      %v5455 = vunpack.c.l.b16 %v5420
      %v5456 = vunpack.c.h.b16 %v5420
      %v5457 = vunpack.c.l.b16 %v5421
      %v5458 = vunpack.c.h.b16 %v5421
      %v5459 = vunpack.c.l.b16 %v5422
      %v5460 = vunpack.c.h.b16 %v5422
      %v5461 = vunpack.c.l.b16 %v5423
      %v5462 = vunpack.c.h.b16 %v5423
      %v5463 = vunpack.c.l.b16 %v5424
      %v5464 = vunpack.c.h.b16 %v5424
      %v5465 = vunpack.c.l.b16 %v5425
      %v5466 = vunpack.c.h.b16 %v5425
      %v5467 = vunpack.c.l.b16 %v5426
      %v5468 = vunpack.c.h.b16 %v5426
      %v5469 = vunpack.c.l.b16 %v5427
      %v5470 = vunpack.c.h.b16 %v5427
      %v5471 = vunpack.c.l.b16 %v5428
      %v5472 = vunpack.c.h.b16 %v5428
      %v5473 = vunpack.c.l.b16 %v5429
      %v5474 = vunpack.c.h.b16 %v5429
      %v5475 = vunpack.c.l.b16 %v5430
      %v5476 = vunpack.c.h.b16 %v5430
      %v5477 = vunpack.c.l.b16 %v5431
      %v5478 = vunpack.c.h.b16 %v5431
      %v5479 = vunpack.c.l.b16 %v5432
      %v5480 = vunpack.c.h.b16 %v5432
      %v5481 = vpack.c.b16 %v5449, %v5449
      %v5482 = vpack.c.b16 %v5450, %v5450
      %v5483 = vpack.c.b16 %v5451, %v5451
      %v5484 = vpack.c.b16 %v5452, %v5452
      %v5485 = vpack.c.b16 %v5453, %v5453
      %v5486 = vpack.c.b16 %v5454, %v5454
      %v5487 = vpack.c.b16 %v5455, %v5455
      %v5488 = vpack.c.b16 %v5456, %v5456
      %v5489 = vpack.c.b16 %v5457, %v5457
      %v5490 = vpack.c.b16 %v5458, %v5458
      %v5491 = vpack.c.b16 %v5459, %v5459
      %v5492 = vpack.c.b16 %v5460, %v5460
      %v5493 = vpack.c.b16 %v5461, %v5461
      %v5494 = vpack.c.b16 %v5462, %v5462
      %v5495 = vpack.c.b16 %v5463, %v5463
      %v5496 = vpack.c.b16 %v5464, %v5464
      %v5497 = vpack.c.b16 %v5465, %v5465
      %v5498 = vpack.c.b16 %v5466, %v5466
      %v5499 = vpack.c.b16 %v5467, %v5467
      %v5500 = vpack.c.b16 %v5468, %v5468
      %v5501 = vpack.c.b16 %v5469, %v5469
      %v5502 = vpack.c.b16 %v5470, %v5470
      %v5503 = vpack.c.b16 %v5471, %v5471
      %v5504 = vpack.c.b16 %v5472, %v5472
      %v5505 = vpack.c.b16 %v5473, %v5473
      %v5506 = vpack.c.b16 %v5474, %v5474
      %v5507 = vpack.c.b16 %v5475, %v5475
      %v5508 = vpack.c.b16 %v5476, %v5476
      %v5509 = vpack.c.b16 %v5477, %v5477
      %v5510 = vpack.c.b16 %v5478, %v5478
      %v5511 = vpack.c.b16 %v5479, %v5479
      %v5512 = vpack.c.b16 %v5480, %v5480
      %5545 = vst [vmem:[%s217] sm:$0xf] %v5481
      %5546 = vst [vmem:[%s217 + $0x4] sm:$0xf] %v5482
      %5547 = vst [vmem:[%s217 + $0x8] sm:$0xf] %v5483
      %5548 = vst [vmem:[%s217 + $0xc] sm:$0xf] %v5484
      %5549 = vst [vmem:[%s217 + $0x10] sm:$0xf] %v5485
      %5550 = vst [vmem:[%s217 + $0x14] sm:$0xf] %v5486
      %5551 = vst [vmem:[%s217 + $0x18] sm:$0xf] %v5487
      %5552 = vst [vmem:[%s217 + $0x1c] sm:$0xf] %v5488
      %5553 = vst [vmem:[%s217 + $0x20] sm:$0xf] %v5489
      %5554 = vst [vmem:[%s217 + $0x24] sm:$0xf] %v5490
      %5555 = vst [vmem:[%s217 + $0x28] sm:$0xf] %v5491
      %5556 = vst [vmem:[%s217 + $0x2c] sm:$0xf] %v5492
      %5557 = vst [vmem:[%s217 + $0x30] sm:$0xf] %v5493
      %5558 = vst [vmem:[%s217 + $0x34] sm:$0xf] %v5494
      %5559 = vst [vmem:[%s217 + $0x38] sm:$0xf] %v5495
      %5560 = vst [vmem:[%s217 + $0x3c] sm:$0xf] %v5496
      %5561 = vst [vmem:[%s217 + $0x40] sm:$0xf] %v5497
      %5562 = vst [vmem:[%s217 + $0x44] sm:$0xf] %v5498
      %5563 = vst [vmem:[%s217 + $0x48] sm:$0xf] %v5499
      %5564 = vst [vmem:[%s217 + $0x4c] sm:$0xf] %v5500
      %5565 = vst [vmem:[%s217 + $0x50] sm:$0xf] %v5501
      %5566 = vst [vmem:[%s217 + $0x54] sm:$0xf] %v5502
      %5567 = vst [vmem:[%s217 + $0x58] sm:$0xf] %v5503
      %5568 = vst [vmem:[%s217 + $0x5c] sm:$0xf] %v5504
      %5569 = vst [vmem:[%s217 + $0x60] sm:$0xf] %v5505
      %5570 = vst [vmem:[%s217 + $0x64] sm:$0xf] %v5506
      %5571 = vst [vmem:[%s217 + $0x68] sm:$0xf] %v5507
      %5572 = vst [vmem:[%s217 + $0x6c] sm:$0xf] %v5508
      %5573 = vst [vmem:[%s217 + $0x70] sm:$0xf] %v5509
      %5574 = vst [vmem:[%s217 + $0x74] sm:$0xf] %v5510
      %5575 = vst [vmem:[%s217 + $0x78] sm:$0xf] %v5511
      %5576 = vst [vmem:[%s217 + $0x7c] sm:$0xf] %v5512
      %p5577 = scmp.lt.s32.totalorder %s19, 1
      %s5578 = scalar_select %p5577, %s19, 1
      %p5579 = scmp.lt.s32.totalorder %s20, 0
      %s5580 = scalar_select %p5579, %s20, 0
      %s5581 = smul.addr %s5578, 32
      %s5582 = sadd.s32 %s5580, %s5581
      %s5583 = smul.addr %s5582, 4
      %s5584 = scalar_lea.vmem %s4, %s5583
      // Predicated region
      $region41: #{_lambda_.2} parent=35 // pred_check
        %p5585 = pneg %p136
      $region42: #{_lambda_.2} parent=35 // pred_check_branch
        %5587 = sbr.rel (%p5585) target = $region44
      $region43: #{_lambda_.2} parent=35 // pred_region
        _
      $region44: #{_lambda_.2} parent=35 // pred_fallthru
        _
    $region36: #{_lambda_.2} parent=5 // pred_fallthru
      _
    %p5588 = scmp.le.s32.totalorder 2, %s10
    // Predicated region
    $region45: #{_lambda_.2} parent=5 // pred_check
      %p5589 = pneg %p5588
    $region46: #{_lambda_.2} parent=5 // pred_check_branch
      %5591 = sbr.rel (%p5589) target = $region48
    $region47: #{_lambda_.2} parent=5 // pred_region
      %s5592 = ssub.s32 %s10, 2
      // Predicated region
      $region49: #{_lambda_.2} parent=47 // pred_check
        %p5593 = pneg %p142
      $region50: #{_lambda_.2} parent=47 // pred_check_branch
        %5595 = sbr.rel (%p5593) target = $region52
      $region51: #{_lambda_.2} parent=47 // pred_region
        %p5596 = scmp.lt.s32.totalorder %s21, 1
        %s5597 = scalar_select %p5596, %s21, 1
        %p5598 = scmp.lt.s32.totalorder %s22, 0
        %s5599 = scalar_select %p5598, %s22, 0
        %s5600 = smul.addr %s5597, 32
        %s5601 = sadd.s32 %s5599, %s5600
        %s5602 = smul.addr %s5601, 4
        %s5603 = scalar_lea.vmem %s4, %s5602
      $region52: #{_lambda_.2} parent=47 // pred_fallthru
        _
    $region48: #{_lambda_.2} parent=5 // pred_fallthru
      _
  $region6: #{_lambda_.2} parent=0 // loop_footer
    %s14 = sadd.s32 1, %s10
  $region7: #{_lambda_.2} parent=0 // loop_footer_branch
    %9 = sbr.rel target = $region3
  $region8: #{_lambda_.2} parent=0 // loop_exit
    _

// kernel: _lambda_.3
$region0: #{_lambda_.3}
  #allocation0 [shape = 'u32[]', space=smem, size = 0x4, offset = 0x4, fixed_abs, tag = 'smem constant byte address 0x4 - core index']
  #allocation1 [shape = 'u32[144,128]{1,0:T(1,128)}', space=vmem, size = 0x12000, scoped, tag = 'internal scratch']
  #allocation2 [shape = 'bf16[18,18,128]{2,1,0:T(8,128)(2,1)}', space=vmem, size = 0x1b000, scoped, tag = 'scratch operand']
  #allocation3 [shape = 'bf16[256,1152]{1,0:T(16,128)(2,1)}', space=vmem, size = 0x90000, scoped, tag = 'scratch operand']
  %s0 = inlined_call_operand.vmem [shape: bf16[2,16,16,128], index: 0, kind: input, shape index: {}]
  %s1 = inlined_call_operand.vmem [shape: f32[1,128], index: 1, kind: input, shape index: {}]
  %s2 = inlined_call_operand.vmem [shape: f32[1,128], index: 2, kind: input, shape index: {}]
  %s3 = inlined_call_operand.vmem [shape: bf16[1,1152,128], index: 3, kind: input, shape index: {}]
  %s4 = inlined_call_operand.vmem [shape: bf16[2,16,16,128], index: 4, kind: input, shape index: {}]
  %s5 = inlined_call_operand.vmem [shape: f32[2,16,16,128], index: 5, kind: output, shape index: {}]
  %s6 = sld [smem:[#allocation0]]
  $region57: #{_lambda_.3} parent=0
    _
  %s8 = ssub.s32 1, %s6
  %s9 = scalar_select 0, %s8, %s6
  loop: start=0, step=1, limit=4
  $region2: #{_lambda_.3} parent=0 // loop_pre_header
    _
  $region3: #{_lambda_.3} parent=0 // loop_header
    %s11 = sphi 0, %s15
    %p12 = scmp.ge.s32.totalorder %s11, 4
    %s18 = sphi 0, %s30
    %s19 = sphi 0, %s26
    %s20 = sphi 0, %s18
    %s21 = sphi 0, %s19
    %s22 = sphi 0, %s20
    %s23 = sphi 0, %s21
    %s33 = sphi 0, %s35
    %s36 = sphi 0, %s33
    %s37 = sphi 0, %s36
    %s53 = sphi 0, %s37
    %s57 = sphi 0, %s57
    %s59 = sphi 0, %s57
    %s60 = sphi 0, %s59
    %s74 = sphi 0, %s60
    %s78 = sphi 0, %s78
    %s80 = sphi 0, %s78
    %s81 = sphi 0, %s80
    %s95 = sphi 0, %s81
    %s99 = sphi 0, %s99
    %s101 = sphi 0, %s99
    %s102 = sphi 0, %s101
    %s116 = sphi 0, %s102
    %s124 = sphi 0, %s126
    %s127 = sphi 0, %s124
    %s128 = sphi 0, %s127
    %s144 = sphi 0, %s128
    %s152 = sphi 0, %s154
    %s155 = sphi 0, %s152
    %s156 = sphi 0, %s155
    %s172 = sphi 0, %s156
  $region4: #{_lambda_.3} parent=0 // loop_header_branch
    %14 = sbr.rel (%p12) target = $region8
  $region5: #{_lambda_.3} parent=0 // loop_body
    %s16 = ssub.s32 %s11, 1
    %s17 = ssub.s32 %s11, 2
    %s24 = sadd.s32 1, %s19
    %p25 = scmp.ge.s32.totalorder %s24, 1
    %s26 = scalar_select %p25, 0, %s24
    %s27 = sadd.s32 1, %s18
    %s28 = scalar_select %p25, %s27, %s18
    %p29 = scmp.ge.s32.totalorder %s28, 2
    %s30 = scalar_select %p29, 0, %s28
    %s31 = ssub.s32 %s18, %s30
    %p32 = scmp.eq.s32.totalorder %s31, 0
    %s34 = sadd.s32 %s33, 1
    %s35 = scalar_select %p32, %s33, %s34
    %p38 = pneg %p32
    %p39 = scmp.eq.s32.totalorder %s11, 1
    %p40 = por %p38, %p39
    %p41 = scmp.ne.s32.totalorder %s33, %s36
    %p42 = scmp.eq.s32.totalorder %s11, 0
    %p43 = por %p41, %p42
    %p44 = scmp.ne.s32.totalorder %s33, %s36
    %p45 = scmp.eq.s32.totalorder %s16, 1
    %p46 = por %p44, %p45
    %p47 = scmp.ne.s32.totalorder %s36, %s37
    %p48 = scmp.eq.s32.totalorder %s16, 0
    %p49 = por %p47, %p48
    %p50 = scmp.ne.s32.totalorder %s36, %s37
    %p51 = scmp.eq.s32.totalorder %s17, 1
    %p52 = por %p50, %p51
    %p54 = scmp.ne.s32.totalorder %s37, %s53
    %p55 = scmp.eq.s32.totalorder %s17, 0
    %p56 = por %p54, %p55
    %s58 = sadd.s32 %s57, 1
    %p61 = scmp.eq.s32.totalorder %s11, 1
    %p62 = scmp.ne.s32.totalorder %s57, %s59
    %p63 = scmp.eq.s32.totalorder %s11, 0
    %p64 = por %p62, %p63
    %p65 = scmp.ne.s32.totalorder %s57, %s59
    %p66 = scmp.eq.s32.totalorder %s16, 1
    %p67 = por %p65, %p66
    %p68 = scmp.ne.s32.totalorder %s59, %s60
    %p69 = scmp.eq.s32.totalorder %s16, 0
    %p70 = por %p68, %p69
    %p71 = scmp.ne.s32.totalorder %s59, %s60
    %p72 = scmp.eq.s32.totalorder %s17, 1
    %p73 = por %p71, %p72
    %p75 = scmp.ne.s32.totalorder %s60, %s74
    %p76 = scmp.eq.s32.totalorder %s17, 0
    %p77 = por %p75, %p76
    %s79 = sadd.s32 %s78, 1
    %p82 = scmp.eq.s32.totalorder %s11, 1
    %p83 = scmp.ne.s32.totalorder %s78, %s80
    %p84 = scmp.eq.s32.totalorder %s11, 0
    %p85 = por %p83, %p84
    %p86 = scmp.ne.s32.totalorder %s78, %s80
    %p87 = scmp.eq.s32.totalorder %s16, 1
    %p88 = por %p86, %p87
    %p89 = scmp.ne.s32.totalorder %s80, %s81
    %p90 = scmp.eq.s32.totalorder %s16, 0
    %p91 = por %p89, %p90
    %p92 = scmp.ne.s32.totalorder %s80, %s81
    %p93 = scmp.eq.s32.totalorder %s17, 1
    %p94 = por %p92, %p93
    %p96 = scmp.ne.s32.totalorder %s81, %s95
    %p97 = scmp.eq.s32.totalorder %s17, 0
    %p98 = por %p96, %p97
    %s100 = sadd.s32 %s99, 1
    %p103 = scmp.eq.s32.totalorder %s11, 1
    %p104 = scmp.ne.s32.totalorder %s99, %s101
    %p105 = scmp.eq.s32.totalorder %s11, 0
    %p106 = por %p104, %p105
    %p107 = scmp.ne.s32.totalorder %s99, %s101
    %p108 = scmp.eq.s32.totalorder %s16, 1
    %p109 = por %p107, %p108
    %p110 = scmp.ne.s32.totalorder %s101, %s102
    %p111 = scmp.eq.s32.totalorder %s16, 0
    %p112 = por %p110, %p111
    %p113 = scmp.ne.s32.totalorder %s101, %s102
    %p114 = scmp.eq.s32.totalorder %s17, 1
    %p115 = por %p113, %p114
    %p117 = scmp.ne.s32.totalorder %s102, %s116
    %p118 = scmp.eq.s32.totalorder %s17, 0
    %p119 = por %p117, %p118
    %s120 = ssub.s32 %s18, %s30
    %s121 = ssub.s32 %s19, %s26
    %s122 = sor.u32 %s120, %s121
    %p123 = scmp.eq.s32.totalorder %s122, 0
    %s125 = sadd.s32 %s124, 1
    %s126 = scalar_select %p123, %s124, %s125
    %p129 = pneg %p123
    %p130 = scmp.eq.s32.totalorder %s11, 1
    %p131 = por %p129, %p130
    %p132 = scmp.ne.s32.totalorder %s124, %s127
    %p133 = scmp.eq.s32.totalorder %s11, 0
    %p134 = por %p132, %p133
    %p135 = scmp.ne.s32.totalorder %s124, %s127
    %p136 = scmp.eq.s32.totalorder %s16, 1
    %p137 = por %p135, %p136
    %p138 = scmp.ne.s32.totalorder %s127, %s128
    %p139 = scmp.eq.s32.totalorder %s16, 0
    %p140 = por %p138, %p139
    %p141 = scmp.ne.s32.totalorder %s127, %s128
    %p142 = scmp.eq.s32.totalorder %s17, 1
    %p143 = por %p141, %p142
    %p145 = scmp.ne.s32.totalorder %s128, %s144
    %p146 = scmp.eq.s32.totalorder %s17, 0
    %p147 = por %p145, %p146
    %s148 = ssub.s32 %s18, %s30
    %s149 = ssub.s32 %s19, %s26
    %s150 = sor.u32 %s148, %s149
    %p151 = scmp.eq.s32.totalorder %s150, 0
    %s153 = sadd.s32 %s152, 1
    %s154 = scalar_select %p151, %s152, %s153
    %p157 = pneg %p151
    %p158 = scmp.eq.s32.totalorder %s11, 1
    %p159 = por %p157, %p158
    %p160 = scmp.ne.s32.totalorder %s152, %s155
    %p161 = scmp.eq.s32.totalorder %s11, 0
    %p162 = por %p160, %p161
    %p163 = scmp.ne.s32.totalorder %s152, %s155
    %p164 = scmp.eq.s32.totalorder %s16, 1
    %p165 = por %p163, %p164
    %p166 = scmp.ne.s32.totalorder %s155, %s156
    %p167 = scmp.eq.s32.totalorder %s16, 0
    %p168 = por %p166, %p167
    %p169 = scmp.ne.s32.totalorder %s155, %s156
    %p170 = scmp.eq.s32.totalorder %s17, 1
    %p171 = por %p169, %p170
    %p173 = scmp.ne.s32.totalorder %s156, %s172
    %p174 = scmp.eq.s32.totalorder %s17, 0
    %p175 = por %p173, %p174
    %p176 = scmp.le.s32.totalorder 1, %s11
    %p177 = scmp.lt.s32.totalorder %s11, 3
    %p178 = pnand %p176, %p177
    %p179 = pneg %p178
    // Predicated region
    $region9: #{_lambda_.3} parent=5 // pred_check
      _
    $region10: #{_lambda_.3} parent=5 // pred_check_branch
      %181 = sbr.rel (%p178) target = $region12
    $region11: #{_lambda_.3} parent=5 // pred_region
      %s182 = ssub.s32 %s11, 1
      // Predicated region
      $region13: #{_lambda_.3} parent=11 // pred_check
        %p183 = pneg %p70
      $region14: #{_lambda_.3} parent=11 // pred_check_branch
        %185 = sbr.rel (%p183) target = $region16
      $region15: #{_lambda_.3} parent=11 // pred_region
        _
      $region16: #{_lambda_.3} parent=11 // pred_fallthru
        _
      // Predicated region
      $region17: #{_lambda_.3} parent=11 // pred_check
        %p186 = pneg %p91
      $region18: #{_lambda_.3} parent=11 // pred_check_branch
        %188 = sbr.rel (%p186) target = $region20
      $region19: #{_lambda_.3} parent=11 // pred_region
        _
      $region20: #{_lambda_.3} parent=11 // pred_fallthru
        _
      // Predicated region
      $region21: #{_lambda_.3} parent=11 // pred_check
        %p189 = pneg %p112
      $region22: #{_lambda_.3} parent=11 // pred_check_branch
        %191 = sbr.rel (%p189) target = $region24
      $region23: #{_lambda_.3} parent=11 // pred_region
        _
      $region24: #{_lambda_.3} parent=11 // pred_fallthru
        _
    $region12: #{_lambda_.3} parent=5 // pred_fallthru
      _
    %p192 = scmp.lt.s32.totalorder %s11, 2
    // Predicated region
    $region25: #{_lambda_.3} parent=5 // pred_check
      %p193 = pneg %p192
    $region26: #{_lambda_.3} parent=5 // pred_check_branch
      %195 = sbr.rel (%p193) target = $region28
    $region27: #{_lambda_.3} parent=5 // pred_region
      // Predicated region
      $region29: #{_lambda_.3} parent=27 // pred_check
        %p196 = pneg %p43
      $region30: #{_lambda_.3} parent=27 // pred_check_branch
        %198 = sbr.rel (%p196) target = $region32
      $region31: #{_lambda_.3} parent=27 // pred_region
        %p199 = scmp.lt.s32.totalorder %s18, 1
        %s200 = scalar_select %p199, %s18, 1
        %s201 = smul.addr %s200, 32
        %s202 = smul.addr %s201, 4
        %s203 = scalar_lea.vmem %s0, %s202
      $region32: #{_lambda_.3} parent=27 // pred_fallthru
        _
      // Predicated region
      $region33: #{_lambda_.3} parent=27 // pred_check
        %p204 = pneg %p134
      $region34: #{_lambda_.3} parent=27 // pred_check_branch
        %206 = sbr.rel (%p204) target = $region36
      $region35: #{_lambda_.3} parent=27 // pred_region
        %p207 = scmp.lt.s32.totalorder %s18, 1
        %s208 = scalar_select %p207, %s18, 1
        %p209 = scmp.lt.s32.totalorder %s19, 0
        %s210 = scalar_select %p209, %s19, 0
        %s211 = smul.addr %s208, 32
        %s212 = sadd.s32 %s210, %s211
        %s213 = smul.addr %s212, 4
        %s214 = scalar_lea.vmem %s4, %s213
      $region36: #{_lambda_.3} parent=27 // pred_fallthru
        _
    $region28: #{_lambda_.3} parent=5 // pred_fallthru
      _
    %p215 = scmp.le.s32.totalorder 1, %s11
    %p216 = scmp.lt.s32.totalorder %s11, 3
    %p217 = pnand %p215, %p216
    %p218 = pneg %p217
    // Predicated region
    $region37: #{_lambda_.3} parent=5 // pred_check
      _
    $region38: #{_lambda_.3} parent=5 // pred_check_branch
      %220 = sbr.rel (%p217) target = $region40
    $region39: #{_lambda_.3} parent=5 // pred_region
      %s221 = ssub.s32 %s11, 1
      %p222 = scmp.lt.s32.totalorder %s20, 1
      %s223 = scalar_select %p222, %s20, 1
      %s224 = smul.addr %s223, 32
      %s225 = smul.addr %s224, 4
      %s226 = scalar_lea.vmem %s0, %s225
      %p227 = pneg %p49
      %p228 = pneg %p46
      %p229 = pneg %p70
      %p230 = pneg %p67
      %p231 = pneg %p91
      %p232 = pneg %p88
      %p233 = pneg %p112
      %p234 = pneg %p109
      %p235 = scmp.lt.s32.totalorder %s20, 1
      %s236 = scalar_select %p235, %s20, 1
      %p237 = scmp.lt.s32.totalorder %s21, 0
      %s238 = scalar_select %p237, %s21, 0
      %s239 = smul.addr %s236, 32
      %s240 = sadd.s32 %s238, %s239
      %s241 = smul.addr %s240, 4
      %s242 = scalar_lea.vmem %s4, %s241
      %p243 = pneg %p140
      %p244 = pneg %p137
      %p245 = pneg %p168
      %p246 = pneg %p165
      %p247 = scmp.lt.s32.totalorder %s20, 1
      %s248 = scalar_select %p247, %s20, 1
      %p249 = scmp.lt.s32.totalorder %s21, 0
      %s250 = scalar_select %p249, %s21, 0
      %s251 = smul.addr %s248, 32
      %s252 = sadd.s32 %s250, %s251
      %s253 = smul.addr %s252, 8
      %s254 = scalar_lea.vmem %s5, %s253
      %p255 = scmp.lt.s32.totalorder %s20, 1
      %s256 = scalar_select %p255, %s20, 1
      %s257 = smul.addr %s256, 32
      %s258 = smul.addr %s257, 4
      %s259 = scalar_lea.vmem %s0, %s258
      %p260 = scmp.lt.s32.totalorder %s20, 1
      %s261 = scalar_select %p260, %s20, 1
      %p262 = scmp.lt.s32.totalorder %s21, 0
      %s263 = scalar_select %p262, %s21, 0
      %s264 = smul.addr %s261, 32
      %s265 = sadd.s32 %s263, %s264
      %s266 = smul.addr %s265, 4
      %s267 = scalar_lea.vmem %s4, %s266
      %p268 = scmp.lt.s32.totalorder %s20, 1
      %s269 = scalar_select %p268, %s20, 1
      %p270 = scmp.lt.s32.totalorder %s21, 0
      %s271 = scalar_select %p270, %s21, 0
      %s272 = smul.addr %s269, 32
      %s273 = sadd.s32 %s271, %s272
      %s274 = smul.addr %s273, 8
      %s275 = scalar_lea.vmem %s5, %s274
      %p277 = scmp.eq.s32.totalorder %s21, 0
      // Predicated region
      $region41: #{_lambda_.3} parent=39 // pred_check
        %p278 = pneg %p277
      $region42: #{_lambda_.3} parent=39 // pred_check_branch
        %280 = sbr.rel (%p278) target = $region44
      $region43: #{_lambda_.3} parent=39 // pred_region
        %281 = vst [vmem:[#allocation2] sm:$0xf] 0
        %282 = vst [vmem:[#allocation2 + $0x4] sm:$0xf] 0
        %283 = vst [vmem:[#allocation2 + $0x8] sm:$0x1] 0
        %s284 = scalar_lea.vmem [#allocation2], 204
        %285 = vst [vmem:[%s284] sm:$0xf] 0
        %286 = vst [vmem:[%s284 + $0x4] sm:$0xf] 0
        %287 = vst [vmem:[%s284 + $0x8] sm:$0x1] 0
        %vm288 = vcmask 1040384
        %vm289 = vsmask.f32 256
        %vm290 = vmand %vm288, %vm289
        %v291 = vld [vmem:[#allocation2] sm:$0x1]
        %v292 = vsel %vm290, 0, %v291
        %293 = vst [vmem:[#allocation2] sm:$0x1] %v292
        %v294 = vld [vmem:[#allocation2 + $0xc] sm:$0x1]
        %v295 = vsel %vm290, 0, %v294
        %296 = vst [vmem:[#allocation2 + $0xc] sm:$0x1] %v295
        %v297 = vld [vmem:[#allocation2 + $0x18] sm:$0x1]
        %v298 = vsel %vm290, 0, %v297
        %299 = vst [vmem:[#allocation2 + $0x18] sm:$0x1] %v298
        %v300 = vld [vmem:[#allocation2 + $0x24] sm:$0x1]
        %v301 = vsel %vm290, 0, %v300
        %302 = vst [vmem:[#allocation2 + $0x24] sm:$0x1] %v301
        %v303 = vld [vmem:[#allocation2 + $0x30] sm:$0x1]
        %v304 = vsel %vm290, 0, %v303
        %305 = vst [vmem:[#allocation2 + $0x30] sm:$0x1] %v304
        %v306 = vld [vmem:[#allocation2 + $0x3c] sm:$0x1]
        %v307 = vsel %vm290, 0, %v306
        %308 = vst [vmem:[#allocation2 + $0x3c] sm:$0x1] %v307
        %v309 = vld [vmem:[#allocation2 + $0x48] sm:$0x1]
        %v310 = vsel %vm290, 0, %v309
        %311 = vst [vmem:[#allocation2 + $0x48] sm:$0x1] %v310
        %v312 = vld [vmem:[#allocation2 + $0x54] sm:$0x1]
        %v313 = vsel %vm290, 0, %v312
        %314 = vst [vmem:[#allocation2 + $0x54] sm:$0x1] %v313
        %v315 = vld [vmem:[#allocation2 + $0x60] sm:$0x1]
        %v316 = vsel %vm290, 0, %v315
        %317 = vst [vmem:[#allocation2 + $0x60] sm:$0x1] %v316
        %v318 = vld [vmem:[#allocation2 + $0x6c] sm:$0x1]
        %v319 = vsel %vm290, 0, %v318
        %320 = vst [vmem:[#allocation2 + $0x6c] sm:$0x1] %v319
        %v321 = vld [vmem:[#allocation2 + $0x78] sm:$0x1]
        %v322 = vsel %vm290, 0, %v321
        %323 = vst [vmem:[#allocation2 + $0x78] sm:$0x1] %v322
        %v324 = vld [vmem:[#allocation2 + $0x84] sm:$0x1]
        %v325 = vsel %vm290, 0, %v324
        %326 = vst [vmem:[#allocation2 + $0x84] sm:$0x1] %v325
        %v327 = vld [vmem:[#allocation2 + $0x90] sm:$0x1]
        %v328 = vsel %vm290, 0, %v327
        %329 = vst [vmem:[#allocation2 + $0x90] sm:$0x1] %v328
        %v330 = vld [vmem:[#allocation2 + $0x9c] sm:$0x1]
        %v331 = vsel %vm290, 0, %v330
        %332 = vst [vmem:[#allocation2 + $0x9c] sm:$0x1] %v331
        %v333 = vld [vmem:[#allocation2 + $0xa8] sm:$0x1]
        %v334 = vsel %vm290, 0, %v333
        %335 = vst [vmem:[#allocation2 + $0xa8] sm:$0x1] %v334
        %v336 = vld [vmem:[#allocation2 + $0xb4] sm:$0x1]
        %v337 = vsel %vm290, 0, %v336
        %338 = vst [vmem:[#allocation2 + $0xb4] sm:$0x1] %v337
        %v339 = vld [vmem:[#allocation2 + $0xc0] sm:$0x1]
        %v340 = vsel %vm290, 0, %v339
        %341 = vst [vmem:[#allocation2 + $0xc0] sm:$0x1] %v340
        %v342 = vld [vmem:[#allocation2 + $0xcc] sm:$0x1]
        %v343 = vsel %vm290, 0, %v342
        %344 = vst [vmem:[#allocation2 + $0xcc] sm:$0x1] %v343
        %vm345 = vsmask.f32 7938
        %vm346 = vmand %vm288, %vm345
        %v347 = vld [vmem:[#allocation2 + $0x8] sm:$0x1]
        %v348 = vsel %vm346, 0, %v347
        %349 = vst [vmem:[#allocation2 + $0x8] sm:$0x1] %v348
        %v350 = vld [vmem:[#allocation2 + $0x14] sm:$0x1]
        %v351 = vsel %vm346, 0, %v350
        %352 = vst [vmem:[#allocation2 + $0x14] sm:$0x1] %v351
        %v353 = vld [vmem:[#allocation2 + $0x20] sm:$0x1]
        %v354 = vsel %vm346, 0, %v353
        %355 = vst [vmem:[#allocation2 + $0x20] sm:$0x1] %v354
        %v356 = vld [vmem:[#allocation2 + $0x2c] sm:$0x1]
        %v357 = vsel %vm346, 0, %v356
        %358 = vst [vmem:[#allocation2 + $0x2c] sm:$0x1] %v357
        %v359 = vld [vmem:[#allocation2 + $0x38] sm:$0x1]
        %v360 = vsel %vm346, 0, %v359
        %361 = vst [vmem:[#allocation2 + $0x38] sm:$0x1] %v360
        %v362 = vld [vmem:[#allocation2 + $0x44] sm:$0x1]
        %v363 = vsel %vm346, 0, %v362
        %364 = vst [vmem:[#allocation2 + $0x44] sm:$0x1] %v363
        %v365 = vld [vmem:[#allocation2 + $0x50] sm:$0x1]
        %v366 = vsel %vm346, 0, %v365
        %367 = vst [vmem:[#allocation2 + $0x50] sm:$0x1] %v366
        %v368 = vld [vmem:[#allocation2 + $0x5c] sm:$0x1]
        %v369 = vsel %vm346, 0, %v368
        %370 = vst [vmem:[#allocation2 + $0x5c] sm:$0x1] %v369
        %v371 = vld [vmem:[#allocation2 + $0x68] sm:$0x1]
        %v372 = vsel %vm346, 0, %v371
        %373 = vst [vmem:[#allocation2 + $0x68] sm:$0x1] %v372
        %v374 = vld [vmem:[#allocation2 + $0x74] sm:$0x1]
        %v375 = vsel %vm346, 0, %v374
        %376 = vst [vmem:[#allocation2 + $0x74] sm:$0x1] %v375
        %v377 = vld [vmem:[#allocation2 + $0x80] sm:$0x1]
        %v378 = vsel %vm346, 0, %v377
        %379 = vst [vmem:[#allocation2 + $0x80] sm:$0x1] %v378
        %v380 = vld [vmem:[#allocation2 + $0x8c] sm:$0x1]
        %v381 = vsel %vm346, 0, %v380
        %382 = vst [vmem:[#allocation2 + $0x8c] sm:$0x1] %v381
        %v383 = vld [vmem:[#allocation2 + $0x98] sm:$0x1]
        %v384 = vsel %vm346, 0, %v383
        %385 = vst [vmem:[#allocation2 + $0x98] sm:$0x1] %v384
        %v386 = vld [vmem:[#allocation2 + $0xa4] sm:$0x1]
        %v387 = vsel %vm346, 0, %v386
        %388 = vst [vmem:[#allocation2 + $0xa4] sm:$0x1] %v387
        %v389 = vld [vmem:[#allocation2 + $0xb0] sm:$0x1]
        %v390 = vsel %vm346, 0, %v389
        %391 = vst [vmem:[#allocation2 + $0xb0] sm:$0x1] %v390
        %v392 = vld [vmem:[#allocation2 + $0xbc] sm:$0x1]
        %v393 = vsel %vm346, 0, %v392
        %394 = vst [vmem:[#allocation2 + $0xbc] sm:$0x1] %v393
        %v395 = vld [vmem:[#allocation2 + $0xc8] sm:$0x1]
        %v396 = vsel %vm346, 0, %v395
        %397 = vst [vmem:[#allocation2 + $0xc8] sm:$0x1] %v396
        %v398 = vld [vmem:[#allocation2 + $0xd4] sm:$0x1]
        %v399 = vsel %vm346, 0, %v398
        %400 = vst [vmem:[#allocation2 + $0xd4] sm:$0x1] %v399
        %v401 = vld [vmem:[%s259] sm:$0xf]
        %v402 = vld [vmem:[%s259 + $0x4] sm:$0xf]
        %v403 = vld [vmem:[%s259 + $0x8] sm:$0xf]
        %v404 = vld [vmem:[%s259 + $0xc] sm:$0xf]
        %v405 = vld [vmem:[%s259 + $0x10] sm:$0xf]
        %v406 = vld [vmem:[%s259 + $0x14] sm:$0xf]
        %v407 = vld [vmem:[%s259 + $0x18] sm:$0xf]
        %v408 = vld [vmem:[%s259 + $0x1c] sm:$0xf]
        %v409 = vld [vmem:[%s259 + $0x20] sm:$0xf]
        %v410 = vld [vmem:[%s259 + $0x24] sm:$0xf]
        %v411 = vld [vmem:[%s259 + $0x28] sm:$0xf]
        %v412 = vld [vmem:[%s259 + $0x2c] sm:$0xf]
        %v413 = vld [vmem:[%s259 + $0x30] sm:$0xf]
        %v414 = vld [vmem:[%s259 + $0x34] sm:$0xf]
        %v415 = vld [vmem:[%s259 + $0x38] sm:$0xf]
        %v416 = vld [vmem:[%s259 + $0x3c] sm:$0xf]
        %v417 = vld [vmem:[%s259 + $0x40] sm:$0xf]
        %v418 = vld [vmem:[%s259 + $0x44] sm:$0xf]
        %v419 = vld [vmem:[%s259 + $0x48] sm:$0xf]
        %v420 = vld [vmem:[%s259 + $0x4c] sm:$0xf]
        %v421 = vld [vmem:[%s259 + $0x50] sm:$0xf]
        %v422 = vld [vmem:[%s259 + $0x54] sm:$0xf]
        %v423 = vld [vmem:[%s259 + $0x58] sm:$0xf]
        %v424 = vld [vmem:[%s259 + $0x5c] sm:$0xf]
        %v425 = vld [vmem:[%s259 + $0x60] sm:$0xf]
        %v426 = vld [vmem:[%s259 + $0x64] sm:$0xf]
        %v427 = vld [vmem:[%s259 + $0x68] sm:$0xf]
        %v428 = vld [vmem:[%s259 + $0x6c] sm:$0xf]
        %v429 = vld [vmem:[%s259 + $0x70] sm:$0xf]
        %v430 = vld [vmem:[%s259 + $0x74] sm:$0xf]
        %v431 = vld [vmem:[%s259 + $0x78] sm:$0xf]
        %v432 = vld [vmem:[%s259 + $0x7c] sm:$0xf]
        %v433 = vunpack.c.l.bf16 %v401
        %v434 = vunpack.c.l.bf16 %v402
        %v435 = vunpack.c.l.bf16 %v403
        %v436 = vunpack.c.l.bf16 %v404
        %v437 = vunpack.c.l.bf16 %v405
        %v438 = vunpack.c.l.bf16 %v406
        %v439 = vunpack.c.l.bf16 %v407
        %v440 = vunpack.c.l.bf16 %v408
        %v441 = vunpack.c.l.bf16 %v409
        %v442 = vunpack.c.l.bf16 %v410
        %v443 = vunpack.c.l.bf16 %v411
        %v444 = vunpack.c.l.bf16 %v412
        %v445 = vunpack.c.l.bf16 %v413
        %v446 = vunpack.c.l.bf16 %v414
        %v447 = vunpack.c.l.bf16 %v415
        %v448 = vunpack.c.l.bf16 %v416
        %v449 = vunpack.c.l.bf16 %v417
        %v450 = vunpack.c.l.bf16 %v418
        %v451 = vunpack.c.l.bf16 %v419
        %v452 = vunpack.c.l.bf16 %v420
        %v453 = vunpack.c.l.bf16 %v421
        %v454 = vunpack.c.l.bf16 %v422
        %v455 = vunpack.c.l.bf16 %v423
        %v456 = vunpack.c.l.bf16 %v424
        %v457 = vunpack.c.l.bf16 %v425
        %v458 = vunpack.c.l.bf16 %v426
        %v459 = vunpack.c.l.bf16 %v427
        %v460 = vunpack.c.l.bf16 %v428
        %v461 = vunpack.c.l.bf16 %v429
        %v462 = vunpack.c.l.bf16 %v430
        %v463 = vunpack.c.l.bf16 %v431
        %v464 = vunpack.c.l.bf16 %v432
        %v465 = vld [vmem:[%s1] sm:$0x1]
        %v467 = vlaneseq
        %v468 = vshrl.u32 %v467, 7
        %v469 = vsub.s32 0, %v468
        %v470 = vrot.slane %v465, %v469
        %v472 = vmul.f32 %v433, %v470
        %v473 = vmul.f32 %v434, %v470
        %v474 = vmul.f32 %v435, %v470
        %v475 = vmul.f32 %v436, %v470
        %v476 = vmul.f32 %v437, %v470
        %v477 = vmul.f32 %v438, %v470
        %v478 = vmul.f32 %v439, %v470
        %v479 = vmul.f32 %v440, %v470
        %v480 = vmul.f32 %v441, %v470
        %v481 = vmul.f32 %v442, %v470
        %v482 = vmul.f32 %v443, %v470
        %v483 = vmul.f32 %v444, %v470
        %v484 = vmul.f32 %v445, %v470
        %v485 = vmul.f32 %v446, %v470
        %v486 = vmul.f32 %v447, %v470
        %v487 = vmul.f32 %v448, %v470
        %v488 = vmul.f32 %v449, %v470
        %v489 = vmul.f32 %v450, %v470
        %v490 = vmul.f32 %v451, %v470
        %v491 = vmul.f32 %v452, %v470
        %v492 = vmul.f32 %v453, %v470
        %v493 = vmul.f32 %v454, %v470
        %v494 = vmul.f32 %v455, %v470
        %v495 = vmul.f32 %v456, %v470
        %v496 = vmul.f32 %v457, %v470
        %v497 = vmul.f32 %v458, %v470
        %v498 = vmul.f32 %v459, %v470
        %v499 = vmul.f32 %v460, %v470
        %v500 = vmul.f32 %v461, %v470
        %v501 = vmul.f32 %v462, %v470
        %v502 = vmul.f32 %v463, %v470
        %v503 = vmul.f32 %v464, %v470
        %v504 = vld [vmem:[%s2] sm:$0x1]
        %v506 = vlaneseq
        %v507 = vshrl.u32 %v506, 7
        %v508 = vsub.s32 0, %v507
        %v509 = vrot.slane %v504, %v508
        %v511 = vadd.f32 %v472, %v509
        %v512 = vadd.f32 %v473, %v509
        %v513 = vadd.f32 %v474, %v509
        %v514 = vadd.f32 %v475, %v509
        %v515 = vadd.f32 %v476, %v509
        %v516 = vadd.f32 %v477, %v509
        %v517 = vadd.f32 %v478, %v509
        %v518 = vadd.f32 %v479, %v509
        %v519 = vadd.f32 %v480, %v509
        %v520 = vadd.f32 %v481, %v509
        %v521 = vadd.f32 %v482, %v509
        %v522 = vadd.f32 %v483, %v509
        %v523 = vadd.f32 %v484, %v509
        %v524 = vadd.f32 %v485, %v509
        %v525 = vadd.f32 %v486, %v509
        %v526 = vadd.f32 %v487, %v509
        %v527 = vadd.f32 %v488, %v509
        %v528 = vadd.f32 %v489, %v509
        %v529 = vadd.f32 %v490, %v509
        %v530 = vadd.f32 %v491, %v509
        %v531 = vadd.f32 %v492, %v509
        %v532 = vadd.f32 %v493, %v509
        %v533 = vadd.f32 %v494, %v509
        %v534 = vadd.f32 %v495, %v509
        %v535 = vadd.f32 %v496, %v509
        %v536 = vadd.f32 %v497, %v509
        %v537 = vadd.f32 %v498, %v509
        %v538 = vadd.f32 %v499, %v509
        %v539 = vadd.f32 %v500, %v509
        %v540 = vadd.f32 %v501, %v509
        %v541 = vadd.f32 %v502, %v509
        %v542 = vadd.f32 %v503, %v509
        %v543 = vmax.f32 %v511, 0.0
        %v544 = vmax.f32 %v512, 0.0
        %v545 = vmax.f32 %v513, 0.0
        %v546 = vmax.f32 %v514, 0.0
        %v547 = vmax.f32 %v515, 0.0
        %v548 = vmax.f32 %v516, 0.0
        %v549 = vmax.f32 %v517, 0.0
        %v550 = vmax.f32 %v518, 0.0
        %v551 = vmax.f32 %v519, 0.0
        %v552 = vmax.f32 %v520, 0.0
        %v553 = vmax.f32 %v521, 0.0
        %v554 = vmax.f32 %v522, 0.0
        %v555 = vmax.f32 %v523, 0.0
        %v556 = vmax.f32 %v524, 0.0
        %v557 = vmax.f32 %v525, 0.0
        %v558 = vmax.f32 %v526, 0.0
        %v559 = vmax.f32 %v527, 0.0
        %v560 = vmax.f32 %v528, 0.0
        %v561 = vmax.f32 %v529, 0.0
        %v562 = vmax.f32 %v530, 0.0
        %v563 = vmax.f32 %v531, 0.0
        %v564 = vmax.f32 %v532, 0.0
        %v565 = vmax.f32 %v533, 0.0
        %v566 = vmax.f32 %v534, 0.0
        %v567 = vmax.f32 %v535, 0.0
        %v568 = vmax.f32 %v536, 0.0
        %v569 = vmax.f32 %v537, 0.0
        %v570 = vmax.f32 %v538, 0.0
        %v571 = vmax.f32 %v539, 0.0
        %v572 = vmax.f32 %v540, 0.0
        %v573 = vmax.f32 %v541, 0.0
        %v574 = vmax.f32 %v542, 0.0
        %v575 = vpack.c.bf16 %v544, %v543
        %v576 = vpack.c.bf16 %v546, %v545
        %v577 = vpack.c.bf16 %v548, %v547
        %v578 = vpack.c.bf16 %v550, %v549
        %v579 = vpack.c.bf16 %v552, %v551
        %v580 = vpack.c.bf16 %v554, %v553
        %v581 = vpack.c.bf16 %v556, %v555
        %v582 = vpack.c.bf16 %v558, %v557
        %v583 = vpack.c.bf16 %v560, %v559
        %v584 = vpack.c.bf16 %v562, %v561
        %v585 = vpack.c.bf16 %v564, %v563
        %v586 = vpack.c.bf16 %v566, %v565
        %v587 = vpack.c.bf16 %v568, %v567
        %v588 = vpack.c.bf16 %v570, %v569
        %v589 = vpack.c.bf16 %v572, %v571
        %v590 = vpack.c.bf16 %v574, %v573
        %v607 = vunpack.c.l.b16 %v575
        %v608 = vunpack.c.h.b16 %v575
        %v609 = vunpack.c.l.b16 %v576
        %v610 = vunpack.c.h.b16 %v576
        %v611 = vunpack.c.l.b16 %v577
        %v612 = vunpack.c.h.b16 %v577
        %v613 = vunpack.c.l.b16 %v578
        %v614 = vunpack.c.h.b16 %v578
        %v615 = vunpack.c.l.b16 %v579
        %v616 = vunpack.c.h.b16 %v579
        %v617 = vunpack.c.l.b16 %v580
        %v618 = vunpack.c.h.b16 %v580
        %v619 = vunpack.c.l.b16 %v581
        %v620 = vunpack.c.h.b16 %v581
        %v621 = vunpack.c.l.b16 %v582
        %v622 = vunpack.c.h.b16 %v582
        %v623 = vunpack.c.l.b16 %v583
        %v624 = vunpack.c.h.b16 %v583
        %v625 = vunpack.c.l.b16 %v584
        %v626 = vunpack.c.h.b16 %v584
        %v627 = vunpack.c.l.b16 %v585
        %v628 = vunpack.c.h.b16 %v585
        %v629 = vunpack.c.l.b16 %v586
        %v630 = vunpack.c.h.b16 %v586
        %v631 = vunpack.c.l.b16 %v587
        %v632 = vunpack.c.h.b16 %v587
        %v633 = vunpack.c.l.b16 %v588
        %v634 = vunpack.c.h.b16 %v588
        %v635 = vunpack.c.l.b16 %v589
        %v636 = vunpack.c.h.b16 %v589
        %v637 = vunpack.c.l.b16 %v590
        %v638 = vunpack.c.h.b16 %v590
        %v639 = vpack.c.b16 %v607, %v607
        %v640 = vpack.c.b16 %v608, %v608
        %v641 = vpack.c.b16 %v609, %v609
        %v642 = vpack.c.b16 %v610, %v610
        %v643 = vpack.c.b16 %v611, %v611
        %v644 = vpack.c.b16 %v612, %v612
        %v645 = vpack.c.b16 %v613, %v613
        %v646 = vpack.c.b16 %v614, %v614
        %v647 = vpack.c.b16 %v615, %v615
        %v648 = vpack.c.b16 %v616, %v616
        %v649 = vpack.c.b16 %v617, %v617
        %v650 = vpack.c.b16 %v618, %v618
        %v651 = vpack.c.b16 %v619, %v619
        %v652 = vpack.c.b16 %v620, %v620
        %v653 = vpack.c.b16 %v621, %v621
        %v654 = vpack.c.b16 %v622, %v622
        %v655 = vpack.c.b16 %v623, %v623
        %v656 = vpack.c.b16 %v624, %v624
        %v657 = vpack.c.b16 %v625, %v625
        %v658 = vpack.c.b16 %v626, %v626
        %v659 = vpack.c.b16 %v627, %v627
        %v660 = vpack.c.b16 %v628, %v628
        %v661 = vpack.c.b16 %v629, %v629
        %v662 = vpack.c.b16 %v630, %v630
        %v663 = vpack.c.b16 %v631, %v631
        %v664 = vpack.c.b16 %v632, %v632
        %v665 = vpack.c.b16 %v633, %v633
        %v666 = vpack.c.b16 %v634, %v634
        %v667 = vpack.c.b16 %v635, %v635
        %v668 = vpack.c.b16 %v636, %v636
        %v669 = vpack.c.b16 %v637, %v637
        %v670 = vpack.c.b16 %v638, %v638
        %vm671 = vsmask.f32 4368
        %vm672 = vmor %vm289, %vm671
        %v674 = vshrl.u32 %v639, 16
        %v676 = vrot.slane %v674, 7
        %v677 = vshll.u32 %v639, 16
        %v679 = vor.u32 %v676, %v677
        %v680 = vrot.slane %v676, 4
        %v682 = vshrl.u32 %v640, 16
        %v684 = vrot.slane %v682, 7
        %v685 = vshll.u32 %v640, 16
        %v687 = vor.u32 %v684, %v685
        %v688 = vsel %vm672, %v680, %v687
        %v689 = vrot.slane %v684, 4
        %v691 = vshrl.u32 %v641, 16
        %v693 = vrot.slane %v691, 7
        %v694 = vshll.u32 %v641, 16
        %v696 = vor.u32 %v693, %v694
        %v697 = vrot.slane %v693, 4
        %v699 = vshrl.u32 %v642, 16
        %v701 = vrot.slane %v699, 7
        %v702 = vshll.u32 %v642, 16
        %v704 = vor.u32 %v701, %v702
        %v705 = vsel %vm672, %v697, %v704
        %v706 = vrot.slane %v701, 4
        %v708 = vshrl.u32 %v643, 16
        %v710 = vrot.slane %v708, 7
        %v711 = vshll.u32 %v643, 16
        %v713 = vor.u32 %v710, %v711
        %v714 = vrot.slane %v710, 4
        %v716 = vshrl.u32 %v644, 16
        %v718 = vrot.slane %v716, 7
        %v719 = vshll.u32 %v644, 16
        %v721 = vor.u32 %v718, %v719
        %v722 = vsel %vm672, %v714, %v721
        %v723 = vrot.slane %v718, 4
        %v725 = vshrl.u32 %v645, 16
        %v727 = vrot.slane %v725, 7
        %v728 = vshll.u32 %v645, 16
        %v730 = vor.u32 %v727, %v728
        %v731 = vrot.slane %v727, 4
        %v733 = vshrl.u32 %v646, 16
        %v735 = vrot.slane %v733, 7
        %v736 = vshll.u32 %v646, 16
        %v738 = vor.u32 %v735, %v736
        %v739 = vsel %vm672, %v731, %v738
        %v740 = vrot.slane %v735, 4
        %v742 = vshrl.u32 %v647, 16
        %v744 = vrot.slane %v742, 7
        %v745 = vshll.u32 %v647, 16
        %v747 = vor.u32 %v744, %v745
        %v748 = vrot.slane %v744, 4
        %v750 = vshrl.u32 %v648, 16
        %v752 = vrot.slane %v750, 7
        %v753 = vshll.u32 %v648, 16
        %v755 = vor.u32 %v752, %v753
        %v756 = vsel %vm672, %v748, %v755
        %v757 = vrot.slane %v752, 4
        %v759 = vshrl.u32 %v649, 16
        %v761 = vrot.slane %v759, 7
        %v762 = vshll.u32 %v649, 16
        %v764 = vor.u32 %v761, %v762
        %v765 = vrot.slane %v761, 4
        %v767 = vshrl.u32 %v650, 16
        %v769 = vrot.slane %v767, 7
        %v770 = vshll.u32 %v650, 16
        %v772 = vor.u32 %v769, %v770
        %v773 = vsel %vm672, %v765, %v772
        %v774 = vrot.slane %v769, 4
        %v776 = vshrl.u32 %v651, 16
        %v778 = vrot.slane %v776, 7
        %v779 = vshll.u32 %v651, 16
        %v781 = vor.u32 %v778, %v779
        %v782 = vrot.slane %v778, 4
        %v784 = vshrl.u32 %v652, 16
        %v786 = vrot.slane %v784, 7
        %v787 = vshll.u32 %v652, 16
        %v789 = vor.u32 %v786, %v787
        %v790 = vsel %vm672, %v782, %v789
        %v791 = vrot.slane %v786, 4
        %v793 = vshrl.u32 %v653, 16
        %v795 = vrot.slane %v793, 7
        %v796 = vshll.u32 %v653, 16
        %v798 = vor.u32 %v795, %v796
        %v799 = vrot.slane %v795, 4
        %v801 = vshrl.u32 %v654, 16
        %v803 = vrot.slane %v801, 7
        %v804 = vshll.u32 %v654, 16
        %v806 = vor.u32 %v803, %v804
        %v807 = vsel %vm672, %v799, %v806
        %v808 = vrot.slane %v803, 4
        %v810 = vshrl.u32 %v655, 16
        %v812 = vrot.slane %v810, 7
        %v813 = vshll.u32 %v655, 16
        %v815 = vor.u32 %v812, %v813
        %v816 = vrot.slane %v812, 4
        %v818 = vshrl.u32 %v656, 16
        %v820 = vrot.slane %v818, 7
        %v821 = vshll.u32 %v656, 16
        %v823 = vor.u32 %v820, %v821
        %v824 = vsel %vm672, %v816, %v823
        %v825 = vrot.slane %v820, 4
        %v827 = vshrl.u32 %v657, 16
        %v829 = vrot.slane %v827, 7
        %v830 = vshll.u32 %v657, 16
        %v832 = vor.u32 %v829, %v830
        %v833 = vrot.slane %v829, 4
        %v835 = vshrl.u32 %v658, 16
        %v837 = vrot.slane %v835, 7
        %v838 = vshll.u32 %v658, 16
        %v840 = vor.u32 %v837, %v838
        %v841 = vsel %vm672, %v833, %v840
        %v842 = vrot.slane %v837, 4
        %v844 = vshrl.u32 %v659, 16
        %v846 = vrot.slane %v844, 7
        %v847 = vshll.u32 %v659, 16
        %v849 = vor.u32 %v846, %v847
        %v850 = vrot.slane %v846, 4
        %v852 = vshrl.u32 %v660, 16
        %v854 = vrot.slane %v852, 7
        %v855 = vshll.u32 %v660, 16
        %v857 = vor.u32 %v854, %v855
        %v858 = vsel %vm672, %v850, %v857
        %v859 = vrot.slane %v854, 4
        %v861 = vshrl.u32 %v661, 16
        %v863 = vrot.slane %v861, 7
        %v864 = vshll.u32 %v661, 16
        %v866 = vor.u32 %v863, %v864
        %v867 = vrot.slane %v863, 4
        %v869 = vshrl.u32 %v662, 16
        %v871 = vrot.slane %v869, 7
        %v872 = vshll.u32 %v662, 16
        %v874 = vor.u32 %v871, %v872
        %v875 = vsel %vm672, %v867, %v874
        %v876 = vrot.slane %v871, 4
        %v878 = vshrl.u32 %v663, 16
        %v880 = vrot.slane %v878, 7
        %v881 = vshll.u32 %v663, 16
        %v883 = vor.u32 %v880, %v881
        %v884 = vrot.slane %v880, 4
        %v886 = vshrl.u32 %v664, 16
        %v888 = vrot.slane %v886, 7
        %v889 = vshll.u32 %v664, 16
        %v891 = vor.u32 %v888, %v889
        %v892 = vsel %vm672, %v884, %v891
        %v893 = vrot.slane %v888, 4
        %v895 = vshrl.u32 %v665, 16
        %v897 = vrot.slane %v895, 7
        %v898 = vshll.u32 %v665, 16
        %v900 = vor.u32 %v897, %v898
        %v901 = vrot.slane %v897, 4
        %v903 = vshrl.u32 %v666, 16
        %v905 = vrot.slane %v903, 7
        %v906 = vshll.u32 %v666, 16
        %v908 = vor.u32 %v905, %v906
        %v909 = vsel %vm672, %v901, %v908
        %v910 = vrot.slane %v905, 4
        %v912 = vshrl.u32 %v667, 16
        %v914 = vrot.slane %v912, 7
        %v915 = vshll.u32 %v667, 16
        %v917 = vor.u32 %v914, %v915
        %v918 = vrot.slane %v914, 4
        %v920 = vshrl.u32 %v668, 16
        %v922 = vrot.slane %v920, 7
        %v923 = vshll.u32 %v668, 16
        %v925 = vor.u32 %v922, %v923
        %v926 = vsel %vm672, %v918, %v925
        %v927 = vrot.slane %v922, 4
        %v929 = vshrl.u32 %v669, 16
        %v931 = vrot.slane %v929, 7
        %v932 = vshll.u32 %v669, 16
        %v934 = vor.u32 %v931, %v932
        %v935 = vrot.slane %v931, 4
        %v937 = vshrl.u32 %v670, 16
        %v939 = vrot.slane %v937, 7
        %v940 = vshll.u32 %v670, 16
        %v942 = vor.u32 %v939, %v940
        %v943 = vsel %vm672, %v935, %v942
        %v944 = vrot.slane %v939, 4
        %s993 = scalar_lea.vmem [#allocation2], 12
        %vm994 = vcmask 1043456
        %vm995 = vmand %vm994, %vm345
        %v996 = vld [vmem:[%s993] sm:$0xf]
        %v997 = vsel %vm995, %v679, %v996
        %998 = vst [vmem:[%s993] sm:$0xf] %v997
        %999 = vst [vmem:[%s993 + $0x4] sm:$0xf] %v688
        %v1000 = vld [vmem:[%s993 + $0x8] sm:$0x1]
        %v1001 = vsel %vm290, %v689, %v1000
        %1002 = vst [vmem:[%s993 + $0x8] sm:$0x1] %v1001
        %v1003 = vld [vmem:[%s993 + $0xc] sm:$0xf]
        %v1004 = vsel %vm995, %v696, %v1003
        %1005 = vst [vmem:[%s993 + $0xc] sm:$0xf] %v1004
        %1006 = vst [vmem:[%s993 + $0x10] sm:$0xf] %v705
        %v1007 = vld [vmem:[%s993 + $0x14] sm:$0x1]
        %v1008 = vsel %vm290, %v706, %v1007
        %1009 = vst [vmem:[%s993 + $0x14] sm:$0x1] %v1008
        %v1010 = vld [vmem:[%s993 + $0x18] sm:$0xf]
        %v1011 = vsel %vm995, %v713, %v1010
        %1012 = vst [vmem:[%s993 + $0x18] sm:$0xf] %v1011
        %1013 = vst [vmem:[%s993 + $0x1c] sm:$0xf] %v722
        %v1014 = vld [vmem:[%s993 + $0x20] sm:$0x1]
        %v1015 = vsel %vm290, %v723, %v1014
        %1016 = vst [vmem:[%s993 + $0x20] sm:$0x1] %v1015
        %v1017 = vld [vmem:[%s993 + $0x24] sm:$0xf]
        %v1018 = vsel %vm995, %v730, %v1017
        %1019 = vst [vmem:[%s993 + $0x24] sm:$0xf] %v1018
        %1020 = vst [vmem:[%s993 + $0x28] sm:$0xf] %v739
        %v1021 = vld [vmem:[%s993 + $0x2c] sm:$0x1]
        %v1022 = vsel %vm290, %v740, %v1021
        %1023 = vst [vmem:[%s993 + $0x2c] sm:$0x1] %v1022
        %v1024 = vld [vmem:[%s993 + $0x30] sm:$0xf]
        %v1025 = vsel %vm995, %v747, %v1024
        %1026 = vst [vmem:[%s993 + $0x30] sm:$0xf] %v1025
        %1027 = vst [vmem:[%s993 + $0x34] sm:$0xf] %v756
        %v1028 = vld [vmem:[%s993 + $0x38] sm:$0x1]
        %v1029 = vsel %vm290, %v757, %v1028
        %1030 = vst [vmem:[%s993 + $0x38] sm:$0x1] %v1029
        %v1031 = vld [vmem:[%s993 + $0x3c] sm:$0xf]
        %v1032 = vsel %vm995, %v764, %v1031
        %1033 = vst [vmem:[%s993 + $0x3c] sm:$0xf] %v1032
        %1034 = vst [vmem:[%s993 + $0x40] sm:$0xf] %v773
        %v1035 = vld [vmem:[%s993 + $0x44] sm:$0x1]
        %v1036 = vsel %vm290, %v774, %v1035
        %1037 = vst [vmem:[%s993 + $0x44] sm:$0x1] %v1036
        %v1038 = vld [vmem:[%s993 + $0x48] sm:$0xf]
        %v1039 = vsel %vm995, %v781, %v1038
        %1040 = vst [vmem:[%s993 + $0x48] sm:$0xf] %v1039
        %1041 = vst [vmem:[%s993 + $0x4c] sm:$0xf] %v790
        %v1042 = vld [vmem:[%s993 + $0x50] sm:$0x1]
        %v1043 = vsel %vm290, %v791, %v1042
        %1044 = vst [vmem:[%s993 + $0x50] sm:$0x1] %v1043
        %v1045 = vld [vmem:[%s993 + $0x54] sm:$0xf]
        %v1046 = vsel %vm995, %v798, %v1045
        %1047 = vst [vmem:[%s993 + $0x54] sm:$0xf] %v1046
        %1048 = vst [vmem:[%s993 + $0x58] sm:$0xf] %v807
        %v1049 = vld [vmem:[%s993 + $0x5c] sm:$0x1]
        %v1050 = vsel %vm290, %v808, %v1049
        %1051 = vst [vmem:[%s993 + $0x5c] sm:$0x1] %v1050
        %v1052 = vld [vmem:[%s993 + $0x60] sm:$0xf]
        %v1053 = vsel %vm995, %v815, %v1052
        %1054 = vst [vmem:[%s993 + $0x60] sm:$0xf] %v1053
        %1055 = vst [vmem:[%s993 + $0x64] sm:$0xf] %v824
        %v1056 = vld [vmem:[%s993 + $0x68] sm:$0x1]
        %v1057 = vsel %vm290, %v825, %v1056
        %1058 = vst [vmem:[%s993 + $0x68] sm:$0x1] %v1057
        %v1059 = vld [vmem:[%s993 + $0x6c] sm:$0xf]
        %v1060 = vsel %vm995, %v832, %v1059
        %1061 = vst [vmem:[%s993 + $0x6c] sm:$0xf] %v1060
        %1062 = vst [vmem:[%s993 + $0x70] sm:$0xf] %v841
        %v1063 = vld [vmem:[%s993 + $0x74] sm:$0x1]
        %v1064 = vsel %vm290, %v842, %v1063
        %1065 = vst [vmem:[%s993 + $0x74] sm:$0x1] %v1064
        %v1066 = vld [vmem:[%s993 + $0x78] sm:$0xf]
        %v1067 = vsel %vm995, %v849, %v1066
        %1068 = vst [vmem:[%s993 + $0x78] sm:$0xf] %v1067
        %1069 = vst [vmem:[%s993 + $0x7c] sm:$0xf] %v858
        %v1070 = vld [vmem:[%s993 + $0x80] sm:$0x1]
        %v1071 = vsel %vm290, %v859, %v1070
        %1072 = vst [vmem:[%s993 + $0x80] sm:$0x1] %v1071
        %v1073 = vld [vmem:[%s993 + $0x84] sm:$0xf]
        %v1074 = vsel %vm995, %v866, %v1073
        %1075 = vst [vmem:[%s993 + $0x84] sm:$0xf] %v1074
        %1076 = vst [vmem:[%s993 + $0x88] sm:$0xf] %v875
        %v1077 = vld [vmem:[%s993 + $0x8c] sm:$0x1]
        %v1078 = vsel %vm290, %v876, %v1077
        %1079 = vst [vmem:[%s993 + $0x8c] sm:$0x1] %v1078
        %v1080 = vld [vmem:[%s993 + $0x90] sm:$0xf]
        %v1081 = vsel %vm995, %v883, %v1080
        %1082 = vst [vmem:[%s993 + $0x90] sm:$0xf] %v1081
        %1083 = vst [vmem:[%s993 + $0x94] sm:$0xf] %v892
        %v1084 = vld [vmem:[%s993 + $0x98] sm:$0x1]
        %v1085 = vsel %vm290, %v893, %v1084
        %1086 = vst [vmem:[%s993 + $0x98] sm:$0x1] %v1085
        %v1087 = vld [vmem:[%s993 + $0x9c] sm:$0xf]
        %v1088 = vsel %vm995, %v900, %v1087
        %1089 = vst [vmem:[%s993 + $0x9c] sm:$0xf] %v1088
        %1090 = vst [vmem:[%s993 + $0xa0] sm:$0xf] %v909
        %v1091 = vld [vmem:[%s993 + $0xa4] sm:$0x1]
        %v1092 = vsel %vm290, %v910, %v1091
        %1093 = vst [vmem:[%s993 + $0xa4] sm:$0x1] %v1092
        %v1094 = vld [vmem:[%s993 + $0xa8] sm:$0xf]
        %v1095 = vsel %vm995, %v917, %v1094
        %1096 = vst [vmem:[%s993 + $0xa8] sm:$0xf] %v1095
        %1097 = vst [vmem:[%s993 + $0xac] sm:$0xf] %v926
        %v1098 = vld [vmem:[%s993 + $0xb0] sm:$0x1]
        %v1099 = vsel %vm290, %v927, %v1098
        %1100 = vst [vmem:[%s993 + $0xb0] sm:$0x1] %v1099
        %v1101 = vld [vmem:[%s993 + $0xb4] sm:$0xf]
        %v1102 = vsel %vm995, %v934, %v1101
        %1103 = vst [vmem:[%s993 + $0xb4] sm:$0xf] %v1102
        %1104 = vst [vmem:[%s993 + $0xb8] sm:$0xf] %v943
        %v1105 = vld [vmem:[%s993 + $0xbc] sm:$0x1]
        %v1106 = vsel %vm290, %v944, %v1105
        %1107 = vst [vmem:[%s993 + $0xbc] sm:$0x1] %v1106
        %v1108 = vld [vmem:[#allocation2] sm:$0xf]
        %v1109 = vld [vmem:[#allocation2 + $0x4] sm:$0xf]
        %v1110 = vld [vmem:[#allocation2 + $0xc] sm:$0xf]
        %v1111 = vld [vmem:[#allocation2 + $0x10] sm:$0xf]
        %v1112 = vld [vmem:[#allocation2 + $0x18] sm:$0xf]
        %v1113 = vld [vmem:[#allocation2 + $0x1c] sm:$0xf]
        %v1114 = vld [vmem:[#allocation2 + $0x24] sm:$0xf]
        %v1115 = vld [vmem:[#allocation2 + $0x28] sm:$0xf]
        %v1116 = vld [vmem:[#allocation2 + $0x30] sm:$0xf]
        %v1117 = vld [vmem:[#allocation2 + $0x34] sm:$0xf]
        %v1118 = vld [vmem:[#allocation2 + $0x3c] sm:$0xf]
        %v1119 = vld [vmem:[#allocation2 + $0x40] sm:$0xf]
        %v1120 = vld [vmem:[#allocation2 + $0x48] sm:$0xf]
        %v1121 = vld [vmem:[#allocation2 + $0x4c] sm:$0xf]
        %v1122 = vld [vmem:[#allocation2 + $0x54] sm:$0xf]
        %v1123 = vld [vmem:[#allocation2 + $0x58] sm:$0xf]
        %v1124 = vld [vmem:[#allocation2 + $0x60] sm:$0xf]
        %v1125 = vld [vmem:[#allocation2 + $0x64] sm:$0xf]
        %v1126 = vld [vmem:[#allocation2 + $0x6c] sm:$0xf]
        %v1127 = vld [vmem:[#allocation2 + $0x70] sm:$0xf]
        %v1128 = vld [vmem:[#allocation2 + $0x78] sm:$0xf]
        %v1129 = vld [vmem:[#allocation2 + $0x7c] sm:$0xf]
        %v1130 = vld [vmem:[#allocation2 + $0x84] sm:$0xf]
        %v1131 = vld [vmem:[#allocation2 + $0x88] sm:$0xf]
        %v1132 = vld [vmem:[#allocation2 + $0x90] sm:$0xf]
        %v1133 = vld [vmem:[#allocation2 + $0x94] sm:$0xf]
        %v1134 = vld [vmem:[#allocation2 + $0x9c] sm:$0xf]
        %v1135 = vld [vmem:[#allocation2 + $0xa0] sm:$0xf]
        %v1136 = vld [vmem:[#allocation2 + $0xa8] sm:$0xf]
        %v1137 = vld [vmem:[#allocation2 + $0xac] sm:$0xf]
        %v1138 = vld [vmem:[#allocation2 + $0xb4] sm:$0xf]
        %v1139 = vld [vmem:[#allocation2 + $0xb8] sm:$0xf]
        %v1172 = vunpack.c.l.b16 %v1108
        %v1173 = vunpack.c.l.b16 %v1109
        %v1174 = vunpack.c.l.b16 %v1110
        %v1175 = vunpack.c.l.b16 %v1111
        %v1176 = vunpack.c.l.b16 %v1112
        %v1177 = vunpack.c.l.b16 %v1113
        %v1178 = vunpack.c.l.b16 %v1114
        %v1179 = vunpack.c.l.b16 %v1115
        %v1180 = vunpack.c.l.b16 %v1116
        %v1181 = vunpack.c.l.b16 %v1117
        %v1182 = vunpack.c.l.b16 %v1118
        %v1183 = vunpack.c.l.b16 %v1119
        %v1184 = vunpack.c.l.b16 %v1120
        %v1185 = vunpack.c.l.b16 %v1121
        %v1186 = vunpack.c.l.b16 %v1122
        %v1187 = vunpack.c.l.b16 %v1123
        %v1188 = vunpack.c.l.b16 %v1124
        %v1189 = vunpack.c.l.b16 %v1125
        %v1190 = vunpack.c.l.b16 %v1126
        %v1191 = vunpack.c.l.b16 %v1127
        %v1192 = vunpack.c.l.b16 %v1128
        %v1193 = vunpack.c.l.b16 %v1129
        %v1194 = vunpack.c.l.b16 %v1130
        %v1195 = vunpack.c.l.b16 %v1131
        %v1196 = vunpack.c.l.b16 %v1132
        %v1197 = vunpack.c.l.b16 %v1133
        %v1198 = vunpack.c.l.b16 %v1134
        %v1199 = vunpack.c.l.b16 %v1135
        %v1200 = vunpack.c.l.b16 %v1136
        %v1201 = vunpack.c.l.b16 %v1137
        %v1202 = vunpack.c.l.b16 %v1138
        %v1203 = vunpack.c.l.b16 %v1139
        %v1204 = vpack.c.b16 %v1173, %v1172
        %v1205 = vpack.c.b16 %v1175, %v1174
        %v1206 = vpack.c.b16 %v1177, %v1176
        %v1207 = vpack.c.b16 %v1179, %v1178
        %v1208 = vpack.c.b16 %v1181, %v1180
        %v1209 = vpack.c.b16 %v1183, %v1182
        %v1210 = vpack.c.b16 %v1185, %v1184
        %v1211 = vpack.c.b16 %v1187, %v1186
        %v1212 = vpack.c.b16 %v1189, %v1188
        %v1213 = vpack.c.b16 %v1191, %v1190
        %v1214 = vpack.c.b16 %v1193, %v1192
        %v1215 = vpack.c.b16 %v1195, %v1194
        %v1216 = vpack.c.b16 %v1197, %v1196
        %v1217 = vpack.c.b16 %v1199, %v1198
        %v1218 = vpack.c.b16 %v1201, %v1200
        %v1219 = vpack.c.b16 %v1203, %v1202
        %1236 = vst [vmem:[#allocation3] sm:$0xff] %v1204
        %1237 = vst [vmem:[#allocation3 + $0x48] sm:$0xff] %v1205
        %1238 = vst [vmem:[#allocation3 + $0x90] sm:$0xff] %v1206
        %1239 = vst [vmem:[#allocation3 + $0xd8] sm:$0xff] %v1207
        %1240 = vst [vmem:[#allocation3 + $0x120] sm:$0xff] %v1208
        %1241 = vst [vmem:[#allocation3 + $0x168] sm:$0xff] %v1209
        %1242 = vst [vmem:[#allocation3 + $0x1b0] sm:$0xff] %v1210
        %1243 = vst [vmem:[#allocation3 + $0x1f8] sm:$0xff] %v1211
        %1244 = vst [vmem:[#allocation3 + $0x240] sm:$0xff] %v1212
        %1245 = vst [vmem:[#allocation3 + $0x288] sm:$0xff] %v1213
        %1246 = vst [vmem:[#allocation3 + $0x2d0] sm:$0xff] %v1214
        %1247 = vst [vmem:[#allocation3 + $0x318] sm:$0xff] %v1215
        %1248 = vst [vmem:[#allocation3 + $0x360] sm:$0xff] %v1216
        %1249 = vst [vmem:[#allocation3 + $0x3a8] sm:$0xff] %v1217
        %1250 = vst [vmem:[#allocation3 + $0x3f0] sm:$0xff] %v1218
        %1251 = vst [vmem:[#allocation3 + $0x438] sm:$0xff] %v1219
        %v1252 = vld [vmem:[#allocation2] sm:$0xf]
        %v1253 = vld [vmem:[#allocation2 + $0x4] sm:$0xf]
        %v1254 = vld [vmem:[#allocation2 + $0x8] sm:$0x1]
        %v1255 = vld [vmem:[#allocation2 + $0xc] sm:$0xf]
        %v1256 = vld [vmem:[#allocation2 + $0x10] sm:$0xf]
        %v1257 = vld [vmem:[#allocation2 + $0x14] sm:$0x1]
        %v1258 = vld [vmem:[#allocation2 + $0x18] sm:$0xf]
        %v1259 = vld [vmem:[#allocation2 + $0x1c] sm:$0xf]
        %v1260 = vld [vmem:[#allocation2 + $0x20] sm:$0x1]
        %v1261 = vld [vmem:[#allocation2 + $0x24] sm:$0xf]
        %v1262 = vld [vmem:[#allocation2 + $0x28] sm:$0xf]
        %v1263 = vld [vmem:[#allocation2 + $0x2c] sm:$0x1]
        %v1264 = vld [vmem:[#allocation2 + $0x30] sm:$0xf]
        %v1265 = vld [vmem:[#allocation2 + $0x34] sm:$0xf]
        %v1266 = vld [vmem:[#allocation2 + $0x38] sm:$0x1]
        %v1267 = vld [vmem:[#allocation2 + $0x3c] sm:$0xf]
        %v1268 = vld [vmem:[#allocation2 + $0x40] sm:$0xf]
        %v1269 = vld [vmem:[#allocation2 + $0x44] sm:$0x1]
        %v1270 = vld [vmem:[#allocation2 + $0x48] sm:$0xf]
        %v1271 = vld [vmem:[#allocation2 + $0x4c] sm:$0xf]
        %v1272 = vld [vmem:[#allocation2 + $0x50] sm:$0x1]
        %v1273 = vld [vmem:[#allocation2 + $0x54] sm:$0xf]
        %v1274 = vld [vmem:[#allocation2 + $0x58] sm:$0xf]
        %v1275 = vld [vmem:[#allocation2 + $0x5c] sm:$0x1]
        %v1276 = vld [vmem:[#allocation2 + $0x60] sm:$0xf]
        %v1277 = vld [vmem:[#allocation2 + $0x64] sm:$0xf]
        %v1278 = vld [vmem:[#allocation2 + $0x68] sm:$0x1]
        %v1279 = vld [vmem:[#allocation2 + $0x6c] sm:$0xf]
        %v1280 = vld [vmem:[#allocation2 + $0x70] sm:$0xf]
        %v1281 = vld [vmem:[#allocation2 + $0x74] sm:$0x1]
        %v1282 = vld [vmem:[#allocation2 + $0x78] sm:$0xf]
        %v1283 = vld [vmem:[#allocation2 + $0x7c] sm:$0xf]
        %v1284 = vld [vmem:[#allocation2 + $0x80] sm:$0x1]
        %v1285 = vld [vmem:[#allocation2 + $0x84] sm:$0xf]
        %v1286 = vld [vmem:[#allocation2 + $0x88] sm:$0xf]
        %v1287 = vld [vmem:[#allocation2 + $0x8c] sm:$0x1]
        %v1288 = vld [vmem:[#allocation2 + $0x90] sm:$0xf]
        %v1289 = vld [vmem:[#allocation2 + $0x94] sm:$0xf]
        %v1290 = vld [vmem:[#allocation2 + $0x98] sm:$0x1]
        %v1291 = vld [vmem:[#allocation2 + $0x9c] sm:$0xf]
        %v1292 = vld [vmem:[#allocation2 + $0xa0] sm:$0xf]
        %v1293 = vld [vmem:[#allocation2 + $0xa4] sm:$0x1]
        %v1294 = vld [vmem:[#allocation2 + $0xa8] sm:$0xf]
        %v1295 = vld [vmem:[#allocation2 + $0xac] sm:$0xf]
        %v1296 = vld [vmem:[#allocation2 + $0xb0] sm:$0x1]
        %v1297 = vld [vmem:[#allocation2 + $0xb4] sm:$0xf]
        %v1298 = vld [vmem:[#allocation2 + $0xb8] sm:$0xf]
        %v1299 = vld [vmem:[#allocation2 + $0xbc] sm:$0x1]
        %vm1300 = vsmask.f32 3328
        %vm1301 = vsmask.f32 7440
        %vm1302 = vmor %vm1300, %vm1301
        %v1304 = vshrl.u32 %v1252, 16
        %v1306 = vrot.slane %v1304, 4
        %v1307 = vshll.u32 %v1252, 16
        %v1309 = vrot.slane %v1307, 5
        %v1310 = vor.u32 %v1306, %v1309
        %v1311 = vrot.slane %v1310, 4
        %v1313 = vshll.u32 %v1253, 16
        %v1315 = vrot.slane %v1313, 5
        %v1316 = vsel %vm1302, %v1311, %v1315
        %v1317 = vshrl.u32 %v1253, 16
        %v1319 = vrot.slane %v1317, 4
        %v1320 = vor.u32 %v1319, %v1315
        %v1321 = vrot.slane %v1320, 4
        %v1323 = vshll.u32 %v1254, 16
        %v1325 = vrot.slane %v1323, 5
        %v1326 = vsel %vm1302, %v1321, %v1325
        %v1328 = vshrl.u32 %v1255, 16
        %v1330 = vrot.slane %v1328, 4
        %v1331 = vshll.u32 %v1255, 16
        %v1333 = vrot.slane %v1331, 5
        %v1334 = vor.u32 %v1330, %v1333
        %v1335 = vrot.slane %v1334, 4
        %v1337 = vshll.u32 %v1256, 16
        %v1339 = vrot.slane %v1337, 5
        %v1340 = vsel %vm1302, %v1335, %v1339
        %v1341 = vshrl.u32 %v1256, 16
        %v1343 = vrot.slane %v1341, 4
        %v1344 = vor.u32 %v1343, %v1339
        %v1345 = vrot.slane %v1344, 4
        %v1347 = vshll.u32 %v1257, 16
        %v1349 = vrot.slane %v1347, 5
        %v1350 = vsel %vm1302, %v1345, %v1349
        %v1352 = vshrl.u32 %v1258, 16
        %v1354 = vrot.slane %v1352, 4
        %v1355 = vshll.u32 %v1258, 16
        %v1357 = vrot.slane %v1355, 5
        %v1358 = vor.u32 %v1354, %v1357
        %v1359 = vrot.slane %v1358, 4
        %v1361 = vshll.u32 %v1259, 16
        %v1363 = vrot.slane %v1361, 5
        %v1364 = vsel %vm1302, %v1359, %v1363
        %v1365 = vshrl.u32 %v1259, 16
        %v1367 = vrot.slane %v1365, 4
        %v1368 = vor.u32 %v1367, %v1363
        %v1369 = vrot.slane %v1368, 4
        %v1371 = vshll.u32 %v1260, 16
        %v1373 = vrot.slane %v1371, 5
        %v1374 = vsel %vm1302, %v1369, %v1373
        %v1376 = vshrl.u32 %v1261, 16
        %v1378 = vrot.slane %v1376, 4
        %v1379 = vshll.u32 %v1261, 16
        %v1381 = vrot.slane %v1379, 5
        %v1382 = vor.u32 %v1378, %v1381
        %v1383 = vrot.slane %v1382, 4
        %v1385 = vshll.u32 %v1262, 16
        %v1387 = vrot.slane %v1385, 5
        %v1388 = vsel %vm1302, %v1383, %v1387
        %v1389 = vshrl.u32 %v1262, 16
        %v1391 = vrot.slane %v1389, 4
        %v1392 = vor.u32 %v1391, %v1387
        %v1393 = vrot.slane %v1392, 4
        %v1395 = vshll.u32 %v1263, 16
        %v1397 = vrot.slane %v1395, 5
        %v1398 = vsel %vm1302, %v1393, %v1397
        %v1400 = vshrl.u32 %v1264, 16
        %v1402 = vrot.slane %v1400, 4
        %v1403 = vshll.u32 %v1264, 16
        %v1405 = vrot.slane %v1403, 5
        %v1406 = vor.u32 %v1402, %v1405
        %v1407 = vrot.slane %v1406, 4
        %v1409 = vshll.u32 %v1265, 16
        %v1411 = vrot.slane %v1409, 5
        %v1412 = vsel %vm1302, %v1407, %v1411
        %v1413 = vshrl.u32 %v1265, 16
        %v1415 = vrot.slane %v1413, 4
        %v1416 = vor.u32 %v1415, %v1411
        %v1417 = vrot.slane %v1416, 4
        %v1419 = vshll.u32 %v1266, 16
        %v1421 = vrot.slane %v1419, 5
        %v1422 = vsel %vm1302, %v1417, %v1421
        %v1424 = vshrl.u32 %v1267, 16
        %v1426 = vrot.slane %v1424, 4
        %v1427 = vshll.u32 %v1267, 16
        %v1429 = vrot.slane %v1427, 5
        %v1430 = vor.u32 %v1426, %v1429
        %v1431 = vrot.slane %v1430, 4
        %v1433 = vshll.u32 %v1268, 16
        %v1435 = vrot.slane %v1433, 5
        %v1436 = vsel %vm1302, %v1431, %v1435
        %v1437 = vshrl.u32 %v1268, 16
        %v1439 = vrot.slane %v1437, 4
        %v1440 = vor.u32 %v1439, %v1435
        %v1441 = vrot.slane %v1440, 4
        %v1443 = vshll.u32 %v1269, 16
        %v1445 = vrot.slane %v1443, 5
        %v1446 = vsel %vm1302, %v1441, %v1445
        %v1448 = vshrl.u32 %v1270, 16
        %v1450 = vrot.slane %v1448, 4
        %v1451 = vshll.u32 %v1270, 16
        %v1453 = vrot.slane %v1451, 5
        %v1454 = vor.u32 %v1450, %v1453
        %v1455 = vrot.slane %v1454, 4
        %v1457 = vshll.u32 %v1271, 16
        %v1459 = vrot.slane %v1457, 5
        %v1460 = vsel %vm1302, %v1455, %v1459
        %v1461 = vshrl.u32 %v1271, 16
        %v1463 = vrot.slane %v1461, 4
        %v1464 = vor.u32 %v1463, %v1459
        %v1465 = vrot.slane %v1464, 4
        %v1467 = vshll.u32 %v1272, 16
        %v1469 = vrot.slane %v1467, 5
        %v1470 = vsel %vm1302, %v1465, %v1469
        %v1472 = vshrl.u32 %v1273, 16
        %v1474 = vrot.slane %v1472, 4
        %v1475 = vshll.u32 %v1273, 16
        %v1477 = vrot.slane %v1475, 5
        %v1478 = vor.u32 %v1474, %v1477
        %v1479 = vrot.slane %v1478, 4
        %v1481 = vshll.u32 %v1274, 16
        %v1483 = vrot.slane %v1481, 5
        %v1484 = vsel %vm1302, %v1479, %v1483
        %v1485 = vshrl.u32 %v1274, 16
        %v1487 = vrot.slane %v1485, 4
        %v1488 = vor.u32 %v1487, %v1483
        %v1489 = vrot.slane %v1488, 4
        %v1491 = vshll.u32 %v1275, 16
        %v1493 = vrot.slane %v1491, 5
        %v1494 = vsel %vm1302, %v1489, %v1493
        %v1496 = vshrl.u32 %v1276, 16
        %v1498 = vrot.slane %v1496, 4
        %v1499 = vshll.u32 %v1276, 16
        %v1501 = vrot.slane %v1499, 5
        %v1502 = vor.u32 %v1498, %v1501
        %v1503 = vrot.slane %v1502, 4
        %v1505 = vshll.u32 %v1277, 16
        %v1507 = vrot.slane %v1505, 5
        %v1508 = vsel %vm1302, %v1503, %v1507
        %v1509 = vshrl.u32 %v1277, 16
        %v1511 = vrot.slane %v1509, 4
        %v1512 = vor.u32 %v1511, %v1507
        %v1513 = vrot.slane %v1512, 4
        %v1515 = vshll.u32 %v1278, 16
        %v1517 = vrot.slane %v1515, 5
        %v1518 = vsel %vm1302, %v1513, %v1517
        %v1520 = vshrl.u32 %v1279, 16
        %v1522 = vrot.slane %v1520, 4
        %v1523 = vshll.u32 %v1279, 16
        %v1525 = vrot.slane %v1523, 5
        %v1526 = vor.u32 %v1522, %v1525
        %v1527 = vrot.slane %v1526, 4
        %v1529 = vshll.u32 %v1280, 16
        %v1531 = vrot.slane %v1529, 5
        %v1532 = vsel %vm1302, %v1527, %v1531
        %v1533 = vshrl.u32 %v1280, 16
        %v1535 = vrot.slane %v1533, 4
        %v1536 = vor.u32 %v1535, %v1531
        %v1537 = vrot.slane %v1536, 4
        %v1539 = vshll.u32 %v1281, 16
        %v1541 = vrot.slane %v1539, 5
        %v1542 = vsel %vm1302, %v1537, %v1541
        %v1544 = vshrl.u32 %v1282, 16
        %v1546 = vrot.slane %v1544, 4
        %v1547 = vshll.u32 %v1282, 16
        %v1549 = vrot.slane %v1547, 5
        %v1550 = vor.u32 %v1546, %v1549
        %v1551 = vrot.slane %v1550, 4
        %v1553 = vshll.u32 %v1283, 16
        %v1555 = vrot.slane %v1553, 5
        %v1556 = vsel %vm1302, %v1551, %v1555
        %v1557 = vshrl.u32 %v1283, 16
        %v1559 = vrot.slane %v1557, 4
        %v1560 = vor.u32 %v1559, %v1555
        %v1561 = vrot.slane %v1560, 4
        %v1563 = vshll.u32 %v1284, 16
        %v1565 = vrot.slane %v1563, 5
        %v1566 = vsel %vm1302, %v1561, %v1565
        %v1568 = vshrl.u32 %v1285, 16
        %v1570 = vrot.slane %v1568, 4
        %v1571 = vshll.u32 %v1285, 16
        %v1573 = vrot.slane %v1571, 5
        %v1574 = vor.u32 %v1570, %v1573
        %v1575 = vrot.slane %v1574, 4
        %v1577 = vshll.u32 %v1286, 16
        %v1579 = vrot.slane %v1577, 5
        %v1580 = vsel %vm1302, %v1575, %v1579
        %v1581 = vshrl.u32 %v1286, 16
        %v1583 = vrot.slane %v1581, 4
        %v1584 = vor.u32 %v1583, %v1579
        %v1585 = vrot.slane %v1584, 4
        %v1587 = vshll.u32 %v1287, 16
        %v1589 = vrot.slane %v1587, 5
        %v1590 = vsel %vm1302, %v1585, %v1589
        %v1592 = vshrl.u32 %v1288, 16
        %v1594 = vrot.slane %v1592, 4
        %v1595 = vshll.u32 %v1288, 16
        %v1597 = vrot.slane %v1595, 5
        %v1598 = vor.u32 %v1594, %v1597
        %v1599 = vrot.slane %v1598, 4
        %v1601 = vshll.u32 %v1289, 16
        %v1603 = vrot.slane %v1601, 5
        %v1604 = vsel %vm1302, %v1599, %v1603
        %v1605 = vshrl.u32 %v1289, 16
        %v1607 = vrot.slane %v1605, 4
        %v1608 = vor.u32 %v1607, %v1603
        %v1609 = vrot.slane %v1608, 4
        %v1611 = vshll.u32 %v1290, 16
        %v1613 = vrot.slane %v1611, 5
        %v1614 = vsel %vm1302, %v1609, %v1613
        %v1616 = vshrl.u32 %v1291, 16
        %v1618 = vrot.slane %v1616, 4
        %v1619 = vshll.u32 %v1291, 16
        %v1621 = vrot.slane %v1619, 5
        %v1622 = vor.u32 %v1618, %v1621
        %v1623 = vrot.slane %v1622, 4
        %v1625 = vshll.u32 %v1292, 16
        %v1627 = vrot.slane %v1625, 5
        %v1628 = vsel %vm1302, %v1623, %v1627
        %v1629 = vshrl.u32 %v1292, 16
        %v1631 = vrot.slane %v1629, 4
        %v1632 = vor.u32 %v1631, %v1627
        %v1633 = vrot.slane %v1632, 4
        %v1635 = vshll.u32 %v1293, 16
        %v1637 = vrot.slane %v1635, 5
        %v1638 = vsel %vm1302, %v1633, %v1637
        %v1640 = vshrl.u32 %v1294, 16
        %v1642 = vrot.slane %v1640, 4
        %v1643 = vshll.u32 %v1294, 16
        %v1645 = vrot.slane %v1643, 5
        %v1646 = vor.u32 %v1642, %v1645
        %v1647 = vrot.slane %v1646, 4
        %v1649 = vshll.u32 %v1295, 16
        %v1651 = vrot.slane %v1649, 5
        %v1652 = vsel %vm1302, %v1647, %v1651
        %v1653 = vshrl.u32 %v1295, 16
        %v1655 = vrot.slane %v1653, 4
        %v1656 = vor.u32 %v1655, %v1651
        %v1657 = vrot.slane %v1656, 4
        %v1659 = vshll.u32 %v1296, 16
        %v1661 = vrot.slane %v1659, 5
        %v1662 = vsel %vm1302, %v1657, %v1661
        %v1664 = vshrl.u32 %v1297, 16
        %v1666 = vrot.slane %v1664, 4
        %v1667 = vshll.u32 %v1297, 16
        %v1669 = vrot.slane %v1667, 5
        %v1670 = vor.u32 %v1666, %v1669
        %v1671 = vrot.slane %v1670, 4
        %v1673 = vshll.u32 %v1298, 16
        %v1675 = vrot.slane %v1673, 5
        %v1676 = vsel %vm1302, %v1671, %v1675
        %v1677 = vshrl.u32 %v1298, 16
        %v1679 = vrot.slane %v1677, 4
        %v1680 = vor.u32 %v1679, %v1675
        %v1681 = vrot.slane %v1680, 4
        %v1683 = vshll.u32 %v1299, 16
        %v1685 = vrot.slane %v1683, 5
        %v1686 = vsel %vm1302, %v1681, %v1685
        %v1687 = vunpack.c.l.b16 %v1316
        %v1688 = vunpack.c.l.b16 %v1326
        %v1689 = vunpack.c.l.b16 %v1340
        %v1690 = vunpack.c.l.b16 %v1350
        %v1691 = vunpack.c.l.b16 %v1364
        %v1692 = vunpack.c.l.b16 %v1374
        %v1693 = vunpack.c.l.b16 %v1388
        %v1694 = vunpack.c.l.b16 %v1398
        %v1695 = vunpack.c.l.b16 %v1412
        %v1696 = vunpack.c.l.b16 %v1422
        %v1697 = vunpack.c.l.b16 %v1436
        %v1698 = vunpack.c.l.b16 %v1446
        %v1699 = vunpack.c.l.b16 %v1460
        %v1700 = vunpack.c.l.b16 %v1470
        %v1701 = vunpack.c.l.b16 %v1484
        %v1702 = vunpack.c.l.b16 %v1494
        %v1703 = vunpack.c.l.b16 %v1508
        %v1704 = vunpack.c.l.b16 %v1518
        %v1705 = vunpack.c.l.b16 %v1532
        %v1706 = vunpack.c.l.b16 %v1542
        %v1707 = vunpack.c.l.b16 %v1556
        %v1708 = vunpack.c.l.b16 %v1566
        %v1709 = vunpack.c.l.b16 %v1580
        %v1710 = vunpack.c.l.b16 %v1590
        %v1711 = vunpack.c.l.b16 %v1604
        %v1712 = vunpack.c.l.b16 %v1614
        %v1713 = vunpack.c.l.b16 %v1628
        %v1714 = vunpack.c.l.b16 %v1638
        %v1715 = vunpack.c.l.b16 %v1652
        %v1716 = vunpack.c.l.b16 %v1662
        %v1717 = vunpack.c.l.b16 %v1676
        %v1718 = vunpack.c.l.b16 %v1686
        %v1719 = vpack.c.b16 %v1688, %v1687
        %v1720 = vpack.c.b16 %v1690, %v1689
        %v1721 = vpack.c.b16 %v1692, %v1691
        %v1722 = vpack.c.b16 %v1694, %v1693
        %v1723 = vpack.c.b16 %v1696, %v1695
        %v1724 = vpack.c.b16 %v1698, %v1697
        %v1725 = vpack.c.b16 %v1700, %v1699
        %v1726 = vpack.c.b16 %v1702, %v1701
        %v1727 = vpack.c.b16 %v1704, %v1703
        %v1728 = vpack.c.b16 %v1706, %v1705
        %v1729 = vpack.c.b16 %v1708, %v1707
        %v1730 = vpack.c.b16 %v1710, %v1709
        %v1731 = vpack.c.b16 %v1712, %v1711
        %v1732 = vpack.c.b16 %v1714, %v1713
        %v1733 = vpack.c.b16 %v1716, %v1715
        %v1734 = vpack.c.b16 %v1718, %v1717
        %1751 = vst [vmem:[#allocation3 + $0x8] sm:$0xff] %v1719
        %1752 = vst [vmem:[#allocation3 + $0x50] sm:$0xff] %v1720
        %1753 = vst [vmem:[#allocation3 + $0x98] sm:$0xff] %v1721
        %1754 = vst [vmem:[#allocation3 + $0xe0] sm:$0xff] %v1722
        %1755 = vst [vmem:[#allocation3 + $0x128] sm:$0xff] %v1723
        %1756 = vst [vmem:[#allocation3 + $0x170] sm:$0xff] %v1724
        %1757 = vst [vmem:[#allocation3 + $0x1b8] sm:$0xff] %v1725
        %1758 = vst [vmem:[#allocation3 + $0x200] sm:$0xff] %v1726
        %1759 = vst [vmem:[#allocation3 + $0x248] sm:$0xff] %v1727
        %1760 = vst [vmem:[#allocation3 + $0x290] sm:$0xff] %v1728
        %1761 = vst [vmem:[#allocation3 + $0x2d8] sm:$0xff] %v1729
        %1762 = vst [vmem:[#allocation3 + $0x320] sm:$0xff] %v1730
        %1763 = vst [vmem:[#allocation3 + $0x368] sm:$0xff] %v1731
        %1764 = vst [vmem:[#allocation3 + $0x3b0] sm:$0xff] %v1732
        %1765 = vst [vmem:[#allocation3 + $0x3f8] sm:$0xff] %v1733
        %1766 = vst [vmem:[#allocation3 + $0x440] sm:$0xff] %v1734
        %v1767 = vld [vmem:[#allocation2] sm:$0xe]
        %v1768 = vld [vmem:[#allocation2 + $0x4] sm:$0xf]
        %v1769 = vld [vmem:[#allocation2 + $0x8] sm:$0x1]
        %v1770 = vld [vmem:[#allocation2 + $0xc] sm:$0xe]
        %v1771 = vld [vmem:[#allocation2 + $0x10] sm:$0xf]
        %v1772 = vld [vmem:[#allocation2 + $0x14] sm:$0x1]
        %v1773 = vld [vmem:[#allocation2 + $0x18] sm:$0xe]
        %v1774 = vld [vmem:[#allocation2 + $0x1c] sm:$0xf]
        %v1775 = vld [vmem:[#allocation2 + $0x20] sm:$0x1]
        %v1776 = vld [vmem:[#allocation2 + $0x24] sm:$0xe]
        %v1777 = vld [vmem:[#allocation2 + $0x28] sm:$0xf]
        %v1778 = vld [vmem:[#allocation2 + $0x2c] sm:$0x1]
        %v1779 = vld [vmem:[#allocation2 + $0x30] sm:$0xe]
        %v1780 = vld [vmem:[#allocation2 + $0x34] sm:$0xf]
        %v1781 = vld [vmem:[#allocation2 + $0x38] sm:$0x1]
        %v1782 = vld [vmem:[#allocation2 + $0x3c] sm:$0xe]
        %v1783 = vld [vmem:[#allocation2 + $0x40] sm:$0xf]
        %v1784 = vld [vmem:[#allocation2 + $0x44] sm:$0x1]
        %v1785 = vld [vmem:[#allocation2 + $0x48] sm:$0xe]
        %v1786 = vld [vmem:[#allocation2 + $0x4c] sm:$0xf]
        %v1787 = vld [vmem:[#allocation2 + $0x50] sm:$0x1]
        %v1788 = vld [vmem:[#allocation2 + $0x54] sm:$0xe]
        %v1789 = vld [vmem:[#allocation2 + $0x58] sm:$0xf]
        %v1790 = vld [vmem:[#allocation2 + $0x5c] sm:$0x1]
        %v1791 = vld [vmem:[#allocation2 + $0x60] sm:$0xe]
        %v1792 = vld [vmem:[#allocation2 + $0x64] sm:$0xf]
        %v1793 = vld [vmem:[#allocation2 + $0x68] sm:$0x1]
        %v1794 = vld [vmem:[#allocation2 + $0x6c] sm:$0xe]
        %v1795 = vld [vmem:[#allocation2 + $0x70] sm:$0xf]
        %v1796 = vld [vmem:[#allocation2 + $0x74] sm:$0x1]
        %v1797 = vld [vmem:[#allocation2 + $0x78] sm:$0xe]
        %v1798 = vld [vmem:[#allocation2 + $0x7c] sm:$0xf]
        %v1799 = vld [vmem:[#allocation2 + $0x80] sm:$0x1]
        %v1800 = vld [vmem:[#allocation2 + $0x84] sm:$0xe]
        %v1801 = vld [vmem:[#allocation2 + $0x88] sm:$0xf]
        %v1802 = vld [vmem:[#allocation2 + $0x8c] sm:$0x1]
        %v1803 = vld [vmem:[#allocation2 + $0x90] sm:$0xe]
        %v1804 = vld [vmem:[#allocation2 + $0x94] sm:$0xf]
        %v1805 = vld [vmem:[#allocation2 + $0x98] sm:$0x1]
        %v1806 = vld [vmem:[#allocation2 + $0x9c] sm:$0xe]
        %v1807 = vld [vmem:[#allocation2 + $0xa0] sm:$0xf]
        %v1808 = vld [vmem:[#allocation2 + $0xa4] sm:$0x1]
        %v1809 = vld [vmem:[#allocation2 + $0xa8] sm:$0xe]
        %v1810 = vld [vmem:[#allocation2 + $0xac] sm:$0xf]
        %v1811 = vld [vmem:[#allocation2 + $0xb0] sm:$0x1]
        %v1812 = vld [vmem:[#allocation2 + $0xb4] sm:$0xe]
        %v1813 = vld [vmem:[#allocation2 + $0xb8] sm:$0xf]
        %v1814 = vld [vmem:[#allocation2 + $0xbc] sm:$0x1]
        %vm1863 = vcmask 1042432
        %vm1864 = vcmask 1046532
        %vm1865 = vmor %vm1863, %vm1864
        %v1866 = vrot.slane %v1767, 5
        %v1867 = vrot.slane %v1866, 4
        %v1868 = vrot.slane %v1768, 5
        %v1869 = vsel %vm1865, %v1867, %v1868
        %v1870 = vrot.slane %v1868, 4
        %v1871 = vrot.slane %v1769, 5
        %v1872 = vsel %vm1865, %v1870, %v1871
        %v1873 = vrot.slane %v1770, 5
        %v1874 = vrot.slane %v1873, 4
        %v1875 = vrot.slane %v1771, 5
        %v1876 = vsel %vm1865, %v1874, %v1875
        %v1877 = vrot.slane %v1875, 4
        %v1878 = vrot.slane %v1772, 5
        %v1879 = vsel %vm1865, %v1877, %v1878
        %v1880 = vrot.slane %v1773, 5
        %v1881 = vrot.slane %v1880, 4
        %v1882 = vrot.slane %v1774, 5
        %v1883 = vsel %vm1865, %v1881, %v1882
        %v1884 = vrot.slane %v1882, 4
        %v1885 = vrot.slane %v1775, 5
        %v1886 = vsel %vm1865, %v1884, %v1885
        %v1887 = vrot.slane %v1776, 5
        %v1888 = vrot.slane %v1887, 4
        %v1889 = vrot.slane %v1777, 5
        %v1890 = vsel %vm1865, %v1888, %v1889
        %v1891 = vrot.slane %v1889, 4
        %v1892 = vrot.slane %v1778, 5
        %v1893 = vsel %vm1865, %v1891, %v1892
        %v1894 = vrot.slane %v1779, 5
        %v1895 = vrot.slane %v1894, 4
        %v1896 = vrot.slane %v1780, 5
        %v1897 = vsel %vm1865, %v1895, %v1896
        %v1898 = vrot.slane %v1896, 4
        %v1899 = vrot.slane %v1781, 5
        %v1900 = vsel %vm1865, %v1898, %v1899
        %v1901 = vrot.slane %v1782, 5
        %v1902 = vrot.slane %v1901, 4
        %v1903 = vrot.slane %v1783, 5
        %v1904 = vsel %vm1865, %v1902, %v1903
        %v1905 = vrot.slane %v1903, 4
        %v1906 = vrot.slane %v1784, 5
        %v1907 = vsel %vm1865, %v1905, %v1906
        %v1908 = vrot.slane %v1785, 5
        %v1909 = vrot.slane %v1908, 4
        %v1910 = vrot.slane %v1786, 5
        %v1911 = vsel %vm1865, %v1909, %v1910
        %v1912 = vrot.slane %v1910, 4
        %v1913 = vrot.slane %v1787, 5
        %v1914 = vsel %vm1865, %v1912, %v1913
        %v1915 = vrot.slane %v1788, 5
        %v1916 = vrot.slane %v1915, 4
        %v1917 = vrot.slane %v1789, 5
        %v1918 = vsel %vm1865, %v1916, %v1917
        %v1919 = vrot.slane %v1917, 4
        %v1920 = vrot.slane %v1790, 5
        %v1921 = vsel %vm1865, %v1919, %v1920
        %v1922 = vrot.slane %v1791, 5
        %v1923 = vrot.slane %v1922, 4
        %v1924 = vrot.slane %v1792, 5
        %v1925 = vsel %vm1865, %v1923, %v1924
        %v1926 = vrot.slane %v1924, 4
        %v1927 = vrot.slane %v1793, 5
        %v1928 = vsel %vm1865, %v1926, %v1927
        %v1929 = vrot.slane %v1794, 5
        %v1930 = vrot.slane %v1929, 4
        %v1931 = vrot.slane %v1795, 5
        %v1932 = vsel %vm1865, %v1930, %v1931
        %v1933 = vrot.slane %v1931, 4
        %v1934 = vrot.slane %v1796, 5
        %v1935 = vsel %vm1865, %v1933, %v1934
        %v1936 = vrot.slane %v1797, 5
        %v1937 = vrot.slane %v1936, 4
        %v1938 = vrot.slane %v1798, 5
        %v1939 = vsel %vm1865, %v1937, %v1938
        %v1940 = vrot.slane %v1938, 4
        %v1941 = vrot.slane %v1799, 5
        %v1942 = vsel %vm1865, %v1940, %v1941
        %v1943 = vrot.slane %v1800, 5
        %v1944 = vrot.slane %v1943, 4
        %v1945 = vrot.slane %v1801, 5
        %v1946 = vsel %vm1865, %v1944, %v1945
        %v1947 = vrot.slane %v1945, 4
        %v1948 = vrot.slane %v1802, 5
        %v1949 = vsel %vm1865, %v1947, %v1948
        %v1950 = vrot.slane %v1803, 5
        %v1951 = vrot.slane %v1950, 4
        %v1952 = vrot.slane %v1804, 5
        %v1953 = vsel %vm1865, %v1951, %v1952
        %v1954 = vrot.slane %v1952, 4
        %v1955 = vrot.slane %v1805, 5
        %v1956 = vsel %vm1865, %v1954, %v1955
        %v1957 = vrot.slane %v1806, 5
        %v1958 = vrot.slane %v1957, 4
        %v1959 = vrot.slane %v1807, 5
        %v1960 = vsel %vm1865, %v1958, %v1959
        %v1961 = vrot.slane %v1959, 4
        %v1962 = vrot.slane %v1808, 5
        %v1963 = vsel %vm1865, %v1961, %v1962
        %v1964 = vrot.slane %v1809, 5
        %v1965 = vrot.slane %v1964, 4
        %v1966 = vrot.slane %v1810, 5
        %v1967 = vsel %vm1865, %v1965, %v1966
        %v1968 = vrot.slane %v1966, 4
        %v1969 = vrot.slane %v1811, 5
        %v1970 = vsel %vm1865, %v1968, %v1969
        %v1971 = vrot.slane %v1812, 5
        %v1972 = vrot.slane %v1971, 4
        %v1973 = vrot.slane %v1813, 5
        %v1974 = vsel %vm1865, %v1972, %v1973
        %v1975 = vrot.slane %v1973, 4
        %v1976 = vrot.slane %v1814, 5
        %v1977 = vsel %vm1865, %v1975, %v1976
        %v1978 = vunpack.c.l.b16 %v1869
        %v1979 = vunpack.c.l.b16 %v1872
        %v1980 = vunpack.c.l.b16 %v1876
        %v1981 = vunpack.c.l.b16 %v1879
        %v1982 = vunpack.c.l.b16 %v1883
        %v1983 = vunpack.c.l.b16 %v1886
        %v1984 = vunpack.c.l.b16 %v1890
        %v1985 = vunpack.c.l.b16 %v1893
        %v1986 = vunpack.c.l.b16 %v1897
        %v1987 = vunpack.c.l.b16 %v1900
        %v1988 = vunpack.c.l.b16 %v1904
        %v1989 = vunpack.c.l.b16 %v1907
        %v1990 = vunpack.c.l.b16 %v1911
        %v1991 = vunpack.c.l.b16 %v1914
        %v1992 = vunpack.c.l.b16 %v1918
        %v1993 = vunpack.c.l.b16 %v1921
        %v1994 = vunpack.c.l.b16 %v1925
        %v1995 = vunpack.c.l.b16 %v1928
        %v1996 = vunpack.c.l.b16 %v1932
        %v1997 = vunpack.c.l.b16 %v1935
        %v1998 = vunpack.c.l.b16 %v1939
        %v1999 = vunpack.c.l.b16 %v1942
        %v2000 = vunpack.c.l.b16 %v1946
        %v2001 = vunpack.c.l.b16 %v1949
        %v2002 = vunpack.c.l.b16 %v1953
        %v2003 = vunpack.c.l.b16 %v1956
        %v2004 = vunpack.c.l.b16 %v1960
        %v2005 = vunpack.c.l.b16 %v1963
        %v2006 = vunpack.c.l.b16 %v1967
        %v2007 = vunpack.c.l.b16 %v1970
        %v2008 = vunpack.c.l.b16 %v1974
        %v2009 = vunpack.c.l.b16 %v1977
        %v2010 = vpack.c.b16 %v1979, %v1978
        %v2011 = vpack.c.b16 %v1981, %v1980
        %v2012 = vpack.c.b16 %v1983, %v1982
        %v2013 = vpack.c.b16 %v1985, %v1984
        %v2014 = vpack.c.b16 %v1987, %v1986
        %v2015 = vpack.c.b16 %v1989, %v1988
        %v2016 = vpack.c.b16 %v1991, %v1990
        %v2017 = vpack.c.b16 %v1993, %v1992
        %v2018 = vpack.c.b16 %v1995, %v1994
        %v2019 = vpack.c.b16 %v1997, %v1996
        %v2020 = vpack.c.b16 %v1999, %v1998
        %v2021 = vpack.c.b16 %v2001, %v2000
        %v2022 = vpack.c.b16 %v2003, %v2002
        %v2023 = vpack.c.b16 %v2005, %v2004
        %v2024 = vpack.c.b16 %v2007, %v2006
        %v2025 = vpack.c.b16 %v2009, %v2008
        %2042 = vst [vmem:[#allocation3 + $0x10] sm:$0xff] %v2010
        %2043 = vst [vmem:[#allocation3 + $0x58] sm:$0xff] %v2011
        %2044 = vst [vmem:[#allocation3 + $0xa0] sm:$0xff] %v2012
        %2045 = vst [vmem:[#allocation3 + $0xe8] sm:$0xff] %v2013
        %2046 = vst [vmem:[#allocation3 + $0x130] sm:$0xff] %v2014
        %2047 = vst [vmem:[#allocation3 + $0x178] sm:$0xff] %v2015
        %2048 = vst [vmem:[#allocation3 + $0x1c0] sm:$0xff] %v2016
        %2049 = vst [vmem:[#allocation3 + $0x208] sm:$0xff] %v2017
        %2050 = vst [vmem:[#allocation3 + $0x250] sm:$0xff] %v2018
        %2051 = vst [vmem:[#allocation3 + $0x298] sm:$0xff] %v2019
        %2052 = vst [vmem:[#allocation3 + $0x2e0] sm:$0xff] %v2020
        %2053 = vst [vmem:[#allocation3 + $0x328] sm:$0xff] %v2021
        %2054 = vst [vmem:[#allocation3 + $0x370] sm:$0xff] %v2022
        %2055 = vst [vmem:[#allocation3 + $0x3b8] sm:$0xff] %v2023
        %2056 = vst [vmem:[#allocation3 + $0x400] sm:$0xff] %v2024
        %2057 = vst [vmem:[#allocation3 + $0x448] sm:$0xff] %v2025
        %v2058 = vld [vmem:[%s993] sm:$0xf]
        %v2059 = vld [vmem:[%s993 + $0x4] sm:$0xf]
        %v2060 = vld [vmem:[%s993 + $0xc] sm:$0xf]
        %v2061 = vld [vmem:[%s993 + $0x10] sm:$0xf]
        %v2062 = vld [vmem:[%s993 + $0x18] sm:$0xf]
        %v2063 = vld [vmem:[%s993 + $0x1c] sm:$0xf]
        %v2064 = vld [vmem:[%s993 + $0x24] sm:$0xf]
        %v2065 = vld [vmem:[%s993 + $0x28] sm:$0xf]
        %v2066 = vld [vmem:[%s993 + $0x30] sm:$0xf]
        %v2067 = vld [vmem:[%s993 + $0x34] sm:$0xf]
        %v2068 = vld [vmem:[%s993 + $0x3c] sm:$0xf]
        %v2069 = vld [vmem:[%s993 + $0x40] sm:$0xf]
        %v2070 = vld [vmem:[%s993 + $0x48] sm:$0xf]
        %v2071 = vld [vmem:[%s993 + $0x4c] sm:$0xf]
        %v2072 = vld [vmem:[%s993 + $0x54] sm:$0xf]
        %v2073 = vld [vmem:[%s993 + $0x58] sm:$0xf]
        %v2074 = vld [vmem:[%s993 + $0x60] sm:$0xf]
        %v2075 = vld [vmem:[%s993 + $0x64] sm:$0xf]
        %v2076 = vld [vmem:[%s993 + $0x6c] sm:$0xf]
        %v2077 = vld [vmem:[%s993 + $0x70] sm:$0xf]
        %v2078 = vld [vmem:[%s993 + $0x78] sm:$0xf]
        %v2079 = vld [vmem:[%s993 + $0x7c] sm:$0xf]
        %v2080 = vld [vmem:[%s993 + $0x84] sm:$0xf]
        %v2081 = vld [vmem:[%s993 + $0x88] sm:$0xf]
        %v2082 = vld [vmem:[%s993 + $0x90] sm:$0xf]
        %v2083 = vld [vmem:[%s993 + $0x94] sm:$0xf]
        %v2084 = vld [vmem:[%s993 + $0x9c] sm:$0xf]
        %v2085 = vld [vmem:[%s993 + $0xa0] sm:$0xf]
        %v2086 = vld [vmem:[%s993 + $0xa8] sm:$0xf]
        %v2087 = vld [vmem:[%s993 + $0xac] sm:$0xf]
        %v2088 = vld [vmem:[%s993 + $0xb4] sm:$0xf]
        %v2089 = vld [vmem:[%s993 + $0xb8] sm:$0xf]
        %v2122 = vunpack.c.l.b16 %v2058
        %v2123 = vunpack.c.l.b16 %v2059
        %v2124 = vunpack.c.l.b16 %v2060
        %v2125 = vunpack.c.l.b16 %v2061
        %v2126 = vunpack.c.l.b16 %v2062
        %v2127 = vunpack.c.l.b16 %v2063
        %v2128 = vunpack.c.l.b16 %v2064
        %v2129 = vunpack.c.l.b16 %v2065
        %v2130 = vunpack.c.l.b16 %v2066
        %v2131 = vunpack.c.l.b16 %v2067
        %v2132 = vunpack.c.l.b16 %v2068
        %v2133 = vunpack.c.l.b16 %v2069
        %v2134 = vunpack.c.l.b16 %v2070
        %v2135 = vunpack.c.l.b16 %v2071
        %v2136 = vunpack.c.l.b16 %v2072
        %v2137 = vunpack.c.l.b16 %v2073
        %v2138 = vunpack.c.l.b16 %v2074
        %v2139 = vunpack.c.l.b16 %v2075
        %v2140 = vunpack.c.l.b16 %v2076
        %v2141 = vunpack.c.l.b16 %v2077
        %v2142 = vunpack.c.l.b16 %v2078
        %v2143 = vunpack.c.l.b16 %v2079
        %v2144 = vunpack.c.l.b16 %v2080
        %v2145 = vunpack.c.l.b16 %v2081
        %v2146 = vunpack.c.l.b16 %v2082
        %v2147 = vunpack.c.l.b16 %v2083
        %v2148 = vunpack.c.l.b16 %v2084
        %v2149 = vunpack.c.l.b16 %v2085
        %v2150 = vunpack.c.l.b16 %v2086
        %v2151 = vunpack.c.l.b16 %v2087
        %v2152 = vunpack.c.l.b16 %v2088
        %v2153 = vunpack.c.l.b16 %v2089
        %v2154 = vpack.c.b16 %v2123, %v2122
        %v2155 = vpack.c.b16 %v2125, %v2124
        %v2156 = vpack.c.b16 %v2127, %v2126
        %v2157 = vpack.c.b16 %v2129, %v2128
        %v2158 = vpack.c.b16 %v2131, %v2130
        %v2159 = vpack.c.b16 %v2133, %v2132
        %v2160 = vpack.c.b16 %v2135, %v2134
        %v2161 = vpack.c.b16 %v2137, %v2136
        %v2162 = vpack.c.b16 %v2139, %v2138
        %v2163 = vpack.c.b16 %v2141, %v2140
        %v2164 = vpack.c.b16 %v2143, %v2142
        %v2165 = vpack.c.b16 %v2145, %v2144
        %v2166 = vpack.c.b16 %v2147, %v2146
        %v2167 = vpack.c.b16 %v2149, %v2148
        %v2168 = vpack.c.b16 %v2151, %v2150
        %v2169 = vpack.c.b16 %v2153, %v2152
        %2186 = vst [vmem:[#allocation3 + $0x18] sm:$0xff] %v2154
        %2187 = vst [vmem:[#allocation3 + $0x60] sm:$0xff] %v2155
        %2188 = vst [vmem:[#allocation3 + $0xa8] sm:$0xff] %v2156
        %2189 = vst [vmem:[#allocation3 + $0xf0] sm:$0xff] %v2157
        %2190 = vst [vmem:[#allocation3 + $0x138] sm:$0xff] %v2158
        %2191 = vst [vmem:[#allocation3 + $0x180] sm:$0xff] %v2159
        %2192 = vst [vmem:[#allocation3 + $0x1c8] sm:$0xff] %v2160
        %2193 = vst [vmem:[#allocation3 + $0x210] sm:$0xff] %v2161
        %2194 = vst [vmem:[#allocation3 + $0x258] sm:$0xff] %v2162
        %2195 = vst [vmem:[#allocation3 + $0x2a0] sm:$0xff] %v2163
        %2196 = vst [vmem:[#allocation3 + $0x2e8] sm:$0xff] %v2164
        %2197 = vst [vmem:[#allocation3 + $0x330] sm:$0xff] %v2165
        %2198 = vst [vmem:[#allocation3 + $0x378] sm:$0xff] %v2166
        %2199 = vst [vmem:[#allocation3 + $0x3c0] sm:$0xff] %v2167
        %2200 = vst [vmem:[#allocation3 + $0x408] sm:$0xff] %v2168
        %2201 = vst [vmem:[#allocation3 + $0x450] sm:$0xff] %v2169
        %v2202 = vld [vmem:[%s993] sm:$0xf]
        %v2203 = vld [vmem:[%s993 + $0x4] sm:$0xf]
        %v2204 = vld [vmem:[%s993 + $0x8] sm:$0x1]
        %v2205 = vld [vmem:[%s993 + $0xc] sm:$0xf]
        %v2206 = vld [vmem:[%s993 + $0x10] sm:$0xf]
        %v2207 = vld [vmem:[%s993 + $0x14] sm:$0x1]
        %v2208 = vld [vmem:[%s993 + $0x18] sm:$0xf]
        %v2209 = vld [vmem:[%s993 + $0x1c] sm:$0xf]
        %v2210 = vld [vmem:[%s993 + $0x20] sm:$0x1]
        %v2211 = vld [vmem:[%s993 + $0x24] sm:$0xf]
        %v2212 = vld [vmem:[%s993 + $0x28] sm:$0xf]
        %v2213 = vld [vmem:[%s993 + $0x2c] sm:$0x1]
        %v2214 = vld [vmem:[%s993 + $0x30] sm:$0xf]
        %v2215 = vld [vmem:[%s993 + $0x34] sm:$0xf]
        %v2216 = vld [vmem:[%s993 + $0x38] sm:$0x1]
        %v2217 = vld [vmem:[%s993 + $0x3c] sm:$0xf]
        %v2218 = vld [vmem:[%s993 + $0x40] sm:$0xf]
        %v2219 = vld [vmem:[%s993 + $0x44] sm:$0x1]
        %v2220 = vld [vmem:[%s993 + $0x48] sm:$0xf]
        %v2221 = vld [vmem:[%s993 + $0x4c] sm:$0xf]
        %v2222 = vld [vmem:[%s993 + $0x50] sm:$0x1]
        %v2223 = vld [vmem:[%s993 + $0x54] sm:$0xf]
        %v2224 = vld [vmem:[%s993 + $0x58] sm:$0xf]
        %v2225 = vld [vmem:[%s993 + $0x5c] sm:$0x1]
        %v2226 = vld [vmem:[%s993 + $0x60] sm:$0xf]
        %v2227 = vld [vmem:[%s993 + $0x64] sm:$0xf]
        %v2228 = vld [vmem:[%s993 + $0x68] sm:$0x1]
        %v2229 = vld [vmem:[%s993 + $0x6c] sm:$0xf]
        %v2230 = vld [vmem:[%s993 + $0x70] sm:$0xf]
        %v2231 = vld [vmem:[%s993 + $0x74] sm:$0x1]
        %v2232 = vld [vmem:[%s993 + $0x78] sm:$0xf]
        %v2233 = vld [vmem:[%s993 + $0x7c] sm:$0xf]
        %v2234 = vld [vmem:[%s993 + $0x80] sm:$0x1]
        %v2235 = vld [vmem:[%s993 + $0x84] sm:$0xf]
        %v2236 = vld [vmem:[%s993 + $0x88] sm:$0xf]
        %v2237 = vld [vmem:[%s993 + $0x8c] sm:$0x1]
        %v2238 = vld [vmem:[%s993 + $0x90] sm:$0xf]
        %v2239 = vld [vmem:[%s993 + $0x94] sm:$0xf]
        %v2240 = vld [vmem:[%s993 + $0x98] sm:$0x1]
        %v2241 = vld [vmem:[%s993 + $0x9c] sm:$0xf]
        %v2242 = vld [vmem:[%s993 + $0xa0] sm:$0xf]
        %v2243 = vld [vmem:[%s993 + $0xa4] sm:$0x1]
        %v2244 = vld [vmem:[%s993 + $0xa8] sm:$0xf]
        %v2245 = vld [vmem:[%s993 + $0xac] sm:$0xf]
        %v2246 = vld [vmem:[%s993 + $0xb0] sm:$0x1]
        %v2247 = vld [vmem:[%s993 + $0xb4] sm:$0xf]
        %v2248 = vld [vmem:[%s993 + $0xb8] sm:$0xf]
        %v2249 = vld [vmem:[%s993 + $0xbc] sm:$0x1]
        %v2251 = vshrl.u32 %v2202, 16
        %v2253 = vrot.slane %v2251, 4
        %v2254 = vshll.u32 %v2202, 16
        %v2256 = vrot.slane %v2254, 5
        %v2257 = vor.u32 %v2253, %v2256
        %v2258 = vrot.slane %v2257, 4
        %v2260 = vshll.u32 %v2203, 16
        %v2262 = vrot.slane %v2260, 5
        %v2263 = vsel %vm1302, %v2258, %v2262
        %v2264 = vshrl.u32 %v2203, 16
        %v2266 = vrot.slane %v2264, 4
        %v2267 = vor.u32 %v2266, %v2262
        %v2268 = vrot.slane %v2267, 4
        %v2270 = vshll.u32 %v2204, 16
        %v2272 = vrot.slane %v2270, 5
        %v2273 = vsel %vm1302, %v2268, %v2272
        %v2275 = vshrl.u32 %v2205, 16
        %v2277 = vrot.slane %v2275, 4
        %v2278 = vshll.u32 %v2205, 16
        %v2280 = vrot.slane %v2278, 5
        %v2281 = vor.u32 %v2277, %v2280
        %v2282 = vrot.slane %v2281, 4
        %v2284 = vshll.u32 %v2206, 16
        %v2286 = vrot.slane %v2284, 5
        %v2287 = vsel %vm1302, %v2282, %v2286
        %v2288 = vshrl.u32 %v2206, 16
        %v2290 = vrot.slane %v2288, 4
        %v2291 = vor.u32 %v2290, %v2286
        %v2292 = vrot.slane %v2291, 4
        %v2294 = vshll.u32 %v2207, 16
        %v2296 = vrot.slane %v2294, 5
        %v2297 = vsel %vm1302, %v2292, %v2296
        %v2299 = vshrl.u32 %v2208, 16
        %v2301 = vrot.slane %v2299, 4
        %v2302 = vshll.u32 %v2208, 16
        %v2304 = vrot.slane %v2302, 5
        %v2305 = vor.u32 %v2301, %v2304
        %v2306 = vrot.slane %v2305, 4
        %v2308 = vshll.u32 %v2209, 16
        %v2310 = vrot.slane %v2308, 5
        %v2311 = vsel %vm1302, %v2306, %v2310
        %v2312 = vshrl.u32 %v2209, 16
        %v2314 = vrot.slane %v2312, 4
        %v2315 = vor.u32 %v2314, %v2310
        %v2316 = vrot.slane %v2315, 4
        %v2318 = vshll.u32 %v2210, 16
        %v2320 = vrot.slane %v2318, 5
        %v2321 = vsel %vm1302, %v2316, %v2320
        %v2323 = vshrl.u32 %v2211, 16
        %v2325 = vrot.slane %v2323, 4
        %v2326 = vshll.u32 %v2211, 16
        %v2328 = vrot.slane %v2326, 5
        %v2329 = vor.u32 %v2325, %v2328
        %v2330 = vrot.slane %v2329, 4
        %v2332 = vshll.u32 %v2212, 16
        %v2334 = vrot.slane %v2332, 5
        %v2335 = vsel %vm1302, %v2330, %v2334
        %v2336 = vshrl.u32 %v2212, 16
        %v2338 = vrot.slane %v2336, 4
        %v2339 = vor.u32 %v2338, %v2334
        %v2340 = vrot.slane %v2339, 4
        %v2342 = vshll.u32 %v2213, 16
        %v2344 = vrot.slane %v2342, 5
        %v2345 = vsel %vm1302, %v2340, %v2344
        %v2347 = vshrl.u32 %v2214, 16
        %v2349 = vrot.slane %v2347, 4
        %v2350 = vshll.u32 %v2214, 16
        %v2352 = vrot.slane %v2350, 5
        %v2353 = vor.u32 %v2349, %v2352
        %v2354 = vrot.slane %v2353, 4
        %v2356 = vshll.u32 %v2215, 16
        %v2358 = vrot.slane %v2356, 5
        %v2359 = vsel %vm1302, %v2354, %v2358
        %v2360 = vshrl.u32 %v2215, 16
        %v2362 = vrot.slane %v2360, 4
        %v2363 = vor.u32 %v2362, %v2358
        %v2364 = vrot.slane %v2363, 4
        %v2366 = vshll.u32 %v2216, 16
        %v2368 = vrot.slane %v2366, 5
        %v2369 = vsel %vm1302, %v2364, %v2368
        %v2371 = vshrl.u32 %v2217, 16
        %v2373 = vrot.slane %v2371, 4
        %v2374 = vshll.u32 %v2217, 16
        %v2376 = vrot.slane %v2374, 5
        %v2377 = vor.u32 %v2373, %v2376
        %v2378 = vrot.slane %v2377, 4
        %v2380 = vshll.u32 %v2218, 16
        %v2382 = vrot.slane %v2380, 5
        %v2383 = vsel %vm1302, %v2378, %v2382
        %v2384 = vshrl.u32 %v2218, 16
        %v2386 = vrot.slane %v2384, 4
        %v2387 = vor.u32 %v2386, %v2382
        %v2388 = vrot.slane %v2387, 4
        %v2390 = vshll.u32 %v2219, 16
        %v2392 = vrot.slane %v2390, 5
        %v2393 = vsel %vm1302, %v2388, %v2392
        %v2395 = vshrl.u32 %v2220, 16
        %v2397 = vrot.slane %v2395, 4
        %v2398 = vshll.u32 %v2220, 16
        %v2400 = vrot.slane %v2398, 5
        %v2401 = vor.u32 %v2397, %v2400
        %v2402 = vrot.slane %v2401, 4
        %v2404 = vshll.u32 %v2221, 16
        %v2406 = vrot.slane %v2404, 5
        %v2407 = vsel %vm1302, %v2402, %v2406
        %v2408 = vshrl.u32 %v2221, 16
        %v2410 = vrot.slane %v2408, 4
        %v2411 = vor.u32 %v2410, %v2406
        %v2412 = vrot.slane %v2411, 4
        %v2414 = vshll.u32 %v2222, 16
        %v2416 = vrot.slane %v2414, 5
        %v2417 = vsel %vm1302, %v2412, %v2416
        %v2419 = vshrl.u32 %v2223, 16
        %v2421 = vrot.slane %v2419, 4
        %v2422 = vshll.u32 %v2223, 16
        %v2424 = vrot.slane %v2422, 5
        %v2425 = vor.u32 %v2421, %v2424
        %v2426 = vrot.slane %v2425, 4
        %v2428 = vshll.u32 %v2224, 16
        %v2430 = vrot.slane %v2428, 5
        %v2431 = vsel %vm1302, %v2426, %v2430
        %v2432 = vshrl.u32 %v2224, 16
        %v2434 = vrot.slane %v2432, 4
        %v2435 = vor.u32 %v2434, %v2430
        %v2436 = vrot.slane %v2435, 4
        %v2438 = vshll.u32 %v2225, 16
        %v2440 = vrot.slane %v2438, 5
        %v2441 = vsel %vm1302, %v2436, %v2440
        %v2443 = vshrl.u32 %v2226, 16
        %v2445 = vrot.slane %v2443, 4
        %v2446 = vshll.u32 %v2226, 16
        %v2448 = vrot.slane %v2446, 5
        %v2449 = vor.u32 %v2445, %v2448
        %v2450 = vrot.slane %v2449, 4
        %v2452 = vshll.u32 %v2227, 16
        %v2454 = vrot.slane %v2452, 5
        %v2455 = vsel %vm1302, %v2450, %v2454
        %v2456 = vshrl.u32 %v2227, 16
        %v2458 = vrot.slane %v2456, 4
        %v2459 = vor.u32 %v2458, %v2454
        %v2460 = vrot.slane %v2459, 4
        %v2462 = vshll.u32 %v2228, 16
        %v2464 = vrot.slane %v2462, 5
        %v2465 = vsel %vm1302, %v2460, %v2464
        %v2467 = vshrl.u32 %v2229, 16
        %v2469 = vrot.slane %v2467, 4
        %v2470 = vshll.u32 %v2229, 16
        %v2472 = vrot.slane %v2470, 5
        %v2473 = vor.u32 %v2469, %v2472
        %v2474 = vrot.slane %v2473, 4
        %v2476 = vshll.u32 %v2230, 16
        %v2478 = vrot.slane %v2476, 5
        %v2479 = vsel %vm1302, %v2474, %v2478
        %v2480 = vshrl.u32 %v2230, 16
        %v2482 = vrot.slane %v2480, 4
        %v2483 = vor.u32 %v2482, %v2478
        %v2484 = vrot.slane %v2483, 4
        %v2486 = vshll.u32 %v2231, 16
        %v2488 = vrot.slane %v2486, 5
        %v2489 = vsel %vm1302, %v2484, %v2488
        %v2491 = vshrl.u32 %v2232, 16
        %v2493 = vrot.slane %v2491, 4
        %v2494 = vshll.u32 %v2232, 16
        %v2496 = vrot.slane %v2494, 5
        %v2497 = vor.u32 %v2493, %v2496
        %v2498 = vrot.slane %v2497, 4
        %v2500 = vshll.u32 %v2233, 16
        %v2502 = vrot.slane %v2500, 5
        %v2503 = vsel %vm1302, %v2498, %v2502
        %v2504 = vshrl.u32 %v2233, 16
        %v2506 = vrot.slane %v2504, 4
        %v2507 = vor.u32 %v2506, %v2502
        %v2508 = vrot.slane %v2507, 4
        %v2510 = vshll.u32 %v2234, 16
        %v2512 = vrot.slane %v2510, 5
        %v2513 = vsel %vm1302, %v2508, %v2512
        %v2515 = vshrl.u32 %v2235, 16
        %v2517 = vrot.slane %v2515, 4
        %v2518 = vshll.u32 %v2235, 16
        %v2520 = vrot.slane %v2518, 5
        %v2521 = vor.u32 %v2517, %v2520
        %v2522 = vrot.slane %v2521, 4
        %v2524 = vshll.u32 %v2236, 16
        %v2526 = vrot.slane %v2524, 5
        %v2527 = vsel %vm1302, %v2522, %v2526
        %v2528 = vshrl.u32 %v2236, 16
        %v2530 = vrot.slane %v2528, 4
        %v2531 = vor.u32 %v2530, %v2526
        %v2532 = vrot.slane %v2531, 4
        %v2534 = vshll.u32 %v2237, 16
        %v2536 = vrot.slane %v2534, 5
        %v2537 = vsel %vm1302, %v2532, %v2536
        %v2539 = vshrl.u32 %v2238, 16
        %v2541 = vrot.slane %v2539, 4
        %v2542 = vshll.u32 %v2238, 16
        %v2544 = vrot.slane %v2542, 5
        %v2545 = vor.u32 %v2541, %v2544
        %v2546 = vrot.slane %v2545, 4
        %v2548 = vshll.u32 %v2239, 16
        %v2550 = vrot.slane %v2548, 5
        %v2551 = vsel %vm1302, %v2546, %v2550
        %v2552 = vshrl.u32 %v2239, 16
        %v2554 = vrot.slane %v2552, 4
        %v2555 = vor.u32 %v2554, %v2550
        %v2556 = vrot.slane %v2555, 4
        %v2558 = vshll.u32 %v2240, 16
        %v2560 = vrot.slane %v2558, 5
        %v2561 = vsel %vm1302, %v2556, %v2560
        %v2563 = vshrl.u32 %v2241, 16
        %v2565 = vrot.slane %v2563, 4
        %v2566 = vshll.u32 %v2241, 16
        %v2568 = vrot.slane %v2566, 5
        %v2569 = vor.u32 %v2565, %v2568
        %v2570 = vrot.slane %v2569, 4
        %v2572 = vshll.u32 %v2242, 16
        %v2574 = vrot.slane %v2572, 5
        %v2575 = vsel %vm1302, %v2570, %v2574
        %v2576 = vshrl.u32 %v2242, 16
        %v2578 = vrot.slane %v2576, 4
        %v2579 = vor.u32 %v2578, %v2574
        %v2580 = vrot.slane %v2579, 4
        %v2582 = vshll.u32 %v2243, 16
        %v2584 = vrot.slane %v2582, 5
        %v2585 = vsel %vm1302, %v2580, %v2584
        %v2587 = vshrl.u32 %v2244, 16
        %v2589 = vrot.slane %v2587, 4
        %v2590 = vshll.u32 %v2244, 16
        %v2592 = vrot.slane %v2590, 5
        %v2593 = vor.u32 %v2589, %v2592
        %v2594 = vrot.slane %v2593, 4
        %v2596 = vshll.u32 %v2245, 16
        %v2598 = vrot.slane %v2596, 5
        %v2599 = vsel %vm1302, %v2594, %v2598
        %v2600 = vshrl.u32 %v2245, 16
        %v2602 = vrot.slane %v2600, 4
        %v2603 = vor.u32 %v2602, %v2598
        %v2604 = vrot.slane %v2603, 4
        %v2606 = vshll.u32 %v2246, 16
        %v2608 = vrot.slane %v2606, 5
        %v2609 = vsel %vm1302, %v2604, %v2608
        %v2611 = vshrl.u32 %v2247, 16
        %v2613 = vrot.slane %v2611, 4
        %v2614 = vshll.u32 %v2247, 16
        %v2616 = vrot.slane %v2614, 5
        %v2617 = vor.u32 %v2613, %v2616
        %v2618 = vrot.slane %v2617, 4
        %v2620 = vshll.u32 %v2248, 16
        %v2622 = vrot.slane %v2620, 5
        %v2623 = vsel %vm1302, %v2618, %v2622
        %v2624 = vshrl.u32 %v2248, 16
        %v2626 = vrot.slane %v2624, 4
        %v2627 = vor.u32 %v2626, %v2622
        %v2628 = vrot.slane %v2627, 4
        %v2630 = vshll.u32 %v2249, 16
        %v2632 = vrot.slane %v2630, 5
        %v2633 = vsel %vm1302, %v2628, %v2632
        %v2634 = vunpack.c.l.b16 %v2263
        %v2635 = vunpack.c.l.b16 %v2273
        %v2636 = vunpack.c.l.b16 %v2287
        %v2637 = vunpack.c.l.b16 %v2297
        %v2638 = vunpack.c.l.b16 %v2311
        %v2639 = vunpack.c.l.b16 %v2321
        %v2640 = vunpack.c.l.b16 %v2335
        %v2641 = vunpack.c.l.b16 %v2345
        %v2642 = vunpack.c.l.b16 %v2359
        %v2643 = vunpack.c.l.b16 %v2369
        %v2644 = vunpack.c.l.b16 %v2383
        %v2645 = vunpack.c.l.b16 %v2393
        %v2646 = vunpack.c.l.b16 %v2407
        %v2647 = vunpack.c.l.b16 %v2417
        %v2648 = vunpack.c.l.b16 %v2431
        %v2649 = vunpack.c.l.b16 %v2441
        %v2650 = vunpack.c.l.b16 %v2455
        %v2651 = vunpack.c.l.b16 %v2465
        %v2652 = vunpack.c.l.b16 %v2479
        %v2653 = vunpack.c.l.b16 %v2489
        %v2654 = vunpack.c.l.b16 %v2503
        %v2655 = vunpack.c.l.b16 %v2513
        %v2656 = vunpack.c.l.b16 %v2527
        %v2657 = vunpack.c.l.b16 %v2537
        %v2658 = vunpack.c.l.b16 %v2551
        %v2659 = vunpack.c.l.b16 %v2561
        %v2660 = vunpack.c.l.b16 %v2575
        %v2661 = vunpack.c.l.b16 %v2585
        %v2662 = vunpack.c.l.b16 %v2599
        %v2663 = vunpack.c.l.b16 %v2609
        %v2664 = vunpack.c.l.b16 %v2623
        %v2665 = vunpack.c.l.b16 %v2633
        %v2666 = vpack.c.b16 %v2635, %v2634
        %v2667 = vpack.c.b16 %v2637, %v2636
        %v2668 = vpack.c.b16 %v2639, %v2638
        %v2669 = vpack.c.b16 %v2641, %v2640
        %v2670 = vpack.c.b16 %v2643, %v2642
        %v2671 = vpack.c.b16 %v2645, %v2644
        %v2672 = vpack.c.b16 %v2647, %v2646
        %v2673 = vpack.c.b16 %v2649, %v2648
        %v2674 = vpack.c.b16 %v2651, %v2650
        %v2675 = vpack.c.b16 %v2653, %v2652
        %v2676 = vpack.c.b16 %v2655, %v2654
        %v2677 = vpack.c.b16 %v2657, %v2656
        %v2678 = vpack.c.b16 %v2659, %v2658
        %v2679 = vpack.c.b16 %v2661, %v2660
        %v2680 = vpack.c.b16 %v2663, %v2662
        %v2681 = vpack.c.b16 %v2665, %v2664
        %2698 = vst [vmem:[#allocation3 + $0x20] sm:$0xff] %v2666
        %2699 = vst [vmem:[#allocation3 + $0x68] sm:$0xff] %v2667
        %2700 = vst [vmem:[#allocation3 + $0xb0] sm:$0xff] %v2668
        %2701 = vst [vmem:[#allocation3 + $0xf8] sm:$0xff] %v2669
        %2702 = vst [vmem:[#allocation3 + $0x140] sm:$0xff] %v2670
        %2703 = vst [vmem:[#allocation3 + $0x188] sm:$0xff] %v2671
        %2704 = vst [vmem:[#allocation3 + $0x1d0] sm:$0xff] %v2672
        %2705 = vst [vmem:[#allocation3 + $0x218] sm:$0xff] %v2673
        %2706 = vst [vmem:[#allocation3 + $0x260] sm:$0xff] %v2674
        %2707 = vst [vmem:[#allocation3 + $0x2a8] sm:$0xff] %v2675
        %2708 = vst [vmem:[#allocation3 + $0x2f0] sm:$0xff] %v2676
        %2709 = vst [vmem:[#allocation3 + $0x338] sm:$0xff] %v2677
        %2710 = vst [vmem:[#allocation3 + $0x380] sm:$0xff] %v2678
        %2711 = vst [vmem:[#allocation3 + $0x3c8] sm:$0xff] %v2679
        %2712 = vst [vmem:[#allocation3 + $0x410] sm:$0xff] %v2680
        %2713 = vst [vmem:[#allocation3 + $0x458] sm:$0xff] %v2681
        %v2714 = vld [vmem:[%s993] sm:$0xe]
        %v2715 = vld [vmem:[%s993 + $0x4] sm:$0xf]
        %v2716 = vld [vmem:[%s993 + $0x8] sm:$0x1]
        %v2717 = vld [vmem:[%s993 + $0xc] sm:$0xe]
        %v2718 = vld [vmem:[%s993 + $0x10] sm:$0xf]
        %v2719 = vld [vmem:[%s993 + $0x14] sm:$0x1]
        %v2720 = vld [vmem:[%s993 + $0x18] sm:$0xe]
        %v2721 = vld [vmem:[%s993 + $0x1c] sm:$0xf]
        %v2722 = vld [vmem:[%s993 + $0x20] sm:$0x1]
        %v2723 = vld [vmem:[%s993 + $0x24] sm:$0xe]
        %v2724 = vld [vmem:[%s993 + $0x28] sm:$0xf]
        %v2725 = vld [vmem:[%s993 + $0x2c] sm:$0x1]
        %v2726 = vld [vmem:[%s993 + $0x30] sm:$0xe]
        %v2727 = vld [vmem:[%s993 + $0x34] sm:$0xf]
        %v2728 = vld [vmem:[%s993 + $0x38] sm:$0x1]
        %v2729 = vld [vmem:[%s993 + $0x3c] sm:$0xe]
        %v2730 = vld [vmem:[%s993 + $0x40] sm:$0xf]
        %v2731 = vld [vmem:[%s993 + $0x44] sm:$0x1]
        %v2732 = vld [vmem:[%s993 + $0x48] sm:$0xe]
        %v2733 = vld [vmem:[%s993 + $0x4c] sm:$0xf]
        %v2734 = vld [vmem:[%s993 + $0x50] sm:$0x1]
        %v2735 = vld [vmem:[%s993 + $0x54] sm:$0xe]
        %v2736 = vld [vmem:[%s993 + $0x58] sm:$0xf]
        %v2737 = vld [vmem:[%s993 + $0x5c] sm:$0x1]
        %v2738 = vld [vmem:[%s993 + $0x60] sm:$0xe]
        %v2739 = vld [vmem:[%s993 + $0x64] sm:$0xf]
        %v2740 = vld [vmem:[%s993 + $0x68] sm:$0x1]
        %v2741 = vld [vmem:[%s993 + $0x6c] sm:$0xe]
        %v2742 = vld [vmem:[%s993 + $0x70] sm:$0xf]
        %v2743 = vld [vmem:[%s993 + $0x74] sm:$0x1]
        %v2744 = vld [vmem:[%s993 + $0x78] sm:$0xe]
        %v2745 = vld [vmem:[%s993 + $0x7c] sm:$0xf]
        %v2746 = vld [vmem:[%s993 + $0x80] sm:$0x1]
        %v2747 = vld [vmem:[%s993 + $0x84] sm:$0xe]
        %v2748 = vld [vmem:[%s993 + $0x88] sm:$0xf]
        %v2749 = vld [vmem:[%s993 + $0x8c] sm:$0x1]
        %v2750 = vld [vmem:[%s993 + $0x90] sm:$0xe]
        %v2751 = vld [vmem:[%s993 + $0x94] sm:$0xf]
        %v2752 = vld [vmem:[%s993 + $0x98] sm:$0x1]
        %v2753 = vld [vmem:[%s993 + $0x9c] sm:$0xe]
        %v2754 = vld [vmem:[%s993 + $0xa0] sm:$0xf]
        %v2755 = vld [vmem:[%s993 + $0xa4] sm:$0x1]
        %v2756 = vld [vmem:[%s993 + $0xa8] sm:$0xe]
        %v2757 = vld [vmem:[%s993 + $0xac] sm:$0xf]
        %v2758 = vld [vmem:[%s993 + $0xb0] sm:$0x1]
        %v2759 = vld [vmem:[%s993 + $0xb4] sm:$0xe]
        %v2760 = vld [vmem:[%s993 + $0xb8] sm:$0xf]
        %v2761 = vld [vmem:[%s993 + $0xbc] sm:$0x1]
        %v2810 = vrot.slane %v2714, 5
        %v2811 = vrot.slane %v2810, 4
        %v2812 = vrot.slane %v2715, 5
        %v2813 = vsel %vm1865, %v2811, %v2812
        %v2814 = vrot.slane %v2812, 4
        %v2815 = vrot.slane %v2716, 5
        %v2816 = vsel %vm1865, %v2814, %v2815
        %v2817 = vrot.slane %v2717, 5
        %v2818 = vrot.slane %v2817, 4
        %v2819 = vrot.slane %v2718, 5
        %v2820 = vsel %vm1865, %v2818, %v2819
        %v2821 = vrot.slane %v2819, 4
        %v2822 = vrot.slane %v2719, 5
        %v2823 = vsel %vm1865, %v2821, %v2822
        %v2824 = vrot.slane %v2720, 5
        %v2825 = vrot.slane %v2824, 4
        %v2826 = vrot.slane %v2721, 5
        %v2827 = vsel %vm1865, %v2825, %v2826
        %v2828 = vrot.slane %v2826, 4
        %v2829 = vrot.slane %v2722, 5
        %v2830 = vsel %vm1865, %v2828, %v2829
        %v2831 = vrot.slane %v2723, 5
        %v2832 = vrot.slane %v2831, 4
        %v2833 = vrot.slane %v2724, 5
        %v2834 = vsel %vm1865, %v2832, %v2833
        %v2835 = vrot.slane %v2833, 4
        %v2836 = vrot.slane %v2725, 5
        %v2837 = vsel %vm1865, %v2835, %v2836
        %v2838 = vrot.slane %v2726, 5
        %v2839 = vrot.slane %v2838, 4
        %v2840 = vrot.slane %v2727, 5
        %v2841 = vsel %vm1865, %v2839, %v2840
        %v2842 = vrot.slane %v2840, 4
        %v2843 = vrot.slane %v2728, 5
        %v2844 = vsel %vm1865, %v2842, %v2843
        %v2845 = vrot.slane %v2729, 5
        %v2846 = vrot.slane %v2845, 4
        %v2847 = vrot.slane %v2730, 5
        %v2848 = vsel %vm1865, %v2846, %v2847
        %v2849 = vrot.slane %v2847, 4
        %v2850 = vrot.slane %v2731, 5
        %v2851 = vsel %vm1865, %v2849, %v2850
        %v2852 = vrot.slane %v2732, 5
        %v2853 = vrot.slane %v2852, 4
        %v2854 = vrot.slane %v2733, 5
        %v2855 = vsel %vm1865, %v2853, %v2854
        %v2856 = vrot.slane %v2854, 4
        %v2857 = vrot.slane %v2734, 5
        %v2858 = vsel %vm1865, %v2856, %v2857
        %v2859 = vrot.slane %v2735, 5
        %v2860 = vrot.slane %v2859, 4
        %v2861 = vrot.slane %v2736, 5
        %v2862 = vsel %vm1865, %v2860, %v2861
        %v2863 = vrot.slane %v2861, 4
        %v2864 = vrot.slane %v2737, 5
        %v2865 = vsel %vm1865, %v2863, %v2864
        %v2866 = vrot.slane %v2738, 5
        %v2867 = vrot.slane %v2866, 4
        %v2868 = vrot.slane %v2739, 5
        %v2869 = vsel %vm1865, %v2867, %v2868
        %v2870 = vrot.slane %v2868, 4
        %v2871 = vrot.slane %v2740, 5
        %v2872 = vsel %vm1865, %v2870, %v2871
        %v2873 = vrot.slane %v2741, 5
        %v2874 = vrot.slane %v2873, 4
        %v2875 = vrot.slane %v2742, 5
        %v2876 = vsel %vm1865, %v2874, %v2875
        %v2877 = vrot.slane %v2875, 4
        %v2878 = vrot.slane %v2743, 5
        %v2879 = vsel %vm1865, %v2877, %v2878
        %v2880 = vrot.slane %v2744, 5
        %v2881 = vrot.slane %v2880, 4
        %v2882 = vrot.slane %v2745, 5
        %v2883 = vsel %vm1865, %v2881, %v2882
        %v2884 = vrot.slane %v2882, 4
        %v2885 = vrot.slane %v2746, 5
        %v2886 = vsel %vm1865, %v2884, %v2885
        %v2887 = vrot.slane %v2747, 5
        %v2888 = vrot.slane %v2887, 4
        %v2889 = vrot.slane %v2748, 5
        %v2890 = vsel %vm1865, %v2888, %v2889
        %v2891 = vrot.slane %v2889, 4
        %v2892 = vrot.slane %v2749, 5
        %v2893 = vsel %vm1865, %v2891, %v2892
        %v2894 = vrot.slane %v2750, 5
        %v2895 = vrot.slane %v2894, 4
        %v2896 = vrot.slane %v2751, 5
        %v2897 = vsel %vm1865, %v2895, %v2896
        %v2898 = vrot.slane %v2896, 4
        %v2899 = vrot.slane %v2752, 5
        %v2900 = vsel %vm1865, %v2898, %v2899
        %v2901 = vrot.slane %v2753, 5
        %v2902 = vrot.slane %v2901, 4
        %v2903 = vrot.slane %v2754, 5
        %v2904 = vsel %vm1865, %v2902, %v2903
        %v2905 = vrot.slane %v2903, 4
        %v2906 = vrot.slane %v2755, 5
        %v2907 = vsel %vm1865, %v2905, %v2906
        %v2908 = vrot.slane %v2756, 5
        %v2909 = vrot.slane %v2908, 4
        %v2910 = vrot.slane %v2757, 5
        %v2911 = vsel %vm1865, %v2909, %v2910
        %v2912 = vrot.slane %v2910, 4
        %v2913 = vrot.slane %v2758, 5
        %v2914 = vsel %vm1865, %v2912, %v2913
        %v2915 = vrot.slane %v2759, 5
        %v2916 = vrot.slane %v2915, 4
        %v2917 = vrot.slane %v2760, 5
        %v2918 = vsel %vm1865, %v2916, %v2917
        %v2919 = vrot.slane %v2917, 4
        %v2920 = vrot.slane %v2761, 5
        %v2921 = vsel %vm1865, %v2919, %v2920
        %v2922 = vunpack.c.l.b16 %v2813
        %v2923 = vunpack.c.l.b16 %v2816
        %v2924 = vunpack.c.l.b16 %v2820
        %v2925 = vunpack.c.l.b16 %v2823
        %v2926 = vunpack.c.l.b16 %v2827
        %v2927 = vunpack.c.l.b16 %v2830
        %v2928 = vunpack.c.l.b16 %v2834
        %v2929 = vunpack.c.l.b16 %v2837
        %v2930 = vunpack.c.l.b16 %v2841
        %v2931 = vunpack.c.l.b16 %v2844
        %v2932 = vunpack.c.l.b16 %v2848
        %v2933 = vunpack.c.l.b16 %v2851
        %v2934 = vunpack.c.l.b16 %v2855
        %v2935 = vunpack.c.l.b16 %v2858
        %v2936 = vunpack.c.l.b16 %v2862
        %v2937 = vunpack.c.l.b16 %v2865
        %v2938 = vunpack.c.l.b16 %v2869
        %v2939 = vunpack.c.l.b16 %v2872
        %v2940 = vunpack.c.l.b16 %v2876
        %v2941 = vunpack.c.l.b16 %v2879
        %v2942 = vunpack.c.l.b16 %v2883
        %v2943 = vunpack.c.l.b16 %v2886
        %v2944 = vunpack.c.l.b16 %v2890
        %v2945 = vunpack.c.l.b16 %v2893
        %v2946 = vunpack.c.l.b16 %v2897
        %v2947 = vunpack.c.l.b16 %v2900
        %v2948 = vunpack.c.l.b16 %v2904
        %v2949 = vunpack.c.l.b16 %v2907
        %v2950 = vunpack.c.l.b16 %v2911
        %v2951 = vunpack.c.l.b16 %v2914
        %v2952 = vunpack.c.l.b16 %v2918
        %v2953 = vunpack.c.l.b16 %v2921
        %v2954 = vpack.c.b16 %v2923, %v2922
        %v2955 = vpack.c.b16 %v2925, %v2924
        %v2956 = vpack.c.b16 %v2927, %v2926
        %v2957 = vpack.c.b16 %v2929, %v2928
        %v2958 = vpack.c.b16 %v2931, %v2930
        %v2959 = vpack.c.b16 %v2933, %v2932
        %v2960 = vpack.c.b16 %v2935, %v2934
        %v2961 = vpack.c.b16 %v2937, %v2936
        %v2962 = vpack.c.b16 %v2939, %v2938
        %v2963 = vpack.c.b16 %v2941, %v2940
        %v2964 = vpack.c.b16 %v2943, %v2942
        %v2965 = vpack.c.b16 %v2945, %v2944
        %v2966 = vpack.c.b16 %v2947, %v2946
        %v2967 = vpack.c.b16 %v2949, %v2948
        %v2968 = vpack.c.b16 %v2951, %v2950
        %v2969 = vpack.c.b16 %v2953, %v2952
        %2986 = vst [vmem:[#allocation3 + $0x28] sm:$0xff] %v2954
        %2987 = vst [vmem:[#allocation3 + $0x70] sm:$0xff] %v2955
        %2988 = vst [vmem:[#allocation3 + $0xb8] sm:$0xff] %v2956
        %2989 = vst [vmem:[#allocation3 + $0x100] sm:$0xff] %v2957
        %2990 = vst [vmem:[#allocation3 + $0x148] sm:$0xff] %v2958
        %2991 = vst [vmem:[#allocation3 + $0x190] sm:$0xff] %v2959
        %2992 = vst [vmem:[#allocation3 + $0x1d8] sm:$0xff] %v2960
        %2993 = vst [vmem:[#allocation3 + $0x220] sm:$0xff] %v2961
        %2994 = vst [vmem:[#allocation3 + $0x268] sm:$0xff] %v2962
        %2995 = vst [vmem:[#allocation3 + $0x2b0] sm:$0xff] %v2963
        %2996 = vst [vmem:[#allocation3 + $0x2f8] sm:$0xff] %v2964
        %2997 = vst [vmem:[#allocation3 + $0x340] sm:$0xff] %v2965
        %2998 = vst [vmem:[#allocation3 + $0x388] sm:$0xff] %v2966
        %2999 = vst [vmem:[#allocation3 + $0x3d0] sm:$0xff] %v2967
        %3000 = vst [vmem:[#allocation3 + $0x418] sm:$0xff] %v2968
        %3001 = vst [vmem:[#allocation3 + $0x460] sm:$0xff] %v2969
        %s3002 = scalar_lea.vmem [#allocation2], 24
        %v3003 = vld [vmem:[%s3002] sm:$0xf]
        %v3004 = vld [vmem:[%s3002 + $0x4] sm:$0xf]
        %v3005 = vld [vmem:[%s3002 + $0xc] sm:$0xf]
        %v3006 = vld [vmem:[%s3002 + $0x10] sm:$0xf]
        %v3007 = vld [vmem:[%s3002 + $0x18] sm:$0xf]
        %v3008 = vld [vmem:[%s3002 + $0x1c] sm:$0xf]
        %v3009 = vld [vmem:[%s3002 + $0x24] sm:$0xf]
        %v3010 = vld [vmem:[%s3002 + $0x28] sm:$0xf]
        %v3011 = vld [vmem:[%s3002 + $0x30] sm:$0xf]
        %v3012 = vld [vmem:[%s3002 + $0x34] sm:$0xf]
        %v3013 = vld [vmem:[%s3002 + $0x3c] sm:$0xf]
        %v3014 = vld [vmem:[%s3002 + $0x40] sm:$0xf]
        %v3015 = vld [vmem:[%s3002 + $0x48] sm:$0xf]
        %v3016 = vld [vmem:[%s3002 + $0x4c] sm:$0xf]
        %v3017 = vld [vmem:[%s3002 + $0x54] sm:$0xf]
        %v3018 = vld [vmem:[%s3002 + $0x58] sm:$0xf]
        %v3019 = vld [vmem:[%s3002 + $0x60] sm:$0xf]
        %v3020 = vld [vmem:[%s3002 + $0x64] sm:$0xf]
        %v3021 = vld [vmem:[%s3002 + $0x6c] sm:$0xf]
        %v3022 = vld [vmem:[%s3002 + $0x70] sm:$0xf]
        %v3023 = vld [vmem:[%s3002 + $0x78] sm:$0xf]
        %v3024 = vld [vmem:[%s3002 + $0x7c] sm:$0xf]
        %v3025 = vld [vmem:[%s3002 + $0x84] sm:$0xf]
        %v3026 = vld [vmem:[%s3002 + $0x88] sm:$0xf]
        %v3027 = vld [vmem:[%s3002 + $0x90] sm:$0xf]
        %v3028 = vld [vmem:[%s3002 + $0x94] sm:$0xf]
        %v3029 = vld [vmem:[%s3002 + $0x9c] sm:$0xf]
        %v3030 = vld [vmem:[%s3002 + $0xa0] sm:$0xf]
        %v3031 = vld [vmem:[%s3002 + $0xa8] sm:$0xf]
        %v3032 = vld [vmem:[%s3002 + $0xac] sm:$0xf]
        %v3033 = vld [vmem:[%s3002 + $0xb4] sm:$0xf]
        %v3034 = vld [vmem:[%s3002 + $0xb8] sm:$0xf]
        %v3067 = vunpack.c.l.b16 %v3003
        %v3068 = vunpack.c.l.b16 %v3004
        %v3069 = vunpack.c.l.b16 %v3005
        %v3070 = vunpack.c.l.b16 %v3006
        %v3071 = vunpack.c.l.b16 %v3007
        %v3072 = vunpack.c.l.b16 %v3008
        %v3073 = vunpack.c.l.b16 %v3009
        %v3074 = vunpack.c.l.b16 %v3010
        %v3075 = vunpack.c.l.b16 %v3011
        %v3076 = vunpack.c.l.b16 %v3012
        %v3077 = vunpack.c.l.b16 %v3013
        %v3078 = vunpack.c.l.b16 %v3014
        %v3079 = vunpack.c.l.b16 %v3015
        %v3080 = vunpack.c.l.b16 %v3016
        %v3081 = vunpack.c.l.b16 %v3017
        %v3082 = vunpack.c.l.b16 %v3018
        %v3083 = vunpack.c.l.b16 %v3019
        %v3084 = vunpack.c.l.b16 %v3020
        %v3085 = vunpack.c.l.b16 %v3021
        %v3086 = vunpack.c.l.b16 %v3022
        %v3087 = vunpack.c.l.b16 %v3023
        %v3088 = vunpack.c.l.b16 %v3024
        %v3089 = vunpack.c.l.b16 %v3025
        %v3090 = vunpack.c.l.b16 %v3026
        %v3091 = vunpack.c.l.b16 %v3027
        %v3092 = vunpack.c.l.b16 %v3028
        %v3093 = vunpack.c.l.b16 %v3029
        %v3094 = vunpack.c.l.b16 %v3030
        %v3095 = vunpack.c.l.b16 %v3031
        %v3096 = vunpack.c.l.b16 %v3032
        %v3097 = vunpack.c.l.b16 %v3033
        %v3098 = vunpack.c.l.b16 %v3034
        %v3099 = vpack.c.b16 %v3068, %v3067
        %v3100 = vpack.c.b16 %v3070, %v3069
        %v3101 = vpack.c.b16 %v3072, %v3071
        %v3102 = vpack.c.b16 %v3074, %v3073
        %v3103 = vpack.c.b16 %v3076, %v3075
        %v3104 = vpack.c.b16 %v3078, %v3077
        %v3105 = vpack.c.b16 %v3080, %v3079
        %v3106 = vpack.c.b16 %v3082, %v3081
        %v3107 = vpack.c.b16 %v3084, %v3083
        %v3108 = vpack.c.b16 %v3086, %v3085
        %v3109 = vpack.c.b16 %v3088, %v3087
        %v3110 = vpack.c.b16 %v3090, %v3089
        %v3111 = vpack.c.b16 %v3092, %v3091
        %v3112 = vpack.c.b16 %v3094, %v3093
        %v3113 = vpack.c.b16 %v3096, %v3095
        %v3114 = vpack.c.b16 %v3098, %v3097
        %3131 = vst [vmem:[#allocation3 + $0x30] sm:$0xff] %v3099
        %3132 = vst [vmem:[#allocation3 + $0x78] sm:$0xff] %v3100
        %3133 = vst [vmem:[#allocation3 + $0xc0] sm:$0xff] %v3101
        %3134 = vst [vmem:[#allocation3 + $0x108] sm:$0xff] %v3102
        %3135 = vst [vmem:[#allocation3 + $0x150] sm:$0xff] %v3103
        %3136 = vst [vmem:[#allocation3 + $0x198] sm:$0xff] %v3104
        %3137 = vst [vmem:[#allocation3 + $0x1e0] sm:$0xff] %v3105
        %3138 = vst [vmem:[#allocation3 + $0x228] sm:$0xff] %v3106
        %3139 = vst [vmem:[#allocation3 + $0x270] sm:$0xff] %v3107
        %3140 = vst [vmem:[#allocation3 + $0x2b8] sm:$0xff] %v3108
        %3141 = vst [vmem:[#allocation3 + $0x300] sm:$0xff] %v3109
        %3142 = vst [vmem:[#allocation3 + $0x348] sm:$0xff] %v3110
        %3143 = vst [vmem:[#allocation3 + $0x390] sm:$0xff] %v3111
        %3144 = vst [vmem:[#allocation3 + $0x3d8] sm:$0xff] %v3112
        %3145 = vst [vmem:[#allocation3 + $0x420] sm:$0xff] %v3113
        %3146 = vst [vmem:[#allocation3 + $0x468] sm:$0xff] %v3114
        %v3147 = vld [vmem:[%s3002] sm:$0xf]
        %v3148 = vld [vmem:[%s3002 + $0x4] sm:$0xf]
        %v3149 = vld [vmem:[%s3002 + $0x8] sm:$0x1]
        %v3150 = vld [vmem:[%s3002 + $0xc] sm:$0xf]
        %v3151 = vld [vmem:[%s3002 + $0x10] sm:$0xf]
        %v3152 = vld [vmem:[%s3002 + $0x14] sm:$0x1]
        %v3153 = vld [vmem:[%s3002 + $0x18] sm:$0xf]
        %v3154 = vld [vmem:[%s3002 + $0x1c] sm:$0xf]
        %v3155 = vld [vmem:[%s3002 + $0x20] sm:$0x1]
        %v3156 = vld [vmem:[%s3002 + $0x24] sm:$0xf]
        %v3157 = vld [vmem:[%s3002 + $0x28] sm:$0xf]
        %v3158 = vld [vmem:[%s3002 + $0x2c] sm:$0x1]
        %v3159 = vld [vmem:[%s3002 + $0x30] sm:$0xf]
        %v3160 = vld [vmem:[%s3002 + $0x34] sm:$0xf]
        %v3161 = vld [vmem:[%s3002 + $0x38] sm:$0x1]
        %v3162 = vld [vmem:[%s3002 + $0x3c] sm:$0xf]
        %v3163 = vld [vmem:[%s3002 + $0x40] sm:$0xf]
        %v3164 = vld [vmem:[%s3002 + $0x44] sm:$0x1]
        %v3165 = vld [vmem:[%s3002 + $0x48] sm:$0xf]
        %v3166 = vld [vmem:[%s3002 + $0x4c] sm:$0xf]
        %v3167 = vld [vmem:[%s3002 + $0x50] sm:$0x1]
        %v3168 = vld [vmem:[%s3002 + $0x54] sm:$0xf]
        %v3169 = vld [vmem:[%s3002 + $0x58] sm:$0xf]
        %v3170 = vld [vmem:[%s3002 + $0x5c] sm:$0x1]
        %v3171 = vld [vmem:[%s3002 + $0x60] sm:$0xf]
        %v3172 = vld [vmem:[%s3002 + $0x64] sm:$0xf]
        %v3173 = vld [vmem:[%s3002 + $0x68] sm:$0x1]
        %v3174 = vld [vmem:[%s3002 + $0x6c] sm:$0xf]
        %v3175 = vld [vmem:[%s3002 + $0x70] sm:$0xf]
        %v3176 = vld [vmem:[%s3002 + $0x74] sm:$0x1]
        %v3177 = vld [vmem:[%s3002 + $0x78] sm:$0xf]
        %v3178 = vld [vmem:[%s3002 + $0x7c] sm:$0xf]
        %v3179 = vld [vmem:[%s3002 + $0x80] sm:$0x1]
        %v3180 = vld [vmem:[%s3002 + $0x84] sm:$0xf]
        %v3181 = vld [vmem:[%s3002 + $0x88] sm:$0xf]
        %v3182 = vld [vmem:[%s3002 + $0x8c] sm:$0x1]
        %v3183 = vld [vmem:[%s3002 + $0x90] sm:$0xf]
        %v3184 = vld [vmem:[%s3002 + $0x94] sm:$0xf]
        %v3185 = vld [vmem:[%s3002 + $0x98] sm:$0x1]
        %v3186 = vld [vmem:[%s3002 + $0x9c] sm:$0xf]
        %v3187 = vld [vmem:[%s3002 + $0xa0] sm:$0xf]
        %v3188 = vld [vmem:[%s3002 + $0xa4] sm:$0x1]
        %v3189 = vld [vmem:[%s3002 + $0xa8] sm:$0xf]
        %v3190 = vld [vmem:[%s3002 + $0xac] sm:$0xf]
        %v3191 = vld [vmem:[%s3002 + $0xb0] sm:$0x1]
        %v3192 = vld [vmem:[%s3002 + $0xb4] sm:$0xf]
        %v3193 = vld [vmem:[%s3002 + $0xb8] sm:$0xf]
        %v3194 = vld [vmem:[%s3002 + $0xbc] sm:$0x1]
        %v3196 = vshrl.u32 %v3147, 16
        %v3198 = vrot.slane %v3196, 4
        %v3199 = vshll.u32 %v3147, 16
        %v3201 = vrot.slane %v3199, 5
        %v3202 = vor.u32 %v3198, %v3201
        %v3203 = vrot.slane %v3202, 4
        %v3205 = vshll.u32 %v3148, 16
        %v3207 = vrot.slane %v3205, 5
        %v3208 = vsel %vm1302, %v3203, %v3207
        %v3209 = vshrl.u32 %v3148, 16
        %v3211 = vrot.slane %v3209, 4
        %v3212 = vor.u32 %v3211, %v3207
        %v3213 = vrot.slane %v3212, 4
        %v3215 = vshll.u32 %v3149, 16
        %v3217 = vrot.slane %v3215, 5
        %v3218 = vsel %vm1302, %v3213, %v3217
        %v3220 = vshrl.u32 %v3150, 16
        %v3222 = vrot.slane %v3220, 4
        %v3223 = vshll.u32 %v3150, 16
        %v3225 = vrot.slane %v3223, 5
        %v3226 = vor.u32 %v3222, %v3225
        %v3227 = vrot.slane %v3226, 4
        %v3229 = vshll.u32 %v3151, 16
        %v3231 = vrot.slane %v3229, 5
        %v3232 = vsel %vm1302, %v3227, %v3231
        %v3233 = vshrl.u32 %v3151, 16
        %v3235 = vrot.slane %v3233, 4
        %v3236 = vor.u32 %v3235, %v3231
        %v3237 = vrot.slane %v3236, 4
        %v3239 = vshll.u32 %v3152, 16
        %v3241 = vrot.slane %v3239, 5
        %v3242 = vsel %vm1302, %v3237, %v3241
        %v3244 = vshrl.u32 %v3153, 16
        %v3246 = vrot.slane %v3244, 4
        %v3247 = vshll.u32 %v3153, 16
        %v3249 = vrot.slane %v3247, 5
        %v3250 = vor.u32 %v3246, %v3249
        %v3251 = vrot.slane %v3250, 4
        %v3253 = vshll.u32 %v3154, 16
        %v3255 = vrot.slane %v3253, 5
        %v3256 = vsel %vm1302, %v3251, %v3255
        %v3257 = vshrl.u32 %v3154, 16
        %v3259 = vrot.slane %v3257, 4
        %v3260 = vor.u32 %v3259, %v3255
        %v3261 = vrot.slane %v3260, 4
        %v3263 = vshll.u32 %v3155, 16
        %v3265 = vrot.slane %v3263, 5
        %v3266 = vsel %vm1302, %v3261, %v3265
        %v3268 = vshrl.u32 %v3156, 16
        %v3270 = vrot.slane %v3268, 4
        %v3271 = vshll.u32 %v3156, 16
        %v3273 = vrot.slane %v3271, 5
        %v3274 = vor.u32 %v3270, %v3273
        %v3275 = vrot.slane %v3274, 4
        %v3277 = vshll.u32 %v3157, 16
        %v3279 = vrot.slane %v3277, 5
        %v3280 = vsel %vm1302, %v3275, %v3279
        %v3281 = vshrl.u32 %v3157, 16
        %v3283 = vrot.slane %v3281, 4
        %v3284 = vor.u32 %v3283, %v3279
        %v3285 = vrot.slane %v3284, 4
        %v3287 = vshll.u32 %v3158, 16
        %v3289 = vrot.slane %v3287, 5
        %v3290 = vsel %vm1302, %v3285, %v3289
        %v3292 = vshrl.u32 %v3159, 16
        %v3294 = vrot.slane %v3292, 4
        %v3295 = vshll.u32 %v3159, 16
        %v3297 = vrot.slane %v3295, 5
        %v3298 = vor.u32 %v3294, %v3297
        %v3299 = vrot.slane %v3298, 4
        %v3301 = vshll.u32 %v3160, 16
        %v3303 = vrot.slane %v3301, 5
        %v3304 = vsel %vm1302, %v3299, %v3303
        %v3305 = vshrl.u32 %v3160, 16
        %v3307 = vrot.slane %v3305, 4
        %v3308 = vor.u32 %v3307, %v3303
        %v3309 = vrot.slane %v3308, 4
        %v3311 = vshll.u32 %v3161, 16
        %v3313 = vrot.slane %v3311, 5
        %v3314 = vsel %vm1302, %v3309, %v3313
        %v3316 = vshrl.u32 %v3162, 16
        %v3318 = vrot.slane %v3316, 4
        %v3319 = vshll.u32 %v3162, 16
        %v3321 = vrot.slane %v3319, 5
        %v3322 = vor.u32 %v3318, %v3321
        %v3323 = vrot.slane %v3322, 4
        %v3325 = vshll.u32 %v3163, 16
        %v3327 = vrot.slane %v3325, 5
        %v3328 = vsel %vm1302, %v3323, %v3327
        %v3329 = vshrl.u32 %v3163, 16
        %v3331 = vrot.slane %v3329, 4
        %v3332 = vor.u32 %v3331, %v3327
        %v3333 = vrot.slane %v3332, 4
        %v3335 = vshll.u32 %v3164, 16
        %v3337 = vrot.slane %v3335, 5
        %v3338 = vsel %vm1302, %v3333, %v3337
        %v3340 = vshrl.u32 %v3165, 16
        %v3342 = vrot.slane %v3340, 4
        %v3343 = vshll.u32 %v3165, 16
        %v3345 = vrot.slane %v3343, 5
        %v3346 = vor.u32 %v3342, %v3345
        %v3347 = vrot.slane %v3346, 4
        %v3349 = vshll.u32 %v3166, 16
        %v3351 = vrot.slane %v3349, 5
        %v3352 = vsel %vm1302, %v3347, %v3351
        %v3353 = vshrl.u32 %v3166, 16
        %v3355 = vrot.slane %v3353, 4
        %v3356 = vor.u32 %v3355, %v3351
        %v3357 = vrot.slane %v3356, 4
        %v3359 = vshll.u32 %v3167, 16
        %v3361 = vrot.slane %v3359, 5
        %v3362 = vsel %vm1302, %v3357, %v3361
        %v3364 = vshrl.u32 %v3168, 16
        %v3366 = vrot.slane %v3364, 4
        %v3367 = vshll.u32 %v3168, 16
        %v3369 = vrot.slane %v3367, 5
        %v3370 = vor.u32 %v3366, %v3369
        %v3371 = vrot.slane %v3370, 4
        %v3373 = vshll.u32 %v3169, 16
        %v3375 = vrot.slane %v3373, 5
        %v3376 = vsel %vm1302, %v3371, %v3375
        %v3377 = vshrl.u32 %v3169, 16
        %v3379 = vrot.slane %v3377, 4
        %v3380 = vor.u32 %v3379, %v3375
        %v3381 = vrot.slane %v3380, 4
        %v3383 = vshll.u32 %v3170, 16
        %v3385 = vrot.slane %v3383, 5
        %v3386 = vsel %vm1302, %v3381, %v3385
        %v3388 = vshrl.u32 %v3171, 16
        %v3390 = vrot.slane %v3388, 4
        %v3391 = vshll.u32 %v3171, 16
        %v3393 = vrot.slane %v3391, 5
        %v3394 = vor.u32 %v3390, %v3393
        %v3395 = vrot.slane %v3394, 4
        %v3397 = vshll.u32 %v3172, 16
        %v3399 = vrot.slane %v3397, 5
        %v3400 = vsel %vm1302, %v3395, %v3399
        %v3401 = vshrl.u32 %v3172, 16
        %v3403 = vrot.slane %v3401, 4
        %v3404 = vor.u32 %v3403, %v3399
        %v3405 = vrot.slane %v3404, 4
        %v3407 = vshll.u32 %v3173, 16
        %v3409 = vrot.slane %v3407, 5
        %v3410 = vsel %vm1302, %v3405, %v3409
        %v3412 = vshrl.u32 %v3174, 16
        %v3414 = vrot.slane %v3412, 4
        %v3415 = vshll.u32 %v3174, 16
        %v3417 = vrot.slane %v3415, 5
        %v3418 = vor.u32 %v3414, %v3417
        %v3419 = vrot.slane %v3418, 4
        %v3421 = vshll.u32 %v3175, 16
        %v3423 = vrot.slane %v3421, 5
        %v3424 = vsel %vm1302, %v3419, %v3423
        %v3425 = vshrl.u32 %v3175, 16
        %v3427 = vrot.slane %v3425, 4
        %v3428 = vor.u32 %v3427, %v3423
        %v3429 = vrot.slane %v3428, 4
        %v3431 = vshll.u32 %v3176, 16
        %v3433 = vrot.slane %v3431, 5
        %v3434 = vsel %vm1302, %v3429, %v3433
        %v3436 = vshrl.u32 %v3177, 16
        %v3438 = vrot.slane %v3436, 4
        %v3439 = vshll.u32 %v3177, 16
        %v3441 = vrot.slane %v3439, 5
        %v3442 = vor.u32 %v3438, %v3441
        %v3443 = vrot.slane %v3442, 4
        %v3445 = vshll.u32 %v3178, 16
        %v3447 = vrot.slane %v3445, 5
        %v3448 = vsel %vm1302, %v3443, %v3447
        %v3449 = vshrl.u32 %v3178, 16
        %v3451 = vrot.slane %v3449, 4
        %v3452 = vor.u32 %v3451, %v3447
        %v3453 = vrot.slane %v3452, 4
        %v3455 = vshll.u32 %v3179, 16
        %v3457 = vrot.slane %v3455, 5
        %v3458 = vsel %vm1302, %v3453, %v3457
        %v3460 = vshrl.u32 %v3180, 16
        %v3462 = vrot.slane %v3460, 4
        %v3463 = vshll.u32 %v3180, 16
        %v3465 = vrot.slane %v3463, 5
        %v3466 = vor.u32 %v3462, %v3465
        %v3467 = vrot.slane %v3466, 4
        %v3469 = vshll.u32 %v3181, 16
        %v3471 = vrot.slane %v3469, 5
        %v3472 = vsel %vm1302, %v3467, %v3471
        %v3473 = vshrl.u32 %v3181, 16
        %v3475 = vrot.slane %v3473, 4
        %v3476 = vor.u32 %v3475, %v3471
        %v3477 = vrot.slane %v3476, 4
        %v3479 = vshll.u32 %v3182, 16
        %v3481 = vrot.slane %v3479, 5
        %v3482 = vsel %vm1302, %v3477, %v3481
        %v3484 = vshrl.u32 %v3183, 16
        %v3486 = vrot.slane %v3484, 4
        %v3487 = vshll.u32 %v3183, 16
        %v3489 = vrot.slane %v3487, 5
        %v3490 = vor.u32 %v3486, %v3489
        %v3491 = vrot.slane %v3490, 4
        %v3493 = vshll.u32 %v3184, 16
        %v3495 = vrot.slane %v3493, 5
        %v3496 = vsel %vm1302, %v3491, %v3495
        %v3497 = vshrl.u32 %v3184, 16
        %v3499 = vrot.slane %v3497, 4
        %v3500 = vor.u32 %v3499, %v3495
        %v3501 = vrot.slane %v3500, 4
        %v3503 = vshll.u32 %v3185, 16
        %v3505 = vrot.slane %v3503, 5
        %v3506 = vsel %vm1302, %v3501, %v3505
        %v3508 = vshrl.u32 %v3186, 16
        %v3510 = vrot.slane %v3508, 4
        %v3511 = vshll.u32 %v3186, 16
        %v3513 = vrot.slane %v3511, 5
        %v3514 = vor.u32 %v3510, %v3513
        %v3515 = vrot.slane %v3514, 4
        %v3517 = vshll.u32 %v3187, 16
        %v3519 = vrot.slane %v3517, 5
        %v3520 = vsel %vm1302, %v3515, %v3519
        %v3521 = vshrl.u32 %v3187, 16
        %v3523 = vrot.slane %v3521, 4
        %v3524 = vor.u32 %v3523, %v3519
        %v3525 = vrot.slane %v3524, 4
        %v3527 = vshll.u32 %v3188, 16
        %v3529 = vrot.slane %v3527, 5
        %v3530 = vsel %vm1302, %v3525, %v3529
        %v3532 = vshrl.u32 %v3189, 16
        %v3534 = vrot.slane %v3532, 4
        %v3535 = vshll.u32 %v3189, 16
        %v3537 = vrot.slane %v3535, 5
        %v3538 = vor.u32 %v3534, %v3537
        %v3539 = vrot.slane %v3538, 4
        %v3541 = vshll.u32 %v3190, 16
        %v3543 = vrot.slane %v3541, 5
        %v3544 = vsel %vm1302, %v3539, %v3543
        %v3545 = vshrl.u32 %v3190, 16
        %v3547 = vrot.slane %v3545, 4
        %v3548 = vor.u32 %v3547, %v3543
        %v3549 = vrot.slane %v3548, 4
        %v3551 = vshll.u32 %v3191, 16
        %v3553 = vrot.slane %v3551, 5
        %v3554 = vsel %vm1302, %v3549, %v3553
        %v3556 = vshrl.u32 %v3192, 16
        %v3558 = vrot.slane %v3556, 4
        %v3559 = vshll.u32 %v3192, 16
        %v3561 = vrot.slane %v3559, 5
        %v3562 = vor.u32 %v3558, %v3561
        %v3563 = vrot.slane %v3562, 4
        %v3565 = vshll.u32 %v3193, 16
        %v3567 = vrot.slane %v3565, 5
        %v3568 = vsel %vm1302, %v3563, %v3567
        %v3569 = vshrl.u32 %v3193, 16
        %v3571 = vrot.slane %v3569, 4
        %v3572 = vor.u32 %v3571, %v3567
        %v3573 = vrot.slane %v3572, 4
        %v3575 = vshll.u32 %v3194, 16
        %v3577 = vrot.slane %v3575, 5
        %v3578 = vsel %vm1302, %v3573, %v3577
        %v3579 = vunpack.c.l.b16 %v3208
        %v3580 = vunpack.c.l.b16 %v3218
        %v3581 = vunpack.c.l.b16 %v3232
        %v3582 = vunpack.c.l.b16 %v3242
        %v3583 = vunpack.c.l.b16 %v3256
        %v3584 = vunpack.c.l.b16 %v3266
        %v3585 = vunpack.c.l.b16 %v3280
        %v3586 = vunpack.c.l.b16 %v3290
        %v3587 = vunpack.c.l.b16 %v3304
        %v3588 = vunpack.c.l.b16 %v3314
        %v3589 = vunpack.c.l.b16 %v3328
        %v3590 = vunpack.c.l.b16 %v3338
        %v3591 = vunpack.c.l.b16 %v3352
        %v3592 = vunpack.c.l.b16 %v3362
        %v3593 = vunpack.c.l.b16 %v3376
        %v3594 = vunpack.c.l.b16 %v3386
        %v3595 = vunpack.c.l.b16 %v3400
        %v3596 = vunpack.c.l.b16 %v3410
        %v3597 = vunpack.c.l.b16 %v3424
        %v3598 = vunpack.c.l.b16 %v3434
        %v3599 = vunpack.c.l.b16 %v3448
        %v3600 = vunpack.c.l.b16 %v3458
        %v3601 = vunpack.c.l.b16 %v3472
        %v3602 = vunpack.c.l.b16 %v3482
        %v3603 = vunpack.c.l.b16 %v3496
        %v3604 = vunpack.c.l.b16 %v3506
        %v3605 = vunpack.c.l.b16 %v3520
        %v3606 = vunpack.c.l.b16 %v3530
        %v3607 = vunpack.c.l.b16 %v3544
        %v3608 = vunpack.c.l.b16 %v3554
        %v3609 = vunpack.c.l.b16 %v3568
        %v3610 = vunpack.c.l.b16 %v3578
        %v3611 = vpack.c.b16 %v3580, %v3579
        %v3612 = vpack.c.b16 %v3582, %v3581
        %v3613 = vpack.c.b16 %v3584, %v3583
        %v3614 = vpack.c.b16 %v3586, %v3585
        %v3615 = vpack.c.b16 %v3588, %v3587
        %v3616 = vpack.c.b16 %v3590, %v3589
        %v3617 = vpack.c.b16 %v3592, %v3591
        %v3618 = vpack.c.b16 %v3594, %v3593
        %v3619 = vpack.c.b16 %v3596, %v3595
        %v3620 = vpack.c.b16 %v3598, %v3597
        %v3621 = vpack.c.b16 %v3600, %v3599
        %v3622 = vpack.c.b16 %v3602, %v3601
        %v3623 = vpack.c.b16 %v3604, %v3603
        %v3624 = vpack.c.b16 %v3606, %v3605
        %v3625 = vpack.c.b16 %v3608, %v3607
        %v3626 = vpack.c.b16 %v3610, %v3609
        %3643 = vst [vmem:[#allocation3 + $0x38] sm:$0xff] %v3611
        %3644 = vst [vmem:[#allocation3 + $0x80] sm:$0xff] %v3612
        %3645 = vst [vmem:[#allocation3 + $0xc8] sm:$0xff] %v3613
        %3646 = vst [vmem:[#allocation3 + $0x110] sm:$0xff] %v3614
        %3647 = vst [vmem:[#allocation3 + $0x158] sm:$0xff] %v3615
        %3648 = vst [vmem:[#allocation3 + $0x1a0] sm:$0xff] %v3616
        %3649 = vst [vmem:[#allocation3 + $0x1e8] sm:$0xff] %v3617
        %3650 = vst [vmem:[#allocation3 + $0x230] sm:$0xff] %v3618
        %3651 = vst [vmem:[#allocation3 + $0x278] sm:$0xff] %v3619
        %3652 = vst [vmem:[#allocation3 + $0x2c0] sm:$0xff] %v3620
        %3653 = vst [vmem:[#allocation3 + $0x308] sm:$0xff] %v3621
        %3654 = vst [vmem:[#allocation3 + $0x350] sm:$0xff] %v3622
        %3655 = vst [vmem:[#allocation3 + $0x398] sm:$0xff] %v3623
        %3656 = vst [vmem:[#allocation3 + $0x3e0] sm:$0xff] %v3624
        %3657 = vst [vmem:[#allocation3 + $0x428] sm:$0xff] %v3625
        %3658 = vst [vmem:[#allocation3 + $0x470] sm:$0xff] %v3626
        %v3659 = vld [vmem:[%s3002] sm:$0xe]
        %v3660 = vld [vmem:[%s3002 + $0x4] sm:$0xf]
        %v3661 = vld [vmem:[%s3002 + $0x8] sm:$0x1]
        %v3662 = vld [vmem:[%s3002 + $0xc] sm:$0xe]
        %v3663 = vld [vmem:[%s3002 + $0x10] sm:$0xf]
        %v3664 = vld [vmem:[%s3002 + $0x14] sm:$0x1]
        %v3665 = vld [vmem:[%s3002 + $0x18] sm:$0xe]
        %v3666 = vld [vmem:[%s3002 + $0x1c] sm:$0xf]
        %v3667 = vld [vmem:[%s3002 + $0x20] sm:$0x1]
        %v3668 = vld [vmem:[%s3002 + $0x24] sm:$0xe]
        %v3669 = vld [vmem:[%s3002 + $0x28] sm:$0xf]
        %v3670 = vld [vmem:[%s3002 + $0x2c] sm:$0x1]
        %v3671 = vld [vmem:[%s3002 + $0x30] sm:$0xe]
        %v3672 = vld [vmem:[%s3002 + $0x34] sm:$0xf]
        %v3673 = vld [vmem:[%s3002 + $0x38] sm:$0x1]
        %v3674 = vld [vmem:[%s3002 + $0x3c] sm:$0xe]
        %v3675 = vld [vmem:[%s3002 + $0x40] sm:$0xf]
        %v3676 = vld [vmem:[%s3002 + $0x44] sm:$0x1]
        %v3677 = vld [vmem:[%s3002 + $0x48] sm:$0xe]
        %v3678 = vld [vmem:[%s3002 + $0x4c] sm:$0xf]
        %v3679 = vld [vmem:[%s3002 + $0x50] sm:$0x1]
        %v3680 = vld [vmem:[%s3002 + $0x54] sm:$0xe]
        %v3681 = vld [vmem:[%s3002 + $0x58] sm:$0xf]
        %v3682 = vld [vmem:[%s3002 + $0x5c] sm:$0x1]
        %v3683 = vld [vmem:[%s3002 + $0x60] sm:$0xe]
        %v3684 = vld [vmem:[%s3002 + $0x64] sm:$0xf]
        %v3685 = vld [vmem:[%s3002 + $0x68] sm:$0x1]
        %v3686 = vld [vmem:[%s3002 + $0x6c] sm:$0xe]
        %v3687 = vld [vmem:[%s3002 + $0x70] sm:$0xf]
        %v3688 = vld [vmem:[%s3002 + $0x74] sm:$0x1]
        %v3689 = vld [vmem:[%s3002 + $0x78] sm:$0xe]
        %v3690 = vld [vmem:[%s3002 + $0x7c] sm:$0xf]
        %v3691 = vld [vmem:[%s3002 + $0x80] sm:$0x1]
        %v3692 = vld [vmem:[%s3002 + $0x84] sm:$0xe]
        %v3693 = vld [vmem:[%s3002 + $0x88] sm:$0xf]
        %v3694 = vld [vmem:[%s3002 + $0x8c] sm:$0x1]
        %v3695 = vld [vmem:[%s3002 + $0x90] sm:$0xe]
        %v3696 = vld [vmem:[%s3002 + $0x94] sm:$0xf]
        %v3697 = vld [vmem:[%s3002 + $0x98] sm:$0x1]
        %v3698 = vld [vmem:[%s3002 + $0x9c] sm:$0xe]
        %v3699 = vld [vmem:[%s3002 + $0xa0] sm:$0xf]
        %v3700 = vld [vmem:[%s3002 + $0xa4] sm:$0x1]
        %v3701 = vld [vmem:[%s3002 + $0xa8] sm:$0xe]
        %v3702 = vld [vmem:[%s3002 + $0xac] sm:$0xf]
        %v3703 = vld [vmem:[%s3002 + $0xb0] sm:$0x1]
        %v3704 = vld [vmem:[%s3002 + $0xb4] sm:$0xe]
        %v3705 = vld [vmem:[%s3002 + $0xb8] sm:$0xf]
        %v3706 = vld [vmem:[%s3002 + $0xbc] sm:$0x1]
        %v3755 = vrot.slane %v3659, 5
        %v3756 = vrot.slane %v3755, 4
        %v3757 = vrot.slane %v3660, 5
        %v3758 = vsel %vm1865, %v3756, %v3757
        %v3759 = vrot.slane %v3757, 4
        %v3760 = vrot.slane %v3661, 5
        %v3761 = vsel %vm1865, %v3759, %v3760
        %v3762 = vrot.slane %v3662, 5
        %v3763 = vrot.slane %v3762, 4
        %v3764 = vrot.slane %v3663, 5
        %v3765 = vsel %vm1865, %v3763, %v3764
        %v3766 = vrot.slane %v3764, 4
        %v3767 = vrot.slane %v3664, 5
        %v3768 = vsel %vm1865, %v3766, %v3767
        %v3769 = vrot.slane %v3665, 5
        %v3770 = vrot.slane %v3769, 4
        %v3771 = vrot.slane %v3666, 5
        %v3772 = vsel %vm1865, %v3770, %v3771
        %v3773 = vrot.slane %v3771, 4
        %v3774 = vrot.slane %v3667, 5
        %v3775 = vsel %vm1865, %v3773, %v3774
        %v3776 = vrot.slane %v3668, 5
        %v3777 = vrot.slane %v3776, 4
        %v3778 = vrot.slane %v3669, 5
        %v3779 = vsel %vm1865, %v3777, %v3778
        %v3780 = vrot.slane %v3778, 4
        %v3781 = vrot.slane %v3670, 5
        %v3782 = vsel %vm1865, %v3780, %v3781
        %v3783 = vrot.slane %v3671, 5
        %v3784 = vrot.slane %v3783, 4
        %v3785 = vrot.slane %v3672, 5
        %v3786 = vsel %vm1865, %v3784, %v3785
        %v3787 = vrot.slane %v3785, 4
        %v3788 = vrot.slane %v3673, 5
        %v3789 = vsel %vm1865, %v3787, %v3788
        %v3790 = vrot.slane %v3674, 5
        %v3791 = vrot.slane %v3790, 4
        %v3792 = vrot.slane %v3675, 5
        %v3793 = vsel %vm1865, %v3791, %v3792
        %v3794 = vrot.slane %v3792, 4
        %v3795 = vrot.slane %v3676, 5
        %v3796 = vsel %vm1865, %v3794, %v3795
        %v3797 = vrot.slane %v3677, 5
        %v3798 = vrot.slane %v3797, 4
        %v3799 = vrot.slane %v3678, 5
        %v3800 = vsel %vm1865, %v3798, %v3799
        %v3801 = vrot.slane %v3799, 4
        %v3802 = vrot.slane %v3679, 5
        %v3803 = vsel %vm1865, %v3801, %v3802
        %v3804 = vrot.slane %v3680, 5
        %v3805 = vrot.slane %v3804, 4
        %v3806 = vrot.slane %v3681, 5
        %v3807 = vsel %vm1865, %v3805, %v3806
        %v3808 = vrot.slane %v3806, 4
        %v3809 = vrot.slane %v3682, 5
        %v3810 = vsel %vm1865, %v3808, %v3809
        %v3811 = vrot.slane %v3683, 5
        %v3812 = vrot.slane %v3811, 4
        %v3813 = vrot.slane %v3684, 5
        %v3814 = vsel %vm1865, %v3812, %v3813
        %v3815 = vrot.slane %v3813, 4
        %v3816 = vrot.slane %v3685, 5
        %v3817 = vsel %vm1865, %v3815, %v3816
        %v3818 = vrot.slane %v3686, 5
        %v3819 = vrot.slane %v3818, 4
        %v3820 = vrot.slane %v3687, 5
        %v3821 = vsel %vm1865, %v3819, %v3820
        %v3822 = vrot.slane %v3820, 4
        %v3823 = vrot.slane %v3688, 5
        %v3824 = vsel %vm1865, %v3822, %v3823
        %v3825 = vrot.slane %v3689, 5
        %v3826 = vrot.slane %v3825, 4
        %v3827 = vrot.slane %v3690, 5
        %v3828 = vsel %vm1865, %v3826, %v3827
        %v3829 = vrot.slane %v3827, 4
        %v3830 = vrot.slane %v3691, 5
        %v3831 = vsel %vm1865, %v3829, %v3830
        %v3832 = vrot.slane %v3692, 5
        %v3833 = vrot.slane %v3832, 4
        %v3834 = vrot.slane %v3693, 5
        %v3835 = vsel %vm1865, %v3833, %v3834
        %v3836 = vrot.slane %v3834, 4
        %v3837 = vrot.slane %v3694, 5
        %v3838 = vsel %vm1865, %v3836, %v3837
        %v3839 = vrot.slane %v3695, 5
        %v3840 = vrot.slane %v3839, 4
        %v3841 = vrot.slane %v3696, 5
        %v3842 = vsel %vm1865, %v3840, %v3841
        %v3843 = vrot.slane %v3841, 4
        %v3844 = vrot.slane %v3697, 5
        %v3845 = vsel %vm1865, %v3843, %v3844
        %v3846 = vrot.slane %v3698, 5
        %v3847 = vrot.slane %v3846, 4
        %v3848 = vrot.slane %v3699, 5
        %v3849 = vsel %vm1865, %v3847, %v3848
        %v3850 = vrot.slane %v3848, 4
        %v3851 = vrot.slane %v3700, 5
        %v3852 = vsel %vm1865, %v3850, %v3851
        %v3853 = vrot.slane %v3701, 5
        %v3854 = vrot.slane %v3853, 4
        %v3855 = vrot.slane %v3702, 5
        %v3856 = vsel %vm1865, %v3854, %v3855
        %v3857 = vrot.slane %v3855, 4
        %v3858 = vrot.slane %v3703, 5
        %v3859 = vsel %vm1865, %v3857, %v3858
        %v3860 = vrot.slane %v3704, 5
        %v3861 = vrot.slane %v3860, 4
        %v3862 = vrot.slane %v3705, 5
        %v3863 = vsel %vm1865, %v3861, %v3862
        %v3864 = vrot.slane %v3862, 4
        %v3865 = vrot.slane %v3706, 5
        %v3866 = vsel %vm1865, %v3864, %v3865
        %v3867 = vunpack.c.l.b16 %v3758
        %v3868 = vunpack.c.l.b16 %v3761
        %v3869 = vunpack.c.l.b16 %v3765
        %v3870 = vunpack.c.l.b16 %v3768
        %v3871 = vunpack.c.l.b16 %v3772
        %v3872 = vunpack.c.l.b16 %v3775
        %v3873 = vunpack.c.l.b16 %v3779
        %v3874 = vunpack.c.l.b16 %v3782
        %v3875 = vunpack.c.l.b16 %v3786
        %v3876 = vunpack.c.l.b16 %v3789
        %v3877 = vunpack.c.l.b16 %v3793
        %v3878 = vunpack.c.l.b16 %v3796
        %v3879 = vunpack.c.l.b16 %v3800
        %v3880 = vunpack.c.l.b16 %v3803
        %v3881 = vunpack.c.l.b16 %v3807
        %v3882 = vunpack.c.l.b16 %v3810
        %v3883 = vunpack.c.l.b16 %v3814
        %v3884 = vunpack.c.l.b16 %v3817
        %v3885 = vunpack.c.l.b16 %v3821
        %v3886 = vunpack.c.l.b16 %v3824
        %v3887 = vunpack.c.l.b16 %v3828
        %v3888 = vunpack.c.l.b16 %v3831
        %v3889 = vunpack.c.l.b16 %v3835
        %v3890 = vunpack.c.l.b16 %v3838
        %v3891 = vunpack.c.l.b16 %v3842
        %v3892 = vunpack.c.l.b16 %v3845
        %v3893 = vunpack.c.l.b16 %v3849
        %v3894 = vunpack.c.l.b16 %v3852
        %v3895 = vunpack.c.l.b16 %v3856
        %v3896 = vunpack.c.l.b16 %v3859
        %v3897 = vunpack.c.l.b16 %v3863
        %v3898 = vunpack.c.l.b16 %v3866
        %v3899 = vpack.c.b16 %v3868, %v3867
        %v3900 = vpack.c.b16 %v3870, %v3869
        %v3901 = vpack.c.b16 %v3872, %v3871
        %v3902 = vpack.c.b16 %v3874, %v3873
        %v3903 = vpack.c.b16 %v3876, %v3875
        %v3904 = vpack.c.b16 %v3878, %v3877
        %v3905 = vpack.c.b16 %v3880, %v3879
        %v3906 = vpack.c.b16 %v3882, %v3881
        %v3907 = vpack.c.b16 %v3884, %v3883
        %v3908 = vpack.c.b16 %v3886, %v3885
        %v3909 = vpack.c.b16 %v3888, %v3887
        %v3910 = vpack.c.b16 %v3890, %v3889
        %v3911 = vpack.c.b16 %v3892, %v3891
        %v3912 = vpack.c.b16 %v3894, %v3893
        %v3913 = vpack.c.b16 %v3896, %v3895
        %v3914 = vpack.c.b16 %v3898, %v3897
        %3931 = vst [vmem:[#allocation3 + $0x40] sm:$0xff] %v3899
        %3932 = vst [vmem:[#allocation3 + $0x88] sm:$0xff] %v3900
        %3933 = vst [vmem:[#allocation3 + $0xd0] sm:$0xff] %v3901
        %3934 = vst [vmem:[#allocation3 + $0x118] sm:$0xff] %v3902
        %3935 = vst [vmem:[#allocation3 + $0x160] sm:$0xff] %v3903
        %3936 = vst [vmem:[#allocation3 + $0x1a8] sm:$0xff] %v3904
        %3937 = vst [vmem:[#allocation3 + $0x1f0] sm:$0xff] %v3905
        %3938 = vst [vmem:[#allocation3 + $0x238] sm:$0xff] %v3906
        %3939 = vst [vmem:[#allocation3 + $0x280] sm:$0xff] %v3907
        %3940 = vst [vmem:[#allocation3 + $0x2c8] sm:$0xff] %v3908
        %3941 = vst [vmem:[#allocation3 + $0x310] sm:$0xff] %v3909
        %3942 = vst [vmem:[#allocation3 + $0x358] sm:$0xff] %v3910
        %3943 = vst [vmem:[#allocation3 + $0x3a0] sm:$0xff] %v3911
        %3944 = vst [vmem:[#allocation3 + $0x3e8] sm:$0xff] %v3912
        %3945 = vst [vmem:[#allocation3 + $0x430] sm:$0xff] %v3913
        %3946 = vst [vmem:[#allocation3 + $0x478] sm:$0xff] %v3914
      $region44: #{_lambda_.3} parent=39 // pred_fallthru
        _
      %v3947 = vld [vmem:[#allocation3] sm:$0xff]
      %v3948 = vld [vmem:[#allocation3 + $0x8] sm:$0xff]
      %v3949 = vld [vmem:[#allocation3 + $0x10] sm:$0xff]
      %v3950 = vld [vmem:[#allocation3 + $0x18] sm:$0xff]
      %v3951 = vld [vmem:[#allocation3 + $0x20] sm:$0xff]
      %v3952 = vld [vmem:[#allocation3 + $0x28] sm:$0xff]
      %v3953 = vld [vmem:[#allocation3 + $0x30] sm:$0xff]
      %v3954 = vld [vmem:[#allocation3 + $0x38] sm:$0xff]
      %v3955 = vld [vmem:[#allocation3 + $0x40] sm:$0xff]
      %v3956 = vld [vmem:[#allocation3 + $0x48] sm:$0xff]
      %v3957 = vld [vmem:[#allocation3 + $0x50] sm:$0xff]
      %v3958 = vld [vmem:[#allocation3 + $0x58] sm:$0xff]
      %v3959 = vld [vmem:[#allocation3 + $0x60] sm:$0xff]
      %v3960 = vld [vmem:[#allocation3 + $0x68] sm:$0xff]
      %v3961 = vld [vmem:[#allocation3 + $0x70] sm:$0xff]
      %v3962 = vld [vmem:[#allocation3 + $0x78] sm:$0xff]
      %v3963 = vld [vmem:[#allocation3 + $0x80] sm:$0xff]
      %v3964 = vld [vmem:[#allocation3 + $0x88] sm:$0xff]
      %v3965 = vld [vmem:[#allocation3 + $0x90] sm:$0xff]
      %v3966 = vld [vmem:[#allocation3 + $0x98] sm:$0xff]
      %v3967 = vld [vmem:[#allocation3 + $0xa0] sm:$0xff]
      %v3968 = vld [vmem:[#allocation3 + $0xa8] sm:$0xff]
      %v3969 = vld [vmem:[#allocation3 + $0xb0] sm:$0xff]
      %v3970 = vld [vmem:[#allocation3 + $0xb8] sm:$0xff]
      %v3971 = vld [vmem:[#allocation3 + $0xc0] sm:$0xff]
      %v3972 = vld [vmem:[#allocation3 + $0xc8] sm:$0xff]
      %v3973 = vld [vmem:[#allocation3 + $0xd0] sm:$0xff]
      %v3974 = vld [vmem:[#allocation3 + $0xd8] sm:$0xff]
      %v3975 = vld [vmem:[#allocation3 + $0xe0] sm:$0xff]
      %v3976 = vld [vmem:[#allocation3 + $0xe8] sm:$0xff]
      %v3977 = vld [vmem:[#allocation3 + $0xf0] sm:$0xff]
      %v3978 = vld [vmem:[#allocation3 + $0xf8] sm:$0xff]
      %v3979 = vld [vmem:[#allocation3 + $0x100] sm:$0xff]
      %v3980 = vld [vmem:[#allocation3 + $0x108] sm:$0xff]
      %v3981 = vld [vmem:[#allocation3 + $0x110] sm:$0xff]
      %v3982 = vld [vmem:[#allocation3 + $0x118] sm:$0xff]
      %v3983 = vld [vmem:[#allocation3 + $0x120] sm:$0xff]
      %v3984 = vld [vmem:[#allocation3 + $0x128] sm:$0xff]
      %v3985 = vld [vmem:[#allocation3 + $0x130] sm:$0xff]
      %v3986 = vld [vmem:[#allocation3 + $0x138] sm:$0xff]
      %v3987 = vld [vmem:[#allocation3 + $0x140] sm:$0xff]
      %v3988 = vld [vmem:[#allocation3 + $0x148] sm:$0xff]
      %v3989 = vld [vmem:[#allocation3 + $0x150] sm:$0xff]
      %v3990 = vld [vmem:[#allocation3 + $0x158] sm:$0xff]
      %v3991 = vld [vmem:[#allocation3 + $0x160] sm:$0xff]
      %v3992 = vld [vmem:[#allocation3 + $0x168] sm:$0xff]
      %v3993 = vld [vmem:[#allocation3 + $0x170] sm:$0xff]
      %v3994 = vld [vmem:[#allocation3 + $0x178] sm:$0xff]
      %v3995 = vld [vmem:[#allocation3 + $0x180] sm:$0xff]
      %v3996 = vld [vmem:[#allocation3 + $0x188] sm:$0xff]
      %v3997 = vld [vmem:[#allocation3 + $0x190] sm:$0xff]
      %v3998 = vld [vmem:[#allocation3 + $0x198] sm:$0xff]
      %v3999 = vld [vmem:[#allocation3 + $0x1a0] sm:$0xff]
      %v4000 = vld [vmem:[#allocation3 + $0x1a8] sm:$0xff]
      %v4001 = vld [vmem:[#allocation3 + $0x1b0] sm:$0xff]
      %v4002 = vld [vmem:[#allocation3 + $0x1b8] sm:$0xff]
      %v4003 = vld [vmem:[#allocation3 + $0x1c0] sm:$0xff]
      %v4004 = vld [vmem:[#allocation3 + $0x1c8] sm:$0xff]
      %v4005 = vld [vmem:[#allocation3 + $0x1d0] sm:$0xff]
      %v4006 = vld [vmem:[#allocation3 + $0x1d8] sm:$0xff]
      %v4007 = vld [vmem:[#allocation3 + $0x1e0] sm:$0xff]
      %v4008 = vld [vmem:[#allocation3 + $0x1e8] sm:$0xff]
      %v4009 = vld [vmem:[#allocation3 + $0x1f0] sm:$0xff]
      %v4010 = vld [vmem:[#allocation3 + $0x1f8] sm:$0xff]
      %v4011 = vld [vmem:[#allocation3 + $0x200] sm:$0xff]
      %v4012 = vld [vmem:[#allocation3 + $0x208] sm:$0xff]
      %v4013 = vld [vmem:[#allocation3 + $0x210] sm:$0xff]
      %v4014 = vld [vmem:[#allocation3 + $0x218] sm:$0xff]
      %v4015 = vld [vmem:[#allocation3 + $0x220] sm:$0xff]
      %v4016 = vld [vmem:[#allocation3 + $0x228] sm:$0xff]
      %v4017 = vld [vmem:[#allocation3 + $0x230] sm:$0xff]
      %v4018 = vld [vmem:[#allocation3 + $0x238] sm:$0xff]
      %v4019 = vld [vmem:[#allocation3 + $0x240] sm:$0xff]
      %v4020 = vld [vmem:[#allocation3 + $0x248] sm:$0xff]
      %v4021 = vld [vmem:[#allocation3 + $0x250] sm:$0xff]
      %v4022 = vld [vmem:[#allocation3 + $0x258] sm:$0xff]
      %v4023 = vld [vmem:[#allocation3 + $0x260] sm:$0xff]
      %v4024 = vld [vmem:[#allocation3 + $0x268] sm:$0xff]
      %v4025 = vld [vmem:[#allocation3 + $0x270] sm:$0xff]
      %v4026 = vld [vmem:[#allocation3 + $0x278] sm:$0xff]
      %v4027 = vld [vmem:[#allocation3 + $0x280] sm:$0xff]
      %v4028 = vld [vmem:[#allocation3 + $0x288] sm:$0xff]
      %v4029 = vld [vmem:[#allocation3 + $0x290] sm:$0xff]
      %v4030 = vld [vmem:[#allocation3 + $0x298] sm:$0xff]
      %v4031 = vld [vmem:[#allocation3 + $0x2a0] sm:$0xff]
      %v4032 = vld [vmem:[#allocation3 + $0x2a8] sm:$0xff]
      %v4033 = vld [vmem:[#allocation3 + $0x2b0] sm:$0xff]
      %v4034 = vld [vmem:[#allocation3 + $0x2b8] sm:$0xff]
      %v4035 = vld [vmem:[#allocation3 + $0x2c0] sm:$0xff]
      %v4036 = vld [vmem:[#allocation3 + $0x2c8] sm:$0xff]
      %v4037 = vld [vmem:[#allocation3 + $0x2d0] sm:$0xff]
      %v4038 = vld [vmem:[#allocation3 + $0x2d8] sm:$0xff]
      %v4039 = vld [vmem:[#allocation3 + $0x2e0] sm:$0xff]
      %v4040 = vld [vmem:[#allocation3 + $0x2e8] sm:$0xff]
      %v4041 = vld [vmem:[#allocation3 + $0x2f0] sm:$0xff]
      %v4042 = vld [vmem:[#allocation3 + $0x2f8] sm:$0xff]
      %v4043 = vld [vmem:[#allocation3 + $0x300] sm:$0xff]
      %v4044 = vld [vmem:[#allocation3 + $0x308] sm:$0xff]
      %v4045 = vld [vmem:[#allocation3 + $0x310] sm:$0xff]
      %v4046 = vld [vmem:[#allocation3 + $0x318] sm:$0xff]
      %v4047 = vld [vmem:[#allocation3 + $0x320] sm:$0xff]
      %v4048 = vld [vmem:[#allocation3 + $0x328] sm:$0xff]
      %v4049 = vld [vmem:[#allocation3 + $0x330] sm:$0xff]
      %v4050 = vld [vmem:[#allocation3 + $0x338] sm:$0xff]
      %v4051 = vld [vmem:[#allocation3 + $0x340] sm:$0xff]
      %v4052 = vld [vmem:[#allocation3 + $0x348] sm:$0xff]
      %v4053 = vld [vmem:[#allocation3 + $0x350] sm:$0xff]
      %v4054 = vld [vmem:[#allocation3 + $0x358] sm:$0xff]
      %v4055 = vld [vmem:[#allocation3 + $0x360] sm:$0xff]
      %v4056 = vld [vmem:[#allocation3 + $0x368] sm:$0xff]
      %v4057 = vld [vmem:[#allocation3 + $0x370] sm:$0xff]
      %v4058 = vld [vmem:[#allocation3 + $0x378] sm:$0xff]
      %v4059 = vld [vmem:[#allocation3 + $0x380] sm:$0xff]
      %v4060 = vld [vmem:[#allocation3 + $0x388] sm:$0xff]
      %v4061 = vld [vmem:[#allocation3 + $0x390] sm:$0xff]
      %v4062 = vld [vmem:[#allocation3 + $0x398] sm:$0xff]
      %v4063 = vld [vmem:[#allocation3 + $0x3a0] sm:$0xff]
      %v4064 = vld [vmem:[#allocation3 + $0x3a8] sm:$0xff]
      %v4065 = vld [vmem:[#allocation3 + $0x3b0] sm:$0xff]
      %v4066 = vld [vmem:[#allocation3 + $0x3b8] sm:$0xff]
      %v4067 = vld [vmem:[#allocation3 + $0x3c0] sm:$0xff]
      %v4068 = vld [vmem:[#allocation3 + $0x3c8] sm:$0xff]
      %v4069 = vld [vmem:[#allocation3 + $0x3d0] sm:$0xff]
      %v4070 = vld [vmem:[#allocation3 + $0x3d8] sm:$0xff]
      %v4071 = vld [vmem:[#allocation3 + $0x3e0] sm:$0xff]
      %v4072 = vld [vmem:[#allocation3 + $0x3e8] sm:$0xff]
      %v4073 = vld [vmem:[#allocation3 + $0x3f0] sm:$0xff]
      %v4074 = vld [vmem:[#allocation3 + $0x3f8] sm:$0xff]
      %v4075 = vld [vmem:[#allocation3 + $0x400] sm:$0xff]
      %v4076 = vld [vmem:[#allocation3 + $0x408] sm:$0xff]
      %v4077 = vld [vmem:[#allocation3 + $0x410] sm:$0xff]
      %v4078 = vld [vmem:[#allocation3 + $0x418] sm:$0xff]
      %v4079 = vld [vmem:[#allocation3 + $0x420] sm:$0xff]
      %v4080 = vld [vmem:[#allocation3 + $0x428] sm:$0xff]
      %v4081 = vld [vmem:[#allocation3 + $0x430] sm:$0xff]
      %v4082 = vld [vmem:[#allocation3 + $0x438] sm:$0xff]
      %v4083 = vld [vmem:[#allocation3 + $0x440] sm:$0xff]
      %v4084 = vld [vmem:[#allocation3 + $0x448] sm:$0xff]
      %v4085 = vld [vmem:[#allocation3 + $0x450] sm:$0xff]
      %v4086 = vld [vmem:[#allocation3 + $0x458] sm:$0xff]
      %v4087 = vld [vmem:[#allocation3 + $0x460] sm:$0xff]
      %v4088 = vld [vmem:[#allocation3 + $0x468] sm:$0xff]
      %v4089 = vld [vmem:[#allocation3 + $0x470] sm:$0xff]
      %v4090 = vld [vmem:[#allocation3 + $0x478] sm:$0xff]
      %s4091 = smul.u32 %s21, 144
      %s4092 = smul.addr %s4091, 4
      %s4093 = scalar_lea.vmem %s3, %s4092
      %v4094 = vld [vmem:[%s4093] sm:$0xf]
      %v4095 = vld [vmem:[%s4093 + $0x4] sm:$0xf]
      %v4096 = vld [vmem:[%s4093 + $0x8] sm:$0xf]
      %v4097 = vld [vmem:[%s4093 + $0xc] sm:$0xf]
      %v4098 = vld [vmem:[%s4093 + $0x10] sm:$0xf]
      %v4099 = vld [vmem:[%s4093 + $0x14] sm:$0xf]
      %v4100 = vld [vmem:[%s4093 + $0x18] sm:$0xf]
      %v4101 = vld [vmem:[%s4093 + $0x1c] sm:$0xf]
      %v4102 = vld [vmem:[%s4093 + $0x20] sm:$0xf]
      %v4103 = vld [vmem:[%s4093 + $0x24] sm:$0xf]
      %v4104 = vld [vmem:[%s4093 + $0x28] sm:$0xf]
      %v4105 = vld [vmem:[%s4093 + $0x2c] sm:$0xf]
      %v4106 = vld [vmem:[%s4093 + $0x30] sm:$0xf]
      %v4107 = vld [vmem:[%s4093 + $0x34] sm:$0xf]
      %v4108 = vld [vmem:[%s4093 + $0x38] sm:$0xf]
      %v4109 = vld [vmem:[%s4093 + $0x3c] sm:$0xf]
      %v4110 = vld [vmem:[%s4093 + $0x40] sm:$0xf]
      %v4111 = vld [vmem:[%s4093 + $0x44] sm:$0xf]
      %v4112 = vld [vmem:[%s4093 + $0x48] sm:$0xf]
      %v4113 = vld [vmem:[%s4093 + $0x4c] sm:$0xf]
      %v4114 = vld [vmem:[%s4093 + $0x50] sm:$0xf]
      %v4115 = vld [vmem:[%s4093 + $0x54] sm:$0xf]
      %v4116 = vld [vmem:[%s4093 + $0x58] sm:$0xf]
      %v4117 = vld [vmem:[%s4093 + $0x5c] sm:$0xf]
      %v4118 = vld [vmem:[%s4093 + $0x60] sm:$0xf]
      %v4119 = vld [vmem:[%s4093 + $0x64] sm:$0xf]
      %v4120 = vld [vmem:[%s4093 + $0x68] sm:$0xf]
      %v4121 = vld [vmem:[%s4093 + $0x6c] sm:$0xf]
      %v4122 = vld [vmem:[%s4093 + $0x70] sm:$0xf]
      %v4123 = vld [vmem:[%s4093 + $0x74] sm:$0xf]
      %v4124 = vld [vmem:[%s4093 + $0x78] sm:$0xf]
      %v4125 = vld [vmem:[%s4093 + $0x7c] sm:$0xf]
      %v4126 = vld [vmem:[%s4093 + $0x80] sm:$0xf]
      %v4127 = vld [vmem:[%s4093 + $0x84] sm:$0xf]
      %v4128 = vld [vmem:[%s4093 + $0x88] sm:$0xf]
      %v4129 = vld [vmem:[%s4093 + $0x8c] sm:$0xf]
      %v4130 = vld [vmem:[%s4093 + $0x90] sm:$0xf]
      %v4131 = vld [vmem:[%s4093 + $0x94] sm:$0xf]
      %v4132 = vld [vmem:[%s4093 + $0x98] sm:$0xf]
      %v4133 = vld [vmem:[%s4093 + $0x9c] sm:$0xf]
      %v4134 = vld [vmem:[%s4093 + $0xa0] sm:$0xf]
      %v4135 = vld [vmem:[%s4093 + $0xa4] sm:$0xf]
      %v4136 = vld [vmem:[%s4093 + $0xa8] sm:$0xf]
      %v4137 = vld [vmem:[%s4093 + $0xac] sm:$0xf]
      %v4138 = vld [vmem:[%s4093 + $0xb0] sm:$0xf]
      %v4139 = vld [vmem:[%s4093 + $0xb4] sm:$0xf]
      %v4140 = vld [vmem:[%s4093 + $0xb8] sm:$0xf]
      %v4141 = vld [vmem:[%s4093 + $0xbc] sm:$0xf]
      %v4142 = vld [vmem:[%s4093 + $0xc0] sm:$0xf]
      %v4143 = vld [vmem:[%s4093 + $0xc4] sm:$0xf]
      %v4144 = vld [vmem:[%s4093 + $0xc8] sm:$0xf]
      %v4145 = vld [vmem:[%s4093 + $0xcc] sm:$0xf]
      %v4146 = vld [vmem:[%s4093 + $0xd0] sm:$0xf]
      %v4147 = vld [vmem:[%s4093 + $0xd4] sm:$0xf]
      %v4148 = vld [vmem:[%s4093 + $0xd8] sm:$0xf]
      %v4149 = vld [vmem:[%s4093 + $0xdc] sm:$0xf]
      %v4150 = vld [vmem:[%s4093 + $0xe0] sm:$0xf]
      %v4151 = vld [vmem:[%s4093 + $0xe4] sm:$0xf]
      %v4152 = vld [vmem:[%s4093 + $0xe8] sm:$0xf]
      %v4153 = vld [vmem:[%s4093 + $0xec] sm:$0xf]
      %v4154 = vld [vmem:[%s4093 + $0xf0] sm:$0xf]
      %v4155 = vld [vmem:[%s4093 + $0xf4] sm:$0xf]
      %v4156 = vld [vmem:[%s4093 + $0xf8] sm:$0xf]
      %v4157 = vld [vmem:[%s4093 + $0xfc] sm:$0xf]
      %v4158 = vld [vmem:[%s4093 + $0x100] sm:$0xf]
      %v4159 = vld [vmem:[%s4093 + $0x104] sm:$0xf]
      %v4160 = vld [vmem:[%s4093 + $0x108] sm:$0xf]
      %v4161 = vld [vmem:[%s4093 + $0x10c] sm:$0xf]
      %v4162 = vld [vmem:[%s4093 + $0x110] sm:$0xf]
      %v4163 = vld [vmem:[%s4093 + $0x114] sm:$0xf]
      %v4164 = vld [vmem:[%s4093 + $0x118] sm:$0xf]
      %v4165 = vld [vmem:[%s4093 + $0x11c] sm:$0xf]
      %v4166 = vld [vmem:[%s4093 + $0x120] sm:$0xf]
      %v4167 = vld [vmem:[%s4093 + $0x124] sm:$0xf]
      %v4168 = vld [vmem:[%s4093 + $0x128] sm:$0xf]
      %v4169 = vld [vmem:[%s4093 + $0x12c] sm:$0xf]
      %v4170 = vld [vmem:[%s4093 + $0x130] sm:$0xf]
      %v4171 = vld [vmem:[%s4093 + $0x134] sm:$0xf]
      %v4172 = vld [vmem:[%s4093 + $0x138] sm:$0xf]
      %v4173 = vld [vmem:[%s4093 + $0x13c] sm:$0xf]
      %v4174 = vld [vmem:[%s4093 + $0x140] sm:$0xf]
      %v4175 = vld [vmem:[%s4093 + $0x144] sm:$0xf]
      %v4176 = vld [vmem:[%s4093 + $0x148] sm:$0xf]
      %v4177 = vld [vmem:[%s4093 + $0x14c] sm:$0xf]
      %v4178 = vld [vmem:[%s4093 + $0x150] sm:$0xf]
      %v4179 = vld [vmem:[%s4093 + $0x154] sm:$0xf]
      %v4180 = vld [vmem:[%s4093 + $0x158] sm:$0xf]
      %v4181 = vld [vmem:[%s4093 + $0x15c] sm:$0xf]
      %v4182 = vld [vmem:[%s4093 + $0x160] sm:$0xf]
      %v4183 = vld [vmem:[%s4093 + $0x164] sm:$0xf]
      %v4184 = vld [vmem:[%s4093 + $0x168] sm:$0xf]
      %v4185 = vld [vmem:[%s4093 + $0x16c] sm:$0xf]
      %v4186 = vld [vmem:[%s4093 + $0x170] sm:$0xf]
      %v4187 = vld [vmem:[%s4093 + $0x174] sm:$0xf]
      %v4188 = vld [vmem:[%s4093 + $0x178] sm:$0xf]
      %v4189 = vld [vmem:[%s4093 + $0x17c] sm:$0xf]
      %v4190 = vld [vmem:[%s4093 + $0x180] sm:$0xf]
      %v4191 = vld [vmem:[%s4093 + $0x184] sm:$0xf]
      %v4192 = vld [vmem:[%s4093 + $0x188] sm:$0xf]
      %v4193 = vld [vmem:[%s4093 + $0x18c] sm:$0xf]
      %v4194 = vld [vmem:[%s4093 + $0x190] sm:$0xf]
      %v4195 = vld [vmem:[%s4093 + $0x194] sm:$0xf]
      %v4196 = vld [vmem:[%s4093 + $0x198] sm:$0xf]
      %v4197 = vld [vmem:[%s4093 + $0x19c] sm:$0xf]
      %v4198 = vld [vmem:[%s4093 + $0x1a0] sm:$0xf]
      %v4199 = vld [vmem:[%s4093 + $0x1a4] sm:$0xf]
      %v4200 = vld [vmem:[%s4093 + $0x1a8] sm:$0xf]
      %v4201 = vld [vmem:[%s4093 + $0x1ac] sm:$0xf]
      %v4202 = vld [vmem:[%s4093 + $0x1b0] sm:$0xf]
      %v4203 = vld [vmem:[%s4093 + $0x1b4] sm:$0xf]
      %v4204 = vld [vmem:[%s4093 + $0x1b8] sm:$0xf]
      %v4205 = vld [vmem:[%s4093 + $0x1bc] sm:$0xf]
      %v4206 = vld [vmem:[%s4093 + $0x1c0] sm:$0xf]
      %v4207 = vld [vmem:[%s4093 + $0x1c4] sm:$0xf]
      %v4208 = vld [vmem:[%s4093 + $0x1c8] sm:$0xf]
      %v4209 = vld [vmem:[%s4093 + $0x1cc] sm:$0xf]
      %v4210 = vld [vmem:[%s4093 + $0x1d0] sm:$0xf]
      %v4211 = vld [vmem:[%s4093 + $0x1d4] sm:$0xf]
      %v4212 = vld [vmem:[%s4093 + $0x1d8] sm:$0xf]
      %v4213 = vld [vmem:[%s4093 + $0x1dc] sm:$0xf]
      %v4214 = vld [vmem:[%s4093 + $0x1e0] sm:$0xf]
      %v4215 = vld [vmem:[%s4093 + $0x1e4] sm:$0xf]
      %v4216 = vld [vmem:[%s4093 + $0x1e8] sm:$0xf]
      %v4217 = vld [vmem:[%s4093 + $0x1ec] sm:$0xf]
      %v4218 = vld [vmem:[%s4093 + $0x1f0] sm:$0xf]
      %v4219 = vld [vmem:[%s4093 + $0x1f4] sm:$0xf]
      %v4220 = vld [vmem:[%s4093 + $0x1f8] sm:$0xf]
      %v4221 = vld [vmem:[%s4093 + $0x1fc] sm:$0xf]
      %v4222 = vld [vmem:[%s4093 + $0x200] sm:$0xf]
      %v4223 = vld [vmem:[%s4093 + $0x204] sm:$0xf]
      %v4224 = vld [vmem:[%s4093 + $0x208] sm:$0xf]
      %v4225 = vld [vmem:[%s4093 + $0x20c] sm:$0xf]
      %v4226 = vld [vmem:[%s4093 + $0x210] sm:$0xf]
      %v4227 = vld [vmem:[%s4093 + $0x214] sm:$0xf]
      %v4228 = vld [vmem:[%s4093 + $0x218] sm:$0xf]
      %v4229 = vld [vmem:[%s4093 + $0x21c] sm:$0xf]
      %v4230 = vld [vmem:[%s4093 + $0x220] sm:$0xf]
      %v4231 = vld [vmem:[%s4093 + $0x224] sm:$0xf]
      %v4232 = vld [vmem:[%s4093 + $0x228] sm:$0xf]
      %v4233 = vld [vmem:[%s4093 + $0x22c] sm:$0xf]
      %v4234 = vld [vmem:[%s4093 + $0x230] sm:$0xf]
      %v4235 = vld [vmem:[%s4093 + $0x234] sm:$0xf]
      %v4236 = vld [vmem:[%s4093 + $0x238] sm:$0xf]
      %v4237 = vld [vmem:[%s4093 + $0x23c] sm:$0xf]
      %v4238 = vld [vmem:[%s267] sm:$0xf]
      %v4239 = vld [vmem:[%s267 + $0x4] sm:$0xf]
      %v4240 = vld [vmem:[%s267 + $0x8] sm:$0xf]
      %v4241 = vld [vmem:[%s267 + $0xc] sm:$0xf]
      %v4242 = vld [vmem:[%s267 + $0x10] sm:$0xf]
      %v4243 = vld [vmem:[%s267 + $0x14] sm:$0xf]
      %v4244 = vld [vmem:[%s267 + $0x18] sm:$0xf]
      %v4245 = vld [vmem:[%s267 + $0x1c] sm:$0xf]
      %v4246 = vld [vmem:[%s267 + $0x20] sm:$0xf]
      %v4247 = vld [vmem:[%s267 + $0x24] sm:$0xf]
      %v4248 = vld [vmem:[%s267 + $0x28] sm:$0xf]
      %v4249 = vld [vmem:[%s267 + $0x2c] sm:$0xf]
      %v4250 = vld [vmem:[%s267 + $0x30] sm:$0xf]
      %v4251 = vld [vmem:[%s267 + $0x34] sm:$0xf]
      %v4252 = vld [vmem:[%s267 + $0x38] sm:$0xf]
      %v4253 = vld [vmem:[%s267 + $0x3c] sm:$0xf]
      %v4254 = vld [vmem:[%s267 + $0x40] sm:$0xf]
      %v4255 = vld [vmem:[%s267 + $0x44] sm:$0xf]
      %v4256 = vld [vmem:[%s267 + $0x48] sm:$0xf]
      %v4257 = vld [vmem:[%s267 + $0x4c] sm:$0xf]
      %v4258 = vld [vmem:[%s267 + $0x50] sm:$0xf]
      %v4259 = vld [vmem:[%s267 + $0x54] sm:$0xf]
      %v4260 = vld [vmem:[%s267 + $0x58] sm:$0xf]
      %v4261 = vld [vmem:[%s267 + $0x5c] sm:$0xf]
      %v4262 = vld [vmem:[%s267 + $0x60] sm:$0xf]
      %v4263 = vld [vmem:[%s267 + $0x64] sm:$0xf]
      %v4264 = vld [vmem:[%s267 + $0x68] sm:$0xf]
      %v4265 = vld [vmem:[%s267 + $0x6c] sm:$0xf]
      %v4266 = vld [vmem:[%s267 + $0x70] sm:$0xf]
      %v4267 = vld [vmem:[%s267 + $0x74] sm:$0xf]
      %v4268 = vld [vmem:[%s267 + $0x78] sm:$0xf]
      %v4269 = vld [vmem:[%s267 + $0x7c] sm:$0xf]
      %v4270 = vunpack.c.l.bf16 %v4238
      %v4271 = vunpack.c.l.bf16 %v4239
      %v4272 = vunpack.c.l.bf16 %v4240
      %v4273 = vunpack.c.l.bf16 %v4241
      %v4274 = vunpack.c.l.bf16 %v4242
      %v4275 = vunpack.c.l.bf16 %v4243
      %v4276 = vunpack.c.l.bf16 %v4244
      %v4277 = vunpack.c.l.bf16 %v4245
      %v4278 = vunpack.c.l.bf16 %v4246
      %v4279 = vunpack.c.l.bf16 %v4247
      %v4280 = vunpack.c.l.bf16 %v4248
      %v4281 = vunpack.c.l.bf16 %v4249
      %v4282 = vunpack.c.l.bf16 %v4250
      %v4283 = vunpack.c.l.bf16 %v4251
      %v4284 = vunpack.c.l.bf16 %v4252
      %v4285 = vunpack.c.l.bf16 %v4253
      %v4286 = vunpack.c.l.bf16 %v4254
      %v4287 = vunpack.c.l.bf16 %v4255
      %v4288 = vunpack.c.l.bf16 %v4256
      %v4289 = vunpack.c.l.bf16 %v4257
      %v4290 = vunpack.c.l.bf16 %v4258
      %v4291 = vunpack.c.l.bf16 %v4259
      %v4292 = vunpack.c.l.bf16 %v4260
      %v4293 = vunpack.c.l.bf16 %v4261
      %v4294 = vunpack.c.l.bf16 %v4262
      %v4295 = vunpack.c.l.bf16 %v4263
      %v4296 = vunpack.c.l.bf16 %v4264
      %v4297 = vunpack.c.l.bf16 %v4265
      %v4298 = vunpack.c.l.bf16 %v4266
      %v4299 = vunpack.c.l.bf16 %v4267
      %v4300 = vunpack.c.l.bf16 %v4268
      %v4301 = vunpack.c.l.bf16 %v4269
      %v4446 = vunpack.c.l.b16 %v4094
      %v4447 = vunpack.c.l.b16 %v4095
      %v4448 = vunpack.c.l.b16 %v4096
      %v4449 = vunpack.c.l.b16 %v4097
      %v4450 = vunpack.c.l.b16 %v4098
      %v4451 = vunpack.c.l.b16 %v4099
      %v4452 = vunpack.c.l.b16 %v4100
      %v4453 = vunpack.c.l.b16 %v4101
      %v4454 = vunpack.c.l.b16 %v4102
      %v4455 = vunpack.c.l.b16 %v4103
      %v4456 = vunpack.c.l.b16 %v4104
      %v4457 = vunpack.c.l.b16 %v4105
      %v4458 = vunpack.c.l.b16 %v4106
      %v4459 = vunpack.c.l.b16 %v4107
      %v4460 = vunpack.c.l.b16 %v4108
      %v4461 = vunpack.c.l.b16 %v4109
      %v4462 = vunpack.c.l.b16 %v4110
      %v4463 = vunpack.c.l.b16 %v4111
      %v4464 = vunpack.c.l.b16 %v4112
      %v4465 = vunpack.c.l.b16 %v4113
      %v4466 = vunpack.c.l.b16 %v4114
      %v4467 = vunpack.c.l.b16 %v4115
      %v4468 = vunpack.c.l.b16 %v4116
      %v4469 = vunpack.c.l.b16 %v4117
      %v4470 = vunpack.c.l.b16 %v4118
      %v4471 = vunpack.c.l.b16 %v4119
      %v4472 = vunpack.c.l.b16 %v4120
      %v4473 = vunpack.c.l.b16 %v4121
      %v4474 = vunpack.c.l.b16 %v4122
      %v4475 = vunpack.c.l.b16 %v4123
      %v4476 = vunpack.c.l.b16 %v4124
      %v4477 = vunpack.c.l.b16 %v4125
      %v4478 = vunpack.c.l.b16 %v4126
      %v4479 = vunpack.c.l.b16 %v4127
      %v4480 = vunpack.c.l.b16 %v4128
      %v4481 = vunpack.c.l.b16 %v4129
      %v4482 = vunpack.c.l.b16 %v4130
      %v4483 = vunpack.c.l.b16 %v4131
      %v4484 = vunpack.c.l.b16 %v4132
      %v4485 = vunpack.c.l.b16 %v4133
      %v4486 = vunpack.c.l.b16 %v4134
      %v4487 = vunpack.c.l.b16 %v4135
      %v4488 = vunpack.c.l.b16 %v4136
      %v4489 = vunpack.c.l.b16 %v4137
      %v4490 = vunpack.c.l.b16 %v4138
      %v4491 = vunpack.c.l.b16 %v4139
      %v4492 = vunpack.c.l.b16 %v4140
      %v4493 = vunpack.c.l.b16 %v4141
      %v4494 = vunpack.c.l.b16 %v4142
      %v4495 = vunpack.c.l.b16 %v4143
      %v4496 = vunpack.c.l.b16 %v4144
      %v4497 = vunpack.c.l.b16 %v4145
      %v4498 = vunpack.c.l.b16 %v4146
      %v4499 = vunpack.c.l.b16 %v4147
      %v4500 = vunpack.c.l.b16 %v4148
      %v4501 = vunpack.c.l.b16 %v4149
      %v4502 = vunpack.c.l.b16 %v4150
      %v4503 = vunpack.c.l.b16 %v4151
      %v4504 = vunpack.c.l.b16 %v4152
      %v4505 = vunpack.c.l.b16 %v4153
      %v4506 = vunpack.c.l.b16 %v4154
      %v4507 = vunpack.c.l.b16 %v4155
      %v4508 = vunpack.c.l.b16 %v4156
      %v4509 = vunpack.c.l.b16 %v4157
      %v4510 = vunpack.c.l.b16 %v4158
      %v4511 = vunpack.c.l.b16 %v4159
      %v4512 = vunpack.c.l.b16 %v4160
      %v4513 = vunpack.c.l.b16 %v4161
      %v4514 = vunpack.c.l.b16 %v4162
      %v4515 = vunpack.c.l.b16 %v4163
      %v4516 = vunpack.c.l.b16 %v4164
      %v4517 = vunpack.c.l.b16 %v4165
      %v4518 = vunpack.c.l.b16 %v4166
      %v4519 = vunpack.c.l.b16 %v4167
      %v4520 = vunpack.c.l.b16 %v4168
      %v4521 = vunpack.c.l.b16 %v4169
      %v4522 = vunpack.c.l.b16 %v4170
      %v4523 = vunpack.c.l.b16 %v4171
      %v4524 = vunpack.c.l.b16 %v4172
      %v4525 = vunpack.c.l.b16 %v4173
      %v4526 = vunpack.c.l.b16 %v4174
      %v4527 = vunpack.c.l.b16 %v4175
      %v4528 = vunpack.c.l.b16 %v4176
      %v4529 = vunpack.c.l.b16 %v4177
      %v4530 = vunpack.c.l.b16 %v4178
      %v4531 = vunpack.c.l.b16 %v4179
      %v4532 = vunpack.c.l.b16 %v4180
      %v4533 = vunpack.c.l.b16 %v4181
      %v4534 = vunpack.c.l.b16 %v4182
      %v4535 = vunpack.c.l.b16 %v4183
      %v4536 = vunpack.c.l.b16 %v4184
      %v4537 = vunpack.c.l.b16 %v4185
      %v4538 = vunpack.c.l.b16 %v4186
      %v4539 = vunpack.c.l.b16 %v4187
      %v4540 = vunpack.c.l.b16 %v4188
      %v4541 = vunpack.c.l.b16 %v4189
      %v4542 = vunpack.c.l.b16 %v4190
      %v4543 = vunpack.c.l.b16 %v4191
      %v4544 = vunpack.c.l.b16 %v4192
      %v4545 = vunpack.c.l.b16 %v4193
      %v4546 = vunpack.c.l.b16 %v4194
      %v4547 = vunpack.c.l.b16 %v4195
      %v4548 = vunpack.c.l.b16 %v4196
      %v4549 = vunpack.c.l.b16 %v4197
      %v4550 = vunpack.c.l.b16 %v4198
      %v4551 = vunpack.c.l.b16 %v4199
      %v4552 = vunpack.c.l.b16 %v4200
      %v4553 = vunpack.c.l.b16 %v4201
      %v4554 = vunpack.c.l.b16 %v4202
      %v4555 = vunpack.c.l.b16 %v4203
      %v4556 = vunpack.c.l.b16 %v4204
      %v4557 = vunpack.c.l.b16 %v4205
      %v4558 = vunpack.c.l.b16 %v4206
      %v4559 = vunpack.c.l.b16 %v4207
      %v4560 = vunpack.c.l.b16 %v4208
      %v4561 = vunpack.c.l.b16 %v4209
      %v4562 = vunpack.c.l.b16 %v4210
      %v4563 = vunpack.c.l.b16 %v4211
      %v4564 = vunpack.c.l.b16 %v4212
      %v4565 = vunpack.c.l.b16 %v4213
      %v4566 = vunpack.c.l.b16 %v4214
      %v4567 = vunpack.c.l.b16 %v4215
      %v4568 = vunpack.c.l.b16 %v4216
      %v4569 = vunpack.c.l.b16 %v4217
      %v4570 = vunpack.c.l.b16 %v4218
      %v4571 = vunpack.c.l.b16 %v4219
      %v4572 = vunpack.c.l.b16 %v4220
      %v4573 = vunpack.c.l.b16 %v4221
      %v4574 = vunpack.c.l.b16 %v4222
      %v4575 = vunpack.c.l.b16 %v4223
      %v4576 = vunpack.c.l.b16 %v4224
      %v4577 = vunpack.c.l.b16 %v4225
      %v4578 = vunpack.c.l.b16 %v4226
      %v4579 = vunpack.c.l.b16 %v4227
      %v4580 = vunpack.c.l.b16 %v4228
      %v4581 = vunpack.c.l.b16 %v4229
      %v4582 = vunpack.c.l.b16 %v4230
      %v4583 = vunpack.c.l.b16 %v4231
      %v4584 = vunpack.c.l.b16 %v4232
      %v4585 = vunpack.c.l.b16 %v4233
      %v4586 = vunpack.c.l.b16 %v4234
      %v4587 = vunpack.c.l.b16 %v4235
      %v4588 = vunpack.c.l.b16 %v4236
      %v4589 = vunpack.c.l.b16 %v4237
      %v4590 = vpack.c.b16 %v4447, %v4446
      %v4591 = vpack.c.b16 %v4449, %v4448
      %v4592 = vpack.c.b16 %v4451, %v4450
      %v4593 = vpack.c.b16 %v4453, %v4452
      %v4594 = vpack.c.b16 %v4455, %v4454
      %v4595 = vpack.c.b16 %v4457, %v4456
      %v4596 = vpack.c.b16 %v4459, %v4458
      %v4597 = vpack.c.b16 %v4461, %v4460
      %v4598 = vpack.c.b16 %v4463, %v4462
      %v4599 = vpack.c.b16 %v4465, %v4464
      %v4600 = vpack.c.b16 %v4467, %v4466
      %v4601 = vpack.c.b16 %v4469, %v4468
      %v4602 = vpack.c.b16 %v4471, %v4470
      %v4603 = vpack.c.b16 %v4473, %v4472
      %v4604 = vpack.c.b16 %v4475, %v4474
      %v4605 = vpack.c.b16 %v4477, %v4476
      %v4606 = vpack.c.b16 %v4479, %v4478
      %v4607 = vpack.c.b16 %v4481, %v4480
      %v4608 = vpack.c.b16 %v4483, %v4482
      %v4609 = vpack.c.b16 %v4485, %v4484
      %v4610 = vpack.c.b16 %v4487, %v4486
      %v4611 = vpack.c.b16 %v4489, %v4488
      %v4612 = vpack.c.b16 %v4491, %v4490
      %v4613 = vpack.c.b16 %v4493, %v4492
      %v4614 = vpack.c.b16 %v4495, %v4494
      %v4615 = vpack.c.b16 %v4497, %v4496
      %v4616 = vpack.c.b16 %v4499, %v4498
      %v4617 = vpack.c.b16 %v4501, %v4500
      %v4618 = vpack.c.b16 %v4503, %v4502
      %v4619 = vpack.c.b16 %v4505, %v4504
      %v4620 = vpack.c.b16 %v4507, %v4506
      %v4621 = vpack.c.b16 %v4509, %v4508
      %v4622 = vpack.c.b16 %v4511, %v4510
      %v4623 = vpack.c.b16 %v4513, %v4512
      %v4624 = vpack.c.b16 %v4515, %v4514
      %v4625 = vpack.c.b16 %v4517, %v4516
      %v4626 = vpack.c.b16 %v4519, %v4518
      %v4627 = vpack.c.b16 %v4521, %v4520
      %v4628 = vpack.c.b16 %v4523, %v4522
      %v4629 = vpack.c.b16 %v4525, %v4524
      %v4630 = vpack.c.b16 %v4527, %v4526
      %v4631 = vpack.c.b16 %v4529, %v4528
      %v4632 = vpack.c.b16 %v4531, %v4530
      %v4633 = vpack.c.b16 %v4533, %v4532
      %v4634 = vpack.c.b16 %v4535, %v4534
      %v4635 = vpack.c.b16 %v4537, %v4536
      %v4636 = vpack.c.b16 %v4539, %v4538
      %v4637 = vpack.c.b16 %v4541, %v4540
      %v4638 = vpack.c.b16 %v4543, %v4542
      %v4639 = vpack.c.b16 %v4545, %v4544
      %v4640 = vpack.c.b16 %v4547, %v4546
      %v4641 = vpack.c.b16 %v4549, %v4548
      %v4642 = vpack.c.b16 %v4551, %v4550
      %v4643 = vpack.c.b16 %v4553, %v4552
      %v4644 = vpack.c.b16 %v4555, %v4554
      %v4645 = vpack.c.b16 %v4557, %v4556
      %v4646 = vpack.c.b16 %v4559, %v4558
      %v4647 = vpack.c.b16 %v4561, %v4560
      %v4648 = vpack.c.b16 %v4563, %v4562
      %v4649 = vpack.c.b16 %v4565, %v4564
      %v4650 = vpack.c.b16 %v4567, %v4566
      %v4651 = vpack.c.b16 %v4569, %v4568
      %v4652 = vpack.c.b16 %v4571, %v4570
      %v4653 = vpack.c.b16 %v4573, %v4572
      %v4654 = vpack.c.b16 %v4575, %v4574
      %v4655 = vpack.c.b16 %v4577, %v4576
      %v4656 = vpack.c.b16 %v4579, %v4578
      %v4657 = vpack.c.b16 %v4581, %v4580
      %v4658 = vpack.c.b16 %v4583, %v4582
      %v4659 = vpack.c.b16 %v4585, %v4584
      %v4660 = vpack.c.b16 %v4587, %v4586
      %v4661 = vpack.c.b16 %v4589, %v4588
      %4734 = vmatprep.subr.bf16.mxu0 0
      %4735 = vmatpush1.bf16.msra.mxu0 %v4590
      %4736 = vmatprep.subr.bf16.mxu0 0
      %4737 = vmatpush1.bf16.msra.mxu0 %v4591
      %4738 = vmatprep.subr.bf16.mxu0 0
      %4739 = vmatpush1.bf16.msra.mxu0 %v4592
      %4740 = vmatprep.subr.bf16.mxu0 0
      %4741 = vmatpush1.bf16.msra.mxu0 %v4593
      %4742 = vmatprep.subr.bf16.mxu0 0
      %4743 = vmatpush1.bf16.msra.mxu0 %v4594
      %4744 = vmatprep.subr.bf16.mxu0 0
      %4745 = vmatpush1.bf16.msra.mxu0 %v4595
      %4746 = vmatprep.subr.bf16.mxu0 0
      %4747 = vmatpush1.bf16.msra.mxu0 %v4596
      %4748 = vmatprep.subr.bf16.mxu0 0
      %4749 = vmatpush1.bf16.msra.mxu0 %v4597
      %4750 = vmatprep.subr.bf16.mxu0 0
      %4751 = vmatpush1.bf16.msra.mxu0 %v4598
      %4752 = vmatprep.subr.bf16.mxu0 0
      %4753 = vmatpush1.bf16.msra.mxu0 %v4599
      %4754 = vmatprep.subr.bf16.mxu0 0
      %4755 = vmatpush1.bf16.msra.mxu0 %v4600
      %4756 = vmatprep.subr.bf16.mxu0 0
      %4757 = vmatpush1.bf16.msra.mxu0 %v4601
      %4758 = vmatprep.subr.bf16.mxu0 0
      %4759 = vmatpush1.bf16.msra.mxu0 %v4602
      %4760 = vmatprep.subr.bf16.mxu0 0
      %4761 = vmatpush1.bf16.msra.mxu0 %v4603
      %4762 = vmatprep.subr.bf16.mxu0 0
      %4763 = vmatpush1.bf16.msra.mxu0 %v4604
      %4764 = vmatprep.subr.bf16.mxu0 0
      %4765 = vmatpush1.bf16.msra.mxu0 %v4605
      %4766 = vmatprep.mubr.bf16.mxu0 %v3948
      %4767 = vmatmul.mubr.bf16.gmra.mrb[0].mxu0 %v3947
      %v4768 = vpop.f32.mrb[0].mxu0
      %v4769 = vadd.f32 %v4270, %v4768
      %v4770 = vpop.f32.mrb[0].mxu0
      %v4771 = vpop.f32.mrb[0].mxu0
      %v4772 = vadd.f32 %v4271, %v4771
      %v4773 = vpop.f32.mrb[0].mxu0
      %4774 = vmatprep.mubr.bf16.mxu0 %v3957
      %4775 = vmatmul.mubr.bf16.gmra.mrb[0].mxu0 %v3956
      %v4776 = vpop.f32.mrb[0].mxu0
      %v4777 = vadd.f32 %v4272, %v4776
      %v4778 = vpop.f32.mrb[0].mxu0
      %v4779 = vpop.f32.mrb[0].mxu0
      %v4780 = vadd.f32 %v4273, %v4779
      %v4781 = vpop.f32.mrb[0].mxu0
      %4782 = vmatprep.mubr.bf16.mxu0 %v3966
      %4783 = vmatmul.mubr.bf16.gmra.mrb[0].mxu0 %v3965
      %v4784 = vpop.f32.mrb[0].mxu0
      %v4785 = vadd.f32 %v4274, %v4784
      %v4786 = vpop.f32.mrb[0].mxu0
      %v4787 = vpop.f32.mrb[0].mxu0
      %v4788 = vadd.f32 %v4275, %v4787
      %v4789 = vpop.f32.mrb[0].mxu0
      %4790 = vmatprep.mubr.bf16.mxu0 %v3975
      %4791 = vmatmul.mubr.bf16.gmra.mrb[0].mxu0 %v3974
      %v4792 = vpop.f32.mrb[0].mxu0
      %v4793 = vadd.f32 %v4276, %v4792
      %v4794 = vpop.f32.mrb[0].mxu0
      %v4795 = vpop.f32.mrb[0].mxu0
      %v4796 = vadd.f32 %v4277, %v4795
      %v4797 = vpop.f32.mrb[0].mxu0
      %4798 = vmatprep.mubr.bf16.mxu0 %v3984
      %4799 = vmatmul.mubr.bf16.gmra.mrb[0].mxu0 %v3983
      %v4800 = vpop.f32.mrb[0].mxu0
      %v4801 = vadd.f32 %v4278, %v4800
      %v4802 = vpop.f32.mrb[0].mxu0
      %v4803 = vpop.f32.mrb[0].mxu0
      %v4804 = vadd.f32 %v4279, %v4803
      %v4805 = vpop.f32.mrb[0].mxu0
      %4806 = vmatprep.mubr.bf16.mxu0 %v3993
      %4807 = vmatmul.mubr.bf16.gmra.mrb[0].mxu0 %v3992
      %v4808 = vpop.f32.mrb[0].mxu0
      %v4809 = vadd.f32 %v4280, %v4808
      %v4810 = vpop.f32.mrb[0].mxu0
      %v4811 = vpop.f32.mrb[0].mxu0
      %v4812 = vadd.f32 %v4281, %v4811
      %v4813 = vpop.f32.mrb[0].mxu0
      %4814 = vmatprep.mubr.bf16.mxu0 %v4002
      %4815 = vmatmul.mubr.bf16.gmra.mrb[0].mxu0 %v4001
      %v4816 = vpop.f32.mrb[0].mxu0
      %v4817 = vadd.f32 %v4282, %v4816
      %v4818 = vpop.f32.mrb[0].mxu0
      %v4819 = vpop.f32.mrb[0].mxu0
      %v4820 = vadd.f32 %v4283, %v4819
      %v4821 = vpop.f32.mrb[0].mxu0
      %4822 = vmatprep.mubr.bf16.mxu0 %v4011
      %4823 = vmatmul.mubr.bf16.gmra.mrb[0].mxu0 %v4010
      %v4824 = vpop.f32.mrb[0].mxu0
      %v4825 = vadd.f32 %v4284, %v4824
      %v4826 = vpop.f32.mrb[0].mxu0
      %v4827 = vpop.f32.mrb[0].mxu0
      %v4828 = vadd.f32 %v4285, %v4827
      %v4829 = vpop.f32.mrb[0].mxu0
      %4830 = vmatprep.mubr.bf16.mxu0 %v4020
      %4831 = vmatmul.mubr.bf16.gmra.mrb[0].mxu0 %v4019
      %v4832 = vpop.f32.mrb[0].mxu0
      %v4833 = vadd.f32 %v4286, %v4832
      %v4834 = vpop.f32.mrb[0].mxu0
      %v4835 = vpop.f32.mrb[0].mxu0
      %v4836 = vadd.f32 %v4287, %v4835
      %v4837 = vpop.f32.mrb[0].mxu0
      %4838 = vmatprep.mubr.bf16.mxu0 %v4029
      %4839 = vmatmul.mubr.bf16.gmra.mrb[0].mxu0 %v4028
      %v4840 = vpop.f32.mrb[0].mxu0
      %v4841 = vadd.f32 %v4288, %v4840
      %v4842 = vpop.f32.mrb[0].mxu0
      %v4843 = vpop.f32.mrb[0].mxu0
      %v4844 = vadd.f32 %v4289, %v4843
      %v4845 = vpop.f32.mrb[0].mxu0
      %4846 = vmatprep.mubr.bf16.mxu0 %v4038
      %4847 = vmatmul.mubr.bf16.gmra.mrb[0].mxu0 %v4037
      %v4848 = vpop.f32.mrb[0].mxu0
      %v4849 = vadd.f32 %v4290, %v4848
      %v4850 = vpop.f32.mrb[0].mxu0
      %v4851 = vpop.f32.mrb[0].mxu0
      %v4852 = vadd.f32 %v4291, %v4851
      %v4853 = vpop.f32.mrb[0].mxu0
      %4854 = vmatprep.mubr.bf16.mxu0 %v4047
      %4855 = vmatmul.mubr.bf16.gmra.mrb[0].mxu0 %v4046
      %v4856 = vpop.f32.mrb[0].mxu0
      %v4857 = vadd.f32 %v4292, %v4856
      %v4858 = vpop.f32.mrb[0].mxu0
      %v4859 = vpop.f32.mrb[0].mxu0
      %v4860 = vadd.f32 %v4293, %v4859
      %v4861 = vpop.f32.mrb[0].mxu0
      %4862 = vmatprep.mubr.bf16.mxu0 %v4056
      %4863 = vmatmul.mubr.bf16.gmra.mrb[0].mxu0 %v4055
      %v4864 = vpop.f32.mrb[0].mxu0
      %v4865 = vadd.f32 %v4294, %v4864
      %v4866 = vpop.f32.mrb[0].mxu0
      %v4867 = vpop.f32.mrb[0].mxu0
      %v4868 = vadd.f32 %v4295, %v4867
      %v4869 = vpop.f32.mrb[0].mxu0
      %4870 = vmatprep.mubr.bf16.mxu0 %v4065
      %4871 = vmatmul.mubr.bf16.gmra.mrb[0].mxu0 %v4064
      %v4872 = vpop.f32.mrb[0].mxu0
      %v4873 = vadd.f32 %v4296, %v4872
      %v4874 = vpop.f32.mrb[0].mxu0
      %v4875 = vpop.f32.mrb[0].mxu0
      %v4876 = vadd.f32 %v4297, %v4875
      %v4877 = vpop.f32.mrb[0].mxu0
      %4878 = vmatprep.mubr.bf16.mxu0 %v4074
      %4879 = vmatmul.mubr.bf16.gmra.mrb[0].mxu0 %v4073
      %v4880 = vpop.f32.mrb[0].mxu0
      %v4881 = vadd.f32 %v4298, %v4880
      %v4882 = vpop.f32.mrb[0].mxu0
      %v4883 = vpop.f32.mrb[0].mxu0
      %v4884 = vadd.f32 %v4299, %v4883
      %v4885 = vpop.f32.mrb[0].mxu0
      %4886 = vmatprep.mubr.bf16.mxu0 %v4083
      %4887 = vmatmul.mubr.bf16.gmra.mrb[0].mxu0 %v4082
      %v4888 = vpop.f32.mrb[0].mxu0
      %v4889 = vadd.f32 %v4300, %v4888
      %v4890 = vpop.f32.mrb[0].mxu0
      %v4891 = vpop.f32.mrb[0].mxu0
      %v4892 = vadd.f32 %v4301, %v4891
      %v4893 = vpop.f32.mrb[0].mxu0
      %4894 = vdwg.mxu0
      %4895 = vmatprep.subr.bf16.mxu0 0
      %4896 = vmatpush1.bf16.msra.mxu0 %v4606
      %4897 = vmatprep.subr.bf16.mxu0 0
      %4898 = vmatpush1.bf16.msra.mxu0 %v4607
      %4899 = vmatprep.subr.bf16.mxu0 0
      %4900 = vmatpush1.bf16.msra.mxu0 %v4608
      %4901 = vmatprep.subr.bf16.mxu0 0
      %4902 = vmatpush1.bf16.msra.mxu0 %v4609
      %4903 = vmatprep.subr.bf16.mxu0 0
      %4904 = vmatpush1.bf16.msra.mxu0 %v4610
      %4905 = vmatprep.subr.bf16.mxu0 0
      %4906 = vmatpush1.bf16.msra.mxu0 %v4611
      %4907 = vmatprep.subr.bf16.mxu0 0
      %4908 = vmatpush1.bf16.msra.mxu0 %v4612
      %4909 = vmatprep.subr.bf16.mxu0 0
      %4910 = vmatpush1.bf16.msra.mxu0 %v4613
      %4911 = vmatprep.subr.bf16.mxu0 0
      %4912 = vmatpush1.bf16.msra.mxu0 %v4614
      %4913 = vmatprep.subr.bf16.mxu0 0
      %4914 = vmatpush1.bf16.msra.mxu0 %v4615
      %4915 = vmatprep.subr.bf16.mxu0 0
      %4916 = vmatpush1.bf16.msra.mxu0 %v4616
      %4917 = vmatprep.subr.bf16.mxu0 0
      %4918 = vmatpush1.bf16.msra.mxu0 %v4617
      %4919 = vmatprep.subr.bf16.mxu0 0
      %4920 = vmatpush1.bf16.msra.mxu0 %v4618
      %4921 = vmatprep.subr.bf16.mxu0 0
      %4922 = vmatpush1.bf16.msra.mxu0 %v4619
      %4923 = vmatprep.subr.bf16.mxu0 0
      %4924 = vmatpush1.bf16.msra.mxu0 %v4620
      %4925 = vmatprep.subr.bf16.mxu0 0
      %4926 = vmatpush1.bf16.msra.mxu0 %v4621
      %4927 = vmatprep.mubr.bf16.mxu0 %v3950
      %4928 = vmatmul.mubr.bf16.gmra.mrb[0].mxu0 %v3949
      %v4929 = vpop.f32.mrb[0].mxu0
      %v4930 = vadd.f32 %v4769, %v4929
      %v4931 = vpop.f32.mrb[0].mxu0
      %v4932 = vpop.f32.mrb[0].mxu0
      %v4933 = vadd.f32 %v4772, %v4932
      %v4934 = vpop.f32.mrb[0].mxu0
      %4935 = vmatprep.mubr.bf16.mxu0 %v3959
      %4936 = vmatmul.mubr.bf16.gmra.mrb[0].mxu0 %v3958
      %v4937 = vpop.f32.mrb[0].mxu0
      %v4938 = vadd.f32 %v4777, %v4937
      %v4939 = vpop.f32.mrb[0].mxu0
      %v4940 = vpop.f32.mrb[0].mxu0
      %v4941 = vadd.f32 %v4780, %v4940
      %v4942 = vpop.f32.mrb[0].mxu0
      %4943 = vmatprep.mubr.bf16.mxu0 %v3968
      %4944 = vmatmul.mubr.bf16.gmra.mrb[0].mxu0 %v3967
      %v4945 = vpop.f32.mrb[0].mxu0
      %v4946 = vadd.f32 %v4785, %v4945
      %v4947 = vpop.f32.mrb[0].mxu0
      %v4948 = vpop.f32.mrb[0].mxu0
      %v4949 = vadd.f32 %v4788, %v4948
      %v4950 = vpop.f32.mrb[0].mxu0
      %4951 = vmatprep.mubr.bf16.mxu0 %v3977
      %4952 = vmatmul.mubr.bf16.gmra.mrb[0].mxu0 %v3976
      %v4953 = vpop.f32.mrb[0].mxu0
      %v4954 = vadd.f32 %v4793, %v4953
      %v4955 = vpop.f32.mrb[0].mxu0
      %v4956 = vpop.f32.mrb[0].mxu0
      %v4957 = vadd.f32 %v4796, %v4956
      %v4958 = vpop.f32.mrb[0].mxu0
      %4959 = vmatprep.mubr.bf16.mxu0 %v3986
      %4960 = vmatmul.mubr.bf16.gmra.mrb[0].mxu0 %v3985
      %v4961 = vpop.f32.mrb[0].mxu0
      %v4962 = vadd.f32 %v4801, %v4961
      %v4963 = vpop.f32.mrb[0].mxu0
      %v4964 = vpop.f32.mrb[0].mxu0
      %v4965 = vadd.f32 %v4804, %v4964
      %v4966 = vpop.f32.mrb[0].mxu0
      %4967 = vmatprep.mubr.bf16.mxu0 %v3995
      %4968 = vmatmul.mubr.bf16.gmra.mrb[0].mxu0 %v3994
      %v4969 = vpop.f32.mrb[0].mxu0
      %v4970 = vadd.f32 %v4809, %v4969
      %v4971 = vpop.f32.mrb[0].mxu0
      %v4972 = vpop.f32.mrb[0].mxu0
      %v4973 = vadd.f32 %v4812, %v4972
      %v4974 = vpop.f32.mrb[0].mxu0
      %4975 = vmatprep.mubr.bf16.mxu0 %v4004
      %4976 = vmatmul.mubr.bf16.gmra.mrb[0].mxu0 %v4003
      %v4977 = vpop.f32.mrb[0].mxu0
      %v4978 = vadd.f32 %v4817, %v4977
      %v4979 = vpop.f32.mrb[0].mxu0
      %v4980 = vpop.f32.mrb[0].mxu0
      %v4981 = vadd.f32 %v4820, %v4980
      %v4982 = vpop.f32.mrb[0].mxu0
      %4983 = vmatprep.mubr.bf16.mxu0 %v4013
      %4984 = vmatmul.mubr.bf16.gmra.mrb[0].mxu0 %v4012
      %v4985 = vpop.f32.mrb[0].mxu0
      %v4986 = vadd.f32 %v4825, %v4985
      %v4987 = vpop.f32.mrb[0].mxu0
      %v4988 = vpop.f32.mrb[0].mxu0
      %v4989 = vadd.f32 %v4828, %v4988
      %v4990 = vpop.f32.mrb[0].mxu0
      %4991 = vmatprep.mubr.bf16.mxu0 %v4022
      %4992 = vmatmul.mubr.bf16.gmra.mrb[0].mxu0 %v4021
      %v4993 = vpop.f32.mrb[0].mxu0
      %v4994 = vadd.f32 %v4833, %v4993
      %v4995 = vpop.f32.mrb[0].mxu0
      %v4996 = vpop.f32.mrb[0].mxu0
      %v4997 = vadd.f32 %v4836, %v4996
      %v4998 = vpop.f32.mrb[0].mxu0
      %4999 = vmatprep.mubr.bf16.mxu0 %v4031
      %5000 = vmatmul.mubr.bf16.gmra.mrb[0].mxu0 %v4030
      %v5001 = vpop.f32.mrb[0].mxu0
      %v5002 = vadd.f32 %v4841, %v5001
      %v5003 = vpop.f32.mrb[0].mxu0
      %v5004 = vpop.f32.mrb[0].mxu0
      %v5005 = vadd.f32 %v4844, %v5004
      %v5006 = vpop.f32.mrb[0].mxu0
      %5007 = vmatprep.mubr.bf16.mxu0 %v4040
      %5008 = vmatmul.mubr.bf16.gmra.mrb[0].mxu0 %v4039
      %v5009 = vpop.f32.mrb[0].mxu0
      %v5010 = vadd.f32 %v4849, %v5009
      %v5011 = vpop.f32.mrb[0].mxu0
      %v5012 = vpop.f32.mrb[0].mxu0
      %v5013 = vadd.f32 %v4852, %v5012
      %v5014 = vpop.f32.mrb[0].mxu0
      %5015 = vmatprep.mubr.bf16.mxu0 %v4049
      %5016 = vmatmul.mubr.bf16.gmra.mrb[0].mxu0 %v4048
      %v5017 = vpop.f32.mrb[0].mxu0
      %v5018 = vadd.f32 %v4857, %v5017
      %v5019 = vpop.f32.mrb[0].mxu0
      %v5020 = vpop.f32.mrb[0].mxu0
      %v5021 = vadd.f32 %v4860, %v5020
      %v5022 = vpop.f32.mrb[0].mxu0
      %5023 = vmatprep.mubr.bf16.mxu0 %v4058
      %5024 = vmatmul.mubr.bf16.gmra.mrb[0].mxu0 %v4057
      %v5025 = vpop.f32.mrb[0].mxu0
      %v5026 = vadd.f32 %v4865, %v5025
      %v5027 = vpop.f32.mrb[0].mxu0
      %v5028 = vpop.f32.mrb[0].mxu0
      %v5029 = vadd.f32 %v4868, %v5028
      %v5030 = vpop.f32.mrb[0].mxu0
      %5031 = vmatprep.mubr.bf16.mxu0 %v4067
      %5032 = vmatmul.mubr.bf16.gmra.mrb[0].mxu0 %v4066
      %v5033 = vpop.f32.mrb[0].mxu0
      %v5034 = vadd.f32 %v4873, %v5033
      %v5035 = vpop.f32.mrb[0].mxu0
      %v5036 = vpop.f32.mrb[0].mxu0
      %v5037 = vadd.f32 %v4876, %v5036
      %v5038 = vpop.f32.mrb[0].mxu0
      %5039 = vmatprep.mubr.bf16.mxu0 %v4076
      %5040 = vmatmul.mubr.bf16.gmra.mrb[0].mxu0 %v4075
      %v5041 = vpop.f32.mrb[0].mxu0
      %v5042 = vadd.f32 %v4881, %v5041
      %v5043 = vpop.f32.mrb[0].mxu0
      %v5044 = vpop.f32.mrb[0].mxu0
      %v5045 = vadd.f32 %v4884, %v5044
      %v5046 = vpop.f32.mrb[0].mxu0
      %5047 = vmatprep.mubr.bf16.mxu0 %v4085
      %5048 = vmatmul.mubr.bf16.gmra.mrb[0].mxu0 %v4084
      %v5049 = vpop.f32.mrb[0].mxu0
      %v5050 = vadd.f32 %v4889, %v5049
      %v5051 = vpop.f32.mrb[0].mxu0
      %v5052 = vpop.f32.mrb[0].mxu0
      %v5053 = vadd.f32 %v4892, %v5052
      %v5054 = vpop.f32.mrb[0].mxu0
      %5055 = vdwg.mxu0
      %5056 = vmatprep.subr.bf16.mxu0 0
      %5057 = vmatpush1.bf16.msra.mxu0 %v4622
      %5058 = vmatprep.subr.bf16.mxu0 0
      %5059 = vmatpush1.bf16.msra.mxu0 %v4623
      %5060 = vmatprep.subr.bf16.mxu0 0
      %5061 = vmatpush1.bf16.msra.mxu0 %v4624
      %5062 = vmatprep.subr.bf16.mxu0 0
      %5063 = vmatpush1.bf16.msra.mxu0 %v4625
      %5064 = vmatprep.subr.bf16.mxu0 0
      %5065 = vmatpush1.bf16.msra.mxu0 %v4626
      %5066 = vmatprep.subr.bf16.mxu0 0
      %5067 = vmatpush1.bf16.msra.mxu0 %v4627
      %5068 = vmatprep.subr.bf16.mxu0 0
      %5069 = vmatpush1.bf16.msra.mxu0 %v4628
      %5070 = vmatprep.subr.bf16.mxu0 0
      %5071 = vmatpush1.bf16.msra.mxu0 %v4629
      %5072 = vmatprep.subr.bf16.mxu0 0
      %5073 = vmatpush1.bf16.msra.mxu0 %v4630
      %5074 = vmatprep.subr.bf16.mxu0 0
      %5075 = vmatpush1.bf16.msra.mxu0 %v4631
      %5076 = vmatprep.subr.bf16.mxu0 0
      %5077 = vmatpush1.bf16.msra.mxu0 %v4632
      %5078 = vmatprep.subr.bf16.mxu0 0
      %5079 = vmatpush1.bf16.msra.mxu0 %v4633
      %5080 = vmatprep.subr.bf16.mxu0 0
      %5081 = vmatpush1.bf16.msra.mxu0 %v4634
      %5082 = vmatprep.subr.bf16.mxu0 0
      %5083 = vmatpush1.bf16.msra.mxu0 %v4635
      %5084 = vmatprep.subr.bf16.mxu0 0
      %5085 = vmatpush1.bf16.msra.mxu0 %v4636
      %5086 = vmatprep.subr.bf16.mxu0 0
      %5087 = vmatpush1.bf16.msra.mxu0 %v4637
      %5088 = vmatprep.mubr.bf16.mxu0 %v3952
      %5089 = vmatmul.mubr.bf16.gmra.mrb[0].mxu0 %v3951
      %v5090 = vpop.f32.mrb[0].mxu0
      %v5091 = vadd.f32 %v4930, %v5090
      %v5092 = vpop.f32.mrb[0].mxu0
      %v5093 = vpop.f32.mrb[0].mxu0
      %v5094 = vadd.f32 %v4933, %v5093
      %v5095 = vpop.f32.mrb[0].mxu0
      %5096 = vmatprep.mubr.bf16.mxu0 %v3961
      %5097 = vmatmul.mubr.bf16.gmra.mrb[0].mxu0 %v3960
      %v5098 = vpop.f32.mrb[0].mxu0
      %v5099 = vadd.f32 %v4938, %v5098
      %v5100 = vpop.f32.mrb[0].mxu0
      %v5101 = vpop.f32.mrb[0].mxu0
      %v5102 = vadd.f32 %v4941, %v5101
      %v5103 = vpop.f32.mrb[0].mxu0
      %5104 = vmatprep.mubr.bf16.mxu0 %v3970
      %5105 = vmatmul.mubr.bf16.gmra.mrb[0].mxu0 %v3969
      %v5106 = vpop.f32.mrb[0].mxu0
      %v5107 = vadd.f32 %v4946, %v5106
      %v5108 = vpop.f32.mrb[0].mxu0
      %v5109 = vpop.f32.mrb[0].mxu0
      %v5110 = vadd.f32 %v4949, %v5109
      %v5111 = vpop.f32.mrb[0].mxu0
      %5112 = vmatprep.mubr.bf16.mxu0 %v3979
      %5113 = vmatmul.mubr.bf16.gmra.mrb[0].mxu0 %v3978
      %v5114 = vpop.f32.mrb[0].mxu0
      %v5115 = vadd.f32 %v4954, %v5114
      %v5116 = vpop.f32.mrb[0].mxu0
      %v5117 = vpop.f32.mrb[0].mxu0
      %v5118 = vadd.f32 %v4957, %v5117
      %v5119 = vpop.f32.mrb[0].mxu0
      %5120 = vmatprep.mubr.bf16.mxu0 %v3988
      %5121 = vmatmul.mubr.bf16.gmra.mrb[0].mxu0 %v3987
      %v5122 = vpop.f32.mrb[0].mxu0
      %v5123 = vadd.f32 %v4962, %v5122
      %v5124 = vpop.f32.mrb[0].mxu0
      %v5125 = vpop.f32.mrb[0].mxu0
      %v5126 = vadd.f32 %v4965, %v5125
      %v5127 = vpop.f32.mrb[0].mxu0
      %5128 = vmatprep.mubr.bf16.mxu0 %v3997
      %5129 = vmatmul.mubr.bf16.gmra.mrb[0].mxu0 %v3996
      %v5130 = vpop.f32.mrb[0].mxu0
      %v5131 = vadd.f32 %v4970, %v5130
      %v5132 = vpop.f32.mrb[0].mxu0
      %v5133 = vpop.f32.mrb[0].mxu0
      %v5134 = vadd.f32 %v4973, %v5133
      %v5135 = vpop.f32.mrb[0].mxu0
      %5136 = vmatprep.mubr.bf16.mxu0 %v4006
      %5137 = vmatmul.mubr.bf16.gmra.mrb[0].mxu0 %v4005
      %v5138 = vpop.f32.mrb[0].mxu0
      %v5139 = vadd.f32 %v4978, %v5138
      %v5140 = vpop.f32.mrb[0].mxu0
      %v5141 = vpop.f32.mrb[0].mxu0
      %v5142 = vadd.f32 %v4981, %v5141
      %v5143 = vpop.f32.mrb[0].mxu0
      %5144 = vmatprep.mubr.bf16.mxu0 %v4015
      %5145 = vmatmul.mubr.bf16.gmra.mrb[0].mxu0 %v4014
      %v5146 = vpop.f32.mrb[0].mxu0
      %v5147 = vadd.f32 %v4986, %v5146
      %v5148 = vpop.f32.mrb[0].mxu0
      %v5149 = vpop.f32.mrb[0].mxu0
      %v5150 = vadd.f32 %v4989, %v5149
      %v5151 = vpop.f32.mrb[0].mxu0
      %5152 = vmatprep.mubr.bf16.mxu0 %v4024
      %5153 = vmatmul.mubr.bf16.gmra.mrb[0].mxu0 %v4023
      %v5154 = vpop.f32.mrb[0].mxu0
      %v5155 = vadd.f32 %v4994, %v5154
      %v5156 = vpop.f32.mrb[0].mxu0
      %v5157 = vpop.f32.mrb[0].mxu0
      %v5158 = vadd.f32 %v4997, %v5157
      %v5159 = vpop.f32.mrb[0].mxu0
      %5160 = vmatprep.mubr.bf16.mxu0 %v4033
      %5161 = vmatmul.mubr.bf16.gmra.mrb[0].mxu0 %v4032
      %v5162 = vpop.f32.mrb[0].mxu0
      %v5163 = vadd.f32 %v5002, %v5162
      %v5164 = vpop.f32.mrb[0].mxu0
      %v5165 = vpop.f32.mrb[0].mxu0
      %v5166 = vadd.f32 %v5005, %v5165
      %v5167 = vpop.f32.mrb[0].mxu0
      %5168 = vmatprep.mubr.bf16.mxu0 %v4042
      %5169 = vmatmul.mubr.bf16.gmra.mrb[0].mxu0 %v4041
      %v5170 = vpop.f32.mrb[0].mxu0
      %v5171 = vadd.f32 %v5010, %v5170
      %v5172 = vpop.f32.mrb[0].mxu0
      %v5173 = vpop.f32.mrb[0].mxu0
      %v5174 = vadd.f32 %v5013, %v5173
      %v5175 = vpop.f32.mrb[0].mxu0
      %5176 = vmatprep.mubr.bf16.mxu0 %v4051
      %5177 = vmatmul.mubr.bf16.gmra.mrb[0].mxu0 %v4050
      %v5178 = vpop.f32.mrb[0].mxu0
      %v5179 = vadd.f32 %v5018, %v5178
      %v5180 = vpop.f32.mrb[0].mxu0
      %v5181 = vpop.f32.mrb[0].mxu0
      %v5182 = vadd.f32 %v5021, %v5181
      %v5183 = vpop.f32.mrb[0].mxu0
      %5184 = vmatprep.mubr.bf16.mxu0 %v4060
      %5185 = vmatmul.mubr.bf16.gmra.mrb[0].mxu0 %v4059
      %v5186 = vpop.f32.mrb[0].mxu0
      %v5187 = vadd.f32 %v5026, %v5186
      %v5188 = vpop.f32.mrb[0].mxu0
      %v5189 = vpop.f32.mrb[0].mxu0
      %v5190 = vadd.f32 %v5029, %v5189
      %v5191 = vpop.f32.mrb[0].mxu0
      %5192 = vmatprep.mubr.bf16.mxu0 %v4069
      %5193 = vmatmul.mubr.bf16.gmra.mrb[0].mxu0 %v4068
      %v5194 = vpop.f32.mrb[0].mxu0
      %v5195 = vadd.f32 %v5034, %v5194
      %v5196 = vpop.f32.mrb[0].mxu0
      %v5197 = vpop.f32.mrb[0].mxu0
      %v5198 = vadd.f32 %v5037, %v5197
      %v5199 = vpop.f32.mrb[0].mxu0
      %5200 = vmatprep.mubr.bf16.mxu0 %v4078
      %5201 = vmatmul.mubr.bf16.gmra.mrb[0].mxu0 %v4077
      %v5202 = vpop.f32.mrb[0].mxu0
      %v5203 = vadd.f32 %v5042, %v5202
      %v5204 = vpop.f32.mrb[0].mxu0
      %v5205 = vpop.f32.mrb[0].mxu0
      %v5206 = vadd.f32 %v5045, %v5205
      %v5207 = vpop.f32.mrb[0].mxu0
      %5208 = vmatprep.mubr.bf16.mxu0 %v4087
      %5209 = vmatmul.mubr.bf16.gmra.mrb[0].mxu0 %v4086
      %v5210 = vpop.f32.mrb[0].mxu0
      %v5211 = vadd.f32 %v5050, %v5210
      %v5212 = vpop.f32.mrb[0].mxu0
      %v5213 = vpop.f32.mrb[0].mxu0
      %v5214 = vadd.f32 %v5053, %v5213
      %v5215 = vpop.f32.mrb[0].mxu0
      %5216 = vdwg.mxu0
      %5217 = vmatprep.subr.bf16.mxu0 0
      %5218 = vmatpush1.bf16.msra.mxu0 %v4638
      %5219 = vmatprep.subr.bf16.mxu0 0
      %5220 = vmatpush1.bf16.msra.mxu0 %v4639
      %5221 = vmatprep.subr.bf16.mxu0 0
      %5222 = vmatpush1.bf16.msra.mxu0 %v4640
      %5223 = vmatprep.subr.bf16.mxu0 0
      %5224 = vmatpush1.bf16.msra.mxu0 %v4641
      %5225 = vmatprep.subr.bf16.mxu0 0
      %5226 = vmatpush1.bf16.msra.mxu0 %v4642
      %5227 = vmatprep.subr.bf16.mxu0 0
      %5228 = vmatpush1.bf16.msra.mxu0 %v4643
      %5229 = vmatprep.subr.bf16.mxu0 0
      %5230 = vmatpush1.bf16.msra.mxu0 %v4644
      %5231 = vmatprep.subr.bf16.mxu0 0
      %5232 = vmatpush1.bf16.msra.mxu0 %v4645
      %5233 = vmatprep.subr.bf16.mxu0 0
      %5234 = vmatpush1.bf16.msra.mxu0 %v4646
      %5235 = vmatprep.subr.bf16.mxu0 0
      %5236 = vmatpush1.bf16.msra.mxu0 %v4647
      %5237 = vmatprep.subr.bf16.mxu0 0
      %5238 = vmatpush1.bf16.msra.mxu0 %v4648
      %5239 = vmatprep.subr.bf16.mxu0 0
      %5240 = vmatpush1.bf16.msra.mxu0 %v4649
      %5241 = vmatprep.subr.bf16.mxu0 0
      %5242 = vmatpush1.bf16.msra.mxu0 %v4650
      %5243 = vmatprep.subr.bf16.mxu0 0
      %5244 = vmatpush1.bf16.msra.mxu0 %v4651
      %5245 = vmatprep.subr.bf16.mxu0 0
      %5246 = vmatpush1.bf16.msra.mxu0 %v4652
      %5247 = vmatprep.subr.bf16.mxu0 0
      %5248 = vmatpush1.bf16.msra.mxu0 %v4653
      %5249 = vmatprep.mubr.bf16.mxu0 %v3954
      %5250 = vmatmul.mubr.bf16.gmra.mrb[0].mxu0 %v3953
      %v5251 = vpop.f32.mrb[0].mxu0
      %v5252 = vadd.f32 %v5091, %v5251
      %v5253 = vpop.f32.mrb[0].mxu0
      %v5254 = vpop.f32.mrb[0].mxu0
      %v5255 = vadd.f32 %v5094, %v5254
      %v5256 = vpop.f32.mrb[0].mxu0
      %5257 = vmatprep.mubr.bf16.mxu0 %v3963
      %5258 = vmatmul.mubr.bf16.gmra.mrb[0].mxu0 %v3962
      %v5259 = vpop.f32.mrb[0].mxu0
      %v5260 = vadd.f32 %v5099, %v5259
      %v5261 = vpop.f32.mrb[0].mxu0
      %v5262 = vpop.f32.mrb[0].mxu0
      %v5263 = vadd.f32 %v5102, %v5262
      %v5264 = vpop.f32.mrb[0].mxu0
      %5265 = vmatprep.mubr.bf16.mxu0 %v3972
      %5266 = vmatmul.mubr.bf16.gmra.mrb[0].mxu0 %v3971
      %v5267 = vpop.f32.mrb[0].mxu0
      %v5268 = vadd.f32 %v5107, %v5267
      %v5269 = vpop.f32.mrb[0].mxu0
      %v5270 = vpop.f32.mrb[0].mxu0
      %v5271 = vadd.f32 %v5110, %v5270
      %v5272 = vpop.f32.mrb[0].mxu0
      %5273 = vmatprep.mubr.bf16.mxu0 %v3981
      %5274 = vmatmul.mubr.bf16.gmra.mrb[0].mxu0 %v3980
      %v5275 = vpop.f32.mrb[0].mxu0
      %v5276 = vadd.f32 %v5115, %v5275
      %v5277 = vpop.f32.mrb[0].mxu0
      %v5278 = vpop.f32.mrb[0].mxu0
      %v5279 = vadd.f32 %v5118, %v5278
      %v5280 = vpop.f32.mrb[0].mxu0
      %5281 = vmatprep.mubr.bf16.mxu0 %v3990
      %5282 = vmatmul.mubr.bf16.gmra.mrb[0].mxu0 %v3989
      %v5283 = vpop.f32.mrb[0].mxu0
      %v5284 = vadd.f32 %v5123, %v5283
      %v5285 = vpop.f32.mrb[0].mxu0
      %v5286 = vpop.f32.mrb[0].mxu0
      %v5287 = vadd.f32 %v5126, %v5286
      %v5288 = vpop.f32.mrb[0].mxu0
      %5289 = vmatprep.mubr.bf16.mxu0 %v3999
      %5290 = vmatmul.mubr.bf16.gmra.mrb[0].mxu0 %v3998
      %v5291 = vpop.f32.mrb[0].mxu0
      %v5292 = vadd.f32 %v5131, %v5291
      %v5293 = vpop.f32.mrb[0].mxu0
      %v5294 = vpop.f32.mrb[0].mxu0
      %v5295 = vadd.f32 %v5134, %v5294
      %v5296 = vpop.f32.mrb[0].mxu0
      %5297 = vmatprep.mubr.bf16.mxu0 %v4008
      %5298 = vmatmul.mubr.bf16.gmra.mrb[0].mxu0 %v4007
      %v5299 = vpop.f32.mrb[0].mxu0
      %v5300 = vadd.f32 %v5139, %v5299
      %v5301 = vpop.f32.mrb[0].mxu0
      %v5302 = vpop.f32.mrb[0].mxu0
      %v5303 = vadd.f32 %v5142, %v5302
      %v5304 = vpop.f32.mrb[0].mxu0
      %5305 = vmatprep.mubr.bf16.mxu0 %v4017
      %5306 = vmatmul.mubr.bf16.gmra.mrb[0].mxu0 %v4016
      %v5307 = vpop.f32.mrb[0].mxu0
      %v5308 = vadd.f32 %v5147, %v5307
      %v5309 = vpop.f32.mrb[0].mxu0
      %v5310 = vpop.f32.mrb[0].mxu0
      %v5311 = vadd.f32 %v5150, %v5310
      %v5312 = vpop.f32.mrb[0].mxu0
      %5313 = vmatprep.mubr.bf16.mxu0 %v4026
      %5314 = vmatmul.mubr.bf16.gmra.mrb[0].mxu0 %v4025
      %v5315 = vpop.f32.mrb[0].mxu0
      %v5316 = vadd.f32 %v5155, %v5315
      %v5317 = vpop.f32.mrb[0].mxu0
      %v5318 = vpop.f32.mrb[0].mxu0
      %v5319 = vadd.f32 %v5158, %v5318
      %v5320 = vpop.f32.mrb[0].mxu0
      %5321 = vmatprep.mubr.bf16.mxu0 %v4035
      %5322 = vmatmul.mubr.bf16.gmra.mrb[0].mxu0 %v4034
      %v5323 = vpop.f32.mrb[0].mxu0
      %v5324 = vadd.f32 %v5163, %v5323
      %v5325 = vpop.f32.mrb[0].mxu0
      %v5326 = vpop.f32.mrb[0].mxu0
      %v5327 = vadd.f32 %v5166, %v5326
      %v5328 = vpop.f32.mrb[0].mxu0
      %5329 = vmatprep.mubr.bf16.mxu0 %v4044
      %5330 = vmatmul.mubr.bf16.gmra.mrb[0].mxu0 %v4043
      %v5331 = vpop.f32.mrb[0].mxu0
      %v5332 = vadd.f32 %v5171, %v5331
      %v5333 = vpop.f32.mrb[0].mxu0
      %v5334 = vpop.f32.mrb[0].mxu0
      %v5335 = vadd.f32 %v5174, %v5334
      %v5336 = vpop.f32.mrb[0].mxu0
      %5337 = vmatprep.mubr.bf16.mxu0 %v4053
      %5338 = vmatmul.mubr.bf16.gmra.mrb[0].mxu0 %v4052
      %v5339 = vpop.f32.mrb[0].mxu0
      %v5340 = vadd.f32 %v5179, %v5339
      %v5341 = vpop.f32.mrb[0].mxu0
      %v5342 = vpop.f32.mrb[0].mxu0
      %v5343 = vadd.f32 %v5182, %v5342
      %v5344 = vpop.f32.mrb[0].mxu0
      %5345 = vmatprep.mubr.bf16.mxu0 %v4062
      %5346 = vmatmul.mubr.bf16.gmra.mrb[0].mxu0 %v4061
      %v5347 = vpop.f32.mrb[0].mxu0
      %v5348 = vadd.f32 %v5187, %v5347
      %v5349 = vpop.f32.mrb[0].mxu0
      %v5350 = vpop.f32.mrb[0].mxu0
      %v5351 = vadd.f32 %v5190, %v5350
      %v5352 = vpop.f32.mrb[0].mxu0
      %5353 = vmatprep.mubr.bf16.mxu0 %v4071
      %5354 = vmatmul.mubr.bf16.gmra.mrb[0].mxu0 %v4070
      %v5355 = vpop.f32.mrb[0].mxu0
      %v5356 = vadd.f32 %v5195, %v5355
      %v5357 = vpop.f32.mrb[0].mxu0
      %v5358 = vpop.f32.mrb[0].mxu0
      %v5359 = vadd.f32 %v5198, %v5358
      %v5360 = vpop.f32.mrb[0].mxu0
      %5361 = vmatprep.mubr.bf16.mxu0 %v4080
      %5362 = vmatmul.mubr.bf16.gmra.mrb[0].mxu0 %v4079
      %v5363 = vpop.f32.mrb[0].mxu0
      %v5364 = vadd.f32 %v5203, %v5363
      %v5365 = vpop.f32.mrb[0].mxu0
      %v5366 = vpop.f32.mrb[0].mxu0
      %v5367 = vadd.f32 %v5206, %v5366
      %v5368 = vpop.f32.mrb[0].mxu0
      %5369 = vmatprep.mubr.bf16.mxu0 %v4089
      %5370 = vmatmul.mubr.bf16.gmra.mrb[0].mxu0 %v4088
      %v5371 = vpop.f32.mrb[0].mxu0
      %v5372 = vadd.f32 %v5211, %v5371
      %v5373 = vpop.f32.mrb[0].mxu0
      %v5374 = vpop.f32.mrb[0].mxu0
      %v5375 = vadd.f32 %v5214, %v5374
      %v5376 = vpop.f32.mrb[0].mxu0
      %5377 = vdwg.mxu0
      %5378 = vmatprep.subr.bf16.mxu0 0
      %5379 = vmatpush1.bf16.msra.mxu0 %v4654
      %5380 = vmatprep.subr.bf16.mxu0 0
      %5381 = vmatpush1.bf16.msra.mxu0 %v4655
      %5382 = vmatprep.subr.bf16.mxu0 0
      %5383 = vmatpush1.bf16.msra.mxu0 %v4656
      %5384 = vmatprep.subr.bf16.mxu0 0
      %5385 = vmatpush1.bf16.msra.mxu0 %v4657
      %5386 = vmatprep.subr.bf16.mxu0 0
      %5387 = vmatpush1.bf16.msra.mxu0 %v4658
      %5388 = vmatprep.subr.bf16.mxu0 0
      %5389 = vmatpush1.bf16.msra.mxu0 %v4659
      %5390 = vmatprep.subr.bf16.mxu0 0
      %5391 = vmatpush1.bf16.msra.mxu0 %v4660
      %5392 = vmatprep.subr.bf16.mxu0 0
      %5393 = vmatpush1.bf16.msra.mxu0 %v4661
      %5394 = vmatprep.subr.bf16.mxu0 0
      %5395 = vmatpush1.bf16.msra.mxu0 0
      %5396 = vmatprep.subr.bf16.mxu0 0
      %5397 = vmatpush1.bf16.msra.mxu0 0
      %5398 = vmatprep.subr.bf16.mxu0 0
      %5399 = vmatpush1.bf16.msra.mxu0 0
      %5400 = vmatprep.subr.bf16.mxu0 0
      %5401 = vmatpush1.bf16.msra.mxu0 0
      %5402 = vmatprep.subr.bf16.mxu0 0
      %5403 = vmatpush1.bf16.msra.mxu0 0
      %5404 = vmatprep.subr.bf16.mxu0 0
      %5405 = vmatpush1.bf16.msra.mxu0 0
      %5406 = vmatprep.subr.bf16.mxu0 0
      %5407 = vmatpush1.bf16.msra.mxu0 0
      %5408 = vmatprep.subr.bf16.mxu0 0
      %5409 = vmatpush1.bf16.msra.mxu0 0
      %5410 = vmatprep.mubr.bf16.mxu0 0
      %5411 = vmatmul.mubr.bf16.gmra.mrb[0].mxu0 %v3955
      %v5412 = vpop.f32.mrb[0].mxu0
      %v5413 = vadd.f32 %v5252, %v5412
      %v5414 = vpop.f32.mrb[0].mxu0
      %v5415 = vpop.f32.mrb[0].mxu0
      %v5416 = vadd.f32 %v5255, %v5415
      %v5417 = vpop.f32.mrb[0].mxu0
      %5418 = vmatprep.mubr.bf16.mxu0 0
      %5419 = vmatmul.mubr.bf16.gmra.mrb[0].mxu0 %v3964
      %v5420 = vpop.f32.mrb[0].mxu0
      %v5421 = vadd.f32 %v5260, %v5420
      %v5422 = vpop.f32.mrb[0].mxu0
      %v5423 = vpop.f32.mrb[0].mxu0
      %v5424 = vadd.f32 %v5263, %v5423
      %v5425 = vpop.f32.mrb[0].mxu0
      %5426 = vmatprep.mubr.bf16.mxu0 0
      %5427 = vmatmul.mubr.bf16.gmra.mrb[0].mxu0 %v3973
      %v5428 = vpop.f32.mrb[0].mxu0
      %v5429 = vadd.f32 %v5268, %v5428
      %v5430 = vpop.f32.mrb[0].mxu0
      %v5431 = vpop.f32.mrb[0].mxu0
      %v5432 = vadd.f32 %v5271, %v5431
      %v5433 = vpop.f32.mrb[0].mxu0
      %5434 = vmatprep.mubr.bf16.mxu0 0
      %5435 = vmatmul.mubr.bf16.gmra.mrb[0].mxu0 %v3982
      %v5436 = vpop.f32.mrb[0].mxu0
      %v5437 = vadd.f32 %v5276, %v5436
      %v5438 = vpop.f32.mrb[0].mxu0
      %v5439 = vpop.f32.mrb[0].mxu0
      %v5440 = vadd.f32 %v5279, %v5439
      %v5441 = vpop.f32.mrb[0].mxu0
      %5442 = vmatprep.mubr.bf16.mxu0 0
      %5443 = vmatmul.mubr.bf16.gmra.mrb[0].mxu0 %v3991
      %v5444 = vpop.f32.mrb[0].mxu0
      %v5445 = vadd.f32 %v5284, %v5444
      %v5446 = vpop.f32.mrb[0].mxu0
      %v5447 = vpop.f32.mrb[0].mxu0
      %v5448 = vadd.f32 %v5287, %v5447
      %v5449 = vpop.f32.mrb[0].mxu0
      %5450 = vmatprep.mubr.bf16.mxu0 0
      %5451 = vmatmul.mubr.bf16.gmra.mrb[0].mxu0 %v4000
      %v5452 = vpop.f32.mrb[0].mxu0
      %v5453 = vadd.f32 %v5292, %v5452
      %v5454 = vpop.f32.mrb[0].mxu0
      %v5455 = vpop.f32.mrb[0].mxu0
      %v5456 = vadd.f32 %v5295, %v5455
      %v5457 = vpop.f32.mrb[0].mxu0
      %5458 = vmatprep.mubr.bf16.mxu0 0
      %5459 = vmatmul.mubr.bf16.gmra.mrb[0].mxu0 %v4009
      %v5460 = vpop.f32.mrb[0].mxu0
      %v5461 = vadd.f32 %v5300, %v5460
      %v5462 = vpop.f32.mrb[0].mxu0
      %v5463 = vpop.f32.mrb[0].mxu0
      %v5464 = vadd.f32 %v5303, %v5463
      %v5465 = vpop.f32.mrb[0].mxu0
      %5466 = vmatprep.mubr.bf16.mxu0 0
      %5467 = vmatmul.mubr.bf16.gmra.mrb[0].mxu0 %v4018
      %v5468 = vpop.f32.mrb[0].mxu0
      %v5469 = vadd.f32 %v5308, %v5468
      %v5470 = vpop.f32.mrb[0].mxu0
      %v5471 = vpop.f32.mrb[0].mxu0
      %v5472 = vadd.f32 %v5311, %v5471
      %v5473 = vpop.f32.mrb[0].mxu0
      %5474 = vmatprep.mubr.bf16.mxu0 0
      %5475 = vmatmul.mubr.bf16.gmra.mrb[0].mxu0 %v4027
      %v5476 = vpop.f32.mrb[0].mxu0
      %v5477 = vadd.f32 %v5316, %v5476
      %v5478 = vpop.f32.mrb[0].mxu0
      %v5479 = vpop.f32.mrb[0].mxu0
      %v5480 = vadd.f32 %v5319, %v5479
      %v5481 = vpop.f32.mrb[0].mxu0
      %5482 = vmatprep.mubr.bf16.mxu0 0
      %5483 = vmatmul.mubr.bf16.gmra.mrb[0].mxu0 %v4036
      %v5484 = vpop.f32.mrb[0].mxu0
      %v5485 = vadd.f32 %v5324, %v5484
      %v5486 = vpop.f32.mrb[0].mxu0
      %v5487 = vpop.f32.mrb[0].mxu0
      %v5488 = vadd.f32 %v5327, %v5487
      %v5489 = vpop.f32.mrb[0].mxu0
      %5490 = vmatprep.mubr.bf16.mxu0 0
      %5491 = vmatmul.mubr.bf16.gmra.mrb[0].mxu0 %v4045
      %v5492 = vpop.f32.mrb[0].mxu0
      %v5493 = vadd.f32 %v5332, %v5492
      %v5494 = vpop.f32.mrb[0].mxu0
      %v5495 = vpop.f32.mrb[0].mxu0
      %v5496 = vadd.f32 %v5335, %v5495
      %v5497 = vpop.f32.mrb[0].mxu0
      %5498 = vmatprep.mubr.bf16.mxu0 0
      %5499 = vmatmul.mubr.bf16.gmra.mrb[0].mxu0 %v4054
      %v5500 = vpop.f32.mrb[0].mxu0
      %v5501 = vadd.f32 %v5340, %v5500
      %v5502 = vpop.f32.mrb[0].mxu0
      %v5503 = vpop.f32.mrb[0].mxu0
      %v5504 = vadd.f32 %v5343, %v5503
      %v5505 = vpop.f32.mrb[0].mxu0
      %5506 = vmatprep.mubr.bf16.mxu0 0
      %5507 = vmatmul.mubr.bf16.gmra.mrb[0].mxu0 %v4063
      %v5508 = vpop.f32.mrb[0].mxu0
      %v5509 = vadd.f32 %v5348, %v5508
      %v5510 = vpop.f32.mrb[0].mxu0
      %v5511 = vpop.f32.mrb[0].mxu0
      %v5512 = vadd.f32 %v5351, %v5511
      %v5513 = vpop.f32.mrb[0].mxu0
      %5514 = vmatprep.mubr.bf16.mxu0 0
      %5515 = vmatmul.mubr.bf16.gmra.mrb[0].mxu0 %v4072
      %v5516 = vpop.f32.mrb[0].mxu0
      %v5517 = vadd.f32 %v5356, %v5516
      %v5518 = vpop.f32.mrb[0].mxu0
      %v5519 = vpop.f32.mrb[0].mxu0
      %v5520 = vadd.f32 %v5359, %v5519
      %v5521 = vpop.f32.mrb[0].mxu0
      %5522 = vmatprep.mubr.bf16.mxu0 0
      %5523 = vmatmul.mubr.bf16.gmra.mrb[0].mxu0 %v4081
      %v5524 = vpop.f32.mrb[0].mxu0
      %v5525 = vadd.f32 %v5364, %v5524
      %v5526 = vpop.f32.mrb[0].mxu0
      %v5527 = vpop.f32.mrb[0].mxu0
      %v5528 = vadd.f32 %v5367, %v5527
      %v5529 = vpop.f32.mrb[0].mxu0
      %5530 = vmatprep.mubr.bf16.mxu0 0
      %5531 = vmatmul.mubr.bf16.gmra.mrb[0].mxu0 %v4090
      %v5532 = vpop.f32.mrb[0].mxu0
      %v5533 = vadd.f32 %v5372, %v5532
      %v5534 = vpop.f32.mrb[0].mxu0
      %v5535 = vpop.f32.mrb[0].mxu0
      %v5536 = vadd.f32 %v5375, %v5535
      %v5537 = vpop.f32.mrb[0].mxu0
      %5538 = vdwg.mxu0
      %5539 = vst [vmem:[%s275] sm:$0xff] %v5413
      %5540 = vst [vmem:[%s275 + $0x8] sm:$0xff] %v5416
      %5541 = vst [vmem:[%s275 + $0x10] sm:$0xff] %v5421
      %5542 = vst [vmem:[%s275 + $0x18] sm:$0xff] %v5424
      %5543 = vst [vmem:[%s275 + $0x20] sm:$0xff] %v5429
      %5544 = vst [vmem:[%s275 + $0x28] sm:$0xff] %v5432
      %5545 = vst [vmem:[%s275 + $0x30] sm:$0xff] %v5437
      %5546 = vst [vmem:[%s275 + $0x38] sm:$0xff] %v5440
      %5547 = vst [vmem:[%s275 + $0x40] sm:$0xff] %v5445
      %5548 = vst [vmem:[%s275 + $0x48] sm:$0xff] %v5448
      %5549 = vst [vmem:[%s275 + $0x50] sm:$0xff] %v5453
      %5550 = vst [vmem:[%s275 + $0x58] sm:$0xff] %v5456
      %5551 = vst [vmem:[%s275 + $0x60] sm:$0xff] %v5461
      %5552 = vst [vmem:[%s275 + $0x68] sm:$0xff] %v5464
      %5553 = vst [vmem:[%s275 + $0x70] sm:$0xff] %v5469
      %5554 = vst [vmem:[%s275 + $0x78] sm:$0xff] %v5472
      %5555 = vst [vmem:[%s275 + $0x80] sm:$0xff] %v5477
      %5556 = vst [vmem:[%s275 + $0x88] sm:$0xff] %v5480
      %5557 = vst [vmem:[%s275 + $0x90] sm:$0xff] %v5485
      %5558 = vst [vmem:[%s275 + $0x98] sm:$0xff] %v5488
      %5559 = vst [vmem:[%s275 + $0xa0] sm:$0xff] %v5493
      %5560 = vst [vmem:[%s275 + $0xa8] sm:$0xff] %v5496
      %5561 = vst [vmem:[%s275 + $0xb0] sm:$0xff] %v5501
      %5562 = vst [vmem:[%s275 + $0xb8] sm:$0xff] %v5504
      %5563 = vst [vmem:[%s275 + $0xc0] sm:$0xff] %v5509
      %5564 = vst [vmem:[%s275 + $0xc8] sm:$0xff] %v5512
      %5565 = vst [vmem:[%s275 + $0xd0] sm:$0xff] %v5517
      %5566 = vst [vmem:[%s275 + $0xd8] sm:$0xff] %v5520
      %5567 = vst [vmem:[%s275 + $0xe0] sm:$0xff] %v5525
      %5568 = vst [vmem:[%s275 + $0xe8] sm:$0xff] %v5528
      %5569 = vst [vmem:[%s275 + $0xf0] sm:$0xff] %v5533
      %5570 = vst [vmem:[%s275 + $0xf8] sm:$0xff] %v5536
      %p5571 = scmp.lt.s32.totalorder %s20, 1
      %s5572 = scalar_select %p5571, %s20, 1
      %p5573 = scmp.lt.s32.totalorder %s21, 0
      %s5574 = scalar_select %p5573, %s21, 0
      %s5575 = smul.addr %s5572, 32
      %s5576 = sadd.s32 %s5574, %s5575
      %s5577 = smul.addr %s5576, 8
      %s5578 = scalar_lea.vmem %s5, %s5577
      // Predicated region
      $region45: #{_lambda_.3} parent=39 // pred_check
        %p5579 = pneg %p165
      $region46: #{_lambda_.3} parent=39 // pred_check_branch
        %5581 = sbr.rel (%p5579) target = $region48
      $region47: #{_lambda_.3} parent=39 // pred_region
        _
      $region48: #{_lambda_.3} parent=39 // pred_fallthru
        _
    $region40: #{_lambda_.3} parent=5 // pred_fallthru
      _
    %p5582 = scmp.le.s32.totalorder 2, %s11
    // Predicated region
    $region49: #{_lambda_.3} parent=5 // pred_check
      %p5583 = pneg %p5582
    $region50: #{_lambda_.3} parent=5 // pred_check_branch
      %5585 = sbr.rel (%p5583) target = $region52
    $region51: #{_lambda_.3} parent=5 // pred_region
      %s5586 = ssub.s32 %s11, 2
      // Predicated region
      $region53: #{_lambda_.3} parent=51 // pred_check
        %p5587 = pneg %p171
      $region54: #{_lambda_.3} parent=51 // pred_check_branch
        %5589 = sbr.rel (%p5587) target = $region56
      $region55: #{_lambda_.3} parent=51 // pred_region
        %p5590 = scmp.lt.s32.totalorder %s22, 1
        %s5591 = scalar_select %p5590, %s22, 1
        %p5592 = scmp.lt.s32.totalorder %s23, 0
        %s5593 = scalar_select %p5592, %s23, 0
        %s5594 = smul.addr %s5591, 32
        %s5595 = sadd.s32 %s5593, %s5594
        %s5596 = smul.addr %s5595, 8
        %s5597 = scalar_lea.vmem %s5, %s5596
      $region56: #{_lambda_.3} parent=51 // pred_fallthru
        _
    $region52: #{_lambda_.3} parent=5 // pred_fallthru
      _
  $region6: #{_lambda_.3} parent=0 // loop_footer
    %s15 = sadd.s32 1, %s11
  $region7: #{_lambda_.3} parent=0 // loop_footer_branch
    %10 = sbr.rel target = $region3
  $region8: #{_lambda_.3} parent=0 // loop_exit
    _

</llo_original>
